<compile_context>
chip_gen: v7x
topology: tpu7x:2x2x1
jax: 0.10.0
libtpu: 0.0.40
codegen_flags: <defaults>
</compile_context>

<pallas_src>
import jax
import jax.numpy as jnp
import numpy as np
from jax import lax
from jax.experimental import pallas as pl
from jax.experimental.pallas import tpu as pltpu

NUM_ACTIONS = 3
LANE = 128                       # small output widths padded to one lane group
VMEM_LIMIT = 32 * 1024 * 1024    # total resident footprint is only ~4.5 MB


# ---------------------------------------------------------------------------
# Fused DQN kernel: conv1 -> conv2 -> fc1 -> fc2 for one image per grid step.
#   p1_ref : (1, 400, 256) bf16  conv1 im2col patches (parity-grouped rows)
#   h1_ref : (400, 128) bf16 VMEM scratch holding the conv1 activation
#   o_ref  : (1, 1, 128) f32     Q-values (lanes 3..127 are padding)
# ---------------------------------------------------------------------------
def _dqn_fused_kernel(p1_ref, w1_ref, b1_ref, w2_ref, b2_ref,
                      wf1_ref, bf1_ref, wf2_ref, bf2_ref,
                      o_ref, h1_ref):
    # ---- conv1: [400, 256] @ [256, 128], done in 4 parity-class chunks -----
    for cls in range(4):
        r0 = cls * 100
        acc = jnp.dot(p1_ref[0, r0:r0 + 100, :], w1_ref[...],
                      preferred_element_type=jnp.float32)
        acc = jnp.maximum(acc + b1_ref[...], 0.0)
        h1_ref[r0:r0 + 100, :] = acc.astype(jnp.bfloat16)

    # ---- conv2 (k=4, s=2) + (h, w, c) flatten, one output row at a time ----
    # Row r of h1_ref holds conv1 output pixel (oy, ox) with
    #   r = (oy%2 * 2 + ox%2) * 100 + (oy//2) * 10 + (ox//2),
    # so the 9 pixels needed for kernel offset (i, j) at output row oy2 are the
    # 9 *consecutive* rows starting at `base` below.
    feat_pieces = []
    for oy2 in range(9):
        chunks = []
        for i in range(4):
            for j in range(4):
                base = (((i % 2) * 2 + (j % 2)) * 100
                        + (oy2 + i // 2) * 10 + (j // 2))
                chunks.append(h1_ref[base:base + 9, :])          # [9, 128]
        p2_row = jnp.concatenate(chunks, axis=-1)                 # [9, 2048]
        acc = jnp.dot(p2_row, w2_ref[...],
                      preferred_element_type=jnp.float32)
        h2_row = jnp.maximum(acc + b2_ref[...], 0.0)              # [9, 128]
        for ox2 in range(9):                                      # flatten (h,w,c)
            feat_pieces.append(
                h2_row[ox2:ox2 + 1, :32].astype(jnp.bfloat16))    # [1, 32]
    feat = jnp.concatenate(feat_pieces, axis=-1)                  # [1, 2592]

    # ---- fc1 + fc2 (hidden never leaves the chip) ---------------------------
    h = jnp.dot(feat, wf1_ref[...], preferred_element_type=jnp.float32)
    h = jnp.maximum(h + bf1_ref[...], 0.0).astype(jnp.bfloat16)   # [1, 256]
    q = jnp.dot(h, wf2_ref[...], preferred_element_type=jnp.float32)
    o_ref[0] = (q + bf2_ref[...]).astype(o_ref.dtype)             # [1, 128]


# ---------------------------------------------------------------------------
# Wrapper-side conv1 im2col (the only HBM intermediate of the whole net).
# Rows are parity-grouped so conv2's patches become unit-stride in the kernel;
# columns are in (kh, kw, cin) order (matching the prepared conv1 weight).
# ---------------------------------------------------------------------------
def conv1_patches_parity(x_nhwc):
    """[B, 84, 84, 4] bf16 -> [B, 400, 256]."""
    B = x_nhwc.shape[0]
    cols = []
    for i in range(8):
        for j in range(8):
            cols.append(x_nhwc[:, i:i + 77:4, j:j + 77:4, :])     # [B, 20, 20, 4]
    p = jnp.concatenate(cols, axis=-1)                            # [B, 20, 20, 256]
    # (oy, ox) -> (oy%2, ox%2, oy//2, ox//2)
    p = p.reshape(B, 10, 2, 10, 2, 256).transpose(0, 2, 4, 1, 3, 5)
    return p.reshape(B, 400, 256)


# ---------------------------------------------------------------------------
# Parameters: PyTorch-layout f32 init + one-time prep into kernel layout.
# ---------------------------------------------------------------------------
def init_params(key):
    def uniform(key, shape, fan_in):
        bound = 1.0 / np.sqrt(fan_in)
        return jax.random.uniform(key, shape, jnp.float32, -bound, bound)

    ks = jax.random.split(key, 8)
    return {
        "conv1_w": uniform(ks[0], (16, 4, 8, 8), 4 * 8 * 8),
        "conv1_b": uniform(ks[1], (16,), 4 * 8 * 8),
        "conv2_w": uniform(ks[2], (32, 16, 4, 4), 16 * 4 * 4),
        "conv2_b": uniform(ks[3], (32,), 16 * 4 * 4),
        "fc1_w":   uniform(ks[4], (256, 32 * 9 * 9), 32 * 9 * 9),  # PyTorch [out,in]
        "fc1_b":   uniform(ks[5], (256,), 32 * 9 * 9),
        "fc2_w":   uniform(ks[6], (NUM_ACTIONS, 256), 256),
        "fc2_b":   uniform(ks[7], (NUM_ACTIONS,), 256),
    }


def prepare_params(params):
    f32, bf16 = jnp.float32, jnp.bfloat16

    def pad_last(a, n):
        return jnp.pad(a, [(0, 0)] * (a.ndim - 1) + [(0, n - a.shape[-1])])

    # conv1: [16, 4, 8, 8] -> rows (kh, kw, cin) = 256, cols 16 -> 128
    w = params["conv1_w"].transpose(2, 3, 1, 0).reshape(8 * 8 * 4, 16)
    conv1_w = pad_last(w, LANE).astype(bf16)

    # conv2: [32, 16, 4, 4] -> rows (kh, kw, cin padded to 128) = 2048, cols 128
    w = params["conv2_w"].transpose(2, 3, 1, 0)                   # [4, 4, 16, 32]
    w = jnp.pad(w, ((0, 0), (0, 0), (0, LANE - 16), (0, LANE - 32)))
    conv2_w = w.reshape(16 * LANE, LANE).astype(bf16)

    # fc1: permute columns from NCHW flatten (c*81 + h*9 + w) to the kernel's
    # (h*9 + w)*32 + c order, transposed to [K, N].
    w = params["fc1_w"].reshape(256, 32, 9, 9).transpose(2, 3, 1, 0)
    fc1_w = w.reshape(32 * 9 * 9, 256).astype(bf16)

    fc2_w = pad_last(params["fc2_w"].T, LANE).astype(bf16)        # [256, 128]

    return {
        "conv1_w": conv1_w,
        "conv1_b": pad_last(params["conv1_b"], LANE).reshape(1, LANE).astype(f32),
        "conv2_w": conv2_w,
        "conv2_b": pad_last(params["conv2_b"], LANE).reshape(1, LANE).astype(f32),
        "fc1_w": fc1_w,
        "fc1_b": params["fc1_b"].reshape(1, 256).astype(f32),
        "fc2_w": fc2_w,
        "fc2_b": pad_last(params["fc2_b"], LANE).reshape(1, LANE).astype(f32),
    }


# ---------------------------------------------------------------------------
# DQN forward: one fused pallas_call, grid over the batch.
# ---------------------------------------------------------------------------
@jax.jit
def dqn_forward(prepped, x):
    B = x.shape[0]
    x = x.transpose(0, 2, 3, 1).astype(jnp.bfloat16)      # NCHW -> NHWC + bf16 once
    p1 = conv1_patches_parity(x)                          # [B, 400, 256]

    const = lambda b: (0, 0)
    out = pl.pallas_call(
        _dqn_fused_kernel,
        out_shape=jax.ShapeDtypeStruct((B, 1, LANE), jnp.float32),
        grid=(B,),
        in_specs=[
            pl.BlockSpec((1, 400, 256), lambda b: (b, 0, 0)),     # per-image patches
            pl.BlockSpec((256, LANE), const),                     # conv1 W (resident)
            pl.BlockSpec((1, LANE), const),                       # conv1 b
            pl.BlockSpec((16 * LANE, LANE), const),               # conv2 W (resident)
            pl.BlockSpec((1, LANE), const),                       # conv2 b
            pl.BlockSpec((32 * 9 * 9, 256), const),               # fc1 W (resident)
            pl.BlockSpec((1, 256), const),                        # fc1 b
            pl.BlockSpec((256, LANE), const),                     # fc2 W (resident)
            pl.BlockSpec((1, LANE), const),                       # fc2 b
        ],
        out_specs=pl.BlockSpec((1, 1, LANE), lambda b: (b, 0, 0)),
        scratch_shapes=[pltpu.VMEM((400, LANE), jnp.bfloat16)],   # conv1 activation
        compiler_params=pltpu.CompilerParams(
            dimension_semantics=("parallel",),                    # v7x: 2 TCs at B>=2
            vmem_limit_bytes=VMEM_LIMIT,
        ),
    )(p1, prepped["conv1_w"], prepped["conv1_b"],
      prepped["conv2_w"], prepped["conv2_b"],
      prepped["fc1_w"], prepped["fc1_b"],
      prepped["fc2_w"], prepped["fc2_b"])
    return out.reshape(B, LANE)[:, :NUM_ACTIONS]


# ---------------------------------------------------------------------------
# Pure-JAX reference in PyTorch layout (bf16 inputs / f32 accumulation so the
# tolerance stays tight; math/ordering is exactly the PyTorch module's).
# ---------------------------------------------------------------------------
def dqn_reference(params, x):
    bf = jnp.bfloat16

    def conv(h, w, b, s):
        y = lax.conv_general_dilated(
            h.astype(bf), w.astype(bf), window_strides=(s, s), padding="VALID",
            dimension_numbers=("NCHW", "OIHW", "NCHW"),
            preferred_element_type=jnp.float32)
        return jax.nn.relu(y + b[None, :, None, None]).astype(bf)

    B = x.shape[0]
    h = conv(x, params["conv1_w"], params["conv1_b"], 4)          # [B,16,20,20]
    h = conv(h, params["conv2_w"], params["conv2_b"], 2)          # [B,32, 9, 9]
    h = h.reshape(B, 32 * 9 * 9)                                  # NCHW flatten
    h = jax.nn.relu(
        jnp.dot(h, params["fc1_w"].T.astype(bf),
                preferred_element_type=jnp.float32) + params["fc1_b"])
    out = jnp.dot(h.astype(bf), params["fc2_w"].T.astype(bf),
                  preferred_element_type=jnp.float32) + params["fc2_b"]
    return out


if __name__ == "__main__":
    key = jax.random.PRNGKey(0)
    pkey, xkey = jax.random.split(key)
    params = init_params(pkey)
    prepped = prepare_params(params)

    # DQN architecture implies 84x84 input (fc1 expects 32*9*9 features).
    x = jax.random.normal(xkey, (2, 4, 84, 84), dtype=jnp.float32)

    out = jax.block_until_ready(dqn_forward(prepped, x))
    assert out.shape == (2, NUM_ACTIONS)

    ref = jax.block_until_ready(dqn_reference(params, x))
    np.testing.assert_allclose(np.asarray(out, dtype=np.float32),
                               np.asarray(ref, dtype=np.float32),
                               rtol=1e-2, atol=2e-3)
    print("KERNEL_OK")
</pallas_src>

<mosaic_0001>
module attributes {stable_mosaic.version = 11 : i64} {
  func.func @_dqn_fused_kernel(%arg0: i32, %arg1: memref<1x400x256xbf16, #tpu.memory_space<vmem>>, %arg2: memref<256x128xbf16, #tpu.memory_space<vmem>>, %arg3: memref<1x128xf32, #tpu.memory_space<vmem>>, %arg4: memref<2048x128xbf16, #tpu.memory_space<vmem>>, %arg5: memref<1x128xf32, #tpu.memory_space<vmem>>, %arg6: memref<2592x256xbf16, #tpu.memory_space<vmem>>, %arg7: memref<1x256xf32, #tpu.memory_space<vmem>>, %arg8: memref<256x128xbf16, #tpu.memory_space<vmem>>, %arg9: memref<1x128xf32, #tpu.memory_space<vmem>>, %arg10: memref<1x1x128xf32, #tpu.memory_space<vmem>>, %arg11: memref<400x128xbf16, #tpu.memory_space<vmem>>) attributes {dimension_semantics = [#tpu.dimension_semantics<parallel>], iteration_bounds = array<i64: 2>, scalar_prefetch = 0 : i64, scratch_operands = 1 : i64, tpu.core_type = #tpu.core_type<tc>, window_params = [{transform_indices = @transform_0, window_bounds = array<i64: 1, 400, 256>}, {pipeline_mode = #tpu.pipeline_mode<synchronous>, transform_indices = @transform_1, window_bounds = array<i64: 256, 128>}, {pipeline_mode = #tpu.pipeline_mode<synchronous>, transform_indices = @transform_2, window_bounds = array<i64: 1, 128>}, {pipeline_mode = #tpu.pipeline_mode<synchronous>, transform_indices = @transform_3, window_bounds = array<i64: 2048, 128>}, {pipeline_mode = #tpu.pipeline_mode<synchronous>, transform_indices = @transform_4, window_bounds = array<i64: 1, 128>}, {pipeline_mode = #tpu.pipeline_mode<synchronous>, transform_indices = @transform_5, window_bounds = array<i64: 2592, 256>}, {pipeline_mode = #tpu.pipeline_mode<synchronous>, transform_indices = @transform_6, window_bounds = array<i64: 1, 256>}, {pipeline_mode = #tpu.pipeline_mode<synchronous>, transform_indices = @transform_7, window_bounds = array<i64: 256, 128>}, {pipeline_mode = #tpu.pipeline_mode<synchronous>, transform_indices = @transform_8, window_bounds = array<i64: 1, 128>}, {transform_indices = @transform_9, window_bounds = array<i64: 1, 1, 128>}]} {
    %c0 = arith.constant 0 : index
    %c0_0 = arith.constant 0 : index
    %c0_1 = arith.constant 0 : index
    %0 = vector.load %arg1[%c0, %c0_0, %c0_1] : memref<1x400x256xbf16, #tpu.memory_space<vmem>>, vector<1x100x256xbf16>
    %1 = vector.shape_cast %0 : vector<1x100x256xbf16> to vector<100x256xbf16>
    %c0_2 = arith.constant 0 : index
    %c0_3 = arith.constant 0 : index
    %2 = vector.load %arg2[%c0_2, %c0_3] : memref<256x128xbf16, #tpu.memory_space<vmem>>, vector<256x128xbf16>
    %cst = arith.constant dense<0.000000e+00> : vector<100x128xf32>
    %3 = tpu.matmul %1, %2, %cst {dimension_numbers = #tpu.dot_dimension_numbers<[1], [0], [0], [1], [0, 0, 1, 1], [], []>} : vector<100x256xbf16>, vector<256x128xbf16>, vector<100x128xf32> -> vector<100x128xf32>
    %c0_4 = arith.constant 0 : index
    %c0_5 = arith.constant 0 : index
    %4 = vector.load %arg3[%c0_4, %c0_5] : memref<1x128xf32, #tpu.memory_space<vmem>>, vector<1x128xf32>
    %5 = vector.broadcast %4 : vector<1x128xf32> to vector<100x128xf32>
    %6 = arith.addf %3, %5 : vector<100x128xf32>
    %cst_6 = arith.constant 0.000000e+00 : f32
    %7 = vector.broadcast %cst_6 : f32 to vector<100x128xf32>
    %8 = arith.maximumf %6, %7 : vector<100x128xf32>
    %9 = arith.truncf %8 : vector<100x128xf32> to vector<100x128xbf16>
    %c0_7 = arith.constant 0 : index
    %c0_8 = arith.constant 0 : index
    %10 = vector.load %arg11[%c0_7, %c0_8] : memref<400x128xbf16, #tpu.memory_space<vmem>>, vector<100x128xbf16>
    tpu.vector_store %arg11[%c0_7, %c0_8], %9 {strides = array<i32>} : memref<400x128xbf16, #tpu.memory_space<vmem>>, vector<100x128xbf16>,
    %c0_9 = arith.constant 0 : index
    %c100 = arith.constant 100 : index
    %c0_10 = arith.constant 0 : index
    %11 = vector.load %arg1[%c0_9, %c100, %c0_10] : memref<1x400x256xbf16, #tpu.memory_space<vmem>>, vector<1x100x256xbf16>
    %12 = vector.shape_cast %11 : vector<1x100x256xbf16> to vector<100x256xbf16>
    %c0_11 = arith.constant 0 : index
    %c0_12 = arith.constant 0 : index
    %13 = vector.load %arg2[%c0_11, %c0_12] : memref<256x128xbf16, #tpu.memory_space<vmem>>, vector<256x128xbf16>
    %cst_13 = arith.constant dense<0.000000e+00> : vector<100x128xf32>
    %14 = tpu.matmul %12, %13, %cst_13 {dimension_numbers = #tpu.dot_dimension_numbers<[1], [0], [0], [1], [0, 0, 1, 1], [], []>} : vector<100x256xbf16>, vector<256x128xbf16>, vector<100x128xf32> -> vector<100x128xf32>
    %c0_14 = arith.constant 0 : index
    %c0_15 = arith.constant 0 : index
    %15 = vector.load %arg3[%c0_14, %c0_15] : memref<1x128xf32, #tpu.memory_space<vmem>>, vector<1x128xf32>
    %16 = vector.broadcast %15 : vector<1x128xf32> to vector<100x128xf32>
    %17 = arith.addf %14, %16 : vector<100x128xf32>
    %cst_16 = arith.constant 0.000000e+00 : f32
    %18 = vector.broadcast %cst_16 : f32 to vector<100x128xf32>
    %19 = arith.maximumf %17, %18 : vector<100x128xf32>
    %20 = arith.truncf %19 : vector<100x128xf32> to vector<100x128xbf16>
    %c100_17 = arith.constant 100 : index
    %c0_18 = arith.constant 0 : index
    %21 = vector.load %arg11[%c100_17, %c0_18] : memref<400x128xbf16, #tpu.memory_space<vmem>>, vector<100x128xbf16>
    tpu.vector_store %arg11[%c100_17, %c0_18], %20 {strides = array<i32>} : memref<400x128xbf16, #tpu.memory_space<vmem>>, vector<100x128xbf16>,
    %c0_19 = arith.constant 0 : index
    %c200 = arith.constant 200 : index
    %c0_20 = arith.constant 0 : index
    %22 = vector.load %arg1[%c0_19, %c200, %c0_20] : memref<1x400x256xbf16, #tpu.memory_space<vmem>>, vector<1x100x256xbf16>
    %23 = vector.shape_cast %22 : vector<1x100x256xbf16> to vector<100x256xbf16>
    %c0_21 = arith.constant 0 : index
    %c0_22 = arith.constant 0 : index
    %24 = vector.load %arg2[%c0_21, %c0_22] : memref<256x128xbf16, #tpu.memory_space<vmem>>, vector<256x128xbf16>
    %cst_23 = arith.constant dense<0.000000e+00> : vector<100x128xf32>
    %25 = tpu.matmul %23, %24, %cst_23 {dimension_numbers = #tpu.dot_dimension_numbers<[1], [0], [0], [1], [0, 0, 1, 1], [], []>} : vector<100x256xbf16>, vector<256x128xbf16>, vector<100x128xf32> -> vector<100x128xf32>
    %c0_24 = arith.constant 0 : index
    %c0_25 = arith.constant 0 : index
    %26 = vector.load %arg3[%c0_24, %c0_25] : memref<1x128xf32, #tpu.memory_space<vmem>>, vector<1x128xf32>
    %27 = vector.broadcast %26 : vector<1x128xf32> to vector<100x128xf32>
    %28 = arith.addf %25, %27 : vector<100x128xf32>
    %cst_26 = arith.constant 0.000000e+00 : f32
    %29 = vector.broadcast %cst_26 : f32 to vector<100x128xf32>
    %30 = arith.maximumf %28, %29 : vector<100x128xf32>
    %31 = arith.truncf %30 : vector<100x128xf32> to vector<100x128xbf16>
    %c200_27 = arith.constant 200 : index
    %c0_28 = arith.constant 0 : index
    %32 = vector.load %arg11[%c200_27, %c0_28] : memref<400x128xbf16, #tpu.memory_space<vmem>>, vector<100x128xbf16>
    tpu.vector_store %arg11[%c200_27, %c0_28], %31 {strides = array<i32>} : memref<400x128xbf16, #tpu.memory_space<vmem>>, vector<100x128xbf16>,
    %c0_29 = arith.constant 0 : index
    %c300 = arith.constant 300 : index
    %c0_30 = arith.constant 0 : index
    %33 = vector.load %arg1[%c0_29, %c300, %c0_30] : memref<1x400x256xbf16, #tpu.memory_space<vmem>>, vector<1x100x256xbf16>
    %34 = vector.shape_cast %33 : vector<1x100x256xbf16> to vector<100x256xbf16>
    %c0_31 = arith.constant 0 : index
    %c0_32 = arith.constant 0 : index
    %35 = vector.load %arg2[%c0_31, %c0_32] : memref<256x128xbf16, #tpu.memory_space<vmem>>, vector<256x128xbf16>
    %cst_33 = arith.constant dense<0.000000e+00> : vector<100x128xf32>
    %36 = tpu.matmul %34, %35, %cst_33 {dimension_numbers = #tpu.dot_dimension_numbers<[1], [0], [0], [1], [0, 0, 1, 1], [], []>} : vector<100x256xbf16>, vector<256x128xbf16>, vector<100x128xf32> -> vector<100x128xf32>
    %c0_34 = arith.constant 0 : index
    %c0_35 = arith.constant 0 : index
    %37 = vector.load %arg3[%c0_34, %c0_35] : memref<1x128xf32, #tpu.memory_space<vmem>>, vector<1x128xf32>
    %38 = vector.broadcast %37 : vector<1x128xf32> to vector<100x128xf32>
    %39 = arith.addf %36, %38 : vector<100x128xf32>
    %cst_36 = arith.constant 0.000000e+00 : f32
    %40 = vector.broadcast %cst_36 : f32 to vector<100x128xf32>
    %41 = arith.maximumf %39, %40 : vector<100x128xf32>
    %42 = arith.truncf %41 : vector<100x128xf32> to vector<100x128xbf16>
    %c300_37 = arith.constant 300 : index
    %c0_38 = arith.constant 0 : index
    %43 = vector.load %arg11[%c300_37, %c0_38] : memref<400x128xbf16, #tpu.memory_space<vmem>>, vector<100x128xbf16>
    tpu.vector_store %arg11[%c300_37, %c0_38], %42 {strides = array<i32>} : memref<400x128xbf16, #tpu.memory_space<vmem>>, vector<100x128xbf16>,
    %c0_39 = arith.constant 0 : index
    %c0_40 = arith.constant 0 : index
    %44 = vector.load %arg11[%c0_39, %c0_40] : memref<400x128xbf16, #tpu.memory_space<vmem>>, vector<9x128xbf16>
    %c100_41 = arith.constant 100 : index
    %c0_42 = arith.constant 0 : index
    %45 = vector.load %arg11[%c100_41, %c0_42] : memref<400x128xbf16, #tpu.memory_space<vmem>>, vector<9x128xbf16>
    %c1 = arith.constant 1 : index
    %c0_43 = arith.constant 0 : index
    %46 = vector.load %arg11[%c1, %c0_43] : memref<400x128xbf16, #tpu.memory_space<vmem>>, vector<9x128xbf16>
    %c101 = arith.constant 101 : index
    %c0_44 = arith.constant 0 : index
    %47 = vector.load %arg11[%c101, %c0_44] : memref<400x128xbf16, #tpu.memory_space<vmem>>, vector<9x128xbf16>
    %c200_45 = arith.constant 200 : index
    %c0_46 = arith.constant 0 : index
    %48 = vector.load %arg11[%c200_45, %c0_46] : memref<400x128xbf16, #tpu.memory_space<vmem>>, vector<9x128xbf16>
    %c300_47 = arith.constant 300 : index
    %c0_48 = arith.constant 0 : index
    %49 = vector.load %arg11[%c300_47, %c0_48] : memref<400x128xbf16, #tpu.memory_space<vmem>>, vector<9x128xbf16>
    %c201 = arith.constant 201 : index
    %c0_49 = arith.constant 0 : index
    %50 = vector.load %arg11[%c201, %c0_49] : memref<400x128xbf16, #tpu.memory_space<vmem>>, vector<9x128xbf16>
    %c301 = arith.constant 301 : index
    %c0_50 = arith.constant 0 : index
    %51 = vector.load %arg11[%c301, %c0_50] : memref<400x128xbf16, #tpu.memory_space<vmem>>, vector<9x128xbf16>
    %c10 = arith.constant 10 : index
    %c0_51 = arith.constant 0 : index
    %52 = vector.load %arg11[%c10, %c0_51] : memref<400x128xbf16, #tpu.memory_space<vmem>>, vector<9x128xbf16>
    %c110 = arith.constant 110 : index
    %c0_52 = arith.constant 0 : index
    %53 = vector.load %arg11[%c110, %c0_52] : memref<400x128xbf16, #tpu.memory_space<vmem>>, vector<9x128xbf16>
    %c11 = arith.constant 11 : index
    %c0_53 = arith.constant 0 : index
    %54 = vector.load %arg11[%c11, %c0_53] : memref<400x128xbf16, #tpu.memory_space<vmem>>, vector<9x128xbf16>
    %c111 = arith.constant 111 : index
    %c0_54 = arith.constant 0 : index
    %55 = vector.load %arg11[%c111, %c0_54] : memref<400x128xbf16, #tpu.memory_space<vmem>>, vector<9x128xbf16>
    %c210 = arith.constant 210 : index
    %c0_55 = arith.constant 0 : index
    %56 = vector.load %arg11[%c210, %c0_55] : memref<400x128xbf16, #tpu.memory_space<vmem>>, vector<9x128xbf16>
    %c310 = arith.constant 310 : index
    %c0_56 = arith.constant 0 : index
    %57 = vector.load %arg11[%c310, %c0_56] : memref<400x128xbf16, #tpu.memory_space<vmem>>, vector<9x128xbf16>
    %c211 = arith.constant 211 : index
    %c0_57 = arith.constant 0 : index
    %58 = vector.load %arg11[%c211, %c0_57] : memref<400x128xbf16, #tpu.memory_space<vmem>>, vector<9x128xbf16>
    %c311 = arith.constant 311 : index
    %c0_58 = arith.constant 0 : index
    %59 = vector.load %arg11[%c311, %c0_58] : memref<400x128xbf16, #tpu.memory_space<vmem>>, vector<9x128xbf16>
    %60 = tpu.concatenate %44, %45, %46, %47, %48, %49, %50, %51, %52, %53, %54, %55, %56, %57, %58, %59 in 1 : vector<9x128xbf16>, vector<9x128xbf16>, vector<9x128xbf16>, vector<9x128xbf16>, vector<9x128xbf16>, vector<9x128xbf16>, vector<9x128xbf16>, vector<9x128xbf16>, vector<9x128xbf16>, vector<9x128xbf16>, vector<9x128xbf16>, vector<9x128xbf16>, vector<9x128xbf16>, vector<9x128xbf16>, vector<9x128xbf16>, vector<9x128xbf16> -> vector<9x2048xbf16>
    %c0_59 = arith.constant 0 : index
    %c0_60 = arith.constant 0 : index
    %61 = vector.load %arg4[%c0_59, %c0_60] : memref<2048x128xbf16, #tpu.memory_space<vmem>>, vector<2048x128xbf16>
    %cst_61 = arith.constant dense<0.000000e+00> : vector<9x128xf32>
    %62 = tpu.matmul %60, %61, %cst_61 {dimension_numbers = #tpu.dot_dimension_numbers<[1], [0], [0], [1], [0, 0, 1, 1], [], []>} : vector<9x2048xbf16>, vector<2048x128xbf16>, vector<9x128xf32> -> vector<9x128xf32>
    %c0_62 = arith.constant 0 : index
    %c0_63 = arith.constant 0 : index
    %63 = vector.load %arg5[%c0_62, %c0_63] : memref<1x128xf32, #tpu.memory_space<vmem>>, vector<1x128xf32>
    %64 = vector.broadcast %63 : vector<1x128xf32> to vector<9x128xf32>
    %65 = arith.addf %62, %64 : vector<9x128xf32>
    %cst_64 = arith.constant 0.000000e+00 : f32
    %66 = vector.broadcast %cst_64 : f32 to vector<9x128xf32>
    %67 = arith.maximumf %65, %66 : vector<9x128xf32>
    %68 = vector.extract_strided_slice %67 {offsets = [0, 0], sizes = [1, 32], strides = [1, 1]} : vector<9x128xf32> to vector<1x32xf32>
    %69 = arith.truncf %68 : vector<1x32xf32> to vector<1x32xbf16>
    %70 = vector.extract_strided_slice %67 {offsets = [1, 0], sizes = [1, 32], strides = [1, 1]} : vector<9x128xf32> to vector<1x32xf32>
    %71 = arith.truncf %70 : vector<1x32xf32> to vector<1x32xbf16>
    %72 = vector.extract_strided_slice %67 {offsets = [2, 0], sizes = [1, 32], strides = [1, 1]} : vector<9x128xf32> to vector<1x32xf32>
    %73 = arith.truncf %72 : vector<1x32xf32> to vector<1x32xbf16>
    %74 = vector.extract_strided_slice %67 {offsets = [3, 0], sizes = [1, 32], strides = [1, 1]} : vector<9x128xf32> to vector<1x32xf32>
    %75 = arith.truncf %74 : vector<1x32xf32> to vector<1x32xbf16>
    %76 = vector.extract_strided_slice %67 {offsets = [4, 0], sizes = [1, 32], strides = [1, 1]} : vector<9x128xf32> to vector<1x32xf32>
    %77 = arith.truncf %76 : vector<1x32xf32> to vector<1x32xbf16>
    %78 = vector.extract_strided_slice %67 {offsets = [5, 0], sizes = [1, 32], strides = [1, 1]} : vector<9x128xf32> to vector<1x32xf32>
    %79 = arith.truncf %78 : vector<1x32xf32> to vector<1x32xbf16>
    %80 = vector.extract_strided_slice %67 {offsets = [6, 0], sizes = [1, 32], strides = [1, 1]} : vector<9x128xf32> to vector<1x32xf32>
    %81 = arith.truncf %80 : vector<1x32xf32> to vector<1x32xbf16>
    %82 = vector.extract_strided_slice %67 {offsets = [7, 0], sizes = [1, 32], strides = [1, 1]} : vector<9x128xf32> to vector<1x32xf32>
    %83 = arith.truncf %82 : vector<1x32xf32> to vector<1x32xbf16>
    %84 = vector.extract_strided_slice %67 {offsets = [8, 0], sizes = [1, 32], strides = [1, 1]} : vector<9x128xf32> to vector<1x32xf32>
    %85 = arith.truncf %84 : vector<1x32xf32> to vector<1x32xbf16>
    %c10_65 = arith.constant 10 : index
    %c0_66 = arith.constant 0 : index
    %86 = vector.load %arg11[%c10_65, %c0_66] : memref<400x128xbf16, #tpu.memory_space<vmem>>, vector<9x128xbf16>
    %c110_67 = arith.constant 110 : index
    %c0_68 = arith.constant 0 : index
    %87 = vector.load %arg11[%c110_67, %c0_68] : memref<400x128xbf16, #tpu.memory_space<vmem>>, vector<9x128xbf16>
    %c11_69 = arith.constant 11 : index
    %c0_70 = arith.constant 0 : index
    %88 = vector.load %arg11[%c11_69, %c0_70] : memref<400x128xbf16, #tpu.memory_space<vmem>>, vector<9x128xbf16>
    %c111_71 = arith.constant 111 : index
    %c0_72 = arith.constant 0 : index
    %89 = vector.load %arg11[%c111_71, %c0_72] : memref<400x128xbf16, #tpu.memory_space<vmem>>, vector<9x128xbf16>
    %c210_73 = arith.constant 210 : index
    %c0_74 = arith.constant 0 : index
    %90 = vector.load %arg11[%c210_73, %c0_74] : memref<400x128xbf16, #tpu.memory_space<vmem>>, vector<9x128xbf16>
    %c310_75 = arith.constant 310 : index
    %c0_76 = arith.constant 0 : index
    %91 = vector.load %arg11[%c310_75, %c0_76] : memref<400x128xbf16, #tpu.memory_space<vmem>>, vector<9x128xbf16>
    %c211_77 = arith.constant 211 : index
    %c0_78 = arith.constant 0 : index
    %92 = vector.load %arg11[%c211_77, %c0_78] : memref<400x128xbf16, #tpu.memory_space<vmem>>, vector<9x128xbf16>
    %c311_79 = arith.constant 311 : index
    %c0_80 = arith.constant 0 : index
    %93 = vector.load %arg11[%c311_79, %c0_80] : memref<400x128xbf16, #tpu.memory_space<vmem>>, vector<9x128xbf16>
    %c20 = arith.constant 20 : index
    %c0_81 = arith.constant 0 : index
    %94 = vector.load %arg11[%c20, %c0_81] : memref<400x128xbf16, #tpu.memory_space<vmem>>, vector<9x128xbf16>
    %c120 = arith.constant 120 : index
    %c0_82 = arith.constant 0 : index
    %95 = vector.load %arg11[%c120, %c0_82] : memref<400x128xbf16, #tpu.memory_space<vmem>>, vector<9x128xbf16>
    %c21 = arith.constant 21 : index
    %c0_83 = arith.constant 0 : index
    %96 = vector.load %arg11[%c21, %c0_83] : memref<400x128xbf16, #tpu.memory_space<vmem>>, vector<9x128xbf16>
    %c121 = arith.constant 121 : index
    %c0_84 = arith.constant 0 : index
    %97 = vector.load %arg11[%c121, %c0_84] : memref<400x128xbf16, #tpu.memory_space<vmem>>, vector<9x128xbf16>
    %c220 = arith.constant 220 : index
    %c0_85 = arith.constant 0 : index
    %98 = vector.load %arg11[%c220, %c0_85] : memref<400x128xbf16, #tpu.memory_space<vmem>>, vector<9x128xbf16>
    %c320 = arith.constant 320 : index
    %c0_86 = arith.constant 0 : index
    %99 = vector.load %arg11[%c320, %c0_86] : memref<400x128xbf16, #tpu.memory_space<vmem>>, vector<9x128xbf16>
    %c221 = arith.constant 221 : index
    %c0_87 = arith.constant 0 : index
    %100 = vector.load %arg11[%c221, %c0_87] : memref<400x128xbf16, #tpu.memory_space<vmem>>, vector<9x128xbf16>
    %c321 = arith.constant 321 : index
    %c0_88 = arith.constant 0 : index
    %101 = vector.load %arg11[%c321, %c0_88] : memref<400x128xbf16, #tpu.memory_space<vmem>>, vector<9x128xbf16>
    %102 = tpu.concatenate %86, %87, %88, %89, %90, %91, %92, %93, %94, %95, %96, %97, %98, %99, %100, %101 in 1 : vector<9x128xbf16>, vector<9x128xbf16>, vector<9x128xbf16>, vector<9x128xbf16>, vector<9x128xbf16>, vector<9x128xbf16>, vector<9x128xbf16>, vector<9x128xbf16>, vector<9x128xbf16>, vector<9x128xbf16>, vector<9x128xbf16>, vector<9x128xbf16>, vector<9x128xbf16>, vector<9x128xbf16>, vector<9x128xbf16>, vector<9x128xbf16> -> vector<9x2048xbf16>
    %c0_89 = arith.constant 0 : index
    %c0_90 = arith.constant 0 : index
    %103 = vector.load %arg4[%c0_89, %c0_90] : memref<2048x128xbf16, #tpu.memory_space<vmem>>, vector<2048x128xbf16>
    %cst_91 = arith.constant dense<0.000000e+00> : vector<9x128xf32>
    %104 = tpu.matmul %102, %103, %cst_91 {dimension_numbers = #tpu.dot_dimension_numbers<[1], [0], [0], [1], [0, 0, 1, 1], [], []>} : vector<9x2048xbf16>, vector<2048x128xbf16>, vector<9x128xf32> -> vector<9x128xf32>
    %c0_92 = arith.constant 0 : index
    %c0_93 = arith.constant 0 : index
    %105 = vector.load %arg5[%c0_92, %c0_93] : memref<1x128xf32, #tpu.memory_space<vmem>>, vector<1x128xf32>
    %106 = vector.broadcast %105 : vector<1x128xf32> to vector<9x128xf32>
    %107 = arith.addf %104, %106 : vector<9x128xf32>
    %cst_94 = arith.constant 0.000000e+00 : f32
    %108 = vector.broadcast %cst_94 : f32 to vector<9x128xf32>
    %109 = arith.maximumf %107, %108 : vector<9x128xf32>
    %110 = vector.extract_strided_slice %109 {offsets = [0, 0], sizes = [1, 32], strides = [1, 1]} : vector<9x128xf32> to vector<1x32xf32>
    %111 = arith.truncf %110 : vector<1x32xf32> to vector<1x32xbf16>
    %112 = vector.extract_strided_slice %109 {offsets = [1, 0], sizes = [1, 32], strides = [1, 1]} : vector<9x128xf32> to vector<1x32xf32>
    %113 = arith.truncf %112 : vector<1x32xf32> to vector<1x32xbf16>
    %114 = vector.extract_strided_slice %109 {offsets = [2, 0], sizes = [1, 32], strides = [1, 1]} : vector<9x128xf32> to vector<1x32xf32>
    %115 = arith.truncf %114 : vector<1x32xf32> to vector<1x32xbf16>
    %116 = vector.extract_strided_slice %109 {offsets = [3, 0], sizes = [1, 32], strides = [1, 1]} : vector<9x128xf32> to vector<1x32xf32>
    %117 = arith.truncf %116 : vector<1x32xf32> to vector<1x32xbf16>
    %118 = vector.extract_strided_slice %109 {offsets = [4, 0], sizes = [1, 32], strides = [1, 1]} : vector<9x128xf32> to vector<1x32xf32>
    %119 = arith.truncf %118 : vector<1x32xf32> to vector<1x32xbf16>
    %120 = vector.extract_strided_slice %109 {offsets = [5, 0], sizes = [1, 32], strides = [1, 1]} : vector<9x128xf32> to vector<1x32xf32>
    %121 = arith.truncf %120 : vector<1x32xf32> to vector<1x32xbf16>
    %122 = vector.extract_strided_slice %109 {offsets = [6, 0], sizes = [1, 32], strides = [1, 1]} : vector<9x128xf32> to vector<1x32xf32>
    %123 = arith.truncf %122 : vector<1x32xf32> to vector<1x32xbf16>
    %124 = vector.extract_strided_slice %109 {offsets = [7, 0], sizes = [1, 32], strides = [1, 1]} : vector<9x128xf32> to vector<1x32xf32>
    %125 = arith.truncf %124 : vector<1x32xf32> to vector<1x32xbf16>
    %126 = vector.extract_strided_slice %109 {offsets = [8, 0], sizes = [1, 32], strides = [1, 1]} : vector<9x128xf32> to vector<1x32xf32>
    %127 = arith.truncf %126 : vector<1x32xf32> to vector<1x32xbf16>
    %c20_95 = arith.constant 20 : index
    %c0_96 = arith.constant 0 : index
    %128 = vector.load %arg11[%c20_95, %c0_96] : memref<400x128xbf16, #tpu.memory_space<vmem>>, vector<9x128xbf16>
    %c120_97 = arith.constant 120 : index
    %c0_98 = arith.constant 0 : index
    %129 = vector.load %arg11[%c120_97, %c0_98] : memref<400x128xbf16, #tpu.memory_space<vmem>>, vector<9x128xbf16>
    %c21_99 = arith.constant 21 : index
    %c0_100 = arith.constant 0 : index
    %130 = vector.load %arg11[%c21_99, %c0_100] : memref<400x128xbf16, #tpu.memory_space<vmem>>, vector<9x128xbf16>
    %c121_101 = arith.constant 121 : index
    %c0_102 = arith.constant 0 : index
    %131 = vector.load %arg11[%c121_101, %c0_102] : memref<400x128xbf16, #tpu.memory_space<vmem>>, vector<9x128xbf16>
    %c220_103 = arith.constant 220 : index
    %c0_104 = arith.constant 0 : index
    %132 = vector.load %arg11[%c220_103, %c0_104] : memref<400x128xbf16, #tpu.memory_space<vmem>>, vector<9x128xbf16>
    %c320_105 = arith.constant 320 : index
    %c0_106 = arith.constant 0 : index
    %133 = vector.load %arg11[%c320_105, %c0_106] : memref<400x128xbf16, #tpu.memory_space<vmem>>, vector<9x128xbf16>
    %c221_107 = arith.constant 221 : index
    %c0_108 = arith.constant 0 : index
    %134 = vector.load %arg11[%c221_107, %c0_108] : memref<400x128xbf16, #tpu.memory_space<vmem>>, vector<9x128xbf16>
    %c321_109 = arith.constant 321 : index
    %c0_110 = arith.constant 0 : index
    %135 = vector.load %arg11[%c321_109, %c0_110] : memref<400x128xbf16, #tpu.memory_space<vmem>>, vector<9x128xbf16>
    %c30 = arith.constant 30 : index
    %c0_111 = arith.constant 0 : index
    %136 = vector.load %arg11[%c30, %c0_111] : memref<400x128xbf16, #tpu.memory_space<vmem>>, vector<9x128xbf16>
    %c130 = arith.constant 130 : index
    %c0_112 = arith.constant 0 : index
    %137 = vector.load %arg11[%c130, %c0_112] : memref<400x128xbf16, #tpu.memory_space<vmem>>, vector<9x128xbf16>
    %c31 = arith.constant 31 : index
    %c0_113 = arith.constant 0 : index
    %138 = vector.load %arg11[%c31, %c0_113] : memref<400x128xbf16, #tpu.memory_space<vmem>>, vector<9x128xbf16>
    %c131 = arith.constant 131 : index
    %c0_114 = arith.constant 0 : index
    %139 = vector.load %arg11[%c131, %c0_114] : memref<400x128xbf16, #tpu.memory_space<vmem>>, vector<9x128xbf16>
    %c230 = arith.constant 230 : index
    %c0_115 = arith.constant 0 : index
    %140 = vector.load %arg11[%c230, %c0_115] : memref<400x128xbf16, #tpu.memory_space<vmem>>, vector<9x128xbf16>
    %c330 = arith.constant 330 : index
    %c0_116 = arith.constant 0 : index
    %141 = vector.load %arg11[%c330, %c0_116] : memref<400x128xbf16, #tpu.memory_space<vmem>>, vector<9x128xbf16>
    %c231 = arith.constant 231 : index
    %c0_117 = arith.constant 0 : index
    %142 = vector.load %arg11[%c231, %c0_117] : memref<400x128xbf16, #tpu.memory_space<vmem>>, vector<9x128xbf16>
    %c331 = arith.constant 331 : index
    %c0_118 = arith.constant 0 : index
    %143 = vector.load %arg11[%c331, %c0_118] : memref<400x128xbf16, #tpu.memory_space<vmem>>, vector<9x128xbf16>
    %144 = tpu.concatenate %128, %129, %130, %131, %132, %133, %134, %135, %136, %137, %138, %139, %140, %141, %142, %143 in 1 : vector<9x128xbf16>, vector<9x128xbf16>, vector<9x128xbf16>, vector<9x128xbf16>, vector<9x128xbf16>, vector<9x128xbf16>, vector<9x128xbf16>, vector<9x128xbf16>, vector<9x128xbf16>, vector<9x128xbf16>, vector<9x128xbf16>, vector<9x128xbf16>, vector<9x128xbf16>, vector<9x128xbf16>, vector<9x128xbf16>, vector<9x128xbf16> -> vector<9x2048xbf16>
    %c0_119 = arith.constant 0 : index
    %c0_120 = arith.constant 0 : index
    %145 = vector.load %arg4[%c0_119, %c0_120] : memref<2048x128xbf16, #tpu.memory_space<vmem>>, vector<2048x128xbf16>
    %cst_121 = arith.constant dense<0.000000e+00> : vector<9x128xf32>
    %146 = tpu.matmul %144, %145, %cst_121 {dimension_numbers = #tpu.dot_dimension_numbers<[1], [0], [0], [1], [0, 0, 1, 1], [], []>} : vector<9x2048xbf16>, vector<2048x128xbf16>, vector<9x128xf32> -> vector<9x128xf32>
    %c0_122 = arith.constant 0 : index
    %c0_123 = arith.constant 0 : index
    %147 = vector.load %arg5[%c0_122, %c0_123] : memref<1x128xf32, #tpu.memory_space<vmem>>, vector<1x128xf32>
    %148 = vector.broadcast %147 : vector<1x128xf32> to vector<9x128xf32>
    %149 = arith.addf %146, %148 : vector<9x128xf32>
    %cst_124 = arith.constant 0.000000e+00 : f32
    %150 = vector.broadcast %cst_124 : f32 to vector<9x128xf32>
    %151 = arith.maximumf %149, %150 : vector<9x128xf32>
    %152 = vector.extract_strided_slice %151 {offsets = [0, 0], sizes = [1, 32], strides = [1, 1]} : vector<9x128xf32> to vector<1x32xf32>
    %153 = arith.truncf %152 : vector<1x32xf32> to vector<1x32xbf16>
    %154 = vector.extract_strided_slice %151 {offsets = [1, 0], sizes = [1, 32], strides = [1, 1]} : vector<9x128xf32> to vector<1x32xf32>
    %155 = arith.truncf %154 : vector<1x32xf32> to vector<1x32xbf16>
    %156 = vector.extract_strided_slice %151 {offsets = [2, 0], sizes = [1, 32], strides = [1, 1]} : vector<9x128xf32> to vector<1x32xf32>
    %157 = arith.truncf %156 : vector<1x32xf32> to vector<1x32xbf16>
    %158 = vector.extract_strided_slice %151 {offsets = [3, 0], sizes = [1, 32], strides = [1, 1]} : vector<9x128xf32> to vector<1x32xf32>
    %159 = arith.truncf %158 : vector<1x32xf32> to vector<1x32xbf16>
    %160 = vector.extract_strided_slice %151 {offsets = [4, 0], sizes = [1, 32], strides = [1, 1]} : vector<9x128xf32> to vector<1x32xf32>
    %161 = arith.truncf %160 : vector<1x32xf32> to vector<1x32xbf16>
    %162 = vector.extract_strided_slice %151 {offsets = [5, 0], sizes = [1, 32], strides = [1, 1]} : vector<9x128xf32> to vector<1x32xf32>
    %163 = arith.truncf %162 : vector<1x32xf32> to vector<1x32xbf16>
    %164 = vector.extract_strided_slice %151 {offsets = [6, 0], sizes = [1, 32], strides = [1, 1]} : vector<9x128xf32> to vector<1x32xf32>
    %165 = arith.truncf %164 : vector<1x32xf32> to vector<1x32xbf16>
    %166 = vector.extract_strided_slice %151 {offsets = [7, 0], sizes = [1, 32], strides = [1, 1]} : vector<9x128xf32> to vector<1x32xf32>
    %167 = arith.truncf %166 : vector<1x32xf32> to vector<1x32xbf16>
    %168 = vector.extract_strided_slice %151 {offsets = [8, 0], sizes = [1, 32], strides = [1, 1]} : vector<9x128xf32> to vector<1x32xf32>
    %169 = arith.truncf %168 : vector<1x32xf32> to vector<1x32xbf16>
    %c30_125 = arith.constant 30 : index
    %c0_126 = arith.constant 0 : index
    %170 = vector.load %arg11[%c30_125, %c0_126] : memref<400x128xbf16, #tpu.memory_space<vmem>>, vector<9x128xbf16>
    %c130_127 = arith.constant 130 : index
    %c0_128 = arith.constant 0 : index
    %171 = vector.load %arg11[%c130_127, %c0_128] : memref<400x128xbf16, #tpu.memory_space<vmem>>, vector<9x128xbf16>
    %c31_129 = arith.constant 31 : index
    %c0_130 = arith.constant 0 : index
    %172 = vector.load %arg11[%c31_129, %c0_130] : memref<400x128xbf16, #tpu.memory_space<vmem>>, vector<9x128xbf16>
    %c131_131 = arith.constant 131 : index
    %c0_132 = arith.constant 0 : index
    %173 = vector.load %arg11[%c131_131, %c0_132] : memref<400x128xbf16, #tpu.memory_space<vmem>>, vector<9x128xbf16>
    %c230_133 = arith.constant 230 : index
    %c0_134 = arith.constant 0 : index
    %174 = vector.load %arg11[%c230_133, %c0_134] : memref<400x128xbf16, #tpu.memory_space<vmem>>, vector<9x128xbf16>
    %c330_135 = arith.constant 330 : index
    %c0_136 = arith.constant 0 : index
    %175 = vector.load %arg11[%c330_135, %c0_136] : memref<400x128xbf16, #tpu.memory_space<vmem>>, vector<9x128xbf16>
    %c231_137 = arith.constant 231 : index
    %c0_138 = arith.constant 0 : index
    %176 = vector.load %arg11[%c231_137, %c0_138] : memref<400x128xbf16, #tpu.memory_space<vmem>>, vector<9x128xbf16>
    %c331_139 = arith.constant 331 : index
    %c0_140 = arith.constant 0 : index
    %177 = vector.load %arg11[%c331_139, %c0_140] : memref<400x128xbf16, #tpu.memory_space<vmem>>, vector<9x128xbf16>
    %c40 = arith.constant 40 : index
    %c0_141 = arith.constant 0 : index
    %178 = vector.load %arg11[%c40, %c0_141] : memref<400x128xbf16, #tpu.memory_space<vmem>>, vector<9x128xbf16>
    %c140 = arith.constant 140 : index
    %c0_142 = arith.constant 0 : index
    %179 = vector.load %arg11[%c140, %c0_142] : memref<400x128xbf16, #tpu.memory_space<vmem>>, vector<9x128xbf16>
    %c41 = arith.constant 41 : index
    %c0_143 = arith.constant 0 : index
    %180 = vector.load %arg11[%c41, %c0_143] : memref<400x128xbf16, #tpu.memory_space<vmem>>, vector<9x128xbf16>
    %c141 = arith.constant 141 : index
    %c0_144 = arith.constant 0 : index
    %181 = vector.load %arg11[%c141, %c0_144] : memref<400x128xbf16, #tpu.memory_space<vmem>>, vector<9x128xbf16>
    %c240 = arith.constant 240 : index
    %c0_145 = arith.constant 0 : index
    %182 = vector.load %arg11[%c240, %c0_145] : memref<400x128xbf16, #tpu.memory_space<vmem>>, vector<9x128xbf16>
    %c340 = arith.constant 340 : index
    %c0_146 = arith.constant 0 : index
    %183 = vector.load %arg11[%c340, %c0_146] : memref<400x128xbf16, #tpu.memory_space<vmem>>, vector<9x128xbf16>
    %c241 = arith.constant 241 : index
    %c0_147 = arith.constant 0 : index
    %184 = vector.load %arg11[%c241, %c0_147] : memref<400x128xbf16, #tpu.memory_space<vmem>>, vector<9x128xbf16>
    %c341 = arith.constant 341 : index
    %c0_148 = arith.constant 0 : index
    %185 = vector.load %arg11[%c341, %c0_148] : memref<400x128xbf16, #tpu.memory_space<vmem>>, vector<9x128xbf16>
    %186 = tpu.concatenate %170, %171, %172, %173, %174, %175, %176, %177, %178, %179, %180, %181, %182, %183, %184, %185 in 1 : vector<9x128xbf16>, vector<9x128xbf16>, vector<9x128xbf16>, vector<9x128xbf16>, vector<9x128xbf16>, vector<9x128xbf16>, vector<9x128xbf16>, vector<9x128xbf16>, vector<9x128xbf16>, vector<9x128xbf16>, vector<9x128xbf16>, vector<9x128xbf16>, vector<9x128xbf16>, vector<9x128xbf16>, vector<9x128xbf16>, vector<9x128xbf16> -> vector<9x2048xbf16>
    %c0_149 = arith.constant 0 : index
    %c0_150 = arith.constant 0 : index
    %187 = vector.load %arg4[%c0_149, %c0_150] : memref<2048x128xbf16, #tpu.memory_space<vmem>>, vector<2048x128xbf16>
    %cst_151 = arith.constant dense<0.000000e+00> : vector<9x128xf32>
    %188 = tpu.matmul %186, %187, %cst_151 {dimension_numbers = #tpu.dot_dimension_numbers<[1], [0], [0], [1], [0, 0, 1, 1], [], []>} : vector<9x2048xbf16>, vector<2048x128xbf16>, vector<9x128xf32> -> vector<9x128xf32>
    %c0_152 = arith.constant 0 : index
    %c0_153 = arith.constant 0 : index
    %189 = vector.load %arg5[%c0_152, %c0_153] : memref<1x128xf32, #tpu.memory_space<vmem>>, vector<1x128xf32>
    %190 = vector.broadcast %189 : vector<1x128xf32> to vector<9x128xf32>
    %191 = arith.addf %188, %190 : vector<9x128xf32>
    %cst_154 = arith.constant 0.000000e+00 : f32
    %192 = vector.broadcast %cst_154 : f32 to vector<9x128xf32>
    %193 = arith.maximumf %191, %192 : vector<9x128xf32>
    %194 = vector.extract_strided_slice %193 {offsets = [0, 0], sizes = [1, 32], strides = [1, 1]} : vector<9x128xf32> to vector<1x32xf32>
    %195 = arith.truncf %194 : vector<1x32xf32> to vector<1x32xbf16>
    %196 = vector.extract_strided_slice %193 {offsets = [1, 0], sizes = [1, 32], strides = [1, 1]} : vector<9x128xf32> to vector<1x32xf32>
    %197 = arith.truncf %196 : vector<1x32xf32> to vector<1x32xbf16>
    %198 = vector.extract_strided_slice %193 {offsets = [2, 0], sizes = [1, 32], strides = [1, 1]} : vector<9x128xf32> to vector<1x32xf32>
    %199 = arith.truncf %198 : vector<1x32xf32> to vector<1x32xbf16>
    %200 = vector.extract_strided_slice %193 {offsets = [3, 0], sizes = [1, 32], strides = [1, 1]} : vector<9x128xf32> to vector<1x32xf32>
    %201 = arith.truncf %200 : vector<1x32xf32> to vector<1x32xbf16>
    %202 = vector.extract_strided_slice %193 {offsets = [4, 0], sizes = [1, 32], strides = [1, 1]} : vector<9x128xf32> to vector<1x32xf32>
    %203 = arith.truncf %202 : vector<1x32xf32> to vector<1x32xbf16>
    %204 = vector.extract_strided_slice %193 {offsets = [5, 0], sizes = [1, 32], strides = [1, 1]} : vector<9x128xf32> to vector<1x32xf32>
    %205 = arith.truncf %204 : vector<1x32xf32> to vector<1x32xbf16>
    %206 = vector.extract_strided_slice %193 {offsets = [6, 0], sizes = [1, 32], strides = [1, 1]} : vector<9x128xf32> to vector<1x32xf32>
    %207 = arith.truncf %206 : vector<1x32xf32> to vector<1x32xbf16>
    %208 = vector.extract_strided_slice %193 {offsets = [7, 0], sizes = [1, 32], strides = [1, 1]} : vector<9x128xf32> to vector<1x32xf32>
    %209 = arith.truncf %208 : vector<1x32xf32> to vector<1x32xbf16>
    %210 = vector.extract_strided_slice %193 {offsets = [8, 0], sizes = [1, 32], strides = [1, 1]} : vector<9x128xf32> to vector<1x32xf32>
    %211 = arith.truncf %210 : vector<1x32xf32> to vector<1x32xbf16>
    %c40_155 = arith.constant 40 : index
    %c0_156 = arith.constant 0 : index
    %212 = vector.load %arg11[%c40_155, %c0_156] : memref<400x128xbf16, #tpu.memory_space<vmem>>, vector<9x128xbf16>
    %c140_157 = arith.constant 140 : index
    %c0_158 = arith.constant 0 : index
    %213 = vector.load %arg11[%c140_157, %c0_158] : memref<400x128xbf16, #tpu.memory_space<vmem>>, vector<9x128xbf16>
    %c41_159 = arith.constant 41 : index
    %c0_160 = arith.constant 0 : index
    %214 = vector.load %arg11[%c41_159, %c0_160] : memref<400x128xbf16, #tpu.memory_space<vmem>>, vector<9x128xbf16>
    %c141_161 = arith.constant 141 : index
    %c0_162 = arith.constant 0 : index
    %215 = vector.load %arg11[%c141_161, %c0_162] : memref<400x128xbf16, #tpu.memory_space<vmem>>, vector<9x128xbf16>
    %c240_163 = arith.constant 240 : index
    %c0_164 = arith.constant 0 : index
    %216 = vector.load %arg11[%c240_163, %c0_164] : memref<400x128xbf16, #tpu.memory_space<vmem>>, vector<9x128xbf16>
    %c340_165 = arith.constant 340 : index
    %c0_166 = arith.constant 0 : index
    %217 = vector.load %arg11[%c340_165, %c0_166] : memref<400x128xbf16, #tpu.memory_space<vmem>>, vector<9x128xbf16>
    %c241_167 = arith.constant 241 : index
    %c0_168 = arith.constant 0 : index
    %218 = vector.load %arg11[%c241_167, %c0_168] : memref<400x128xbf16, #tpu.memory_space<vmem>>, vector<9x128xbf16>
    %c341_169 = arith.constant 341 : index
    %c0_170 = arith.constant 0 : index
    %219 = vector.load %arg11[%c341_169, %c0_170] : memref<400x128xbf16, #tpu.memory_space<vmem>>, vector<9x128xbf16>
    %c50 = arith.constant 50 : index
    %c0_171 = arith.constant 0 : index
    %220 = vector.load %arg11[%c50, %c0_171] : memref<400x128xbf16, #tpu.memory_space<vmem>>, vector<9x128xbf16>
    %c150 = arith.constant 150 : index
    %c0_172 = arith.constant 0 : index
    %221 = vector.load %arg11[%c150, %c0_172] : memref<400x128xbf16, #tpu.memory_space<vmem>>, vector<9x128xbf16>
    %c51 = arith.constant 51 : index
    %c0_173 = arith.constant 0 : index
    %222 = vector.load %arg11[%c51, %c0_173] : memref<400x128xbf16, #tpu.memory_space<vmem>>, vector<9x128xbf16>
    %c151 = arith.constant 151 : index
    %c0_174 = arith.constant 0 : index
    %223 = vector.load %arg11[%c151, %c0_174] : memref<400x128xbf16, #tpu.memory_space<vmem>>, vector<9x128xbf16>
    %c250 = arith.constant 250 : index
    %c0_175 = arith.constant 0 : index
    %224 = vector.load %arg11[%c250, %c0_175] : memref<400x128xbf16, #tpu.memory_space<vmem>>, vector<9x128xbf16>
    %c350 = arith.constant 350 : index
    %c0_176 = arith.constant 0 : index
    %225 = vector.load %arg11[%c350, %c0_176] : memref<400x128xbf16, #tpu.memory_space<vmem>>, vector<9x128xbf16>
    %c251 = arith.constant 251 : index
    %c0_177 = arith.constant 0 : index
    %226 = vector.load %arg11[%c251, %c0_177] : memref<400x128xbf16, #tpu.memory_space<vmem>>, vector<9x128xbf16>
    %c351 = arith.constant 351 : index
    %c0_178 = arith.constant 0 : index
    %227 = vector.load %arg11[%c351, %c0_178] : memref<400x128xbf16, #tpu.memory_space<vmem>>, vector<9x128xbf16>
    %228 = tpu.concatenate %212, %213, %214, %215, %216, %217, %218, %219, %220, %221, %222, %223, %224, %225, %226, %227 in 1 : vector<9x128xbf16>, vector<9x128xbf16>, vector<9x128xbf16>, vector<9x128xbf16>, vector<9x128xbf16>, vector<9x128xbf16>, vector<9x128xbf16>, vector<9x128xbf16>, vector<9x128xbf16>, vector<9x128xbf16>, vector<9x128xbf16>, vector<9x128xbf16>, vector<9x128xbf16>, vector<9x128xbf16>, vector<9x128xbf16>, vector<9x128xbf16> -> vector<9x2048xbf16>
    %c0_179 = arith.constant 0 : index
    %c0_180 = arith.constant 0 : index
    %229 = vector.load %arg4[%c0_179, %c0_180] : memref<2048x128xbf16, #tpu.memory_space<vmem>>, vector<2048x128xbf16>
    %cst_181 = arith.constant dense<0.000000e+00> : vector<9x128xf32>
    %230 = tpu.matmul %228, %229, %cst_181 {dimension_numbers = #tpu.dot_dimension_numbers<[1], [0], [0], [1], [0, 0, 1, 1], [], []>} : vector<9x2048xbf16>, vector<2048x128xbf16>, vector<9x128xf32> -> vector<9x128xf32>
    %c0_182 = arith.constant 0 : index
    %c0_183 = arith.constant 0 : index
    %231 = vector.load %arg5[%c0_182, %c0_183] : memref<1x128xf32, #tpu.memory_space<vmem>>, vector<1x128xf32>
    %232 = vector.broadcast %231 : vector<1x128xf32> to vector<9x128xf32>
    %233 = arith.addf %230, %232 : vector<9x128xf32>
    %cst_184 = arith.constant 0.000000e+00 : f32
    %234 = vector.broadcast %cst_184 : f32 to vector<9x128xf32>
    %235 = arith.maximumf %233, %234 : vector<9x128xf32>
    %236 = vector.extract_strided_slice %235 {offsets = [0, 0], sizes = [1, 32], strides = [1, 1]} : vector<9x128xf32> to vector<1x32xf32>
    %237 = arith.truncf %236 : vector<1x32xf32> to vector<1x32xbf16>
    %238 = vector.extract_strided_slice %235 {offsets = [1, 0], sizes = [1, 32], strides = [1, 1]} : vector<9x128xf32> to vector<1x32xf32>
    %239 = arith.truncf %238 : vector<1x32xf32> to vector<1x32xbf16>
    %240 = vector.extract_strided_slice %235 {offsets = [2, 0], sizes = [1, 32], strides = [1, 1]} : vector<9x128xf32> to vector<1x32xf32>
    %241 = arith.truncf %240 : vector<1x32xf32> to vector<1x32xbf16>
    %242 = vector.extract_strided_slice %235 {offsets = [3, 0], sizes = [1, 32], strides = [1, 1]} : vector<9x128xf32> to vector<1x32xf32>
    %243 = arith.truncf %242 : vector<1x32xf32> to vector<1x32xbf16>
    %244 = vector.extract_strided_slice %235 {offsets = [4, 0], sizes = [1, 32], strides = [1, 1]} : vector<9x128xf32> to vector<1x32xf32>
    %245 = arith.truncf %244 : vector<1x32xf32> to vector<1x32xbf16>
    %246 = vector.extract_strided_slice %235 {offsets = [5, 0], sizes = [1, 32], strides = [1, 1]} : vector<9x128xf32> to vector<1x32xf32>
    %247 = arith.truncf %246 : vector<1x32xf32> to vector<1x32xbf16>
    %248 = vector.extract_strided_slice %235 {offsets = [6, 0], sizes = [1, 32], strides = [1, 1]} : vector<9x128xf32> to vector<1x32xf32>
    %249 = arith.truncf %248 : vector<1x32xf32> to vector<1x32xbf16>
    %250 = vector.extract_strided_slice %235 {offsets = [7, 0], sizes = [1, 32], strides = [1, 1]} : vector<9x128xf32> to vector<1x32xf32>
    %251 = arith.truncf %250 : vector<1x32xf32> to vector<1x32xbf16>
    %252 = vector.extract_strided_slice %235 {offsets = [8, 0], sizes = [1, 32], strides = [1, 1]} : vector<9x128xf32> to vector<1x32xf32>
    %253 = arith.truncf %252 : vector<1x32xf32> to vector<1x32xbf16>
    %c50_185 = arith.constant 50 : index
    %c0_186 = arith.constant 0 : index
    %254 = vector.load %arg11[%c50_185, %c0_186] : memref<400x128xbf16, #tpu.memory_space<vmem>>, vector<9x128xbf16>
    %c150_187 = arith.constant 150 : index
    %c0_188 = arith.constant 0 : index
    %255 = vector.load %arg11[%c150_187, %c0_188] : memref<400x128xbf16, #tpu.memory_space<vmem>>, vector<9x128xbf16>
    %c51_189 = arith.constant 51 : index
    %c0_190 = arith.constant 0 : index
    %256 = vector.load %arg11[%c51_189, %c0_190] : memref<400x128xbf16, #tpu.memory_space<vmem>>, vector<9x128xbf16>
    %c151_191 = arith.constant 151 : index
    %c0_192 = arith.constant 0 : index
    %257 = vector.load %arg11[%c151_191, %c0_192] : memref<400x128xbf16, #tpu.memory_space<vmem>>, vector<9x128xbf16>
    %c250_193 = arith.constant 250 : index
    %c0_194 = arith.constant 0 : index
    %258 = vector.load %arg11[%c250_193, %c0_194] : memref<400x128xbf16, #tpu.memory_space<vmem>>, vector<9x128xbf16>
    %c350_195 = arith.constant 350 : index
    %c0_196 = arith.constant 0 : index
    %259 = vector.load %arg11[%c350_195, %c0_196] : memref<400x128xbf16, #tpu.memory_space<vmem>>, vector<9x128xbf16>
    %c251_197 = arith.constant 251 : index
    %c0_198 = arith.constant 0 : index
    %260 = vector.load %arg11[%c251_197, %c0_198] : memref<400x128xbf16, #tpu.memory_space<vmem>>, vector<9x128xbf16>
    %c351_199 = arith.constant 351 : index
    %c0_200 = arith.constant 0 : index
    %261 = vector.load %arg11[%c351_199, %c0_200] : memref<400x128xbf16, #tpu.memory_space<vmem>>, vector<9x128xbf16>
    %c60 = arith.constant 60 : index
    %c0_201 = arith.constant 0 : index
    %262 = vector.load %arg11[%c60, %c0_201] : memref<400x128xbf16, #tpu.memory_space<vmem>>, vector<9x128xbf16>
    %c160 = arith.constant 160 : index
    %c0_202 = arith.constant 0 : index
    %263 = vector.load %arg11[%c160, %c0_202] : memref<400x128xbf16, #tpu.memory_space<vmem>>, vector<9x128xbf16>
    %c61 = arith.constant 61 : index
    %c0_203 = arith.constant 0 : index
    %264 = vector.load %arg11[%c61, %c0_203] : memref<400x128xbf16, #tpu.memory_space<vmem>>, vector<9x128xbf16>
    %c161 = arith.constant 161 : index
    %c0_204 = arith.constant 0 : index
    %265 = vector.load %arg11[%c161, %c0_204] : memref<400x128xbf16, #tpu.memory_space<vmem>>, vector<9x128xbf16>
    %c260 = arith.constant 260 : index
    %c0_205 = arith.constant 0 : index
    %266 = vector.load %arg11[%c260, %c0_205] : memref<400x128xbf16, #tpu.memory_space<vmem>>, vector<9x128xbf16>
    %c360 = arith.constant 360 : index
    %c0_206 = arith.constant 0 : index
    %267 = vector.load %arg11[%c360, %c0_206] : memref<400x128xbf16, #tpu.memory_space<vmem>>, vector<9x128xbf16>
    %c261 = arith.constant 261 : index
    %c0_207 = arith.constant 0 : index
    %268 = vector.load %arg11[%c261, %c0_207] : memref<400x128xbf16, #tpu.memory_space<vmem>>, vector<9x128xbf16>
    %c361 = arith.constant 361 : index
    %c0_208 = arith.constant 0 : index
    %269 = vector.load %arg11[%c361, %c0_208] : memref<400x128xbf16, #tpu.memory_space<vmem>>, vector<9x128xbf16>
    %270 = tpu.concatenate %254, %255, %256, %257, %258, %259, %260, %261, %262, %263, %264, %265, %266, %267, %268, %269 in 1 : vector<9x128xbf16>, vector<9x128xbf16>, vector<9x128xbf16>, vector<9x128xbf16>, vector<9x128xbf16>, vector<9x128xbf16>, vector<9x128xbf16>, vector<9x128xbf16>, vector<9x128xbf16>, vector<9x128xbf16>, vector<9x128xbf16>, vector<9x128xbf16>, vector<9x128xbf16>, vector<9x128xbf16>, vector<9x128xbf16>, vector<9x128xbf16> -> vector<9x2048xbf16>
    %c0_209 = arith.constant 0 : index
    %c0_210 = arith.constant 0 : index
    %271 = vector.load %arg4[%c0_209, %c0_210] : memref<2048x128xbf16, #tpu.memory_space<vmem>>, vector<2048x128xbf16>
    %cst_211 = arith.constant dense<0.000000e+00> : vector<9x128xf32>
    %272 = tpu.matmul %270, %271, %cst_211 {dimension_numbers = #tpu.dot_dimension_numbers<[1], [0], [0], [1], [0, 0, 1, 1], [], []>} : vector<9x2048xbf16>, vector<2048x128xbf16>, vector<9x128xf32> -> vector<9x128xf32>
    %c0_212 = arith.constant 0 : index
    %c0_213 = arith.constant 0 : index
    %273 = vector.load %arg5[%c0_212, %c0_213] : memref<1x128xf32, #tpu.memory_space<vmem>>, vector<1x128xf32>
    %274 = vector.broadcast %273 : vector<1x128xf32> to vector<9x128xf32>
    %275 = arith.addf %272, %274 : vector<9x128xf32>
    %cst_214 = arith.constant 0.000000e+00 : f32
    %276 = vector.broadcast %cst_214 : f32 to vector<9x128xf32>
    %277 = arith.maximumf %275, %276 : vector<9x128xf32>
    %278 = vector.extract_strided_slice %277 {offsets = [0, 0], sizes = [1, 32], strides = [1, 1]} : vector<9x128xf32> to vector<1x32xf32>
    %279 = arith.truncf %278 : vector<1x32xf32> to vector<1x32xbf16>
    %280 = vector.extract_strided_slice %277 {offsets = [1, 0], sizes = [1, 32], strides = [1, 1]} : vector<9x128xf32> to vector<1x32xf32>
    %281 = arith.truncf %280 : vector<1x32xf32> to vector<1x32xbf16>
    %282 = vector.extract_strided_slice %277 {offsets = [2, 0], sizes = [1, 32], strides = [1, 1]} : vector<9x128xf32> to vector<1x32xf32>
    %283 = arith.truncf %282 : vector<1x32xf32> to vector<1x32xbf16>
    %284 = vector.extract_strided_slice %277 {offsets = [3, 0], sizes = [1, 32], strides = [1, 1]} : vector<9x128xf32> to vector<1x32xf32>
    %285 = arith.truncf %284 : vector<1x32xf32> to vector<1x32xbf16>
    %286 = vector.extract_strided_slice %277 {offsets = [4, 0], sizes = [1, 32], strides = [1, 1]} : vector<9x128xf32> to vector<1x32xf32>
    %287 = arith.truncf %286 : vector<1x32xf32> to vector<1x32xbf16>
    %288 = vector.extract_strided_slice %277 {offsets = [5, 0], sizes = [1, 32], strides = [1, 1]} : vector<9x128xf32> to vector<1x32xf32>
    %289 = arith.truncf %288 : vector<1x32xf32> to vector<1x32xbf16>
    %290 = vector.extract_strided_slice %277 {offsets = [6, 0], sizes = [1, 32], strides = [1, 1]} : vector<9x128xf32> to vector<1x32xf32>
    %291 = arith.truncf %290 : vector<1x32xf32> to vector<1x32xbf16>
    %292 = vector.extract_strided_slice %277 {offsets = [7, 0], sizes = [1, 32], strides = [1, 1]} : vector<9x128xf32> to vector<1x32xf32>
    %293 = arith.truncf %292 : vector<1x32xf32> to vector<1x32xbf16>
    %294 = vector.extract_strided_slice %277 {offsets = [8, 0], sizes = [1, 32], strides = [1, 1]} : vector<9x128xf32> to vector<1x32xf32>
    %295 = arith.truncf %294 : vector<1x32xf32> to vector<1x32xbf16>
    %c60_215 = arith.constant 60 : index
    %c0_216 = arith.constant 0 : index
    %296 = vector.load %arg11[%c60_215, %c0_216] : memref<400x128xbf16, #tpu.memory_space<vmem>>, vector<9x128xbf16>
    %c160_217 = arith.constant 160 : index
    %c0_218 = arith.constant 0 : index
    %297 = vector.load %arg11[%c160_217, %c0_218] : memref<400x128xbf16, #tpu.memory_space<vmem>>, vector<9x128xbf16>
    %c61_219 = arith.constant 61 : index
    %c0_220 = arith.constant 0 : index
    %298 = vector.load %arg11[%c61_219, %c0_220] : memref<400x128xbf16, #tpu.memory_space<vmem>>, vector<9x128xbf16>
    %c161_221 = arith.constant 161 : index
    %c0_222 = arith.constant 0 : index
    %299 = vector.load %arg11[%c161_221, %c0_222] : memref<400x128xbf16, #tpu.memory_space<vmem>>, vector<9x128xbf16>
    %c260_223 = arith.constant 260 : index
    %c0_224 = arith.constant 0 : index
    %300 = vector.load %arg11[%c260_223, %c0_224] : memref<400x128xbf16, #tpu.memory_space<vmem>>, vector<9x128xbf16>
    %c360_225 = arith.constant 360 : index
    %c0_226 = arith.constant 0 : index
    %301 = vector.load %arg11[%c360_225, %c0_226] : memref<400x128xbf16, #tpu.memory_space<vmem>>, vector<9x128xbf16>
    %c261_227 = arith.constant 261 : index
    %c0_228 = arith.constant 0 : index
    %302 = vector.load %arg11[%c261_227, %c0_228] : memref<400x128xbf16, #tpu.memory_space<vmem>>, vector<9x128xbf16>
    %c361_229 = arith.constant 361 : index
    %c0_230 = arith.constant 0 : index
    %303 = vector.load %arg11[%c361_229, %c0_230] : memref<400x128xbf16, #tpu.memory_space<vmem>>, vector<9x128xbf16>
    %c70 = arith.constant 70 : index
    %c0_231 = arith.constant 0 : index
    %304 = vector.load %arg11[%c70, %c0_231] : memref<400x128xbf16, #tpu.memory_space<vmem>>, vector<9x128xbf16>
    %c170 = arith.constant 170 : index
    %c0_232 = arith.constant 0 : index
    %305 = vector.load %arg11[%c170, %c0_232] : memref<400x128xbf16, #tpu.memory_space<vmem>>, vector<9x128xbf16>
    %c71 = arith.constant 71 : index
    %c0_233 = arith.constant 0 : index
    %306 = vector.load %arg11[%c71, %c0_233] : memref<400x128xbf16, #tpu.memory_space<vmem>>, vector<9x128xbf16>
    %c171 = arith.constant 171 : index
    %c0_234 = arith.constant 0 : index
    %307 = vector.load %arg11[%c171, %c0_234] : memref<400x128xbf16, #tpu.memory_space<vmem>>, vector<9x128xbf16>
    %c270 = arith.constant 270 : index
    %c0_235 = arith.constant 0 : index
    %308 = vector.load %arg11[%c270, %c0_235] : memref<400x128xbf16, #tpu.memory_space<vmem>>, vector<9x128xbf16>
    %c370 = arith.constant 370 : index
    %c0_236 = arith.constant 0 : index
    %309 = vector.load %arg11[%c370, %c0_236] : memref<400x128xbf16, #tpu.memory_space<vmem>>, vector<9x128xbf16>
    %c271 = arith.constant 271 : index
    %c0_237 = arith.constant 0 : index
    %310 = vector.load %arg11[%c271, %c0_237] : memref<400x128xbf16, #tpu.memory_space<vmem>>, vector<9x128xbf16>
    %c371 = arith.constant 371 : index
    %c0_238 = arith.constant 0 : index
    %311 = vector.load %arg11[%c371, %c0_238] : memref<400x128xbf16, #tpu.memory_space<vmem>>, vector<9x128xbf16>
    %312 = tpu.concatenate %296, %297, %298, %299, %300, %301, %302, %303, %304, %305, %306, %307, %308, %309, %310, %311 in 1 : vector<9x128xbf16>, vector<9x128xbf16>, vector<9x128xbf16>, vector<9x128xbf16>, vector<9x128xbf16>, vector<9x128xbf16>, vector<9x128xbf16>, vector<9x128xbf16>, vector<9x128xbf16>, vector<9x128xbf16>, vector<9x128xbf16>, vector<9x128xbf16>, vector<9x128xbf16>, vector<9x128xbf16>, vector<9x128xbf16>, vector<9x128xbf16> -> vector<9x2048xbf16>
    %c0_239 = arith.constant 0 : index
    %c0_240 = arith.constant 0 : index
    %313 = vector.load %arg4[%c0_239, %c0_240] : memref<2048x128xbf16, #tpu.memory_space<vmem>>, vector<2048x128xbf16>
    %cst_241 = arith.constant dense<0.000000e+00> : vector<9x128xf32>
    %314 = tpu.matmul %312, %313, %cst_241 {dimension_numbers = #tpu.dot_dimension_numbers<[1], [0], [0], [1], [0, 0, 1, 1], [], []>} : vector<9x2048xbf16>, vector<2048x128xbf16>, vector<9x128xf32> -> vector<9x128xf32>
    %c0_242 = arith.constant 0 : index
    %c0_243 = arith.constant 0 : index
    %315 = vector.load %arg5[%c0_242, %c0_243] : memref<1x128xf32, #tpu.memory_space<vmem>>, vector<1x128xf32>
    %316 = vector.broadcast %315 : vector<1x128xf32> to vector<9x128xf32>
    %317 = arith.addf %314, %316 : vector<9x128xf32>
    %cst_244 = arith.constant 0.000000e+00 : f32
    %318 = vector.broadcast %cst_244 : f32 to vector<9x128xf32>
    %319 = arith.maximumf %317, %318 : vector<9x128xf32>
    %320 = vector.extract_strided_slice %319 {offsets = [0, 0], sizes = [1, 32], strides = [1, 1]} : vector<9x128xf32> to vector<1x32xf32>
    %321 = arith.truncf %320 : vector<1x32xf32> to vector<1x32xbf16>
    %322 = vector.extract_strided_slice %319 {offsets = [1, 0], sizes = [1, 32], strides = [1, 1]} : vector<9x128xf32> to vector<1x32xf32>
    %323 = arith.truncf %322 : vector<1x32xf32> to vector<1x32xbf16>
    %324 = vector.extract_strided_slice %319 {offsets = [2, 0], sizes = [1, 32], strides = [1, 1]} : vector<9x128xf32> to vector<1x32xf32>
    %325 = arith.truncf %324 : vector<1x32xf32> to vector<1x32xbf16>
    %326 = vector.extract_strided_slice %319 {offsets = [3, 0], sizes = [1, 32], strides = [1, 1]} : vector<9x128xf32> to vector<1x32xf32>
    %327 = arith.truncf %326 : vector<1x32xf32> to vector<1x32xbf16>
    %328 = vector.extract_strided_slice %319 {offsets = [4, 0], sizes = [1, 32], strides = [1, 1]} : vector<9x128xf32> to vector<1x32xf32>
    %329 = arith.truncf %328 : vector<1x32xf32> to vector<1x32xbf16>
    %330 = vector.extract_strided_slice %319 {offsets = [5, 0], sizes = [1, 32], strides = [1, 1]} : vector<9x128xf32> to vector<1x32xf32>
    %331 = arith.truncf %330 : vector<1x32xf32> to vector<1x32xbf16>
    %332 = vector.extract_strided_slice %319 {offsets = [6, 0], sizes = [1, 32], strides = [1, 1]} : vector<9x128xf32> to vector<1x32xf32>
    %333 = arith.truncf %332 : vector<1x32xf32> to vector<1x32xbf16>
    %334 = vector.extract_strided_slice %319 {offsets = [7, 0], sizes = [1, 32], strides = [1, 1]} : vector<9x128xf32> to vector<1x32xf32>
    %335 = arith.truncf %334 : vector<1x32xf32> to vector<1x32xbf16>
    %336 = vector.extract_strided_slice %319 {offsets = [8, 0], sizes = [1, 32], strides = [1, 1]} : vector<9x128xf32> to vector<1x32xf32>
    %337 = arith.truncf %336 : vector<1x32xf32> to vector<1x32xbf16>
    %c70_245 = arith.constant 70 : index
    %c0_246 = arith.constant 0 : index
    %338 = vector.load %arg11[%c70_245, %c0_246] : memref<400x128xbf16, #tpu.memory_space<vmem>>, vector<9x128xbf16>
    %c170_247 = arith.constant 170 : index
    %c0_248 = arith.constant 0 : index
    %339 = vector.load %arg11[%c170_247, %c0_248] : memref<400x128xbf16, #tpu.memory_space<vmem>>, vector<9x128xbf16>
    %c71_249 = arith.constant 71 : index
    %c0_250 = arith.constant 0 : index
    %340 = vector.load %arg11[%c71_249, %c0_250] : memref<400x128xbf16, #tpu.memory_space<vmem>>, vector<9x128xbf16>
    %c171_251 = arith.constant 171 : index
    %c0_252 = arith.constant 0 : index
    %341 = vector.load %arg11[%c171_251, %c0_252] : memref<400x128xbf16, #tpu.memory_space<vmem>>, vector<9x128xbf16>
    %c270_253 = arith.constant 270 : index
    %c0_254 = arith.constant 0 : index
    %342 = vector.load %arg11[%c270_253, %c0_254] : memref<400x128xbf16, #tpu.memory_space<vmem>>, vector<9x128xbf16>
    %c370_255 = arith.constant 370 : index
    %c0_256 = arith.constant 0 : index
    %343 = vector.load %arg11[%c370_255, %c0_256] : memref<400x128xbf16, #tpu.memory_space<vmem>>, vector<9x128xbf16>
    %c271_257 = arith.constant 271 : index
    %c0_258 = arith.constant 0 : index
    %344 = vector.load %arg11[%c271_257, %c0_258] : memref<400x128xbf16, #tpu.memory_space<vmem>>, vector<9x128xbf16>
    %c371_259 = arith.constant 371 : index
    %c0_260 = arith.constant 0 : index
    %345 = vector.load %arg11[%c371_259, %c0_260] : memref<400x128xbf16, #tpu.memory_space<vmem>>, vector<9x128xbf16>
    %c80 = arith.constant 80 : index
    %c0_261 = arith.constant 0 : index
    %346 = vector.load %arg11[%c80, %c0_261] : memref<400x128xbf16, #tpu.memory_space<vmem>>, vector<9x128xbf16>
    %c180 = arith.constant 180 : index
    %c0_262 = arith.constant 0 : index
    %347 = vector.load %arg11[%c180, %c0_262] : memref<400x128xbf16, #tpu.memory_space<vmem>>, vector<9x128xbf16>
    %c81 = arith.constant 81 : index
    %c0_263 = arith.constant 0 : index
    %348 = vector.load %arg11[%c81, %c0_263] : memref<400x128xbf16, #tpu.memory_space<vmem>>, vector<9x128xbf16>
    %c181 = arith.constant 181 : index
    %c0_264 = arith.constant 0 : index
    %349 = vector.load %arg11[%c181, %c0_264] : memref<400x128xbf16, #tpu.memory_space<vmem>>, vector<9x128xbf16>
    %c280 = arith.constant 280 : index
    %c0_265 = arith.constant 0 : index
    %350 = vector.load %arg11[%c280, %c0_265] : memref<400x128xbf16, #tpu.memory_space<vmem>>, vector<9x128xbf16>
    %c380 = arith.constant 380 : index
    %c0_266 = arith.constant 0 : index
    %351 = vector.load %arg11[%c380, %c0_266] : memref<400x128xbf16, #tpu.memory_space<vmem>>, vector<9x128xbf16>
    %c281 = arith.constant 281 : index
    %c0_267 = arith.constant 0 : index
    %352 = vector.load %arg11[%c281, %c0_267] : memref<400x128xbf16, #tpu.memory_space<vmem>>, vector<9x128xbf16>
    %c381 = arith.constant 381 : index
    %c0_268 = arith.constant 0 : index
    %353 = vector.load %arg11[%c381, %c0_268] : memref<400x128xbf16, #tpu.memory_space<vmem>>, vector<9x128xbf16>
    %354 = tpu.concatenate %338, %339, %340, %341, %342, %343, %344, %345, %346, %347, %348, %349, %350, %351, %352, %353 in 1 : vector<9x128xbf16>, vector<9x128xbf16>, vector<9x128xbf16>, vector<9x128xbf16>, vector<9x128xbf16>, vector<9x128xbf16>, vector<9x128xbf16>, vector<9x128xbf16>, vector<9x128xbf16>, vector<9x128xbf16>, vector<9x128xbf16>, vector<9x128xbf16>, vector<9x128xbf16>, vector<9x128xbf16>, vector<9x128xbf16>, vector<9x128xbf16> -> vector<9x2048xbf16>
    %c0_269 = arith.constant 0 : index
    %c0_270 = arith.constant 0 : index
    %355 = vector.load %arg4[%c0_269, %c0_270] : memref<2048x128xbf16, #tpu.memory_space<vmem>>, vector<2048x128xbf16>
    %cst_271 = arith.constant dense<0.000000e+00> : vector<9x128xf32>
    %356 = tpu.matmul %354, %355, %cst_271 {dimension_numbers = #tpu.dot_dimension_numbers<[1], [0], [0], [1], [0, 0, 1, 1], [], []>} : vector<9x2048xbf16>, vector<2048x128xbf16>, vector<9x128xf32> -> vector<9x128xf32>
    %c0_272 = arith.constant 0 : index
    %c0_273 = arith.constant 0 : index
    %357 = vector.load %arg5[%c0_272, %c0_273] : memref<1x128xf32, #tpu.memory_space<vmem>>, vector<1x128xf32>
    %358 = vector.broadcast %357 : vector<1x128xf32> to vector<9x128xf32>
    %359 = arith.addf %356, %358 : vector<9x128xf32>
    %cst_274 = arith.constant 0.000000e+00 : f32
    %360 = vector.broadcast %cst_274 : f32 to vector<9x128xf32>
    %361 = arith.maximumf %359, %360 : vector<9x128xf32>
    %362 = vector.extract_strided_slice %361 {offsets = [0, 0], sizes = [1, 32], strides = [1, 1]} : vector<9x128xf32> to vector<1x32xf32>
    %363 = arith.truncf %362 : vector<1x32xf32> to vector<1x32xbf16>
    %364 = vector.extract_strided_slice %361 {offsets = [1, 0], sizes = [1, 32], strides = [1, 1]} : vector<9x128xf32> to vector<1x32xf32>
    %365 = arith.truncf %364 : vector<1x32xf32> to vector<1x32xbf16>
    %366 = vector.extract_strided_slice %361 {offsets = [2, 0], sizes = [1, 32], strides = [1, 1]} : vector<9x128xf32> to vector<1x32xf32>
    %367 = arith.truncf %366 : vector<1x32xf32> to vector<1x32xbf16>
    %368 = vector.extract_strided_slice %361 {offsets = [3, 0], sizes = [1, 32], strides = [1, 1]} : vector<9x128xf32> to vector<1x32xf32>
    %369 = arith.truncf %368 : vector<1x32xf32> to vector<1x32xbf16>
    %370 = vector.extract_strided_slice %361 {offsets = [4, 0], sizes = [1, 32], strides = [1, 1]} : vector<9x128xf32> to vector<1x32xf32>
    %371 = arith.truncf %370 : vector<1x32xf32> to vector<1x32xbf16>
    %372 = vector.extract_strided_slice %361 {offsets = [5, 0], sizes = [1, 32], strides = [1, 1]} : vector<9x128xf32> to vector<1x32xf32>
    %373 = arith.truncf %372 : vector<1x32xf32> to vector<1x32xbf16>
    %374 = vector.extract_strided_slice %361 {offsets = [6, 0], sizes = [1, 32], strides = [1, 1]} : vector<9x128xf32> to vector<1x32xf32>
    %375 = arith.truncf %374 : vector<1x32xf32> to vector<1x32xbf16>
    %376 = vector.extract_strided_slice %361 {offsets = [7, 0], sizes = [1, 32], strides = [1, 1]} : vector<9x128xf32> to vector<1x32xf32>
    %377 = arith.truncf %376 : vector<1x32xf32> to vector<1x32xbf16>
    %378 = vector.extract_strided_slice %361 {offsets = [8, 0], sizes = [1, 32], strides = [1, 1]} : vector<9x128xf32> to vector<1x32xf32>
    %379 = arith.truncf %378 : vector<1x32xf32> to vector<1x32xbf16>
    %c80_275 = arith.constant 80 : index
    %c0_276 = arith.constant 0 : index
    %380 = vector.load %arg11[%c80_275, %c0_276] : memref<400x128xbf16, #tpu.memory_space<vmem>>, vector<9x128xbf16>
    %c180_277 = arith.constant 180 : index
    %c0_278 = arith.constant 0 : index
    %381 = vector.load %arg11[%c180_277, %c0_278] : memref<400x128xbf16, #tpu.memory_space<vmem>>, vector<9x128xbf16>
    %c81_279 = arith.constant 81 : index
    %c0_280 = arith.constant 0 : index
    %382 = vector.load %arg11[%c81_279, %c0_280] : memref<400x128xbf16, #tpu.memory_space<vmem>>, vector<9x128xbf16>
    %c181_281 = arith.constant 181 : index
    %c0_282 = arith.constant 0 : index
    %383 = vector.load %arg11[%c181_281, %c0_282] : memref<400x128xbf16, #tpu.memory_space<vmem>>, vector<9x128xbf16>
    %c280_283 = arith.constant 280 : index
    %c0_284 = arith.constant 0 : index
    %384 = vector.load %arg11[%c280_283, %c0_284] : memref<400x128xbf16, #tpu.memory_space<vmem>>, vector<9x128xbf16>
    %c380_285 = arith.constant 380 : index
    %c0_286 = arith.constant 0 : index
    %385 = vector.load %arg11[%c380_285, %c0_286] : memref<400x128xbf16, #tpu.memory_space<vmem>>, vector<9x128xbf16>
    %c281_287 = arith.constant 281 : index
    %c0_288 = arith.constant 0 : index
    %386 = vector.load %arg11[%c281_287, %c0_288] : memref<400x128xbf16, #tpu.memory_space<vmem>>, vector<9x128xbf16>
    %c381_289 = arith.constant 381 : index
    %c0_290 = arith.constant 0 : index
    %387 = vector.load %arg11[%c381_289, %c0_290] : memref<400x128xbf16, #tpu.memory_space<vmem>>, vector<9x128xbf16>
    %c90 = arith.constant 90 : index
    %c0_291 = arith.constant 0 : index
    %388 = vector.load %arg11[%c90, %c0_291] : memref<400x128xbf16, #tpu.memory_space<vmem>>, vector<9x128xbf16>
    %c190 = arith.constant 190 : index
    %c0_292 = arith.constant 0 : index
    %389 = vector.load %arg11[%c190, %c0_292] : memref<400x128xbf16, #tpu.memory_space<vmem>>, vector<9x128xbf16>
    %c91 = arith.constant 91 : index
    %c0_293 = arith.constant 0 : index
    %390 = vector.load %arg11[%c91, %c0_293] : memref<400x128xbf16, #tpu.memory_space<vmem>>, vector<9x128xbf16>
    %c191 = arith.constant 191 : index
    %c0_294 = arith.constant 0 : index
    %391 = vector.load %arg11[%c191, %c0_294] : memref<400x128xbf16, #tpu.memory_space<vmem>>, vector<9x128xbf16>
    %c290 = arith.constant 290 : index
    %c0_295 = arith.constant 0 : index
    %392 = vector.load %arg11[%c290, %c0_295] : memref<400x128xbf16, #tpu.memory_space<vmem>>, vector<9x128xbf16>
    %c390 = arith.constant 390 : index
    %c0_296 = arith.constant 0 : index
    %393 = vector.load %arg11[%c390, %c0_296] : memref<400x128xbf16, #tpu.memory_space<vmem>>, vector<9x128xbf16>
    %c291 = arith.constant 291 : index
    %c0_297 = arith.constant 0 : index
    %394 = vector.load %arg11[%c291, %c0_297] : memref<400x128xbf16, #tpu.memory_space<vmem>>, vector<9x128xbf16>
    %c391 = arith.constant 391 : index
    %c0_298 = arith.constant 0 : index
    %395 = vector.load %arg11[%c391, %c0_298] : memref<400x128xbf16, #tpu.memory_space<vmem>>, vector<9x128xbf16>
    %396 = tpu.concatenate %380, %381, %382, %383, %384, %385, %386, %387, %388, %389, %390, %391, %392, %393, %394, %395 in 1 : vector<9x128xbf16>, vector<9x128xbf16>, vector<9x128xbf16>, vector<9x128xbf16>, vector<9x128xbf16>, vector<9x128xbf16>, vector<9x128xbf16>, vector<9x128xbf16>, vector<9x128xbf16>, vector<9x128xbf16>, vector<9x128xbf16>, vector<9x128xbf16>, vector<9x128xbf16>, vector<9x128xbf16>, vector<9x128xbf16>, vector<9x128xbf16> -> vector<9x2048xbf16>
    %c0_299 = arith.constant 0 : index
    %c0_300 = arith.constant 0 : index
    %397 = vector.load %arg4[%c0_299, %c0_300] : memref<2048x128xbf16, #tpu.memory_space<vmem>>, vector<2048x128xbf16>
    %cst_301 = arith.constant dense<0.000000e+00> : vector<9x128xf32>
    %398 = tpu.matmul %396, %397, %cst_301 {dimension_numbers = #tpu.dot_dimension_numbers<[1], [0], [0], [1], [0, 0, 1, 1], [], []>} : vector<9x2048xbf16>, vector<2048x128xbf16>, vector<9x128xf32> -> vector<9x128xf32>
    %c0_302 = arith.constant 0 : index
    %c0_303 = arith.constant 0 : index
    %399 = vector.load %arg5[%c0_302, %c0_303] : memref<1x128xf32, #tpu.memory_space<vmem>>, vector<1x128xf32>
    %400 = vector.broadcast %399 : vector<1x128xf32> to vector<9x128xf32>
    %401 = arith.addf %398, %400 : vector<9x128xf32>
    %cst_304 = arith.constant 0.000000e+00 : f32
    %402 = vector.broadcast %cst_304 : f32 to vector<9x128xf32>
    %403 = arith.maximumf %401, %402 : vector<9x128xf32>
    %404 = vector.extract_strided_slice %403 {offsets = [0, 0], sizes = [1, 32], strides = [1, 1]} : vector<9x128xf32> to vector<1x32xf32>
    %405 = arith.truncf %404 : vector<1x32xf32> to vector<1x32xbf16>
    %406 = vector.extract_strided_slice %403 {offsets = [1, 0], sizes = [1, 32], strides = [1, 1]} : vector<9x128xf32> to vector<1x32xf32>
    %407 = arith.truncf %406 : vector<1x32xf32> to vector<1x32xbf16>
    %408 = vector.extract_strided_slice %403 {offsets = [2, 0], sizes = [1, 32], strides = [1, 1]} : vector<9x128xf32> to vector<1x32xf32>
    %409 = arith.truncf %408 : vector<1x32xf32> to vector<1x32xbf16>
    %410 = vector.extract_strided_slice %403 {offsets = [3, 0], sizes = [1, 32], strides = [1, 1]} : vector<9x128xf32> to vector<1x32xf32>
    %411 = arith.truncf %410 : vector<1x32xf32> to vector<1x32xbf16>
    %412 = vector.extract_strided_slice %403 {offsets = [4, 0], sizes = [1, 32], strides = [1, 1]} : vector<9x128xf32> to vector<1x32xf32>
    %413 = arith.truncf %412 : vector<1x32xf32> to vector<1x32xbf16>
    %414 = vector.extract_strided_slice %403 {offsets = [5, 0], sizes = [1, 32], strides = [1, 1]} : vector<9x128xf32> to vector<1x32xf32>
    %415 = arith.truncf %414 : vector<1x32xf32> to vector<1x32xbf16>
    %416 = vector.extract_strided_slice %403 {offsets = [6, 0], sizes = [1, 32], strides = [1, 1]} : vector<9x128xf32> to vector<1x32xf32>
    %417 = arith.truncf %416 : vector<1x32xf32> to vector<1x32xbf16>
    %418 = vector.extract_strided_slice %403 {offsets = [7, 0], sizes = [1, 32], strides = [1, 1]} : vector<9x128xf32> to vector<1x32xf32>
    %419 = arith.truncf %418 : vector<1x32xf32> to vector<1x32xbf16>
    %420 = vector.extract_strided_slice %403 {offsets = [8, 0], sizes = [1, 32], strides = [1, 1]} : vector<9x128xf32> to vector<1x32xf32>
    %421 = arith.truncf %420 : vector<1x32xf32> to vector<1x32xbf16>
    %422 = tpu.concatenate %69, %71, %73, %75, %77, %79, %81, %83, %85, %111, %113, %115, %117, %119, %121, %123 in 1 : vector<1x32xbf16>, vector<1x32xbf16>, vector<1x32xbf16>, vector<1x32xbf16>, vector<1x32xbf16>, vector<1x32xbf16>, vector<1x32xbf16>, vector<1x32xbf16>, vector<1x32xbf16>, vector<1x32xbf16>, vector<1x32xbf16>, vector<1x32xbf16>, vector<1x32xbf16>, vector<1x32xbf16>, vector<1x32xbf16>, vector<1x32xbf16> -> vector<1x512xbf16>
    %423 = tpu.concatenate %125, %127, %153, %155, %157, %159, %161, %163, %165, %167, %169, %195, %197, %199, %201, %203 in 1 : vector<1x32xbf16>, vector<1x32xbf16>, vector<1x32xbf16>, vector<1x32xbf16>, vector<1x32xbf16>, vector<1x32xbf16>, vector<1x32xbf16>, vector<1x32xbf16>, vector<1x32xbf16>, vector<1x32xbf16>, vector<1x32xbf16>, vector<1x32xbf16>, vector<1x32xbf16>, vector<1x32xbf16>, vector<1x32xbf16>, vector<1x32xbf16> -> vector<1x512xbf16>
    %424 = tpu.concatenate %205, %207, %209, %211, %237, %239, %241, %243, %245, %247, %249, %251, %253, %279, %281, %283 in 1 : vector<1x32xbf16>, vector<1x32xbf16>, vector<1x32xbf16>, vector<1x32xbf16>, vector<1x32xbf16>, vector<1x32xbf16>, vector<1x32xbf16>, vector<1x32xbf16>, vector<1x32xbf16>, vector<1x32xbf16>, vector<1x32xbf16>, vector<1x32xbf16>, vector<1x32xbf16>, vector<1x32xbf16>, vector<1x32xbf16>, vector<1x32xbf16> -> vector<1x512xbf16>
    %425 = tpu.concatenate %285, %287, %289, %291, %293, %295, %321, %323, %325, %327, %329, %331, %333, %335, %337, %363 in 1 : vector<1x32xbf16>, vector<1x32xbf16>, vector<1x32xbf16>, vector<1x32xbf16>, vector<1x32xbf16>, vector<1x32xbf16>, vector<1x32xbf16>, vector<1x32xbf16>, vector<1x32xbf16>, vector<1x32xbf16>, vector<1x32xbf16>, vector<1x32xbf16>, vector<1x32xbf16>, vector<1x32xbf16>, vector<1x32xbf16>, vector<1x32xbf16> -> vector<1x512xbf16>
    %426 = tpu.concatenate %365, %367, %369, %371, %373, %375, %377, %379, %405, %407, %409, %411, %413, %415, %417, %419 in 1 : vector<1x32xbf16>, vector<1x32xbf16>, vector<1x32xbf16>, vector<1x32xbf16>, vector<1x32xbf16>, vector<1x32xbf16>, vector<1x32xbf16>, vector<1x32xbf16>, vector<1x32xbf16>, vector<1x32xbf16>, vector<1x32xbf16>, vector<1x32xbf16>, vector<1x32xbf16>, vector<1x32xbf16>, vector<1x32xbf16>, vector<1x32xbf16> -> vector<1x512xbf16>
    %427 = tpu.concatenate %422, %423, %424, %425, %426, %421 in 1 : vector<1x512xbf16>, vector<1x512xbf16>, vector<1x512xbf16>, vector<1x512xbf16>, vector<1x512xbf16>, vector<1x32xbf16> -> vector<1x2592xbf16>
    %c0_305 = arith.constant 0 : index
    %c0_306 = arith.constant 0 : index
    %428 = vector.load %arg6[%c0_305, %c0_306] : memref<2592x256xbf16, #tpu.memory_space<vmem>>, vector<2592x256xbf16>
    %cst_307 = arith.constant dense<0.000000e+00> : vector<1x256xf32>
    %429 = tpu.matmul %427, %428, %cst_307 {dimension_numbers = #tpu.dot_dimension_numbers<[1], [0], [0], [1], [0, 0, 1, 1], [], []>} : vector<1x2592xbf16>, vector<2592x256xbf16>, vector<1x256xf32> -> vector<1x256xf32>
    %c0_308 = arith.constant 0 : index
    %c0_309 = arith.constant 0 : index
    %430 = vector.load %arg7[%c0_308, %c0_309] : memref<1x256xf32, #tpu.memory_space<vmem>>, vector<1x256xf32>
    %431 = arith.addf %429, %430 : vector<1x256xf32>
    %cst_310 = arith.constant 0.000000e+00 : f32
    %432 = vector.broadcast %cst_310 : f32 to vector<1x256xf32>
    %433 = arith.maximumf %431, %432 : vector<1x256xf32>
    %434 = arith.truncf %433 : vector<1x256xf32> to vector<1x256xbf16>
    %c0_311 = arith.constant 0 : index
    %c0_312 = arith.constant 0 : index
    %435 = vector.load %arg8[%c0_311, %c0_312] : memref<256x128xbf16, #tpu.memory_space<vmem>>, vector<256x128xbf16>
    %cst_313 = arith.constant dense<0.000000e+00> : vector<1x128xf32>
    %436 = tpu.matmul %434, %435, %cst_313 {dimension_numbers = #tpu.dot_dimension_numbers<[1], [0], [0], [1], [0, 0, 1, 1], [], []>} : vector<1x256xbf16>, vector<256x128xbf16>, vector<1x128xf32> -> vector<1x128xf32>
    %c0_314 = arith.constant 0 : index
    %c0_315 = arith.constant 0 : index
    %437 = vector.load %arg9[%c0_314, %c0_315] : memref<1x128xf32, #tpu.memory_space<vmem>>, vector<1x128xf32>
    %438 = arith.addf %436, %437 : vector<1x128xf32>
    %c0_316 = arith.constant 0 : index
    %c0_317 = arith.constant 0 : index
    %c0_318 = arith.constant 0 : index
    %439 = vector.load %arg10[%c0_316, %c0_317, %c0_318] : memref<1x1x128xf32, #tpu.memory_space<vmem>>, vector<1x1x128xf32>
    %440 = vector.shape_cast %439 : vector<1x1x128xf32> to vector<1x128xf32>
    %441 = vector.shape_cast %438 : vector<1x128xf32> to vector<1x1x128xf32>
    tpu.vector_store %arg10[%c0_316, %c0_317, %c0_318], %441 {strides = array<i32>} : memref<1x1x128xf32, #tpu.memory_space<vmem>>, vector<1x1x128xf32>,
    return
  }
  func.func @transform_0(%arg0: i32) -> (i32, i32, i32) {
    %c0_i32 = arith.constant 0 : i32
    %c0_i32_0 = arith.constant 0 : i32
    %c0_i32_1 = arith.constant 0 : i32
    return %arg0, %c0_i32, %c0_i32_0 : i32, i32, i32
  }
  func.func @transform_1(%arg0: i32) -> (i32, i32) {
    %c0_i32 = arith.constant 0 : i32
    %c0_i32_0 = arith.constant 0 : i32
    %c0_i32_1 = arith.constant 0 : i32
    return %c0_i32, %c0_i32_0 : i32, i32
  }
  func.func @transform_2(%arg0: i32) -> (i32, i32) {
    %c0_i32 = arith.constant 0 : i32
    %c0_i32_0 = arith.constant 0 : i32
    %c0_i32_1 = arith.constant 0 : i32
    return %c0_i32, %c0_i32_0 : i32, i32
  }
  func.func @transform_3(%arg0: i32) -> (i32, i32) {
    %c0_i32 = arith.constant 0 : i32
    %c0_i32_0 = arith.constant 0 : i32
    %c0_i32_1 = arith.constant 0 : i32
    return %c0_i32, %c0_i32_0 : i32, i32
  }
  func.func @transform_4(%arg0: i32) -> (i32, i32) {
    %c0_i32 = arith.constant 0 : i32
    %c0_i32_0 = arith.constant 0 : i32
    %c0_i32_1 = arith.constant 0 : i32
    return %c0_i32, %c0_i32_0 : i32, i32
  }
  func.func @transform_5(%arg0: i32) -> (i32, i32) {
    %c0_i32 = arith.constant 0 : i32
    %c0_i32_0 = arith.constant 0 : i32
    %c0_i32_1 = arith.constant 0 : i32
    return %c0_i32, %c0_i32_0 : i32, i32
  }
  func.func @transform_6(%arg0: i32) -> (i32, i32) {
    %c0_i32 = arith.constant 0 : i32
    %c0_i32_0 = arith.constant 0 : i32
    %c0_i32_1 = arith.constant 0 : i32
    return %c0_i32, %c0_i32_0 : i32, i32
  }
  func.func @transform_7(%arg0: i32) -> (i32, i32) {
    %c0_i32 = arith.constant 0 : i32
    %c0_i32_0 = arith.constant 0 : i32
    %c0_i32_1 = arith.constant 0 : i32
    return %c0_i32, %c0_i32_0 : i32, i32
  }
  func.func @transform_8(%arg0: i32) -> (i32, i32) {
    %c0_i32 = arith.constant 0 : i32
    %c0_i32_0 = arith.constant 0 : i32
    %c0_i32_1 = arith.constant 0 : i32
    return %c0_i32, %c0_i32_0 : i32, i32
  }
  func.func @transform_9(%arg0: i32) -> (i32, i32, i32) {
    %c0_i32 = arith.constant 0 : i32
    %c0_i32_0 = arith.constant 0 : i32
    %c0_i32_1 = arith.constant 0 : i32
    return %arg0, %c0_i32, %c0_i32_0 : i32, i32, i32
  }
}

</mosaic_0001>

<llo_original>
// kernel: dqn_forward.1
$region0: #{dqn_forward.1}
  #allocation0 [shape = 'u32[]', space=smem, size = 0x4, offset = 0x4, fixed_abs, tag = 'smem constant byte address 0x4 - core index']
  #allocation1 [shape = 'u32[144,128]{1,0:T(1,128)}', space=vmem, size = 0x12000, scoped, tag = 'internal scratch']
  #allocation2 [shape = 'bf16[400,128]{1,0:T(16,128)(2,1)}', space=vmem, size = 0x19000, scoped, tag = 'scratch operand']
  %s0 = inlined_call_operand.vmem [shape: bf16[2,400,256], index: 0, kind: input, shape index: {}]
  %s1 = inlined_call_operand.vmem [shape: bf16[256,128], index: 1, kind: input, shape index: {}]
  %s2 = inlined_call_operand.vmem [shape: f32[1,128], index: 2, kind: input, shape index: {}]
  %s3 = inlined_call_operand.vmem [shape: bf16[2048,128], index: 3, kind: input, shape index: {}]
  %s4 = inlined_call_operand.vmem [shape: f32[1,128], index: 4, kind: input, shape index: {}]
  %s5 = inlined_call_operand.vmem [shape: bf16[2592,256], index: 5, kind: input, shape index: {}]
  %s6 = inlined_call_operand.vmem [shape: f32[1,256], index: 6, kind: input, shape index: {}]
  %s7 = inlined_call_operand.vmem [shape: bf16[256,128], index: 7, kind: input, shape index: {}]
  %s8 = inlined_call_operand.vmem [shape: f32[1,128], index: 8, kind: input, shape index: {}]
  %s9 = inlined_call_operand.hbm [shape: f32[2,1,128], index: 9, kind: output, shape index: {}]
  %s10 = sld [smem:[#allocation0]]
  $region69: #{dqn_forward.1} parent=0
    _
  %s12 = ssub.s32 1, %s10
  %s13 = scalar_select 0, %s12, %s10
  $region1: #{dqn_forward.1} parent=0
    #allocation3 [shape = 'u8[1024]{0}', space=vmem, size = 0x400, scoped, tag = 'output window, operand 0']
    #allocation4 [shape = 's32[2]{0}', space=sflag, size = 0x8, scoped, tag = 'scoped memory for dqn_forward.1']
    %14 = vsyncpa [#allocation4], 0
    %s15 = scalar_lea.sflag [#allocation4], 1
    %16 = vsyncpa %s15, 0
    loop: start=0, step=1, limit=4
    $region2: #{dqn_forward.1} parent=1 // loop_pre_header
      _
    $region3: #{dqn_forward.1} parent=1 // loop_header
      %s18 = sphi 0, %s22
      %p19 = scmp.ge.s32.totalorder %s18, 4
      %s28 = sphi 0, %s30
      %s31 = sphi 0, %s28
      %s32 = sphi 0, %s31
      %s48 = sphi 0, %s32
      %s52 = sphi 0, %s52
      %s54 = sphi 0, %s52
      %s55 = sphi 0, %s54
      %s69 = sphi 0, %s55
      %s73 = sphi 0, %s73
      %s75 = sphi 0, %s73
      %s76 = sphi 0, %s75
      %s90 = sphi 0, %s76
      %s94 = sphi 0, %s94
      %s96 = sphi 0, %s94
      %s97 = sphi 0, %s96
      %s111 = sphi 0, %s97
      %s115 = sphi 0, %s115
      %s117 = sphi 0, %s115
      %s118 = sphi 0, %s117
      %s132 = sphi 0, %s118
      %s136 = sphi 0, %s136
      %s138 = sphi 0, %s136
      %s139 = sphi 0, %s138
      %s153 = sphi 0, %s139
      %s157 = sphi 0, %s157
      %s159 = sphi 0, %s157
      %s160 = sphi 0, %s159
      %s174 = sphi 0, %s160
      %s178 = sphi 0, %s178
      %s180 = sphi 0, %s178
      %s181 = sphi 0, %s180
      %s195 = sphi 0, %s181
      %s199 = sphi 0, %s199
      %s201 = sphi 0, %s199
      %s202 = sphi 0, %s201
      %s216 = sphi 0, %s202
      %s222 = sphi 0, %s224
      %s225 = sphi 0, %s222
      %s226 = sphi 0, %s225
      %s242 = sphi 0, %s226
    $region4: #{dqn_forward.1} parent=1 // loop_header_branch
      %21 = sbr.rel (%p19) target = $region8
    $region5: #{dqn_forward.1} parent=1 // loop_body
      %s23 = ssub.s32 %s18, 1
      %s24 = ssub.s32 %s18, 2
      %s25 = sadd.s32 %s18, 1
      %s26 = ssub.s32 %s18, %s25
      %p27 = scmp.eq.s32.totalorder %s26, 0
      %s29 = sadd.s32 %s28, 1
      %s30 = scalar_select %p27, %s28, %s29
      %p33 = pneg %p27
      %p34 = scmp.eq.s32.totalorder %s18, 1
      %p35 = por %p33, %p34
      %p36 = scmp.ne.s32.totalorder %s28, %s31
      %p37 = scmp.eq.s32.totalorder %s18, 0
      %p38 = por %p36, %p37
      %p39 = scmp.ne.s32.totalorder %s28, %s31
      %p40 = scmp.eq.s32.totalorder %s23, 1
      %p41 = por %p39, %p40
      %p42 = scmp.ne.s32.totalorder %s31, %s32
      %p43 = scmp.eq.s32.totalorder %s23, 0
      %p44 = por %p42, %p43
      %p45 = scmp.ne.s32.totalorder %s31, %s32
      %p46 = scmp.eq.s32.totalorder %s24, 1
      %p47 = por %p45, %p46
      %p49 = scmp.ne.s32.totalorder %s32, %s48
      %p50 = scmp.eq.s32.totalorder %s24, 0
      %p51 = por %p49, %p50
      %s53 = sadd.s32 %s52, 1
      %p56 = scmp.eq.s32.totalorder %s18, 1
      %p57 = scmp.ne.s32.totalorder %s52, %s54
      %p58 = scmp.eq.s32.totalorder %s18, 0
      %p59 = por %p57, %p58
      %p60 = scmp.ne.s32.totalorder %s52, %s54
      %p61 = scmp.eq.s32.totalorder %s23, 1
      %p62 = por %p60, %p61
      %p63 = scmp.ne.s32.totalorder %s54, %s55
      %p64 = scmp.eq.s32.totalorder %s23, 0
      %p65 = por %p63, %p64
      %p66 = scmp.ne.s32.totalorder %s54, %s55
      %p67 = scmp.eq.s32.totalorder %s24, 1
      %p68 = por %p66, %p67
      %p70 = scmp.ne.s32.totalorder %s55, %s69
      %p71 = scmp.eq.s32.totalorder %s24, 0
      %p72 = por %p70, %p71
      %s74 = sadd.s32 %s73, 1
      %p77 = scmp.eq.s32.totalorder %s18, 1
      %p78 = scmp.ne.s32.totalorder %s73, %s75
      %p79 = scmp.eq.s32.totalorder %s18, 0
      %p80 = por %p78, %p79
      %p81 = scmp.ne.s32.totalorder %s73, %s75
      %p82 = scmp.eq.s32.totalorder %s23, 1
      %p83 = por %p81, %p82
      %p84 = scmp.ne.s32.totalorder %s75, %s76
      %p85 = scmp.eq.s32.totalorder %s23, 0
      %p86 = por %p84, %p85
      %p87 = scmp.ne.s32.totalorder %s75, %s76
      %p88 = scmp.eq.s32.totalorder %s24, 1
      %p89 = por %p87, %p88
      %p91 = scmp.ne.s32.totalorder %s76, %s90
      %p92 = scmp.eq.s32.totalorder %s24, 0
      %p93 = por %p91, %p92
      %s95 = sadd.s32 %s94, 1
      %p98 = scmp.eq.s32.totalorder %s18, 1
      %p99 = scmp.ne.s32.totalorder %s94, %s96
      %p100 = scmp.eq.s32.totalorder %s18, 0
      %p101 = por %p99, %p100
      %p102 = scmp.ne.s32.totalorder %s94, %s96
      %p103 = scmp.eq.s32.totalorder %s23, 1
      %p104 = por %p102, %p103
      %p105 = scmp.ne.s32.totalorder %s96, %s97
      %p106 = scmp.eq.s32.totalorder %s23, 0
      %p107 = por %p105, %p106
      %p108 = scmp.ne.s32.totalorder %s96, %s97
      %p109 = scmp.eq.s32.totalorder %s24, 1
      %p110 = por %p108, %p109
      %p112 = scmp.ne.s32.totalorder %s97, %s111
      %p113 = scmp.eq.s32.totalorder %s24, 0
      %p114 = por %p112, %p113
      %s116 = sadd.s32 %s115, 1
      %p119 = scmp.eq.s32.totalorder %s18, 1
      %p120 = scmp.ne.s32.totalorder %s115, %s117
      %p121 = scmp.eq.s32.totalorder %s18, 0
      %p122 = por %p120, %p121
      %p123 = scmp.ne.s32.totalorder %s115, %s117
      %p124 = scmp.eq.s32.totalorder %s23, 1
      %p125 = por %p123, %p124
      %p126 = scmp.ne.s32.totalorder %s117, %s118
      %p127 = scmp.eq.s32.totalorder %s23, 0
      %p128 = por %p126, %p127
      %p129 = scmp.ne.s32.totalorder %s117, %s118
      %p130 = scmp.eq.s32.totalorder %s24, 1
      %p131 = por %p129, %p130
      %p133 = scmp.ne.s32.totalorder %s118, %s132
      %p134 = scmp.eq.s32.totalorder %s24, 0
      %p135 = por %p133, %p134
      %s137 = sadd.s32 %s136, 1
      %p140 = scmp.eq.s32.totalorder %s18, 1
      %p141 = scmp.ne.s32.totalorder %s136, %s138
      %p142 = scmp.eq.s32.totalorder %s18, 0
      %p143 = por %p141, %p142
      %p144 = scmp.ne.s32.totalorder %s136, %s138
      %p145 = scmp.eq.s32.totalorder %s23, 1
      %p146 = por %p144, %p145
      %p147 = scmp.ne.s32.totalorder %s138, %s139
      %p148 = scmp.eq.s32.totalorder %s23, 0
      %p149 = por %p147, %p148
      %p150 = scmp.ne.s32.totalorder %s138, %s139
      %p151 = scmp.eq.s32.totalorder %s24, 1
      %p152 = por %p150, %p151
      %p154 = scmp.ne.s32.totalorder %s139, %s153
      %p155 = scmp.eq.s32.totalorder %s24, 0
      %p156 = por %p154, %p155
      %s158 = sadd.s32 %s157, 1
      %p161 = scmp.eq.s32.totalorder %s18, 1
      %p162 = scmp.ne.s32.totalorder %s157, %s159
      %p163 = scmp.eq.s32.totalorder %s18, 0
      %p164 = por %p162, %p163
      %p165 = scmp.ne.s32.totalorder %s157, %s159
      %p166 = scmp.eq.s32.totalorder %s23, 1
      %p167 = por %p165, %p166
      %p168 = scmp.ne.s32.totalorder %s159, %s160
      %p169 = scmp.eq.s32.totalorder %s23, 0
      %p170 = por %p168, %p169
      %p171 = scmp.ne.s32.totalorder %s159, %s160
      %p172 = scmp.eq.s32.totalorder %s24, 1
      %p173 = por %p171, %p172
      %p175 = scmp.ne.s32.totalorder %s160, %s174
      %p176 = scmp.eq.s32.totalorder %s24, 0
      %p177 = por %p175, %p176
      %s179 = sadd.s32 %s178, 1
      %p182 = scmp.eq.s32.totalorder %s18, 1
      %p183 = scmp.ne.s32.totalorder %s178, %s180
      %p184 = scmp.eq.s32.totalorder %s18, 0
      %p185 = por %p183, %p184
      %p186 = scmp.ne.s32.totalorder %s178, %s180
      %p187 = scmp.eq.s32.totalorder %s23, 1
      %p188 = por %p186, %p187
      %p189 = scmp.ne.s32.totalorder %s180, %s181
      %p190 = scmp.eq.s32.totalorder %s23, 0
      %p191 = por %p189, %p190
      %p192 = scmp.ne.s32.totalorder %s180, %s181
      %p193 = scmp.eq.s32.totalorder %s24, 1
      %p194 = por %p192, %p193
      %p196 = scmp.ne.s32.totalorder %s181, %s195
      %p197 = scmp.eq.s32.totalorder %s24, 0
      %p198 = por %p196, %p197
      %s200 = sadd.s32 %s199, 1
      %p203 = scmp.eq.s32.totalorder %s18, 1
      %p204 = scmp.ne.s32.totalorder %s199, %s201
      %p205 = scmp.eq.s32.totalorder %s18, 0
      %p206 = por %p204, %p205
      %p207 = scmp.ne.s32.totalorder %s199, %s201
      %p208 = scmp.eq.s32.totalorder %s23, 1
      %p209 = por %p207, %p208
      %p210 = scmp.ne.s32.totalorder %s201, %s202
      %p211 = scmp.eq.s32.totalorder %s23, 0
      %p212 = por %p210, %p211
      %p213 = scmp.ne.s32.totalorder %s201, %s202
      %p214 = scmp.eq.s32.totalorder %s24, 1
      %p215 = por %p213, %p214
      %p217 = scmp.ne.s32.totalorder %s202, %s216
      %p218 = scmp.eq.s32.totalorder %s24, 0
      %p219 = por %p217, %p218
      %s220 = ssub.s32 %s18, %s25
      %p221 = scmp.eq.s32.totalorder %s220, 0
      %s223 = sadd.s32 %s222, 1
      %s224 = scalar_select %p221, %s222, %s223
      %p227 = pneg %p221
      %p228 = scmp.eq.s32.totalorder %s18, 1
      %p229 = por %p227, %p228
      %p230 = scmp.ne.s32.totalorder %s222, %s225
      %p231 = scmp.eq.s32.totalorder %s18, 0
      %p232 = por %p230, %p231
      %p233 = scmp.ne.s32.totalorder %s222, %s225
      %p234 = scmp.eq.s32.totalorder %s23, 1
      %p235 = por %p233, %p234
      %p236 = scmp.ne.s32.totalorder %s225, %s226
      %p237 = scmp.eq.s32.totalorder %s23, 0
      %p238 = por %p236, %p237
      %p239 = scmp.ne.s32.totalorder %s225, %s226
      %p240 = scmp.eq.s32.totalorder %s24, 1
      %p241 = por %p239, %p240
      %p243 = scmp.ne.s32.totalorder %s226, %s242
      %p244 = scmp.eq.s32.totalorder %s24, 0
      %p245 = por %p243, %p244
      %p246 = scmp.le.s32.totalorder 1, %s18
      %p247 = scmp.lt.s32.totalorder %s18, 3
      %p248 = pnand %p246, %p247
      %p249 = pneg %p248
      // Predicated region
      $region9: #{dqn_forward.1} parent=5 // pred_check
        _
      $region10: #{dqn_forward.1} parent=5 // pred_check_branch
        %251 = sbr.rel (%p248) target = $region12
      $region11: #{dqn_forward.1} parent=5 // pred_region
        %s252 = ssub.s32 %s18, 1
        // Predicated region
        $region13: #{dqn_forward.1} parent=11 // pred_check
          %p253 = pneg %p65
        $region14: #{dqn_forward.1} parent=11 // pred_check_branch
          %255 = sbr.rel (%p253) target = $region16
        $region15: #{dqn_forward.1} parent=11 // pred_region
          _
        $region16: #{dqn_forward.1} parent=11 // pred_fallthru
          _
        // Predicated region
        $region17: #{dqn_forward.1} parent=11 // pred_check
          %p256 = pneg %p86
        $region18: #{dqn_forward.1} parent=11 // pred_check_branch
          %258 = sbr.rel (%p256) target = $region20
        $region19: #{dqn_forward.1} parent=11 // pred_region
          _
        $region20: #{dqn_forward.1} parent=11 // pred_fallthru
          _
        // Predicated region
        $region21: #{dqn_forward.1} parent=11 // pred_check
          %p259 = pneg %p107
        $region22: #{dqn_forward.1} parent=11 // pred_check_branch
          %261 = sbr.rel (%p259) target = $region24
        $region23: #{dqn_forward.1} parent=11 // pred_region
          _
        $region24: #{dqn_forward.1} parent=11 // pred_fallthru
          _
        // Predicated region
        $region25: #{dqn_forward.1} parent=11 // pred_check
          %p262 = pneg %p128
        $region26: #{dqn_forward.1} parent=11 // pred_check_branch
          %264 = sbr.rel (%p262) target = $region28
        $region27: #{dqn_forward.1} parent=11 // pred_region
          _
        $region28: #{dqn_forward.1} parent=11 // pred_fallthru
          _
        // Predicated region
        $region29: #{dqn_forward.1} parent=11 // pred_check
          %p265 = pneg %p149
        $region30: #{dqn_forward.1} parent=11 // pred_check_branch
          %267 = sbr.rel (%p265) target = $region32
        $region31: #{dqn_forward.1} parent=11 // pred_region
          _
        $region32: #{dqn_forward.1} parent=11 // pred_fallthru
          _
        // Predicated region
        $region33: #{dqn_forward.1} parent=11 // pred_check
          %p268 = pneg %p170
        $region34: #{dqn_forward.1} parent=11 // pred_check_branch
          %270 = sbr.rel (%p268) target = $region36
        $region35: #{dqn_forward.1} parent=11 // pred_region
          _
        $region36: #{dqn_forward.1} parent=11 // pred_fallthru
          _
        // Predicated region
        $region37: #{dqn_forward.1} parent=11 // pred_check
          %p271 = pneg %p191
        $region38: #{dqn_forward.1} parent=11 // pred_check_branch
          %273 = sbr.rel (%p271) target = $region40
        $region39: #{dqn_forward.1} parent=11 // pred_region
          _
        $region40: #{dqn_forward.1} parent=11 // pred_fallthru
          _
        // Predicated region
        $region41: #{dqn_forward.1} parent=11 // pred_check
          %p274 = pneg %p212
        $region42: #{dqn_forward.1} parent=11 // pred_check_branch
          %276 = sbr.rel (%p274) target = $region44
        $region43: #{dqn_forward.1} parent=11 // pred_region
          _
        $region44: #{dqn_forward.1} parent=11 // pred_fallthru
          _
      $region12: #{dqn_forward.1} parent=5 // pred_fallthru
        _
      %p277 = scmp.lt.s32.totalorder %s18, 2
      // Predicated region
      $region45: #{dqn_forward.1} parent=5 // pred_check
        %p278 = pneg %p277
      $region46: #{dqn_forward.1} parent=5 // pred_check_branch
        %280 = sbr.rel (%p278) target = $region48
      $region47: #{dqn_forward.1} parent=5 // pred_region
        // Predicated region
        $region49: #{dqn_forward.1} parent=47 // pred_check
          %p281 = pneg %p38
        $region50: #{dqn_forward.1} parent=47 // pred_check_branch
          %283 = sbr.rel (%p281) target = $region52
        $region51: #{dqn_forward.1} parent=47 // pred_region
          %p284 = scmp.lt.s32.totalorder %s18, 1
          %s285 = scalar_select %p284, %s18, 1
          %s286 = smul.addr %s285, 100
          %s287 = smul.addr %s286, 4
          %s288 = scalar_lea.vmem %s0, %s287
        $region52: #{dqn_forward.1} parent=47 // pred_fallthru
          _
      $region48: #{dqn_forward.1} parent=5 // pred_fallthru
        _
      %p289 = scmp.le.s32.totalorder 1, %s18
      %p290 = scmp.lt.s32.totalorder %s18, 3
      %p291 = pnand %p289, %p290
      %p292 = pneg %p291
      // Predicated region
      $region53: #{dqn_forward.1} parent=5 // pred_check
        _
      $region54: #{dqn_forward.1} parent=5 // pred_check_branch
        %294 = sbr.rel (%p291) target = $region56
      $region55: #{dqn_forward.1} parent=5 // pred_region
        %s295 = ssub.s32 %s18, 1
        %p296 = scmp.lt.s32.totalorder %s23, 1
        %s297 = scalar_select %p296, %s23, 1
        %s298 = smul.addr %s297, 100
        %s299 = smul.addr %s298, 4
        %s300 = scalar_lea.vmem %s0, %s299
        %p301 = pneg %p44
        %p302 = pneg %p41
        %p303 = pneg %p65
        %p304 = pneg %p62
        %p305 = pneg %p86
        %p306 = pneg %p83
        %p307 = pneg %p107
        %p308 = pneg %p104
        %p309 = pneg %p128
        %p310 = pneg %p125
        %p311 = pneg %p149
        %p312 = pneg %p146
        %p313 = pneg %p170
        %p314 = pneg %p167
        %p315 = pneg %p191
        %p316 = pneg %p188
        %p317 = pneg %p212
        %p318 = pneg %p209
        %p319 = pneg %p238
        %p320 = pneg %p235
        %s321 = sand.u32 %s225, 1
        %s322 = scalar_lea.sflag [#allocation4], %s321
        %s323 = sand.u32 %s225, 1
        %s324 = scalar_lea.vmem [#allocation3], %s323
        %p325 = scmp.lt.s32.totalorder %s23, 1
        %s326 = scalar_select %p325, %s23, 1
        %s327 = smul.addr %s326, 100
        %s328 = smul.addr %s327, 4
        %s329 = scalar_lea.vmem %s0, %s328
        %v331 = vld [vmem:[%s329] sm:$0xff]
        %v332 = vld [vmem:[%s329 + $0x8] sm:$0xff]
        %v333 = vld [vmem:[%s329 + $0x10] sm:$0xff]
        %v334 = vld [vmem:[%s329 + $0x18] sm:$0xff]
        %v335 = vld [vmem:[%s329 + $0x20] sm:$0xff]
        %v336 = vld [vmem:[%s329 + $0x28] sm:$0xff]
        %v337 = vld [vmem:[%s329 + $0x30] sm:$0xff]
        %v338 = vld [vmem:[%s329 + $0x38] sm:$0xff]
        %v339 = vld [vmem:[%s329 + $0x40] sm:$0xff]
        %v340 = vld [vmem:[%s329 + $0x48] sm:$0xff]
        %v341 = vld [vmem:[%s329 + $0x50] sm:$0xff]
        %v342 = vld [vmem:[%s329 + $0x58] sm:$0xff]
        %v343 = vld [vmem:[%s329 + $0x60] sm:$0x33]
        %v344 = vld [vmem:[%s1] sm:$0xf]
        %v345 = vld [vmem:[%s1 + $0x4] sm:$0xf]
        %v346 = vld [vmem:[%s1 + $0x8] sm:$0xf]
        %v347 = vld [vmem:[%s1 + $0xc] sm:$0xf]
        %v348 = vld [vmem:[%s1 + $0x10] sm:$0xf]
        %v349 = vld [vmem:[%s1 + $0x14] sm:$0xf]
        %v350 = vld [vmem:[%s1 + $0x18] sm:$0xf]
        %v351 = vld [vmem:[%s1 + $0x1c] sm:$0xf]
        %v352 = vld [vmem:[%s1 + $0x20] sm:$0xf]
        %v353 = vld [vmem:[%s1 + $0x24] sm:$0xf]
        %v354 = vld [vmem:[%s1 + $0x28] sm:$0xf]
        %v355 = vld [vmem:[%s1 + $0x2c] sm:$0xf]
        %v356 = vld [vmem:[%s1 + $0x30] sm:$0xf]
        %v357 = vld [vmem:[%s1 + $0x34] sm:$0xf]
        %v358 = vld [vmem:[%s1 + $0x38] sm:$0xf]
        %v359 = vld [vmem:[%s1 + $0x3c] sm:$0xf]
        %v360 = vld [vmem:[%s1 + $0x40] sm:$0xf]
        %v361 = vld [vmem:[%s1 + $0x44] sm:$0xf]
        %v362 = vld [vmem:[%s1 + $0x48] sm:$0xf]
        %v363 = vld [vmem:[%s1 + $0x4c] sm:$0xf]
        %v364 = vld [vmem:[%s1 + $0x50] sm:$0xf]
        %v365 = vld [vmem:[%s1 + $0x54] sm:$0xf]
        %v366 = vld [vmem:[%s1 + $0x58] sm:$0xf]
        %v367 = vld [vmem:[%s1 + $0x5c] sm:$0xf]
        %v368 = vld [vmem:[%s1 + $0x60] sm:$0xf]
        %v369 = vld [vmem:[%s1 + $0x64] sm:$0xf]
        %v370 = vld [vmem:[%s1 + $0x68] sm:$0xf]
        %v371 = vld [vmem:[%s1 + $0x6c] sm:$0xf]
        %v372 = vld [vmem:[%s1 + $0x70] sm:$0xf]
        %v373 = vld [vmem:[%s1 + $0x74] sm:$0xf]
        %v374 = vld [vmem:[%s1 + $0x78] sm:$0xf]
        %v375 = vld [vmem:[%s1 + $0x7c] sm:$0xf]
        %v376 = vld [vmem:[%s2] sm:$0x1]
        %v378 = vlaneseq
        %v379 = vshrl.u32 %v378, 7
        %v380 = vsub.s32 0, %v379
        %v381 = vrot.slane %v376, %v380
        %v396 = vunpack.c.l.b16 %v331
        %v397 = vunpack.c.h.b16 %v331
        %v398 = vunpack.c.l.b16 %v332
        %v399 = vunpack.c.h.b16 %v332
        %v400 = vunpack.c.l.b16 %v333
        %v401 = vunpack.c.h.b16 %v333
        %v402 = vunpack.c.l.b16 %v334
        %v403 = vunpack.c.h.b16 %v334
        %v404 = vunpack.c.l.b16 %v335
        %v405 = vunpack.c.h.b16 %v335
        %v406 = vunpack.c.l.b16 %v336
        %v407 = vunpack.c.h.b16 %v336
        %v408 = vunpack.c.l.b16 %v337
        %v409 = vunpack.c.h.b16 %v337
        %v410 = vunpack.c.l.b16 %v338
        %v411 = vunpack.c.h.b16 %v338
        %v412 = vunpack.c.l.b16 %v339
        %v413 = vunpack.c.h.b16 %v339
        %v414 = vunpack.c.l.b16 %v340
        %v415 = vunpack.c.h.b16 %v340
        %v416 = vunpack.c.l.b16 %v341
        %v417 = vunpack.c.h.b16 %v341
        %v418 = vunpack.c.l.b16 %v342
        %v419 = vunpack.c.h.b16 %v342
        %v420 = vunpack.c.l.b16 %v343
        %v421 = vunpack.c.h.b16 %v343
        %v422 = vpack.c.b16 %v398, %v396
        %v423 = vpack.c.b16 %v399, %v397
        %v424 = vpack.c.b16 %v402, %v400
        %v425 = vpack.c.b16 %v403, %v401
        %v426 = vpack.c.b16 %v406, %v404
        %v427 = vpack.c.b16 %v407, %v405
        %v428 = vpack.c.b16 %v410, %v408
        %v429 = vpack.c.b16 %v411, %v409
        %v430 = vpack.c.b16 %v414, %v412
        %v431 = vpack.c.b16 %v415, %v413
        %v432 = vpack.c.b16 %v418, %v416
        %v433 = vpack.c.b16 %v419, %v417
        %v434 = vpack.c.b16 %v420, %v420
        %v435 = vpack.c.b16 %v421, %v421
        %v482 = vunpack.c.l.b16 %v344
        %v483 = vunpack.c.l.b16 %v345
        %v484 = vunpack.c.l.b16 %v346
        %v485 = vunpack.c.l.b16 %v347
        %v486 = vunpack.c.l.b16 %v348
        %v487 = vunpack.c.l.b16 %v349
        %v488 = vunpack.c.l.b16 %v350
        %v489 = vunpack.c.l.b16 %v351
        %v490 = vunpack.c.l.b16 %v352
        %v491 = vunpack.c.l.b16 %v353
        %v492 = vunpack.c.l.b16 %v354
        %v493 = vunpack.c.l.b16 %v355
        %v494 = vunpack.c.l.b16 %v356
        %v495 = vunpack.c.l.b16 %v357
        %v496 = vunpack.c.l.b16 %v358
        %v497 = vunpack.c.l.b16 %v359
        %v498 = vunpack.c.l.b16 %v360
        %v499 = vunpack.c.l.b16 %v361
        %v500 = vunpack.c.l.b16 %v362
        %v501 = vunpack.c.l.b16 %v363
        %v502 = vunpack.c.l.b16 %v364
        %v503 = vunpack.c.l.b16 %v365
        %v504 = vunpack.c.l.b16 %v366
        %v505 = vunpack.c.l.b16 %v367
        %v506 = vunpack.c.l.b16 %v368
        %v507 = vunpack.c.l.b16 %v369
        %v508 = vunpack.c.l.b16 %v370
        %v509 = vunpack.c.l.b16 %v371
        %v510 = vunpack.c.l.b16 %v372
        %v511 = vunpack.c.l.b16 %v373
        %v512 = vunpack.c.l.b16 %v374
        %v513 = vunpack.c.l.b16 %v375
        %v514 = vpack.c.b16 %v483, %v482
        %v515 = vpack.c.b16 %v485, %v484
        %v516 = vpack.c.b16 %v487, %v486
        %v517 = vpack.c.b16 %v489, %v488
        %v518 = vpack.c.b16 %v491, %v490
        %v519 = vpack.c.b16 %v493, %v492
        %v520 = vpack.c.b16 %v495, %v494
        %v521 = vpack.c.b16 %v497, %v496
        %v522 = vpack.c.b16 %v499, %v498
        %v523 = vpack.c.b16 %v501, %v500
        %v524 = vpack.c.b16 %v503, %v502
        %v525 = vpack.c.b16 %v505, %v504
        %v526 = vpack.c.b16 %v507, %v506
        %v527 = vpack.c.b16 %v509, %v508
        %v528 = vpack.c.b16 %v511, %v510
        %v529 = vpack.c.b16 %v513, %v512
        %546 = vmatprep.subr.bf16.mxu0 0
        %547 = vmatpush1.bf16.msra.mxu0 %v514
        %548 = vmatprep.subr.bf16.mxu0 0
        %549 = vmatpush1.bf16.msra.mxu0 %v515
        %550 = vmatprep.subr.bf16.mxu0 0
        %551 = vmatpush1.bf16.msra.mxu0 %v516
        %552 = vmatprep.subr.bf16.mxu0 0
        %553 = vmatpush1.bf16.msra.mxu0 %v517
        %554 = vmatprep.subr.bf16.mxu0 0
        %555 = vmatpush1.bf16.msra.mxu0 %v518
        %556 = vmatprep.subr.bf16.mxu0 0
        %557 = vmatpush1.bf16.msra.mxu0 %v519
        %558 = vmatprep.subr.bf16.mxu0 0
        %559 = vmatpush1.bf16.msra.mxu0 %v520
        %560 = vmatprep.subr.bf16.mxu0 0
        %561 = vmatpush1.bf16.msra.mxu0 %v521
        %562 = vmatprep.subr.bf16.mxu0 0
        %563 = vmatpush1.bf16.msra.mxu0 %v522
        %564 = vmatprep.subr.bf16.mxu0 0
        %565 = vmatpush1.bf16.msra.mxu0 %v523
        %566 = vmatprep.subr.bf16.mxu0 0
        %567 = vmatpush1.bf16.msra.mxu0 %v524
        %568 = vmatprep.subr.bf16.mxu0 0
        %569 = vmatpush1.bf16.msra.mxu0 %v525
        %570 = vmatprep.subr.bf16.mxu0 0
        %571 = vmatpush1.bf16.msra.mxu0 %v526
        %572 = vmatprep.subr.bf16.mxu0 0
        %573 = vmatpush1.bf16.msra.mxu0 %v527
        %574 = vmatprep.subr.bf16.mxu0 0
        %575 = vmatpush1.bf16.msra.mxu0 %v528
        %576 = vmatprep.subr.bf16.mxu0 0
        %577 = vmatpush1.bf16.msra.mxu0 %v529
        %578 = vmatprep.mubr.bf16.mxu0 %v423
        %579 = vmatmul.mubr.bf16.gmra.mrb[0].mxu0 %v422
        %v580 = vpop.f32.mrb[0].mxu0
        %v581 = vadd.f32 %v381, %v580
        %v582 = vpop.f32.mrb[0].mxu0
        %v583 = vpop.f32.mrb[0].mxu0
        %v584 = vadd.f32 %v381, %v583
        %v585 = vpop.f32.mrb[0].mxu0
        %586 = vmatprep.mubr.bf16.mxu0 %v425
        %587 = vmatmul.mubr.bf16.gmra.mrb[0].mxu0 %v424
        %v588 = vpop.f32.mrb[0].mxu0
        %v589 = vadd.f32 %v381, %v588
        %v590 = vpop.f32.mrb[0].mxu0
        %v591 = vpop.f32.mrb[0].mxu0
        %v592 = vadd.f32 %v381, %v591
        %v593 = vpop.f32.mrb[0].mxu0
        %594 = vmatprep.mubr.bf16.mxu0 %v427
        %595 = vmatmul.mubr.bf16.gmra.mrb[0].mxu0 %v426
        %v596 = vpop.f32.mrb[0].mxu0
        %v597 = vadd.f32 %v381, %v596
        %v598 = vpop.f32.mrb[0].mxu0
        %v599 = vpop.f32.mrb[0].mxu0
        %v600 = vadd.f32 %v381, %v599
        %v601 = vpop.f32.mrb[0].mxu0
        %602 = vmatprep.mubr.bf16.mxu0 %v429
        %603 = vmatmul.mubr.bf16.gmra.mrb[0].mxu0 %v428
        %v604 = vpop.f32.mrb[0].mxu0
        %v605 = vadd.f32 %v381, %v604
        %v606 = vpop.f32.mrb[0].mxu0
        %v607 = vpop.f32.mrb[0].mxu0
        %v608 = vadd.f32 %v381, %v607
        %v609 = vpop.f32.mrb[0].mxu0
        %610 = vmatprep.mubr.bf16.mxu0 %v431
        %611 = vmatmul.mubr.bf16.gmra.mrb[0].mxu0 %v430
        %v612 = vpop.f32.mrb[0].mxu0
        %v613 = vadd.f32 %v381, %v612
        %v614 = vpop.f32.mrb[0].mxu0
        %v615 = vpop.f32.mrb[0].mxu0
        %v616 = vadd.f32 %v381, %v615
        %v617 = vpop.f32.mrb[0].mxu0
        %618 = vmatprep.mubr.bf16.mxu0 %v433
        %619 = vmatmul.mubr.bf16.gmra.mrb[0].mxu0 %v432
        %v620 = vpop.f32.mrb[0].mxu0
        %v621 = vadd.f32 %v381, %v620
        %v622 = vpop.f32.mrb[0].mxu0
        %v623 = vpop.f32.mrb[0].mxu0
        %v624 = vadd.f32 %v381, %v623
        %v625 = vpop.f32.mrb[0].mxu0
        %626 = vmatprep.mubr.bf16.mxu0 %v435
        %627 = vmatmul.mubr.bf16.gmra.mrb[0].mxu0 %v434
        %v628 = vpop.f32.mrb[0].mxu0
        %v629 = vadd.f32 %v381, %v628
        %v630 = vpop.f32.mrb[0].mxu0
        %v631 = vpop.f32.mrb[0].mxu0
        %v632 = vpop.f32.mrb[0].mxu0
        %633 = vdwg.mxu0
        %v634 = vmax.f32 %v581, 0.0
        %v635 = vmax.f32 %v584, 0.0
        %v636 = vmax.f32 %v589, 0.0
        %v637 = vmax.f32 %v592, 0.0
        %v638 = vmax.f32 %v597, 0.0
        %v639 = vmax.f32 %v600, 0.0
        %v640 = vmax.f32 %v605, 0.0
        %v641 = vmax.f32 %v608, 0.0
        %v642 = vmax.f32 %v613, 0.0
        %v643 = vmax.f32 %v616, 0.0
        %v644 = vmax.f32 %v621, 0.0
        %v645 = vmax.f32 %v624, 0.0
        %v646 = vmax.f32 %v629, 0.0
        %v647 = vpack.c.bf16 %v635, %v634
        %v648 = vpack.c.bf16 %v637, %v636
        %v649 = vpack.c.bf16 %v639, %v638
        %v650 = vpack.c.bf16 %v641, %v640
        %v651 = vpack.c.bf16 %v643, %v642
        %v652 = vpack.c.bf16 %v645, %v644
        %v653 = vpack.c.bf16 %v646, %v646
        %654 = vst [vmem:[#allocation2] sm:$0xff] %v647
        %655 = vst [vmem:[#allocation2 + $0x8] sm:$0xff] %v648
        %656 = vst [vmem:[#allocation2 + $0x10] sm:$0xff] %v649
        %657 = vst [vmem:[#allocation2 + $0x18] sm:$0xff] %v650
        %658 = vst [vmem:[#allocation2 + $0x20] sm:$0xff] %v651
        %659 = vst [vmem:[#allocation2 + $0x28] sm:$0xff] %v652
        %660 = vst [vmem:[#allocation2 + $0x30] sm:$0x3] %v653
        %v661 = vld [vmem:[%s329 + $0x60] sm:$0xcc]
        %v662 = vld [vmem:[%s329 + $0x68] sm:$0xff]
        %v663 = vld [vmem:[%s329 + $0x70] sm:$0xff]
        %v664 = vld [vmem:[%s329 + $0x78] sm:$0xff]
        %v665 = vld [vmem:[%s329 + $0x80] sm:$0xff]
        %v666 = vld [vmem:[%s329 + $0x88] sm:$0xff]
        %v667 = vld [vmem:[%s329 + $0x90] sm:$0xff]
        %v668 = vld [vmem:[%s329 + $0x98] sm:$0xff]
        %v669 = vld [vmem:[%s329 + $0xa0] sm:$0xff]
        %v670 = vld [vmem:[%s329 + $0xa8] sm:$0xff]
        %v671 = vld [vmem:[%s329 + $0xb0] sm:$0xff]
        %v672 = vld [vmem:[%s329 + $0xb8] sm:$0xff]
        %v673 = vld [vmem:[%s329 + $0xc0] sm:$0xff]
        %v674 = vld [vmem:[%s1] sm:$0xf]
        %v675 = vld [vmem:[%s1 + $0x4] sm:$0xf]
        %v676 = vld [vmem:[%s1 + $0x8] sm:$0xf]
        %v677 = vld [vmem:[%s1 + $0xc] sm:$0xf]
        %v678 = vld [vmem:[%s1 + $0x10] sm:$0xf]
        %v679 = vld [vmem:[%s1 + $0x14] sm:$0xf]
        %v680 = vld [vmem:[%s1 + $0x18] sm:$0xf]
        %v681 = vld [vmem:[%s1 + $0x1c] sm:$0xf]
        %v682 = vld [vmem:[%s1 + $0x20] sm:$0xf]
        %v683 = vld [vmem:[%s1 + $0x24] sm:$0xf]
        %v684 = vld [vmem:[%s1 + $0x28] sm:$0xf]
        %v685 = vld [vmem:[%s1 + $0x2c] sm:$0xf]
        %v686 = vld [vmem:[%s1 + $0x30] sm:$0xf]
        %v687 = vld [vmem:[%s1 + $0x34] sm:$0xf]
        %v688 = vld [vmem:[%s1 + $0x38] sm:$0xf]
        %v689 = vld [vmem:[%s1 + $0x3c] sm:$0xf]
        %v690 = vld [vmem:[%s1 + $0x40] sm:$0xf]
        %v691 = vld [vmem:[%s1 + $0x44] sm:$0xf]
        %v692 = vld [vmem:[%s1 + $0x48] sm:$0xf]
        %v693 = vld [vmem:[%s1 + $0x4c] sm:$0xf]
        %v694 = vld [vmem:[%s1 + $0x50] sm:$0xf]
        %v695 = vld [vmem:[%s1 + $0x54] sm:$0xf]
        %v696 = vld [vmem:[%s1 + $0x58] sm:$0xf]
        %v697 = vld [vmem:[%s1 + $0x5c] sm:$0xf]
        %v698 = vld [vmem:[%s1 + $0x60] sm:$0xf]
        %v699 = vld [vmem:[%s1 + $0x64] sm:$0xf]
        %v700 = vld [vmem:[%s1 + $0x68] sm:$0xf]
        %v701 = vld [vmem:[%s1 + $0x6c] sm:$0xf]
        %v702 = vld [vmem:[%s1 + $0x70] sm:$0xf]
        %v703 = vld [vmem:[%s1 + $0x74] sm:$0xf]
        %v704 = vld [vmem:[%s1 + $0x78] sm:$0xf]
        %v705 = vld [vmem:[%s1 + $0x7c] sm:$0xf]
        %v706 = vld [vmem:[%s2] sm:$0x1]
        %v708 = vlaneseq
        %v709 = vshrl.u32 %v708, 7
        %v710 = vsub.s32 0, %v709
        %v711 = vrot.slane %v706, %v710
        %v726 = vunpack.c.l.b16 %v661
        %v727 = vunpack.c.h.b16 %v661
        %v728 = vunpack.c.l.b16 %v662
        %v729 = vunpack.c.h.b16 %v662
        %v730 = vunpack.c.l.b16 %v663
        %v731 = vunpack.c.h.b16 %v663
        %v732 = vunpack.c.l.b16 %v664
        %v733 = vunpack.c.h.b16 %v664
        %v734 = vunpack.c.l.b16 %v665
        %v735 = vunpack.c.h.b16 %v665
        %v736 = vunpack.c.l.b16 %v666
        %v737 = vunpack.c.h.b16 %v666
        %v738 = vunpack.c.l.b16 %v667
        %v739 = vunpack.c.h.b16 %v667
        %v740 = vunpack.c.l.b16 %v668
        %v741 = vunpack.c.h.b16 %v668
        %v742 = vunpack.c.l.b16 %v669
        %v743 = vunpack.c.h.b16 %v669
        %v744 = vunpack.c.l.b16 %v670
        %v745 = vunpack.c.h.b16 %v670
        %v746 = vunpack.c.l.b16 %v671
        %v747 = vunpack.c.h.b16 %v671
        %v748 = vunpack.c.l.b16 %v672
        %v749 = vunpack.c.h.b16 %v672
        %v750 = vunpack.c.l.b16 %v673
        %v751 = vunpack.c.h.b16 %v673
        %v752 = vpack.c.b16 %v728, %v726
        %v753 = vpack.c.b16 %v729, %v727
        %v754 = vpack.c.b16 %v732, %v730
        %v755 = vpack.c.b16 %v733, %v731
        %v756 = vpack.c.b16 %v736, %v734
        %v757 = vpack.c.b16 %v737, %v735
        %v758 = vpack.c.b16 %v740, %v738
        %v759 = vpack.c.b16 %v741, %v739
        %v760 = vpack.c.b16 %v744, %v742
        %v761 = vpack.c.b16 %v745, %v743
        %v762 = vpack.c.b16 %v748, %v746
        %v763 = vpack.c.b16 %v749, %v747
        %v764 = vpack.c.b16 %v750, %v750
        %v765 = vpack.c.b16 %v751, %v751
        %vm766 = vcmask 1045504
        %v767 = vrot.slane %v752, 2
        %v768 = vrot.slane %v754, 2
        %v769 = vsel %vm766, %v767, %v768
        %v770 = vrot.slane %v753, 2
        %v771 = vrot.slane %v755, 2
        %v772 = vsel %vm766, %v770, %v771
        %v773 = vrot.slane %v756, 2
        %v774 = vsel %vm766, %v768, %v773
        %v775 = vrot.slane %v757, 2
        %v776 = vsel %vm766, %v771, %v775
        %v777 = vrot.slane %v758, 2
        %v778 = vsel %vm766, %v773, %v777
        %v779 = vrot.slane %v759, 2
        %v780 = vsel %vm766, %v775, %v779
        %v781 = vrot.slane %v760, 2
        %v782 = vsel %vm766, %v777, %v781
        %v783 = vrot.slane %v761, 2
        %v784 = vsel %vm766, %v779, %v783
        %v785 = vrot.slane %v762, 2
        %v786 = vsel %vm766, %v781, %v785
        %v787 = vrot.slane %v763, 2
        %v788 = vsel %vm766, %v783, %v787
        %v789 = vrot.slane %v764, 2
        %v790 = vsel %vm766, %v785, %v789
        %v791 = vrot.slane %v765, 2
        %v792 = vsel %vm766, %v787, %v791
        %v839 = vunpack.c.l.b16 %v674
        %v840 = vunpack.c.l.b16 %v675
        %v841 = vunpack.c.l.b16 %v676
        %v842 = vunpack.c.l.b16 %v677
        %v843 = vunpack.c.l.b16 %v678
        %v844 = vunpack.c.l.b16 %v679
        %v845 = vunpack.c.l.b16 %v680
        %v846 = vunpack.c.l.b16 %v681
        %v847 = vunpack.c.l.b16 %v682
        %v848 = vunpack.c.l.b16 %v683
        %v849 = vunpack.c.l.b16 %v684
        %v850 = vunpack.c.l.b16 %v685
        %v851 = vunpack.c.l.b16 %v686
        %v852 = vunpack.c.l.b16 %v687
        %v853 = vunpack.c.l.b16 %v688
        %v854 = vunpack.c.l.b16 %v689
        %v855 = vunpack.c.l.b16 %v690
        %v856 = vunpack.c.l.b16 %v691
        %v857 = vunpack.c.l.b16 %v692
        %v858 = vunpack.c.l.b16 %v693
        %v859 = vunpack.c.l.b16 %v694
        %v860 = vunpack.c.l.b16 %v695
        %v861 = vunpack.c.l.b16 %v696
        %v862 = vunpack.c.l.b16 %v697
        %v863 = vunpack.c.l.b16 %v698
        %v864 = vunpack.c.l.b16 %v699
        %v865 = vunpack.c.l.b16 %v700
        %v866 = vunpack.c.l.b16 %v701
        %v867 = vunpack.c.l.b16 %v702
        %v868 = vunpack.c.l.b16 %v703
        %v869 = vunpack.c.l.b16 %v704
        %v870 = vunpack.c.l.b16 %v705
        %v871 = vpack.c.b16 %v840, %v839
        %v872 = vpack.c.b16 %v842, %v841
        %v873 = vpack.c.b16 %v844, %v843
        %v874 = vpack.c.b16 %v846, %v845
        %v875 = vpack.c.b16 %v848, %v847
        %v876 = vpack.c.b16 %v850, %v849
        %v877 = vpack.c.b16 %v852, %v851
        %v878 = vpack.c.b16 %v854, %v853
        %v879 = vpack.c.b16 %v856, %v855
        %v880 = vpack.c.b16 %v858, %v857
        %v881 = vpack.c.b16 %v860, %v859
        %v882 = vpack.c.b16 %v862, %v861
        %v883 = vpack.c.b16 %v864, %v863
        %v884 = vpack.c.b16 %v866, %v865
        %v885 = vpack.c.b16 %v868, %v867
        %v886 = vpack.c.b16 %v870, %v869
        %903 = vmatprep.subr.bf16.mxu0 0
        %904 = vmatpush1.bf16.msra.mxu0 %v871
        %905 = vmatprep.subr.bf16.mxu0 0
        %906 = vmatpush1.bf16.msra.mxu0 %v872
        %907 = vmatprep.subr.bf16.mxu0 0
        %908 = vmatpush1.bf16.msra.mxu0 %v873
        %909 = vmatprep.subr.bf16.mxu0 0
        %910 = vmatpush1.bf16.msra.mxu0 %v874
        %911 = vmatprep.subr.bf16.mxu0 0
        %912 = vmatpush1.bf16.msra.mxu0 %v875
        %913 = vmatprep.subr.bf16.mxu0 0
        %914 = vmatpush1.bf16.msra.mxu0 %v876
        %915 = vmatprep.subr.bf16.mxu0 0
        %916 = vmatpush1.bf16.msra.mxu0 %v877
        %917 = vmatprep.subr.bf16.mxu0 0
        %918 = vmatpush1.bf16.msra.mxu0 %v878
        %919 = vmatprep.subr.bf16.mxu0 0
        %920 = vmatpush1.bf16.msra.mxu0 %v879
        %921 = vmatprep.subr.bf16.mxu0 0
        %922 = vmatpush1.bf16.msra.mxu0 %v880
        %923 = vmatprep.subr.bf16.mxu0 0
        %924 = vmatpush1.bf16.msra.mxu0 %v881
        %925 = vmatprep.subr.bf16.mxu0 0
        %926 = vmatpush1.bf16.msra.mxu0 %v882
        %927 = vmatprep.subr.bf16.mxu0 0
        %928 = vmatpush1.bf16.msra.mxu0 %v883
        %929 = vmatprep.subr.bf16.mxu0 0
        %930 = vmatpush1.bf16.msra.mxu0 %v884
        %931 = vmatprep.subr.bf16.mxu0 0
        %932 = vmatpush1.bf16.msra.mxu0 %v885
        %933 = vmatprep.subr.bf16.mxu0 0
        %934 = vmatpush1.bf16.msra.mxu0 %v886
        %935 = vmatprep.mubr.bf16.mxu0 %v772
        %936 = vmatmul.mubr.bf16.gmra.mrb[0].mxu0 %v769
        %v937 = vpop.f32.mrb[0].mxu0
        %v938 = vadd.f32 %v711, %v937
        %v939 = vpop.f32.mrb[0].mxu0
        %v940 = vpop.f32.mrb[0].mxu0
        %v941 = vadd.f32 %v711, %v940
        %v942 = vpop.f32.mrb[0].mxu0
        %943 = vmatprep.mubr.bf16.mxu0 %v776
        %944 = vmatmul.mubr.bf16.gmra.mrb[0].mxu0 %v774
        %v945 = vpop.f32.mrb[0].mxu0
        %v946 = vadd.f32 %v711, %v945
        %v947 = vpop.f32.mrb[0].mxu0
        %v948 = vpop.f32.mrb[0].mxu0
        %v949 = vadd.f32 %v711, %v948
        %v950 = vpop.f32.mrb[0].mxu0
        %951 = vmatprep.mubr.bf16.mxu0 %v780
        %952 = vmatmul.mubr.bf16.gmra.mrb[0].mxu0 %v778
        %v953 = vpop.f32.mrb[0].mxu0
        %v954 = vadd.f32 %v711, %v953
        %v955 = vpop.f32.mrb[0].mxu0
        %v956 = vpop.f32.mrb[0].mxu0
        %v957 = vadd.f32 %v711, %v956
        %v958 = vpop.f32.mrb[0].mxu0
        %959 = vmatprep.mubr.bf16.mxu0 %v784
        %960 = vmatmul.mubr.bf16.gmra.mrb[0].mxu0 %v782
        %v961 = vpop.f32.mrb[0].mxu0
        %v962 = vadd.f32 %v711, %v961
        %v963 = vpop.f32.mrb[0].mxu0
        %v964 = vpop.f32.mrb[0].mxu0
        %v965 = vadd.f32 %v711, %v964
        %v966 = vpop.f32.mrb[0].mxu0
        %967 = vmatprep.mubr.bf16.mxu0 %v788
        %968 = vmatmul.mubr.bf16.gmra.mrb[0].mxu0 %v786
        %v969 = vpop.f32.mrb[0].mxu0
        %v970 = vadd.f32 %v711, %v969
        %v971 = vpop.f32.mrb[0].mxu0
        %v972 = vpop.f32.mrb[0].mxu0
        %v973 = vadd.f32 %v711, %v972
        %v974 = vpop.f32.mrb[0].mxu0
        %975 = vmatprep.mubr.bf16.mxu0 %v792
        %976 = vmatmul.mubr.bf16.gmra.mrb[0].mxu0 %v790
        %v977 = vpop.f32.mrb[0].mxu0
        %v978 = vadd.f32 %v711, %v977
        %v979 = vpop.f32.mrb[0].mxu0
        %v980 = vpop.f32.mrb[0].mxu0
        %v981 = vadd.f32 %v711, %v980
        %v982 = vpop.f32.mrb[0].mxu0
        %983 = vmatprep.mubr.bf16.mxu0 %v791
        %984 = vmatmul.mubr.bf16.gmra.mrb[0].mxu0 %v789
        %v985 = vpop.f32.mrb[0].mxu0
        %v986 = vadd.f32 %v711, %v985
        %v987 = vpop.f32.mrb[0].mxu0
        %v988 = vpop.f32.mrb[0].mxu0
        %v989 = vpop.f32.mrb[0].mxu0
        %990 = vdwg.mxu0
        %v991 = vmax.f32 %v938, 0.0
        %v992 = vmax.f32 %v941, 0.0
        %v993 = vmax.f32 %v946, 0.0
        %v994 = vmax.f32 %v949, 0.0
        %v995 = vmax.f32 %v954, 0.0
        %v996 = vmax.f32 %v957, 0.0
        %v997 = vmax.f32 %v962, 0.0
        %v998 = vmax.f32 %v965, 0.0
        %v999 = vmax.f32 %v970, 0.0
        %v1000 = vmax.f32 %v973, 0.0
        %v1001 = vmax.f32 %v978, 0.0
        %v1002 = vmax.f32 %v981, 0.0
        %v1003 = vmax.f32 %v986, 0.0
        %v1004 = vpack.c.bf16 %v992, %v991
        %v1005 = vpack.c.bf16 %v994, %v993
        %v1006 = vpack.c.bf16 %v996, %v995
        %v1007 = vpack.c.bf16 %v998, %v997
        %v1008 = vpack.c.bf16 %v1000, %v999
        %v1009 = vpack.c.bf16 %v1002, %v1001
        %v1010 = vpack.c.bf16 %v1003, %v1003
        %vm1018 = vcmask 1041408
        %v1019 = vrot.slane %v1004, 6
        %v1020 = vrot.slane %v1005, 6
        %v1021 = vsel %vm1018, %v1019, %v1020
        %v1022 = vrot.slane %v1006, 6
        %v1023 = vsel %vm1018, %v1020, %v1022
        %v1024 = vrot.slane %v1007, 6
        %v1025 = vsel %vm1018, %v1022, %v1024
        %v1026 = vrot.slane %v1008, 6
        %v1027 = vsel %vm1018, %v1024, %v1026
        %v1028 = vrot.slane %v1009, 6
        %v1029 = vsel %vm1018, %v1026, %v1028
        %v1030 = vrot.slane %v1010, 6
        %v1031 = vsel %vm1018, %v1028, %v1030
        %1039 = vst [vmem:[#allocation2 + $0x30] sm:$0xfc] %v1019
        %1040 = vst [vmem:[#allocation2 + $0x38] sm:$0xff] %v1021
        %1041 = vst [vmem:[#allocation2 + $0x40] sm:$0xff] %v1023
        %1042 = vst [vmem:[#allocation2 + $0x48] sm:$0xff] %v1025
        %1043 = vst [vmem:[#allocation2 + $0x50] sm:$0xff] %v1027
        %1044 = vst [vmem:[#allocation2 + $0x58] sm:$0xff] %v1029
        %1045 = vst [vmem:[#allocation2 + $0x60] sm:$0xf] %v1031
        %v1046 = vld [vmem:[%s329 + $0xc8] sm:$0xff]
        %v1047 = vld [vmem:[%s329 + $0xd0] sm:$0xff]
        %v1048 = vld [vmem:[%s329 + $0xd8] sm:$0xff]
        %v1049 = vld [vmem:[%s329 + $0xe0] sm:$0xff]
        %v1050 = vld [vmem:[%s329 + $0xe8] sm:$0xff]
        %v1051 = vld [vmem:[%s329 + $0xf0] sm:$0xff]
        %v1052 = vld [vmem:[%s329 + $0xf8] sm:$0xff]
        %v1053 = vld [vmem:[%s329 + $0x100] sm:$0xff]
        %v1054 = vld [vmem:[%s329 + $0x108] sm:$0xff]
        %v1055 = vld [vmem:[%s329 + $0x110] sm:$0xff]
        %v1056 = vld [vmem:[%s329 + $0x118] sm:$0xff]
        %v1057 = vld [vmem:[%s329 + $0x120] sm:$0xff]
        %v1058 = vld [vmem:[%s329 + $0x128] sm:$0x33]
        %v1059 = vld [vmem:[%s1] sm:$0xf]
        %v1060 = vld [vmem:[%s1 + $0x4] sm:$0xf]
        %v1061 = vld [vmem:[%s1 + $0x8] sm:$0xf]
        %v1062 = vld [vmem:[%s1 + $0xc] sm:$0xf]
        %v1063 = vld [vmem:[%s1 + $0x10] sm:$0xf]
        %v1064 = vld [vmem:[%s1 + $0x14] sm:$0xf]
        %v1065 = vld [vmem:[%s1 + $0x18] sm:$0xf]
        %v1066 = vld [vmem:[%s1 + $0x1c] sm:$0xf]
        %v1067 = vld [vmem:[%s1 + $0x20] sm:$0xf]
        %v1068 = vld [vmem:[%s1 + $0x24] sm:$0xf]
        %v1069 = vld [vmem:[%s1 + $0x28] sm:$0xf]
        %v1070 = vld [vmem:[%s1 + $0x2c] sm:$0xf]
        %v1071 = vld [vmem:[%s1 + $0x30] sm:$0xf]
        %v1072 = vld [vmem:[%s1 + $0x34] sm:$0xf]
        %v1073 = vld [vmem:[%s1 + $0x38] sm:$0xf]
        %v1074 = vld [vmem:[%s1 + $0x3c] sm:$0xf]
        %v1075 = vld [vmem:[%s1 + $0x40] sm:$0xf]
        %v1076 = vld [vmem:[%s1 + $0x44] sm:$0xf]
        %v1077 = vld [vmem:[%s1 + $0x48] sm:$0xf]
        %v1078 = vld [vmem:[%s1 + $0x4c] sm:$0xf]
        %v1079 = vld [vmem:[%s1 + $0x50] sm:$0xf]
        %v1080 = vld [vmem:[%s1 + $0x54] sm:$0xf]
        %v1081 = vld [vmem:[%s1 + $0x58] sm:$0xf]
        %v1082 = vld [vmem:[%s1 + $0x5c] sm:$0xf]
        %v1083 = vld [vmem:[%s1 + $0x60] sm:$0xf]
        %v1084 = vld [vmem:[%s1 + $0x64] sm:$0xf]
        %v1085 = vld [vmem:[%s1 + $0x68] sm:$0xf]
        %v1086 = vld [vmem:[%s1 + $0x6c] sm:$0xf]
        %v1087 = vld [vmem:[%s1 + $0x70] sm:$0xf]
        %v1088 = vld [vmem:[%s1 + $0x74] sm:$0xf]
        %v1089 = vld [vmem:[%s1 + $0x78] sm:$0xf]
        %v1090 = vld [vmem:[%s1 + $0x7c] sm:$0xf]
        %v1091 = vld [vmem:[%s2] sm:$0x1]
        %v1093 = vlaneseq
        %v1094 = vshrl.u32 %v1093, 7
        %v1095 = vsub.s32 0, %v1094
        %v1096 = vrot.slane %v1091, %v1095
        %v1111 = vunpack.c.l.b16 %v1046
        %v1112 = vunpack.c.h.b16 %v1046
        %v1113 = vunpack.c.l.b16 %v1047
        %v1114 = vunpack.c.h.b16 %v1047
        %v1115 = vunpack.c.l.b16 %v1048
        %v1116 = vunpack.c.h.b16 %v1048
        %v1117 = vunpack.c.l.b16 %v1049
        %v1118 = vunpack.c.h.b16 %v1049
        %v1119 = vunpack.c.l.b16 %v1050
        %v1120 = vunpack.c.h.b16 %v1050
        %v1121 = vunpack.c.l.b16 %v1051
        %v1122 = vunpack.c.h.b16 %v1051
        %v1123 = vunpack.c.l.b16 %v1052
        %v1124 = vunpack.c.h.b16 %v1052
        %v1125 = vunpack.c.l.b16 %v1053
        %v1126 = vunpack.c.h.b16 %v1053
        %v1127 = vunpack.c.l.b16 %v1054
        %v1128 = vunpack.c.h.b16 %v1054
        %v1129 = vunpack.c.l.b16 %v1055
        %v1130 = vunpack.c.h.b16 %v1055
        %v1131 = vunpack.c.l.b16 %v1056
        %v1132 = vunpack.c.h.b16 %v1056
        %v1133 = vunpack.c.l.b16 %v1057
        %v1134 = vunpack.c.h.b16 %v1057
        %v1135 = vunpack.c.l.b16 %v1058
        %v1136 = vunpack.c.h.b16 %v1058
        %v1137 = vpack.c.b16 %v1113, %v1111
        %v1138 = vpack.c.b16 %v1114, %v1112
        %v1139 = vpack.c.b16 %v1117, %v1115
        %v1140 = vpack.c.b16 %v1118, %v1116
        %v1141 = vpack.c.b16 %v1121, %v1119
        %v1142 = vpack.c.b16 %v1122, %v1120
        %v1143 = vpack.c.b16 %v1125, %v1123
        %v1144 = vpack.c.b16 %v1126, %v1124
        %v1145 = vpack.c.b16 %v1129, %v1127
        %v1146 = vpack.c.b16 %v1130, %v1128
        %v1147 = vpack.c.b16 %v1133, %v1131
        %v1148 = vpack.c.b16 %v1134, %v1132
        %v1149 = vpack.c.b16 %v1135, %v1135
        %v1150 = vpack.c.b16 %v1136, %v1136
        %v1197 = vunpack.c.l.b16 %v1059
        %v1198 = vunpack.c.l.b16 %v1060
        %v1199 = vunpack.c.l.b16 %v1061
        %v1200 = vunpack.c.l.b16 %v1062
        %v1201 = vunpack.c.l.b16 %v1063
        %v1202 = vunpack.c.l.b16 %v1064
        %v1203 = vunpack.c.l.b16 %v1065
        %v1204 = vunpack.c.l.b16 %v1066
        %v1205 = vunpack.c.l.b16 %v1067
        %v1206 = vunpack.c.l.b16 %v1068
        %v1207 = vunpack.c.l.b16 %v1069
        %v1208 = vunpack.c.l.b16 %v1070
        %v1209 = vunpack.c.l.b16 %v1071
        %v1210 = vunpack.c.l.b16 %v1072
        %v1211 = vunpack.c.l.b16 %v1073
        %v1212 = vunpack.c.l.b16 %v1074
        %v1213 = vunpack.c.l.b16 %v1075
        %v1214 = vunpack.c.l.b16 %v1076
        %v1215 = vunpack.c.l.b16 %v1077
        %v1216 = vunpack.c.l.b16 %v1078
        %v1217 = vunpack.c.l.b16 %v1079
        %v1218 = vunpack.c.l.b16 %v1080
        %v1219 = vunpack.c.l.b16 %v1081
        %v1220 = vunpack.c.l.b16 %v1082
        %v1221 = vunpack.c.l.b16 %v1083
        %v1222 = vunpack.c.l.b16 %v1084
        %v1223 = vunpack.c.l.b16 %v1085
        %v1224 = vunpack.c.l.b16 %v1086
        %v1225 = vunpack.c.l.b16 %v1087
        %v1226 = vunpack.c.l.b16 %v1088
        %v1227 = vunpack.c.l.b16 %v1089
        %v1228 = vunpack.c.l.b16 %v1090
        %v1229 = vpack.c.b16 %v1198, %v1197
        %v1230 = vpack.c.b16 %v1200, %v1199
        %v1231 = vpack.c.b16 %v1202, %v1201
        %v1232 = vpack.c.b16 %v1204, %v1203
        %v1233 = vpack.c.b16 %v1206, %v1205
        %v1234 = vpack.c.b16 %v1208, %v1207
        %v1235 = vpack.c.b16 %v1210, %v1209
        %v1236 = vpack.c.b16 %v1212, %v1211
        %v1237 = vpack.c.b16 %v1214, %v1213
        %v1238 = vpack.c.b16 %v1216, %v1215
        %v1239 = vpack.c.b16 %v1218, %v1217
        %v1240 = vpack.c.b16 %v1220, %v1219
        %v1241 = vpack.c.b16 %v1222, %v1221
        %v1242 = vpack.c.b16 %v1224, %v1223
        %v1243 = vpack.c.b16 %v1226, %v1225
        %v1244 = vpack.c.b16 %v1228, %v1227
        %1261 = vmatprep.subr.bf16.mxu0 0
        %1262 = vmatpush1.bf16.msra.mxu0 %v1229
        %1263 = vmatprep.subr.bf16.mxu0 0
        %1264 = vmatpush1.bf16.msra.mxu0 %v1230
        %1265 = vmatprep.subr.bf16.mxu0 0
        %1266 = vmatpush1.bf16.msra.mxu0 %v1231
        %1267 = vmatprep.subr.bf16.mxu0 0
        %1268 = vmatpush1.bf16.msra.mxu0 %v1232
        %1269 = vmatprep.subr.bf16.mxu0 0
        %1270 = vmatpush1.bf16.msra.mxu0 %v1233
        %1271 = vmatprep.subr.bf16.mxu0 0
        %1272 = vmatpush1.bf16.msra.mxu0 %v1234
        %1273 = vmatprep.subr.bf16.mxu0 0
        %1274 = vmatpush1.bf16.msra.mxu0 %v1235
        %1275 = vmatprep.subr.bf16.mxu0 0
        %1276 = vmatpush1.bf16.msra.mxu0 %v1236
        %1277 = vmatprep.subr.bf16.mxu0 0
        %1278 = vmatpush1.bf16.msra.mxu0 %v1237
        %1279 = vmatprep.subr.bf16.mxu0 0
        %1280 = vmatpush1.bf16.msra.mxu0 %v1238
        %1281 = vmatprep.subr.bf16.mxu0 0
        %1282 = vmatpush1.bf16.msra.mxu0 %v1239
        %1283 = vmatprep.subr.bf16.mxu0 0
        %1284 = vmatpush1.bf16.msra.mxu0 %v1240
        %1285 = vmatprep.subr.bf16.mxu0 0
        %1286 = vmatpush1.bf16.msra.mxu0 %v1241
        %1287 = vmatprep.subr.bf16.mxu0 0
        %1288 = vmatpush1.bf16.msra.mxu0 %v1242
        %1289 = vmatprep.subr.bf16.mxu0 0
        %1290 = vmatpush1.bf16.msra.mxu0 %v1243
        %1291 = vmatprep.subr.bf16.mxu0 0
        %1292 = vmatpush1.bf16.msra.mxu0 %v1244
        %1293 = vmatprep.mubr.bf16.mxu0 %v1138
        %1294 = vmatmul.mubr.bf16.gmra.mrb[0].mxu0 %v1137
        %v1295 = vpop.f32.mrb[0].mxu0
        %v1296 = vadd.f32 %v1096, %v1295
        %v1297 = vpop.f32.mrb[0].mxu0
        %v1298 = vpop.f32.mrb[0].mxu0
        %v1299 = vadd.f32 %v1096, %v1298
        %v1300 = vpop.f32.mrb[0].mxu0
        %1301 = vmatprep.mubr.bf16.mxu0 %v1140
        %1302 = vmatmul.mubr.bf16.gmra.mrb[0].mxu0 %v1139
        %v1303 = vpop.f32.mrb[0].mxu0
        %v1304 = vadd.f32 %v1096, %v1303
        %v1305 = vpop.f32.mrb[0].mxu0
        %v1306 = vpop.f32.mrb[0].mxu0
        %v1307 = vadd.f32 %v1096, %v1306
        %v1308 = vpop.f32.mrb[0].mxu0
        %1309 = vmatprep.mubr.bf16.mxu0 %v1142
        %1310 = vmatmul.mubr.bf16.gmra.mrb[0].mxu0 %v1141
        %v1311 = vpop.f32.mrb[0].mxu0
        %v1312 = vadd.f32 %v1096, %v1311
        %v1313 = vpop.f32.mrb[0].mxu0
        %v1314 = vpop.f32.mrb[0].mxu0
        %v1315 = vadd.f32 %v1096, %v1314
        %v1316 = vpop.f32.mrb[0].mxu0
        %1317 = vmatprep.mubr.bf16.mxu0 %v1144
        %1318 = vmatmul.mubr.bf16.gmra.mrb[0].mxu0 %v1143
        %v1319 = vpop.f32.mrb[0].mxu0
        %v1320 = vadd.f32 %v1096, %v1319
        %v1321 = vpop.f32.mrb[0].mxu0
        %v1322 = vpop.f32.mrb[0].mxu0
        %v1323 = vadd.f32 %v1096, %v1322
        %v1324 = vpop.f32.mrb[0].mxu0
        %1325 = vmatprep.mubr.bf16.mxu0 %v1146
        %1326 = vmatmul.mubr.bf16.gmra.mrb[0].mxu0 %v1145
        %v1327 = vpop.f32.mrb[0].mxu0
        %v1328 = vadd.f32 %v1096, %v1327
        %v1329 = vpop.f32.mrb[0].mxu0
        %v1330 = vpop.f32.mrb[0].mxu0
        %v1331 = vadd.f32 %v1096, %v1330
        %v1332 = vpop.f32.mrb[0].mxu0
        %1333 = vmatprep.mubr.bf16.mxu0 %v1148
        %1334 = vmatmul.mubr.bf16.gmra.mrb[0].mxu0 %v1147
        %v1335 = vpop.f32.mrb[0].mxu0
        %v1336 = vadd.f32 %v1096, %v1335
        %v1337 = vpop.f32.mrb[0].mxu0
        %v1338 = vpop.f32.mrb[0].mxu0
        %v1339 = vadd.f32 %v1096, %v1338
        %v1340 = vpop.f32.mrb[0].mxu0
        %1341 = vmatprep.mubr.bf16.mxu0 %v1150
        %1342 = vmatmul.mubr.bf16.gmra.mrb[0].mxu0 %v1149
        %v1343 = vpop.f32.mrb[0].mxu0
        %v1344 = vadd.f32 %v1096, %v1343
        %v1345 = vpop.f32.mrb[0].mxu0
        %v1346 = vpop.f32.mrb[0].mxu0
        %v1347 = vpop.f32.mrb[0].mxu0
        %1348 = vdwg.mxu0
        %v1349 = vmax.f32 %v1296, 0.0
        %v1350 = vmax.f32 %v1299, 0.0
        %v1351 = vmax.f32 %v1304, 0.0
        %v1352 = vmax.f32 %v1307, 0.0
        %v1353 = vmax.f32 %v1312, 0.0
        %v1354 = vmax.f32 %v1315, 0.0
        %v1355 = vmax.f32 %v1320, 0.0
        %v1356 = vmax.f32 %v1323, 0.0
        %v1357 = vmax.f32 %v1328, 0.0
        %v1358 = vmax.f32 %v1331, 0.0
        %v1359 = vmax.f32 %v1336, 0.0
        %v1360 = vmax.f32 %v1339, 0.0
        %v1361 = vmax.f32 %v1344, 0.0
        %v1362 = vpack.c.bf16 %v1350, %v1349
        %v1363 = vpack.c.bf16 %v1352, %v1351
        %v1364 = vpack.c.bf16 %v1354, %v1353
        %v1365 = vpack.c.bf16 %v1356, %v1355
        %v1366 = vpack.c.bf16 %v1358, %v1357
        %v1367 = vpack.c.bf16 %v1360, %v1359
        %v1368 = vpack.c.bf16 %v1361, %v1361
        %vm1376 = vcmask 1043456
        %v1377 = vrot.slane %v1362, 4
        %v1378 = vrot.slane %v1363, 4
        %v1379 = vsel %vm1376, %v1377, %v1378
        %v1380 = vrot.slane %v1364, 4
        %v1381 = vsel %vm1376, %v1378, %v1380
        %v1382 = vrot.slane %v1365, 4
        %v1383 = vsel %vm1376, %v1380, %v1382
        %v1384 = vrot.slane %v1366, 4
        %v1385 = vsel %vm1376, %v1382, %v1384
        %v1386 = vrot.slane %v1367, 4
        %v1387 = vsel %vm1376, %v1384, %v1386
        %v1388 = vrot.slane %v1368, 4
        %v1389 = vsel %vm1376, %v1386, %v1388
        %1397 = vst [vmem:[#allocation2 + $0x60] sm:$0xf0] %v1377
        %1398 = vst [vmem:[#allocation2 + $0x68] sm:$0xff] %v1379
        %1399 = vst [vmem:[#allocation2 + $0x70] sm:$0xff] %v1381
        %1400 = vst [vmem:[#allocation2 + $0x78] sm:$0xff] %v1383
        %1401 = vst [vmem:[#allocation2 + $0x80] sm:$0xff] %v1385
        %1402 = vst [vmem:[#allocation2 + $0x88] sm:$0xff] %v1387
        %1403 = vst [vmem:[#allocation2 + $0x90] sm:$0x3f] %v1389
        %v1404 = vld [vmem:[%s329 + $0x128] sm:$0xcc]
        %v1405 = vld [vmem:[%s329 + $0x130] sm:$0xff]
        %v1406 = vld [vmem:[%s329 + $0x138] sm:$0xff]
        %v1407 = vld [vmem:[%s329 + $0x140] sm:$0xff]
        %v1408 = vld [vmem:[%s329 + $0x148] sm:$0xff]
        %v1409 = vld [vmem:[%s329 + $0x150] sm:$0xff]
        %v1410 = vld [vmem:[%s329 + $0x158] sm:$0xff]
        %v1411 = vld [vmem:[%s329 + $0x160] sm:$0xff]
        %v1412 = vld [vmem:[%s329 + $0x168] sm:$0xff]
        %v1413 = vld [vmem:[%s329 + $0x170] sm:$0xff]
        %v1414 = vld [vmem:[%s329 + $0x178] sm:$0xff]
        %v1415 = vld [vmem:[%s329 + $0x180] sm:$0xff]
        %v1416 = vld [vmem:[%s329 + $0x188] sm:$0xff]
        %v1417 = vld [vmem:[%s1] sm:$0xf]
        %v1418 = vld [vmem:[%s1 + $0x4] sm:$0xf]
        %v1419 = vld [vmem:[%s1 + $0x8] sm:$0xf]
        %v1420 = vld [vmem:[%s1 + $0xc] sm:$0xf]
        %v1421 = vld [vmem:[%s1 + $0x10] sm:$0xf]
        %v1422 = vld [vmem:[%s1 + $0x14] sm:$0xf]
        %v1423 = vld [vmem:[%s1 + $0x18] sm:$0xf]
        %v1424 = vld [vmem:[%s1 + $0x1c] sm:$0xf]
        %v1425 = vld [vmem:[%s1 + $0x20] sm:$0xf]
        %v1426 = vld [vmem:[%s1 + $0x24] sm:$0xf]
        %v1427 = vld [vmem:[%s1 + $0x28] sm:$0xf]
        %v1428 = vld [vmem:[%s1 + $0x2c] sm:$0xf]
        %v1429 = vld [vmem:[%s1 + $0x30] sm:$0xf]
        %v1430 = vld [vmem:[%s1 + $0x34] sm:$0xf]
        %v1431 = vld [vmem:[%s1 + $0x38] sm:$0xf]
        %v1432 = vld [vmem:[%s1 + $0x3c] sm:$0xf]
        %v1433 = vld [vmem:[%s1 + $0x40] sm:$0xf]
        %v1434 = vld [vmem:[%s1 + $0x44] sm:$0xf]
        %v1435 = vld [vmem:[%s1 + $0x48] sm:$0xf]
        %v1436 = vld [vmem:[%s1 + $0x4c] sm:$0xf]
        %v1437 = vld [vmem:[%s1 + $0x50] sm:$0xf]
        %v1438 = vld [vmem:[%s1 + $0x54] sm:$0xf]
        %v1439 = vld [vmem:[%s1 + $0x58] sm:$0xf]
        %v1440 = vld [vmem:[%s1 + $0x5c] sm:$0xf]
        %v1441 = vld [vmem:[%s1 + $0x60] sm:$0xf]
        %v1442 = vld [vmem:[%s1 + $0x64] sm:$0xf]
        %v1443 = vld [vmem:[%s1 + $0x68] sm:$0xf]
        %v1444 = vld [vmem:[%s1 + $0x6c] sm:$0xf]
        %v1445 = vld [vmem:[%s1 + $0x70] sm:$0xf]
        %v1446 = vld [vmem:[%s1 + $0x74] sm:$0xf]
        %v1447 = vld [vmem:[%s1 + $0x78] sm:$0xf]
        %v1448 = vld [vmem:[%s1 + $0x7c] sm:$0xf]
        %v1449 = vld [vmem:[%s2] sm:$0x1]
        %v1451 = vlaneseq
        %v1452 = vshrl.u32 %v1451, 7
        %v1453 = vsub.s32 0, %v1452
        %v1454 = vrot.slane %v1449, %v1453
        %v1469 = vunpack.c.l.b16 %v1404
        %v1470 = vunpack.c.h.b16 %v1404
        %v1471 = vunpack.c.l.b16 %v1405
        %v1472 = vunpack.c.h.b16 %v1405
        %v1473 = vunpack.c.l.b16 %v1406
        %v1474 = vunpack.c.h.b16 %v1406
        %v1475 = vunpack.c.l.b16 %v1407
        %v1476 = vunpack.c.h.b16 %v1407
        %v1477 = vunpack.c.l.b16 %v1408
        %v1478 = vunpack.c.h.b16 %v1408
        %v1479 = vunpack.c.l.b16 %v1409
        %v1480 = vunpack.c.h.b16 %v1409
        %v1481 = vunpack.c.l.b16 %v1410
        %v1482 = vunpack.c.h.b16 %v1410
        %v1483 = vunpack.c.l.b16 %v1411
        %v1484 = vunpack.c.h.b16 %v1411
        %v1485 = vunpack.c.l.b16 %v1412
        %v1486 = vunpack.c.h.b16 %v1412
        %v1487 = vunpack.c.l.b16 %v1413
        %v1488 = vunpack.c.h.b16 %v1413
        %v1489 = vunpack.c.l.b16 %v1414
        %v1490 = vunpack.c.h.b16 %v1414
        %v1491 = vunpack.c.l.b16 %v1415
        %v1492 = vunpack.c.h.b16 %v1415
        %v1493 = vunpack.c.l.b16 %v1416
        %v1494 = vunpack.c.h.b16 %v1416
        %v1495 = vpack.c.b16 %v1471, %v1469
        %v1496 = vpack.c.b16 %v1472, %v1470
        %v1497 = vpack.c.b16 %v1475, %v1473
        %v1498 = vpack.c.b16 %v1476, %v1474
        %v1499 = vpack.c.b16 %v1479, %v1477
        %v1500 = vpack.c.b16 %v1480, %v1478
        %v1501 = vpack.c.b16 %v1483, %v1481
        %v1502 = vpack.c.b16 %v1484, %v1482
        %v1503 = vpack.c.b16 %v1487, %v1485
        %v1504 = vpack.c.b16 %v1488, %v1486
        %v1505 = vpack.c.b16 %v1491, %v1489
        %v1506 = vpack.c.b16 %v1492, %v1490
        %v1507 = vpack.c.b16 %v1493, %v1493
        %v1508 = vpack.c.b16 %v1494, %v1494
        %v1509 = vrot.slane %v1495, 2
        %v1510 = vrot.slane %v1497, 2
        %v1511 = vsel %vm766, %v1509, %v1510
        %v1512 = vrot.slane %v1496, 2
        %v1513 = vrot.slane %v1498, 2
        %v1514 = vsel %vm766, %v1512, %v1513
        %v1515 = vrot.slane %v1499, 2
        %v1516 = vsel %vm766, %v1510, %v1515
        %v1517 = vrot.slane %v1500, 2
        %v1518 = vsel %vm766, %v1513, %v1517
        %v1519 = vrot.slane %v1501, 2
        %v1520 = vsel %vm766, %v1515, %v1519
        %v1521 = vrot.slane %v1502, 2
        %v1522 = vsel %vm766, %v1517, %v1521
        %v1523 = vrot.slane %v1503, 2
        %v1524 = vsel %vm766, %v1519, %v1523
        %v1525 = vrot.slane %v1504, 2
        %v1526 = vsel %vm766, %v1521, %v1525
        %v1527 = vrot.slane %v1505, 2
        %v1528 = vsel %vm766, %v1523, %v1527
        %v1529 = vrot.slane %v1506, 2
        %v1530 = vsel %vm766, %v1525, %v1529
        %v1531 = vrot.slane %v1507, 2
        %v1532 = vsel %vm766, %v1527, %v1531
        %v1533 = vrot.slane %v1508, 2
        %v1534 = vsel %vm766, %v1529, %v1533
        %v1581 = vunpack.c.l.b16 %v1417
        %v1582 = vunpack.c.l.b16 %v1418
        %v1583 = vunpack.c.l.b16 %v1419
        %v1584 = vunpack.c.l.b16 %v1420
        %v1585 = vunpack.c.l.b16 %v1421
        %v1586 = vunpack.c.l.b16 %v1422
        %v1587 = vunpack.c.l.b16 %v1423
        %v1588 = vunpack.c.l.b16 %v1424
        %v1589 = vunpack.c.l.b16 %v1425
        %v1590 = vunpack.c.l.b16 %v1426
        %v1591 = vunpack.c.l.b16 %v1427
        %v1592 = vunpack.c.l.b16 %v1428
        %v1593 = vunpack.c.l.b16 %v1429
        %v1594 = vunpack.c.l.b16 %v1430
        %v1595 = vunpack.c.l.b16 %v1431
        %v1596 = vunpack.c.l.b16 %v1432
        %v1597 = vunpack.c.l.b16 %v1433
        %v1598 = vunpack.c.l.b16 %v1434
        %v1599 = vunpack.c.l.b16 %v1435
        %v1600 = vunpack.c.l.b16 %v1436
        %v1601 = vunpack.c.l.b16 %v1437
        %v1602 = vunpack.c.l.b16 %v1438
        %v1603 = vunpack.c.l.b16 %v1439
        %v1604 = vunpack.c.l.b16 %v1440
        %v1605 = vunpack.c.l.b16 %v1441
        %v1606 = vunpack.c.l.b16 %v1442
        %v1607 = vunpack.c.l.b16 %v1443
        %v1608 = vunpack.c.l.b16 %v1444
        %v1609 = vunpack.c.l.b16 %v1445
        %v1610 = vunpack.c.l.b16 %v1446
        %v1611 = vunpack.c.l.b16 %v1447
        %v1612 = vunpack.c.l.b16 %v1448
        %v1613 = vpack.c.b16 %v1582, %v1581
        %v1614 = vpack.c.b16 %v1584, %v1583
        %v1615 = vpack.c.b16 %v1586, %v1585
        %v1616 = vpack.c.b16 %v1588, %v1587
        %v1617 = vpack.c.b16 %v1590, %v1589
        %v1618 = vpack.c.b16 %v1592, %v1591
        %v1619 = vpack.c.b16 %v1594, %v1593
        %v1620 = vpack.c.b16 %v1596, %v1595
        %v1621 = vpack.c.b16 %v1598, %v1597
        %v1622 = vpack.c.b16 %v1600, %v1599
        %v1623 = vpack.c.b16 %v1602, %v1601
        %v1624 = vpack.c.b16 %v1604, %v1603
        %v1625 = vpack.c.b16 %v1606, %v1605
        %v1626 = vpack.c.b16 %v1608, %v1607
        %v1627 = vpack.c.b16 %v1610, %v1609
        %v1628 = vpack.c.b16 %v1612, %v1611
        %1645 = vmatprep.subr.bf16.mxu0 0
        %1646 = vmatpush1.bf16.msra.mxu0 %v1613
        %1647 = vmatprep.subr.bf16.mxu0 0
        %1648 = vmatpush1.bf16.msra.mxu0 %v1614
        %1649 = vmatprep.subr.bf16.mxu0 0
        %1650 = vmatpush1.bf16.msra.mxu0 %v1615
        %1651 = vmatprep.subr.bf16.mxu0 0
        %1652 = vmatpush1.bf16.msra.mxu0 %v1616
        %1653 = vmatprep.subr.bf16.mxu0 0
        %1654 = vmatpush1.bf16.msra.mxu0 %v1617
        %1655 = vmatprep.subr.bf16.mxu0 0
        %1656 = vmatpush1.bf16.msra.mxu0 %v1618
        %1657 = vmatprep.subr.bf16.mxu0 0
        %1658 = vmatpush1.bf16.msra.mxu0 %v1619
        %1659 = vmatprep.subr.bf16.mxu0 0
        %1660 = vmatpush1.bf16.msra.mxu0 %v1620
        %1661 = vmatprep.subr.bf16.mxu0 0
        %1662 = vmatpush1.bf16.msra.mxu0 %v1621
        %1663 = vmatprep.subr.bf16.mxu0 0
        %1664 = vmatpush1.bf16.msra.mxu0 %v1622
        %1665 = vmatprep.subr.bf16.mxu0 0
        %1666 = vmatpush1.bf16.msra.mxu0 %v1623
        %1667 = vmatprep.subr.bf16.mxu0 0
        %1668 = vmatpush1.bf16.msra.mxu0 %v1624
        %1669 = vmatprep.subr.bf16.mxu0 0
        %1670 = vmatpush1.bf16.msra.mxu0 %v1625
        %1671 = vmatprep.subr.bf16.mxu0 0
        %1672 = vmatpush1.bf16.msra.mxu0 %v1626
        %1673 = vmatprep.subr.bf16.mxu0 0
        %1674 = vmatpush1.bf16.msra.mxu0 %v1627
        %1675 = vmatprep.subr.bf16.mxu0 0
        %1676 = vmatpush1.bf16.msra.mxu0 %v1628
        %1677 = vmatprep.mubr.bf16.mxu0 %v1514
        %1678 = vmatmul.mubr.bf16.gmra.mrb[0].mxu0 %v1511
        %v1679 = vpop.f32.mrb[0].mxu0
        %v1680 = vadd.f32 %v1454, %v1679
        %v1681 = vpop.f32.mrb[0].mxu0
        %v1682 = vpop.f32.mrb[0].mxu0
        %v1683 = vadd.f32 %v1454, %v1682
        %v1684 = vpop.f32.mrb[0].mxu0
        %1685 = vmatprep.mubr.bf16.mxu0 %v1518
        %1686 = vmatmul.mubr.bf16.gmra.mrb[0].mxu0 %v1516
        %v1687 = vpop.f32.mrb[0].mxu0
        %v1688 = vadd.f32 %v1454, %v1687
        %v1689 = vpop.f32.mrb[0].mxu0
        %v1690 = vpop.f32.mrb[0].mxu0
        %v1691 = vadd.f32 %v1454, %v1690
        %v1692 = vpop.f32.mrb[0].mxu0
        %1693 = vmatprep.mubr.bf16.mxu0 %v1522
        %1694 = vmatmul.mubr.bf16.gmra.mrb[0].mxu0 %v1520
        %v1695 = vpop.f32.mrb[0].mxu0
        %v1696 = vadd.f32 %v1454, %v1695
        %v1697 = vpop.f32.mrb[0].mxu0
        %v1698 = vpop.f32.mrb[0].mxu0
        %v1699 = vadd.f32 %v1454, %v1698
        %v1700 = vpop.f32.mrb[0].mxu0
        %1701 = vmatprep.mubr.bf16.mxu0 %v1526
        %1702 = vmatmul.mubr.bf16.gmra.mrb[0].mxu0 %v1524
        %v1703 = vpop.f32.mrb[0].mxu0
        %v1704 = vadd.f32 %v1454, %v1703
        %v1705 = vpop.f32.mrb[0].mxu0
        %v1706 = vpop.f32.mrb[0].mxu0
        %v1707 = vadd.f32 %v1454, %v1706
        %v1708 = vpop.f32.mrb[0].mxu0
        %1709 = vmatprep.mubr.bf16.mxu0 %v1530
        %1710 = vmatmul.mubr.bf16.gmra.mrb[0].mxu0 %v1528
        %v1711 = vpop.f32.mrb[0].mxu0
        %v1712 = vadd.f32 %v1454, %v1711
        %v1713 = vpop.f32.mrb[0].mxu0
        %v1714 = vpop.f32.mrb[0].mxu0
        %v1715 = vadd.f32 %v1454, %v1714
        %v1716 = vpop.f32.mrb[0].mxu0
        %1717 = vmatprep.mubr.bf16.mxu0 %v1534
        %1718 = vmatmul.mubr.bf16.gmra.mrb[0].mxu0 %v1532
        %v1719 = vpop.f32.mrb[0].mxu0
        %v1720 = vadd.f32 %v1454, %v1719
        %v1721 = vpop.f32.mrb[0].mxu0
        %v1722 = vpop.f32.mrb[0].mxu0
        %v1723 = vadd.f32 %v1454, %v1722
        %v1724 = vpop.f32.mrb[0].mxu0
        %1725 = vmatprep.mubr.bf16.mxu0 %v1533
        %1726 = vmatmul.mubr.bf16.gmra.mrb[0].mxu0 %v1531
        %v1727 = vpop.f32.mrb[0].mxu0
        %v1728 = vadd.f32 %v1454, %v1727
        %v1729 = vpop.f32.mrb[0].mxu0
        %v1730 = vpop.f32.mrb[0].mxu0
        %v1731 = vpop.f32.mrb[0].mxu0
        %1732 = vdwg.mxu0
        %v1733 = vmax.f32 %v1680, 0.0
        %v1734 = vmax.f32 %v1683, 0.0
        %v1735 = vmax.f32 %v1688, 0.0
        %v1736 = vmax.f32 %v1691, 0.0
        %v1737 = vmax.f32 %v1696, 0.0
        %v1738 = vmax.f32 %v1699, 0.0
        %v1739 = vmax.f32 %v1704, 0.0
        %v1740 = vmax.f32 %v1707, 0.0
        %v1741 = vmax.f32 %v1712, 0.0
        %v1742 = vmax.f32 %v1715, 0.0
        %v1743 = vmax.f32 %v1720, 0.0
        %v1744 = vmax.f32 %v1723, 0.0
        %v1745 = vmax.f32 %v1728, 0.0
        %v1746 = vpack.c.bf16 %v1734, %v1733
        %v1747 = vpack.c.bf16 %v1736, %v1735
        %v1748 = vpack.c.bf16 %v1738, %v1737
        %v1749 = vpack.c.bf16 %v1740, %v1739
        %v1750 = vpack.c.bf16 %v1742, %v1741
        %v1751 = vpack.c.bf16 %v1744, %v1743
        %v1752 = vpack.c.bf16 %v1745, %v1745
        %v1760 = vrot.slane %v1746, 2
        %v1761 = vrot.slane %v1747, 2
        %v1762 = vsel %vm766, %v1760, %v1761
        %v1763 = vrot.slane %v1748, 2
        %v1764 = vsel %vm766, %v1761, %v1763
        %v1765 = vrot.slane %v1749, 2
        %v1766 = vsel %vm766, %v1763, %v1765
        %v1767 = vrot.slane %v1750, 2
        %v1768 = vsel %vm766, %v1765, %v1767
        %v1769 = vrot.slane %v1751, 2
        %v1770 = vsel %vm766, %v1767, %v1769
        %v1771 = vrot.slane %v1752, 2
        %v1772 = vsel %vm766, %v1769, %v1771
        %1780 = vst [vmem:[#allocation2 + $0x90] sm:$0xc0] %v1760
        %1781 = vst [vmem:[#allocation2 + $0x98] sm:$0xff] %v1762
        %1782 = vst [vmem:[#allocation2 + $0xa0] sm:$0xff] %v1764
        %1783 = vst [vmem:[#allocation2 + $0xa8] sm:$0xff] %v1766
        %1784 = vst [vmem:[#allocation2 + $0xb0] sm:$0xff] %v1768
        %1785 = vst [vmem:[#allocation2 + $0xb8] sm:$0xff] %v1770
        %1786 = vst [vmem:[#allocation2 + $0xc0] sm:$0xff] %v1772
        %v1787 = vld [vmem:[#allocation2] sm:$0x1f]
        %v1788 = vld [vmem:[#allocation2 + $0x30] sm:$0x7c]
        %v1789 = vld [vmem:[#allocation2 + $0x60] sm:$0xf0]
        %v1790 = vld [vmem:[#allocation2 + $0x68] sm:$0x1]
        %v1791 = vld [vmem:[#allocation2 + $0x90] sm:$0xc0]
        %v1792 = vld [vmem:[#allocation2 + $0x98] sm:$0x7]
        %v1793 = vld [vmem:[#allocation2] sm:$0xe0]
        %v1794 = vld [vmem:[#allocation2 + $0x8] sm:$0x3]
        %v1795 = vld [vmem:[#allocation2 + $0x30] sm:$0x80]
        %v1796 = vld [vmem:[#allocation2 + $0x38] sm:$0xf]
        %v1797 = vld [vmem:[#allocation2 + $0x68] sm:$0x3e]
        %v1798 = vld [vmem:[#allocation2 + $0x98] sm:$0xf8]
        %v1800 = vrot.slane %v1788, 2
        %v1803 = vshrl.u32 %v1787, 16
        %v1805 = vshll.u32 %v1787, 16
        %v1807 = vrot.slane %v1805, 1
        %v1808 = vor.u32 %v1803, %v1807
        %v1811 = vshrl.u32 %v1788, 16
        %v1813 = vrot.slane %v1811, 2
        %v1814 = vshll.u32 %v1788, 16
        %v1816 = vrot.slane %v1814, 3
        %v1817 = vor.u32 %v1813, %v1816
        %v1821 = vrot.slane %v1789, 4
        %v1822 = vrot.slane %v1790, 4
        %v1823 = vsel %vm1376, %v1821, %v1822
        %v1827 = vrot.slane %v1791, 6
        %v1828 = vrot.slane %v1792, 6
        %v1829 = vsel %vm1018, %v1827, %v1828
        %vm1831 = vsmask.f32 3328
        %v1833 = vshrl.u32 %v1789, 16
        %v1835 = vrot.slane %v1833, 4
        %v1836 = vshll.u32 %v1789, 16
        %v1838 = vrot.slane %v1836, 5
        %v1839 = vor.u32 %v1835, %v1838
        %v1841 = vshrl.u32 %v1790, 16
        %v1843 = vrot.slane %v1841, 4
        %v1844 = vshll.u32 %v1790, 16
        %v1846 = vrot.slane %v1844, 5
        %v1847 = vor.u32 %v1843, %v1846
        %v1848 = vsel %vm1831, %v1839, %v1847
        %vm1850 = vsmask.f32 1280
        %v1852 = vshrl.u32 %v1791, 16
        %v1854 = vrot.slane %v1852, 6
        %v1855 = vshll.u32 %v1791, 16
        %v1857 = vrot.slane %v1855, 7
        %v1858 = vor.u32 %v1854, %v1857
        %v1860 = vshrl.u32 %v1792, 16
        %v1862 = vrot.slane %v1860, 6
        %v1863 = vshll.u32 %v1792, 16
        %v1865 = vrot.slane %v1863, 7
        %v1866 = vor.u32 %v1862, %v1865
        %v1867 = vsel %vm1850, %v1858, %v1866
        %vm1871 = vcmask 1042432
        %v1872 = vrot.slane %v1793, 5
        %v1873 = vrot.slane %v1794, 5
        %v1874 = vsel %vm1871, %v1872, %v1873
        %vm1878 = vcmask 1040384
        %v1879 = vrot.slane %v1795, 7
        %v1880 = vrot.slane %v1796, 7
        %v1881 = vsel %vm1878, %v1879, %v1880
        %vm1883 = vsmask.f32 2304
        %v1885 = vshrl.u32 %v1793, 16
        %v1887 = vrot.slane %v1885, 5
        %v1888 = vshll.u32 %v1793, 16
        %v1890 = vrot.slane %v1888, 6
        %v1891 = vor.u32 %v1887, %v1890
        %v1893 = vshrl.u32 %v1794, 16
        %v1895 = vrot.slane %v1893, 5
        %v1896 = vshll.u32 %v1794, 16
        %v1898 = vrot.slane %v1896, 6
        %v1899 = vor.u32 %v1895, %v1898
        %v1900 = vsel %vm1883, %v1891, %v1899
        %vm1902 = vsmask.f32 256
        %v1904 = vshrl.u32 %v1795, 16
        %v1906 = vrot.slane %v1904, 7
        %v1908 = vshrl.u32 %v1796, 16
        %v1910 = vrot.slane %v1908, 7
        %v1911 = vshll.u32 %v1796, 16
        %v1913 = vor.u32 %v1910, %v1911
        %v1914 = vsel %vm1902, %v1906, %v1913
        %v1917 = vrot.slane %v1797, 1
        %v1920 = vrot.slane %v1798, 3
        %v1923 = vshrl.u32 %v1797, 16
        %v1925 = vrot.slane %v1923, 1
        %v1926 = vshll.u32 %v1797, 16
        %v1928 = vrot.slane %v1926, 2
        %v1929 = vor.u32 %v1925, %v1928
        %v1932 = vshrl.u32 %v1798, 16
        %v1934 = vrot.slane %v1932, 3
        %v1935 = vshll.u32 %v1798, 16
        %v1937 = vrot.slane %v1935, 4
        %v1938 = vor.u32 %v1934, %v1937
        %v1940 = vld [vmem:[%s3] sm:$0xf]
        %v1941 = vld [vmem:[%s3 + $0x4] sm:$0xf]
        %v1942 = vld [vmem:[%s3 + $0x8] sm:$0xf]
        %v1943 = vld [vmem:[%s3 + $0xc] sm:$0xf]
        %v1944 = vld [vmem:[%s3 + $0x10] sm:$0xf]
        %v1945 = vld [vmem:[%s3 + $0x14] sm:$0xf]
        %v1946 = vld [vmem:[%s3 + $0x18] sm:$0xf]
        %v1947 = vld [vmem:[%s3 + $0x1c] sm:$0xf]
        %v1948 = vld [vmem:[%s3 + $0x20] sm:$0xf]
        %v1949 = vld [vmem:[%s3 + $0x24] sm:$0xf]
        %v1950 = vld [vmem:[%s3 + $0x28] sm:$0xf]
        %v1951 = vld [vmem:[%s3 + $0x2c] sm:$0xf]
        %v1952 = vld [vmem:[%s3 + $0x30] sm:$0xf]
        %v1953 = vld [vmem:[%s3 + $0x34] sm:$0xf]
        %v1954 = vld [vmem:[%s3 + $0x38] sm:$0xf]
        %v1955 = vld [vmem:[%s3 + $0x3c] sm:$0xf]
        %v1956 = vld [vmem:[%s3 + $0x40] sm:$0xf]
        %v1957 = vld [vmem:[%s3 + $0x44] sm:$0xf]
        %v1958 = vld [vmem:[%s3 + $0x48] sm:$0xf]
        %v1959 = vld [vmem:[%s3 + $0x4c] sm:$0xf]
        %v1960 = vld [vmem:[%s3 + $0x50] sm:$0xf]
        %v1961 = vld [vmem:[%s3 + $0x54] sm:$0xf]
        %v1962 = vld [vmem:[%s3 + $0x58] sm:$0xf]
        %v1963 = vld [vmem:[%s3 + $0x5c] sm:$0xf]
        %v1964 = vld [vmem:[%s3 + $0x60] sm:$0xf]
        %v1965 = vld [vmem:[%s3 + $0x64] sm:$0xf]
        %v1966 = vld [vmem:[%s3 + $0x68] sm:$0xf]
        %v1967 = vld [vmem:[%s3 + $0x6c] sm:$0xf]
        %v1968 = vld [vmem:[%s3 + $0x70] sm:$0xf]
        %v1969 = vld [vmem:[%s3 + $0x74] sm:$0xf]
        %v1970 = vld [vmem:[%s3 + $0x78] sm:$0xf]
        %v1971 = vld [vmem:[%s3 + $0x7c] sm:$0xf]
        %v1972 = vld [vmem:[%s3 + $0x80] sm:$0xf]
        %v1973 = vld [vmem:[%s3 + $0x84] sm:$0xf]
        %v1974 = vld [vmem:[%s3 + $0x88] sm:$0xf]
        %v1975 = vld [vmem:[%s3 + $0x8c] sm:$0xf]
        %v1976 = vld [vmem:[%s3 + $0x90] sm:$0xf]
        %v1977 = vld [vmem:[%s3 + $0x94] sm:$0xf]
        %v1978 = vld [vmem:[%s3 + $0x98] sm:$0xf]
        %v1979 = vld [vmem:[%s3 + $0x9c] sm:$0xf]
        %v1980 = vld [vmem:[%s3 + $0xa0] sm:$0xf]
        %v1981 = vld [vmem:[%s3 + $0xa4] sm:$0xf]
        %v1982 = vld [vmem:[%s3 + $0xa8] sm:$0xf]
        %v1983 = vld [vmem:[%s3 + $0xac] sm:$0xf]
        %v1984 = vld [vmem:[%s3 + $0xb0] sm:$0xf]
        %v1985 = vld [vmem:[%s3 + $0xb4] sm:$0xf]
        %v1986 = vld [vmem:[%s3 + $0xb8] sm:$0xf]
        %v1987 = vld [vmem:[%s3 + $0xbc] sm:$0xf]
        %v1988 = vld [vmem:[%s3 + $0xc0] sm:$0xf]
        %v1989 = vld [vmem:[%s3 + $0xc4] sm:$0xf]
        %v1990 = vld [vmem:[%s3 + $0xc8] sm:$0xf]
        %v1991 = vld [vmem:[%s3 + $0xcc] sm:$0xf]
        %v1992 = vld [vmem:[%s3 + $0xd0] sm:$0xf]
        %v1993 = vld [vmem:[%s3 + $0xd4] sm:$0xf]
        %v1994 = vld [vmem:[%s3 + $0xd8] sm:$0xf]
        %v1995 = vld [vmem:[%s3 + $0xdc] sm:$0xf]
        %v1996 = vld [vmem:[%s3 + $0xe0] sm:$0xf]
        %v1997 = vld [vmem:[%s3 + $0xe4] sm:$0xf]
        %v1998 = vld [vmem:[%s3 + $0xe8] sm:$0xf]
        %v1999 = vld [vmem:[%s3 + $0xec] sm:$0xf]
        %v2000 = vld [vmem:[%s3 + $0xf0] sm:$0xf]
        %v2001 = vld [vmem:[%s3 + $0xf4] sm:$0xf]
        %v2002 = vld [vmem:[%s3 + $0xf8] sm:$0xf]
        %v2003 = vld [vmem:[%s3 + $0xfc] sm:$0xf]
        %v2004 = vld [vmem:[%s3 + $0x100] sm:$0xf]
        %v2005 = vld [vmem:[%s3 + $0x104] sm:$0xf]
        %v2006 = vld [vmem:[%s3 + $0x108] sm:$0xf]
        %v2007 = vld [vmem:[%s3 + $0x10c] sm:$0xf]
        %v2008 = vld [vmem:[%s3 + $0x110] sm:$0xf]
        %v2009 = vld [vmem:[%s3 + $0x114] sm:$0xf]
        %v2010 = vld [vmem:[%s3 + $0x118] sm:$0xf]
        %v2011 = vld [vmem:[%s3 + $0x11c] sm:$0xf]
        %v2012 = vld [vmem:[%s3 + $0x120] sm:$0xf]
        %v2013 = vld [vmem:[%s3 + $0x124] sm:$0xf]
        %v2014 = vld [vmem:[%s3 + $0x128] sm:$0xf]
        %v2015 = vld [vmem:[%s3 + $0x12c] sm:$0xf]
        %v2016 = vld [vmem:[%s3 + $0x130] sm:$0xf]
        %v2017 = vld [vmem:[%s3 + $0x134] sm:$0xf]
        %v2018 = vld [vmem:[%s3 + $0x138] sm:$0xf]
        %v2019 = vld [vmem:[%s3 + $0x13c] sm:$0xf]
        %v2020 = vld [vmem:[%s3 + $0x140] sm:$0xf]
        %v2021 = vld [vmem:[%s3 + $0x144] sm:$0xf]
        %v2022 = vld [vmem:[%s3 + $0x148] sm:$0xf]
        %v2023 = vld [vmem:[%s3 + $0x14c] sm:$0xf]
        %v2024 = vld [vmem:[%s3 + $0x150] sm:$0xf]
        %v2025 = vld [vmem:[%s3 + $0x154] sm:$0xf]
        %v2026 = vld [vmem:[%s3 + $0x158] sm:$0xf]
        %v2027 = vld [vmem:[%s3 + $0x15c] sm:$0xf]
        %v2028 = vld [vmem:[%s3 + $0x160] sm:$0xf]
        %v2029 = vld [vmem:[%s3 + $0x164] sm:$0xf]
        %v2030 = vld [vmem:[%s3 + $0x168] sm:$0xf]
        %v2031 = vld [vmem:[%s3 + $0x16c] sm:$0xf]
        %v2032 = vld [vmem:[%s3 + $0x170] sm:$0xf]
        %v2033 = vld [vmem:[%s3 + $0x174] sm:$0xf]
        %v2034 = vld [vmem:[%s3 + $0x178] sm:$0xf]
        %v2035 = vld [vmem:[%s3 + $0x17c] sm:$0xf]
        %v2036 = vld [vmem:[%s3 + $0x180] sm:$0xf]
        %v2037 = vld [vmem:[%s3 + $0x184] sm:$0xf]
        %v2038 = vld [vmem:[%s3 + $0x188] sm:$0xf]
        %v2039 = vld [vmem:[%s3 + $0x18c] sm:$0xf]
        %v2040 = vld [vmem:[%s3 + $0x190] sm:$0xf]
        %v2041 = vld [vmem:[%s3 + $0x194] sm:$0xf]
        %v2042 = vld [vmem:[%s3 + $0x198] sm:$0xf]
        %v2043 = vld [vmem:[%s3 + $0x19c] sm:$0xf]
        %v2044 = vld [vmem:[%s3 + $0x1a0] sm:$0xf]
        %v2045 = vld [vmem:[%s3 + $0x1a4] sm:$0xf]
        %v2046 = vld [vmem:[%s3 + $0x1a8] sm:$0xf]
        %v2047 = vld [vmem:[%s3 + $0x1ac] sm:$0xf]
        %v2048 = vld [vmem:[%s3 + $0x1b0] sm:$0xf]
        %v2049 = vld [vmem:[%s3 + $0x1b4] sm:$0xf]
        %v2050 = vld [vmem:[%s3 + $0x1b8] sm:$0xf]
        %v2051 = vld [vmem:[%s3 + $0x1bc] sm:$0xf]
        %v2052 = vld [vmem:[%s3 + $0x1c0] sm:$0xf]
        %v2053 = vld [vmem:[%s3 + $0x1c4] sm:$0xf]
        %v2054 = vld [vmem:[%s3 + $0x1c8] sm:$0xf]
        %v2055 = vld [vmem:[%s3 + $0x1cc] sm:$0xf]
        %v2056 = vld [vmem:[%s3 + $0x1d0] sm:$0xf]
        %v2057 = vld [vmem:[%s3 + $0x1d4] sm:$0xf]
        %v2058 = vld [vmem:[%s3 + $0x1d8] sm:$0xf]
        %v2059 = vld [vmem:[%s3 + $0x1dc] sm:$0xf]
        %v2060 = vld [vmem:[%s3 + $0x1e0] sm:$0xf]
        %v2061 = vld [vmem:[%s3 + $0x1e4] sm:$0xf]
        %v2062 = vld [vmem:[%s3 + $0x1e8] sm:$0xf]
        %v2063 = vld [vmem:[%s3 + $0x1ec] sm:$0xf]
        %v2064 = vld [vmem:[%s3 + $0x1f0] sm:$0xf]
        %v2065 = vld [vmem:[%s3 + $0x1f4] sm:$0xf]
        %v2066 = vld [vmem:[%s3 + $0x1f8] sm:$0xf]
        %v2067 = vld [vmem:[%s3 + $0x1fc] sm:$0xf]
        %v2068 = vld [vmem:[%s3 + $0x200] sm:$0xf]
        %v2069 = vld [vmem:[%s3 + $0x204] sm:$0xf]
        %v2070 = vld [vmem:[%s3 + $0x208] sm:$0xf]
        %v2071 = vld [vmem:[%s3 + $0x20c] sm:$0xf]
        %v2072 = vld [vmem:[%s3 + $0x210] sm:$0xf]
        %v2073 = vld [vmem:[%s3 + $0x214] sm:$0xf]
        %v2074 = vld [vmem:[%s3 + $0x218] sm:$0xf]
        %v2075 = vld [vmem:[%s3 + $0x21c] sm:$0xf]
        %v2076 = vld [vmem:[%s3 + $0x220] sm:$0xf]
        %v2077 = vld [vmem:[%s3 + $0x224] sm:$0xf]
        %v2078 = vld [vmem:[%s3 + $0x228] sm:$0xf]
        %v2079 = vld [vmem:[%s3 + $0x22c] sm:$0xf]
        %v2080 = vld [vmem:[%s3 + $0x230] sm:$0xf]
        %v2081 = vld [vmem:[%s3 + $0x234] sm:$0xf]
        %v2082 = vld [vmem:[%s3 + $0x238] sm:$0xf]
        %v2083 = vld [vmem:[%s3 + $0x23c] sm:$0xf]
        %v2084 = vld [vmem:[%s3 + $0x240] sm:$0xf]
        %v2085 = vld [vmem:[%s3 + $0x244] sm:$0xf]
        %v2086 = vld [vmem:[%s3 + $0x248] sm:$0xf]
        %v2087 = vld [vmem:[%s3 + $0x24c] sm:$0xf]
        %v2088 = vld [vmem:[%s3 + $0x250] sm:$0xf]
        %v2089 = vld [vmem:[%s3 + $0x254] sm:$0xf]
        %v2090 = vld [vmem:[%s3 + $0x258] sm:$0xf]
        %v2091 = vld [vmem:[%s3 + $0x25c] sm:$0xf]
        %v2092 = vld [vmem:[%s3 + $0x260] sm:$0xf]
        %v2093 = vld [vmem:[%s3 + $0x264] sm:$0xf]
        %v2094 = vld [vmem:[%s3 + $0x268] sm:$0xf]
        %v2095 = vld [vmem:[%s3 + $0x26c] sm:$0xf]
        %v2096 = vld [vmem:[%s3 + $0x270] sm:$0xf]
        %v2097 = vld [vmem:[%s3 + $0x274] sm:$0xf]
        %v2098 = vld [vmem:[%s3 + $0x278] sm:$0xf]
        %v2099 = vld [vmem:[%s3 + $0x27c] sm:$0xf]
        %v2100 = vld [vmem:[%s3 + $0x280] sm:$0xf]
        %v2101 = vld [vmem:[%s3 + $0x284] sm:$0xf]
        %v2102 = vld [vmem:[%s3 + $0x288] sm:$0xf]
        %v2103 = vld [vmem:[%s3 + $0x28c] sm:$0xf]
        %v2104 = vld [vmem:[%s3 + $0x290] sm:$0xf]
        %v2105 = vld [vmem:[%s3 + $0x294] sm:$0xf]
        %v2106 = vld [vmem:[%s3 + $0x298] sm:$0xf]
        %v2107 = vld [vmem:[%s3 + $0x29c] sm:$0xf]
        %v2108 = vld [vmem:[%s3 + $0x2a0] sm:$0xf]
        %v2109 = vld [vmem:[%s3 + $0x2a4] sm:$0xf]
        %v2110 = vld [vmem:[%s3 + $0x2a8] sm:$0xf]
        %v2111 = vld [vmem:[%s3 + $0x2ac] sm:$0xf]
        %v2112 = vld [vmem:[%s3 + $0x2b0] sm:$0xf]
        %v2113 = vld [vmem:[%s3 + $0x2b4] sm:$0xf]
        %v2114 = vld [vmem:[%s3 + $0x2b8] sm:$0xf]
        %v2115 = vld [vmem:[%s3 + $0x2bc] sm:$0xf]
        %v2116 = vld [vmem:[%s3 + $0x2c0] sm:$0xf]
        %v2117 = vld [vmem:[%s3 + $0x2c4] sm:$0xf]
        %v2118 = vld [vmem:[%s3 + $0x2c8] sm:$0xf]
        %v2119 = vld [vmem:[%s3 + $0x2cc] sm:$0xf]
        %v2120 = vld [vmem:[%s3 + $0x2d0] sm:$0xf]
        %v2121 = vld [vmem:[%s3 + $0x2d4] sm:$0xf]
        %v2122 = vld [vmem:[%s3 + $0x2d8] sm:$0xf]
        %v2123 = vld [vmem:[%s3 + $0x2dc] sm:$0xf]
        %v2124 = vld [vmem:[%s3 + $0x2e0] sm:$0xf]
        %v2125 = vld [vmem:[%s3 + $0x2e4] sm:$0xf]
        %v2126 = vld [vmem:[%s3 + $0x2e8] sm:$0xf]
        %v2127 = vld [vmem:[%s3 + $0x2ec] sm:$0xf]
        %v2128 = vld [vmem:[%s3 + $0x2f0] sm:$0xf]
        %v2129 = vld [vmem:[%s3 + $0x2f4] sm:$0xf]
        %v2130 = vld [vmem:[%s3 + $0x2f8] sm:$0xf]
        %v2131 = vld [vmem:[%s3 + $0x2fc] sm:$0xf]
        %v2132 = vld [vmem:[%s3 + $0x300] sm:$0xf]
        %v2133 = vld [vmem:[%s3 + $0x304] sm:$0xf]
        %v2134 = vld [vmem:[%s3 + $0x308] sm:$0xf]
        %v2135 = vld [vmem:[%s3 + $0x30c] sm:$0xf]
        %v2136 = vld [vmem:[%s3 + $0x310] sm:$0xf]
        %v2137 = vld [vmem:[%s3 + $0x314] sm:$0xf]
        %v2138 = vld [vmem:[%s3 + $0x318] sm:$0xf]
        %v2139 = vld [vmem:[%s3 + $0x31c] sm:$0xf]
        %v2140 = vld [vmem:[%s3 + $0x320] sm:$0xf]
        %v2141 = vld [vmem:[%s3 + $0x324] sm:$0xf]
        %v2142 = vld [vmem:[%s3 + $0x328] sm:$0xf]
        %v2143 = vld [vmem:[%s3 + $0x32c] sm:$0xf]
        %v2144 = vld [vmem:[%s3 + $0x330] sm:$0xf]
        %v2145 = vld [vmem:[%s3 + $0x334] sm:$0xf]
        %v2146 = vld [vmem:[%s3 + $0x338] sm:$0xf]
        %v2147 = vld [vmem:[%s3 + $0x33c] sm:$0xf]
        %v2148 = vld [vmem:[%s3 + $0x340] sm:$0xf]
        %v2149 = vld [vmem:[%s3 + $0x344] sm:$0xf]
        %v2150 = vld [vmem:[%s3 + $0x348] sm:$0xf]
        %v2151 = vld [vmem:[%s3 + $0x34c] sm:$0xf]
        %v2152 = vld [vmem:[%s3 + $0x350] sm:$0xf]
        %v2153 = vld [vmem:[%s3 + $0x354] sm:$0xf]
        %v2154 = vld [vmem:[%s3 + $0x358] sm:$0xf]
        %v2155 = vld [vmem:[%s3 + $0x35c] sm:$0xf]
        %v2156 = vld [vmem:[%s3 + $0x360] sm:$0xf]
        %v2157 = vld [vmem:[%s3 + $0x364] sm:$0xf]
        %v2158 = vld [vmem:[%s3 + $0x368] sm:$0xf]
        %v2159 = vld [vmem:[%s3 + $0x36c] sm:$0xf]
        %v2160 = vld [vmem:[%s3 + $0x370] sm:$0xf]
        %v2161 = vld [vmem:[%s3 + $0x374] sm:$0xf]
        %v2162 = vld [vmem:[%s3 + $0x378] sm:$0xf]
        %v2163 = vld [vmem:[%s3 + $0x37c] sm:$0xf]
        %v2164 = vld [vmem:[%s3 + $0x380] sm:$0xf]
        %v2165 = vld [vmem:[%s3 + $0x384] sm:$0xf]
        %v2166 = vld [vmem:[%s3 + $0x388] sm:$0xf]
        %v2167 = vld [vmem:[%s3 + $0x38c] sm:$0xf]
        %v2168 = vld [vmem:[%s3 + $0x390] sm:$0xf]
        %v2169 = vld [vmem:[%s3 + $0x394] sm:$0xf]
        %v2170 = vld [vmem:[%s3 + $0x398] sm:$0xf]
        %v2171 = vld [vmem:[%s3 + $0x39c] sm:$0xf]
        %v2172 = vld [vmem:[%s3 + $0x3a0] sm:$0xf]
        %v2173 = vld [vmem:[%s3 + $0x3a4] sm:$0xf]
        %v2174 = vld [vmem:[%s3 + $0x3a8] sm:$0xf]
        %v2175 = vld [vmem:[%s3 + $0x3ac] sm:$0xf]
        %v2176 = vld [vmem:[%s3 + $0x3b0] sm:$0xf]
        %v2177 = vld [vmem:[%s3 + $0x3b4] sm:$0xf]
        %v2178 = vld [vmem:[%s3 + $0x3b8] sm:$0xf]
        %v2179 = vld [vmem:[%s3 + $0x3bc] sm:$0xf]
        %v2180 = vld [vmem:[%s3 + $0x3c0] sm:$0xf]
        %v2181 = vld [vmem:[%s3 + $0x3c4] sm:$0xf]
        %v2182 = vld [vmem:[%s3 + $0x3c8] sm:$0xf]
        %v2183 = vld [vmem:[%s3 + $0x3cc] sm:$0xf]
        %v2184 = vld [vmem:[%s3 + $0x3d0] sm:$0xf]
        %v2185 = vld [vmem:[%s3 + $0x3d4] sm:$0xf]
        %v2186 = vld [vmem:[%s3 + $0x3d8] sm:$0xf]
        %v2187 = vld [vmem:[%s3 + $0x3dc] sm:$0xf]
        %v2188 = vld [vmem:[%s3 + $0x3e0] sm:$0xf]
        %v2189 = vld [vmem:[%s3 + $0x3e4] sm:$0xf]
        %v2190 = vld [vmem:[%s3 + $0x3e8] sm:$0xf]
        %v2191 = vld [vmem:[%s3 + $0x3ec] sm:$0xf]
        %v2192 = vld [vmem:[%s3 + $0x3f0] sm:$0xf]
        %v2193 = vld [vmem:[%s3 + $0x3f4] sm:$0xf]
        %v2194 = vld [vmem:[%s3 + $0x3f8] sm:$0xf]
        %v2195 = vld [vmem:[%s3 + $0x3fc] sm:$0xf]
        %v2196 = vld [vmem:[%s4] sm:$0x1]
        %v2198 = vlaneseq
        %v2199 = vshrl.u32 %v2198, 7
        %v2200 = vsub.s32 0, %v2199
        %v2201 = vrot.slane %v2196, %v2200
        %v2459 = vunpack.c.l.b16 %v1940
        %v2460 = vunpack.c.l.b16 %v1941
        %v2461 = vunpack.c.l.b16 %v1942
        %v2462 = vunpack.c.l.b16 %v1943
        %v2463 = vunpack.c.l.b16 %v1944
        %v2464 = vunpack.c.l.b16 %v1945
        %v2465 = vunpack.c.l.b16 %v1946
        %v2466 = vunpack.c.l.b16 %v1947
        %v2467 = vunpack.c.l.b16 %v1948
        %v2468 = vunpack.c.l.b16 %v1949
        %v2469 = vunpack.c.l.b16 %v1950
        %v2470 = vunpack.c.l.b16 %v1951
        %v2471 = vunpack.c.l.b16 %v1952
        %v2472 = vunpack.c.l.b16 %v1953
        %v2473 = vunpack.c.l.b16 %v1954
        %v2474 = vunpack.c.l.b16 %v1955
        %v2475 = vunpack.c.l.b16 %v1956
        %v2476 = vunpack.c.l.b16 %v1957
        %v2477 = vunpack.c.l.b16 %v1958
        %v2478 = vunpack.c.l.b16 %v1959
        %v2479 = vunpack.c.l.b16 %v1960
        %v2480 = vunpack.c.l.b16 %v1961
        %v2481 = vunpack.c.l.b16 %v1962
        %v2482 = vunpack.c.l.b16 %v1963
        %v2483 = vunpack.c.l.b16 %v1964
        %v2484 = vunpack.c.l.b16 %v1965
        %v2485 = vunpack.c.l.b16 %v1966
        %v2486 = vunpack.c.l.b16 %v1967
        %v2487 = vunpack.c.l.b16 %v1968
        %v2488 = vunpack.c.l.b16 %v1969
        %v2489 = vunpack.c.l.b16 %v1970
        %v2490 = vunpack.c.l.b16 %v1971
        %v2491 = vunpack.c.l.b16 %v1972
        %v2492 = vunpack.c.l.b16 %v1973
        %v2493 = vunpack.c.l.b16 %v1974
        %v2494 = vunpack.c.l.b16 %v1975
        %v2495 = vunpack.c.l.b16 %v1976
        %v2496 = vunpack.c.l.b16 %v1977
        %v2497 = vunpack.c.l.b16 %v1978
        %v2498 = vunpack.c.l.b16 %v1979
        %v2499 = vunpack.c.l.b16 %v1980
        %v2500 = vunpack.c.l.b16 %v1981
        %v2501 = vunpack.c.l.b16 %v1982
        %v2502 = vunpack.c.l.b16 %v1983
        %v2503 = vunpack.c.l.b16 %v1984
        %v2504 = vunpack.c.l.b16 %v1985
        %v2505 = vunpack.c.l.b16 %v1986
        %v2506 = vunpack.c.l.b16 %v1987
        %v2507 = vunpack.c.l.b16 %v1988
        %v2508 = vunpack.c.l.b16 %v1989
        %v2509 = vunpack.c.l.b16 %v1990
        %v2510 = vunpack.c.l.b16 %v1991
        %v2511 = vunpack.c.l.b16 %v1992
        %v2512 = vunpack.c.l.b16 %v1993
        %v2513 = vunpack.c.l.b16 %v1994
        %v2514 = vunpack.c.l.b16 %v1995
        %v2515 = vunpack.c.l.b16 %v1996
        %v2516 = vunpack.c.l.b16 %v1997
        %v2517 = vunpack.c.l.b16 %v1998
        %v2518 = vunpack.c.l.b16 %v1999
        %v2519 = vunpack.c.l.b16 %v2000
        %v2520 = vunpack.c.l.b16 %v2001
        %v2521 = vunpack.c.l.b16 %v2002
        %v2522 = vunpack.c.l.b16 %v2003
        %v2523 = vunpack.c.l.b16 %v2004
        %v2524 = vunpack.c.l.b16 %v2005
        %v2525 = vunpack.c.l.b16 %v2006
        %v2526 = vunpack.c.l.b16 %v2007
        %v2527 = vunpack.c.l.b16 %v2008
        %v2528 = vunpack.c.l.b16 %v2009
        %v2529 = vunpack.c.l.b16 %v2010
        %v2530 = vunpack.c.l.b16 %v2011
        %v2531 = vunpack.c.l.b16 %v2012
        %v2532 = vunpack.c.l.b16 %v2013
        %v2533 = vunpack.c.l.b16 %v2014
        %v2534 = vunpack.c.l.b16 %v2015
        %v2535 = vunpack.c.l.b16 %v2016
        %v2536 = vunpack.c.l.b16 %v2017
        %v2537 = vunpack.c.l.b16 %v2018
        %v2538 = vunpack.c.l.b16 %v2019
        %v2539 = vunpack.c.l.b16 %v2020
        %v2540 = vunpack.c.l.b16 %v2021
        %v2541 = vunpack.c.l.b16 %v2022
        %v2542 = vunpack.c.l.b16 %v2023
        %v2543 = vunpack.c.l.b16 %v2024
        %v2544 = vunpack.c.l.b16 %v2025
        %v2545 = vunpack.c.l.b16 %v2026
        %v2546 = vunpack.c.l.b16 %v2027
        %v2547 = vunpack.c.l.b16 %v2028
        %v2548 = vunpack.c.l.b16 %v2029
        %v2549 = vunpack.c.l.b16 %v2030
        %v2550 = vunpack.c.l.b16 %v2031
        %v2551 = vunpack.c.l.b16 %v2032
        %v2552 = vunpack.c.l.b16 %v2033
        %v2553 = vunpack.c.l.b16 %v2034
        %v2554 = vunpack.c.l.b16 %v2035
        %v2555 = vunpack.c.l.b16 %v2036
        %v2556 = vunpack.c.l.b16 %v2037
        %v2557 = vunpack.c.l.b16 %v2038
        %v2558 = vunpack.c.l.b16 %v2039
        %v2559 = vunpack.c.l.b16 %v2040
        %v2560 = vunpack.c.l.b16 %v2041
        %v2561 = vunpack.c.l.b16 %v2042
        %v2562 = vunpack.c.l.b16 %v2043
        %v2563 = vunpack.c.l.b16 %v2044
        %v2564 = vunpack.c.l.b16 %v2045
        %v2565 = vunpack.c.l.b16 %v2046
        %v2566 = vunpack.c.l.b16 %v2047
        %v2567 = vunpack.c.l.b16 %v2048
        %v2568 = vunpack.c.l.b16 %v2049
        %v2569 = vunpack.c.l.b16 %v2050
        %v2570 = vunpack.c.l.b16 %v2051
        %v2571 = vunpack.c.l.b16 %v2052
        %v2572 = vunpack.c.l.b16 %v2053
        %v2573 = vunpack.c.l.b16 %v2054
        %v2574 = vunpack.c.l.b16 %v2055
        %v2575 = vunpack.c.l.b16 %v2056
        %v2576 = vunpack.c.l.b16 %v2057
        %v2577 = vunpack.c.l.b16 %v2058
        %v2578 = vunpack.c.l.b16 %v2059
        %v2579 = vunpack.c.l.b16 %v2060
        %v2580 = vunpack.c.l.b16 %v2061
        %v2581 = vunpack.c.l.b16 %v2062
        %v2582 = vunpack.c.l.b16 %v2063
        %v2583 = vunpack.c.l.b16 %v2064
        %v2584 = vunpack.c.l.b16 %v2065
        %v2585 = vunpack.c.l.b16 %v2066
        %v2586 = vunpack.c.l.b16 %v2067
        %v2587 = vunpack.c.l.b16 %v2068
        %v2588 = vunpack.c.l.b16 %v2069
        %v2589 = vunpack.c.l.b16 %v2070
        %v2590 = vunpack.c.l.b16 %v2071
        %v2591 = vunpack.c.l.b16 %v2072
        %v2592 = vunpack.c.l.b16 %v2073
        %v2593 = vunpack.c.l.b16 %v2074
        %v2594 = vunpack.c.l.b16 %v2075
        %v2595 = vunpack.c.l.b16 %v2076
        %v2596 = vunpack.c.l.b16 %v2077
        %v2597 = vunpack.c.l.b16 %v2078
        %v2598 = vunpack.c.l.b16 %v2079
        %v2599 = vunpack.c.l.b16 %v2080
        %v2600 = vunpack.c.l.b16 %v2081
        %v2601 = vunpack.c.l.b16 %v2082
        %v2602 = vunpack.c.l.b16 %v2083
        %v2603 = vunpack.c.l.b16 %v2084
        %v2604 = vunpack.c.l.b16 %v2085
        %v2605 = vunpack.c.l.b16 %v2086
        %v2606 = vunpack.c.l.b16 %v2087
        %v2607 = vunpack.c.l.b16 %v2088
        %v2608 = vunpack.c.l.b16 %v2089
        %v2609 = vunpack.c.l.b16 %v2090
        %v2610 = vunpack.c.l.b16 %v2091
        %v2611 = vunpack.c.l.b16 %v2092
        %v2612 = vunpack.c.l.b16 %v2093
        %v2613 = vunpack.c.l.b16 %v2094
        %v2614 = vunpack.c.l.b16 %v2095
        %v2615 = vunpack.c.l.b16 %v2096
        %v2616 = vunpack.c.l.b16 %v2097
        %v2617 = vunpack.c.l.b16 %v2098
        %v2618 = vunpack.c.l.b16 %v2099
        %v2619 = vunpack.c.l.b16 %v2100
        %v2620 = vunpack.c.l.b16 %v2101
        %v2621 = vunpack.c.l.b16 %v2102
        %v2622 = vunpack.c.l.b16 %v2103
        %v2623 = vunpack.c.l.b16 %v2104
        %v2624 = vunpack.c.l.b16 %v2105
        %v2625 = vunpack.c.l.b16 %v2106
        %v2626 = vunpack.c.l.b16 %v2107
        %v2627 = vunpack.c.l.b16 %v2108
        %v2628 = vunpack.c.l.b16 %v2109
        %v2629 = vunpack.c.l.b16 %v2110
        %v2630 = vunpack.c.l.b16 %v2111
        %v2631 = vunpack.c.l.b16 %v2112
        %v2632 = vunpack.c.l.b16 %v2113
        %v2633 = vunpack.c.l.b16 %v2114
        %v2634 = vunpack.c.l.b16 %v2115
        %v2635 = vunpack.c.l.b16 %v2116
        %v2636 = vunpack.c.l.b16 %v2117
        %v2637 = vunpack.c.l.b16 %v2118
        %v2638 = vunpack.c.l.b16 %v2119
        %v2639 = vunpack.c.l.b16 %v2120
        %v2640 = vunpack.c.l.b16 %v2121
        %v2641 = vunpack.c.l.b16 %v2122
        %v2642 = vunpack.c.l.b16 %v2123
        %v2643 = vunpack.c.l.b16 %v2124
        %v2644 = vunpack.c.l.b16 %v2125
        %v2645 = vunpack.c.l.b16 %v2126
        %v2646 = vunpack.c.l.b16 %v2127
        %v2647 = vunpack.c.l.b16 %v2128
        %v2648 = vunpack.c.l.b16 %v2129
        %v2649 = vunpack.c.l.b16 %v2130
        %v2650 = vunpack.c.l.b16 %v2131
        %v2651 = vunpack.c.l.b16 %v2132
        %v2652 = vunpack.c.l.b16 %v2133
        %v2653 = vunpack.c.l.b16 %v2134
        %v2654 = vunpack.c.l.b16 %v2135
        %v2655 = vunpack.c.l.b16 %v2136
        %v2656 = vunpack.c.l.b16 %v2137
        %v2657 = vunpack.c.l.b16 %v2138
        %v2658 = vunpack.c.l.b16 %v2139
        %v2659 = vunpack.c.l.b16 %v2140
        %v2660 = vunpack.c.l.b16 %v2141
        %v2661 = vunpack.c.l.b16 %v2142
        %v2662 = vunpack.c.l.b16 %v2143
        %v2663 = vunpack.c.l.b16 %v2144
        %v2664 = vunpack.c.l.b16 %v2145
        %v2665 = vunpack.c.l.b16 %v2146
        %v2666 = vunpack.c.l.b16 %v2147
        %v2667 = vunpack.c.l.b16 %v2148
        %v2668 = vunpack.c.l.b16 %v2149
        %v2669 = vunpack.c.l.b16 %v2150
        %v2670 = vunpack.c.l.b16 %v2151
        %v2671 = vunpack.c.l.b16 %v2152
        %v2672 = vunpack.c.l.b16 %v2153
        %v2673 = vunpack.c.l.b16 %v2154
        %v2674 = vunpack.c.l.b16 %v2155
        %v2675 = vunpack.c.l.b16 %v2156
        %v2676 = vunpack.c.l.b16 %v2157
        %v2677 = vunpack.c.l.b16 %v2158
        %v2678 = vunpack.c.l.b16 %v2159
        %v2679 = vunpack.c.l.b16 %v2160
        %v2680 = vunpack.c.l.b16 %v2161
        %v2681 = vunpack.c.l.b16 %v2162
        %v2682 = vunpack.c.l.b16 %v2163
        %v2683 = vunpack.c.l.b16 %v2164
        %v2684 = vunpack.c.l.b16 %v2165
        %v2685 = vunpack.c.l.b16 %v2166
        %v2686 = vunpack.c.l.b16 %v2167
        %v2687 = vunpack.c.l.b16 %v2168
        %v2688 = vunpack.c.l.b16 %v2169
        %v2689 = vunpack.c.l.b16 %v2170
        %v2690 = vunpack.c.l.b16 %v2171
        %v2691 = vunpack.c.l.b16 %v2172
        %v2692 = vunpack.c.l.b16 %v2173
        %v2693 = vunpack.c.l.b16 %v2174
        %v2694 = vunpack.c.l.b16 %v2175
        %v2695 = vunpack.c.l.b16 %v2176
        %v2696 = vunpack.c.l.b16 %v2177
        %v2697 = vunpack.c.l.b16 %v2178
        %v2698 = vunpack.c.l.b16 %v2179
        %v2699 = vunpack.c.l.b16 %v2180
        %v2700 = vunpack.c.l.b16 %v2181
        %v2701 = vunpack.c.l.b16 %v2182
        %v2702 = vunpack.c.l.b16 %v2183
        %v2703 = vunpack.c.l.b16 %v2184
        %v2704 = vunpack.c.l.b16 %v2185
        %v2705 = vunpack.c.l.b16 %v2186
        %v2706 = vunpack.c.l.b16 %v2187
        %v2707 = vunpack.c.l.b16 %v2188
        %v2708 = vunpack.c.l.b16 %v2189
        %v2709 = vunpack.c.l.b16 %v2190
        %v2710 = vunpack.c.l.b16 %v2191
        %v2711 = vunpack.c.l.b16 %v2192
        %v2712 = vunpack.c.l.b16 %v2193
        %v2713 = vunpack.c.l.b16 %v2194
        %v2714 = vunpack.c.l.b16 %v2195
        %v2715 = vpack.c.b16 %v2460, %v2459
        %v2716 = vpack.c.b16 %v2462, %v2461
        %v2717 = vpack.c.b16 %v2464, %v2463
        %v2718 = vpack.c.b16 %v2466, %v2465
        %v2719 = vpack.c.b16 %v2468, %v2467
        %v2720 = vpack.c.b16 %v2470, %v2469
        %v2721 = vpack.c.b16 %v2472, %v2471
        %v2722 = vpack.c.b16 %v2474, %v2473
        %v2723 = vpack.c.b16 %v2476, %v2475
        %v2724 = vpack.c.b16 %v2478, %v2477
        %v2725 = vpack.c.b16 %v2480, %v2479
        %v2726 = vpack.c.b16 %v2482, %v2481
        %v2727 = vpack.c.b16 %v2484, %v2483
        %v2728 = vpack.c.b16 %v2486, %v2485
        %v2729 = vpack.c.b16 %v2488, %v2487
        %v2730 = vpack.c.b16 %v2490, %v2489
        %v2731 = vpack.c.b16 %v2492, %v2491
        %v2732 = vpack.c.b16 %v2494, %v2493
        %v2733 = vpack.c.b16 %v2496, %v2495
        %v2734 = vpack.c.b16 %v2498, %v2497
        %v2735 = vpack.c.b16 %v2500, %v2499
        %v2736 = vpack.c.b16 %v2502, %v2501
        %v2737 = vpack.c.b16 %v2504, %v2503
        %v2738 = vpack.c.b16 %v2506, %v2505
        %v2739 = vpack.c.b16 %v2508, %v2507
        %v2740 = vpack.c.b16 %v2510, %v2509
        %v2741 = vpack.c.b16 %v2512, %v2511
        %v2742 = vpack.c.b16 %v2514, %v2513
        %v2743 = vpack.c.b16 %v2516, %v2515
        %v2744 = vpack.c.b16 %v2518, %v2517
        %v2745 = vpack.c.b16 %v2520, %v2519
        %v2746 = vpack.c.b16 %v2522, %v2521
        %v2747 = vpack.c.b16 %v2524, %v2523
        %v2748 = vpack.c.b16 %v2526, %v2525
        %v2749 = vpack.c.b16 %v2528, %v2527
        %v2750 = vpack.c.b16 %v2530, %v2529
        %v2751 = vpack.c.b16 %v2532, %v2531
        %v2752 = vpack.c.b16 %v2534, %v2533
        %v2753 = vpack.c.b16 %v2536, %v2535
        %v2754 = vpack.c.b16 %v2538, %v2537
        %v2755 = vpack.c.b16 %v2540, %v2539
        %v2756 = vpack.c.b16 %v2542, %v2541
        %v2757 = vpack.c.b16 %v2544, %v2543
        %v2758 = vpack.c.b16 %v2546, %v2545
        %v2759 = vpack.c.b16 %v2548, %v2547
        %v2760 = vpack.c.b16 %v2550, %v2549
        %v2761 = vpack.c.b16 %v2552, %v2551
        %v2762 = vpack.c.b16 %v2554, %v2553
        %v2763 = vpack.c.b16 %v2556, %v2555
        %v2764 = vpack.c.b16 %v2558, %v2557
        %v2765 = vpack.c.b16 %v2560, %v2559
        %v2766 = vpack.c.b16 %v2562, %v2561
        %v2767 = vpack.c.b16 %v2564, %v2563
        %v2768 = vpack.c.b16 %v2566, %v2565
        %v2769 = vpack.c.b16 %v2568, %v2567
        %v2770 = vpack.c.b16 %v2570, %v2569
        %v2771 = vpack.c.b16 %v2572, %v2571
        %v2772 = vpack.c.b16 %v2574, %v2573
        %v2773 = vpack.c.b16 %v2576, %v2575
        %v2774 = vpack.c.b16 %v2578, %v2577
        %v2775 = vpack.c.b16 %v2580, %v2579
        %v2776 = vpack.c.b16 %v2582, %v2581
        %v2777 = vpack.c.b16 %v2584, %v2583
        %v2778 = vpack.c.b16 %v2586, %v2585
        %v2779 = vpack.c.b16 %v2588, %v2587
        %v2780 = vpack.c.b16 %v2590, %v2589
        %v2781 = vpack.c.b16 %v2592, %v2591
        %v2782 = vpack.c.b16 %v2594, %v2593
        %v2783 = vpack.c.b16 %v2596, %v2595
        %v2784 = vpack.c.b16 %v2598, %v2597
        %v2785 = vpack.c.b16 %v2600, %v2599
        %v2786 = vpack.c.b16 %v2602, %v2601
        %v2787 = vpack.c.b16 %v2604, %v2603
        %v2788 = vpack.c.b16 %v2606, %v2605
        %v2789 = vpack.c.b16 %v2608, %v2607
        %v2790 = vpack.c.b16 %v2610, %v2609
        %v2791 = vpack.c.b16 %v2612, %v2611
        %v2792 = vpack.c.b16 %v2614, %v2613
        %v2793 = vpack.c.b16 %v2616, %v2615
        %v2794 = vpack.c.b16 %v2618, %v2617
        %v2795 = vpack.c.b16 %v2620, %v2619
        %v2796 = vpack.c.b16 %v2622, %v2621
        %v2797 = vpack.c.b16 %v2624, %v2623
        %v2798 = vpack.c.b16 %v2626, %v2625
        %v2799 = vpack.c.b16 %v2628, %v2627
        %v2800 = vpack.c.b16 %v2630, %v2629
        %v2801 = vpack.c.b16 %v2632, %v2631
        %v2802 = vpack.c.b16 %v2634, %v2633
        %v2803 = vpack.c.b16 %v2636, %v2635
        %v2804 = vpack.c.b16 %v2638, %v2637
        %v2805 = vpack.c.b16 %v2640, %v2639
        %v2806 = vpack.c.b16 %v2642, %v2641
        %v2807 = vpack.c.b16 %v2644, %v2643
        %v2808 = vpack.c.b16 %v2646, %v2645
        %v2809 = vpack.c.b16 %v2648, %v2647
        %v2810 = vpack.c.b16 %v2650, %v2649
        %v2811 = vpack.c.b16 %v2652, %v2651
        %v2812 = vpack.c.b16 %v2654, %v2653
        %v2813 = vpack.c.b16 %v2656, %v2655
        %v2814 = vpack.c.b16 %v2658, %v2657
        %v2815 = vpack.c.b16 %v2660, %v2659
        %v2816 = vpack.c.b16 %v2662, %v2661
        %v2817 = vpack.c.b16 %v2664, %v2663
        %v2818 = vpack.c.b16 %v2666, %v2665
        %v2819 = vpack.c.b16 %v2668, %v2667
        %v2820 = vpack.c.b16 %v2670, %v2669
        %v2821 = vpack.c.b16 %v2672, %v2671
        %v2822 = vpack.c.b16 %v2674, %v2673
        %v2823 = vpack.c.b16 %v2676, %v2675
        %v2824 = vpack.c.b16 %v2678, %v2677
        %v2825 = vpack.c.b16 %v2680, %v2679
        %v2826 = vpack.c.b16 %v2682, %v2681
        %v2827 = vpack.c.b16 %v2684, %v2683
        %v2828 = vpack.c.b16 %v2686, %v2685
        %v2829 = vpack.c.b16 %v2688, %v2687
        %v2830 = vpack.c.b16 %v2690, %v2689
        %v2831 = vpack.c.b16 %v2692, %v2691
        %v2832 = vpack.c.b16 %v2694, %v2693
        %v2833 = vpack.c.b16 %v2696, %v2695
        %v2834 = vpack.c.b16 %v2698, %v2697
        %v2835 = vpack.c.b16 %v2700, %v2699
        %v2836 = vpack.c.b16 %v2702, %v2701
        %v2837 = vpack.c.b16 %v2704, %v2703
        %v2838 = vpack.c.b16 %v2706, %v2705
        %v2839 = vpack.c.b16 %v2708, %v2707
        %v2840 = vpack.c.b16 %v2710, %v2709
        %v2841 = vpack.c.b16 %v2712, %v2711
        %v2842 = vpack.c.b16 %v2714, %v2713
        %2971 = vmatprep.subr.bf16.mxu0 0
        %2972 = vmatpush1.bf16.msra.mxu0 %v2715
        %2973 = vmatprep.subr.bf16.mxu0 0
        %2974 = vmatpush1.bf16.msra.mxu0 %v2716
        %2975 = vmatprep.subr.bf16.mxu0 0
        %2976 = vmatpush1.bf16.msra.mxu0 %v2717
        %2977 = vmatprep.subr.bf16.mxu0 0
        %2978 = vmatpush1.bf16.msra.mxu0 %v2718
        %2979 = vmatprep.subr.bf16.mxu0 0
        %2980 = vmatpush1.bf16.msra.mxu0 %v2719
        %2981 = vmatprep.subr.bf16.mxu0 0
        %2982 = vmatpush1.bf16.msra.mxu0 %v2720
        %2983 = vmatprep.subr.bf16.mxu0 0
        %2984 = vmatpush1.bf16.msra.mxu0 %v2721
        %2985 = vmatprep.subr.bf16.mxu0 0
        %2986 = vmatpush1.bf16.msra.mxu0 %v2722
        %2987 = vmatprep.subr.bf16.mxu0 0
        %2988 = vmatpush1.bf16.msra.mxu0 %v2723
        %2989 = vmatprep.subr.bf16.mxu0 0
        %2990 = vmatpush1.bf16.msra.mxu0 %v2724
        %2991 = vmatprep.subr.bf16.mxu0 0
        %2992 = vmatpush1.bf16.msra.mxu0 %v2725
        %2993 = vmatprep.subr.bf16.mxu0 0
        %2994 = vmatpush1.bf16.msra.mxu0 %v2726
        %2995 = vmatprep.subr.bf16.mxu0 0
        %2996 = vmatpush1.bf16.msra.mxu0 %v2727
        %2997 = vmatprep.subr.bf16.mxu0 0
        %2998 = vmatpush1.bf16.msra.mxu0 %v2728
        %2999 = vmatprep.subr.bf16.mxu0 0
        %3000 = vmatpush1.bf16.msra.mxu0 %v2729
        %3001 = vmatprep.subr.bf16.mxu0 0
        %3002 = vmatpush1.bf16.msra.mxu0 %v2730
        %3003 = vmatprep.mubr.bf16.mxu0 %v1800
        %3004 = vmatmul.mubr.bf16.gmra.mrb[0].mxu0 %v1787
        %v3005 = vpop.f32.mrb[0].mxu0
        %v3006 = vadd.f32 %v2201, %v3005
        %v3007 = vpop.f32.mrb[0].mxu0
        %v3008 = vpop.f32.mrb[0].mxu0
        %v3009 = vadd.f32 %v2201, %v3008
        %v3010 = vpop.f32.mrb[0].mxu0
        %3011 = vdwg.mxu0
        %3012 = vmatprep.subr.bf16.mxu0 0
        %3013 = vmatpush1.bf16.msra.mxu0 %v2731
        %3014 = vmatprep.subr.bf16.mxu0 0
        %3015 = vmatpush1.bf16.msra.mxu0 %v2732
        %3016 = vmatprep.subr.bf16.mxu0 0
        %3017 = vmatpush1.bf16.msra.mxu0 %v2733
        %3018 = vmatprep.subr.bf16.mxu0 0
        %3019 = vmatpush1.bf16.msra.mxu0 %v2734
        %3020 = vmatprep.subr.bf16.mxu0 0
        %3021 = vmatpush1.bf16.msra.mxu0 %v2735
        %3022 = vmatprep.subr.bf16.mxu0 0
        %3023 = vmatpush1.bf16.msra.mxu0 %v2736
        %3024 = vmatprep.subr.bf16.mxu0 0
        %3025 = vmatpush1.bf16.msra.mxu0 %v2737
        %3026 = vmatprep.subr.bf16.mxu0 0
        %3027 = vmatpush1.bf16.msra.mxu0 %v2738
        %3028 = vmatprep.subr.bf16.mxu0 0
        %3029 = vmatpush1.bf16.msra.mxu0 %v2739
        %3030 = vmatprep.subr.bf16.mxu0 0
        %3031 = vmatpush1.bf16.msra.mxu0 %v2740
        %3032 = vmatprep.subr.bf16.mxu0 0
        %3033 = vmatpush1.bf16.msra.mxu0 %v2741
        %3034 = vmatprep.subr.bf16.mxu0 0
        %3035 = vmatpush1.bf16.msra.mxu0 %v2742
        %3036 = vmatprep.subr.bf16.mxu0 0
        %3037 = vmatpush1.bf16.msra.mxu0 %v2743
        %3038 = vmatprep.subr.bf16.mxu0 0
        %3039 = vmatpush1.bf16.msra.mxu0 %v2744
        %3040 = vmatprep.subr.bf16.mxu0 0
        %3041 = vmatpush1.bf16.msra.mxu0 %v2745
        %3042 = vmatprep.subr.bf16.mxu0 0
        %3043 = vmatpush1.bf16.msra.mxu0 %v2746
        %3044 = vmatprep.mubr.bf16.mxu0 %v1817
        %3045 = vmatmul.mubr.bf16.gmra.mrb[0].mxu0 %v1808
        %v3046 = vpop.f32.mrb[0].mxu0
        %v3047 = vadd.f32 %v3006, %v3046
        %v3048 = vpop.f32.mrb[0].mxu0
        %v3049 = vpop.f32.mrb[0].mxu0
        %v3050 = vadd.f32 %v3009, %v3049
        %v3051 = vpop.f32.mrb[0].mxu0
        %3052 = vdwg.mxu0
        %3053 = vmatprep.subr.bf16.mxu0 0
        %3054 = vmatpush1.bf16.msra.mxu0 %v2747
        %3055 = vmatprep.subr.bf16.mxu0 0
        %3056 = vmatpush1.bf16.msra.mxu0 %v2748
        %3057 = vmatprep.subr.bf16.mxu0 0
        %3058 = vmatpush1.bf16.msra.mxu0 %v2749
        %3059 = vmatprep.subr.bf16.mxu0 0
        %3060 = vmatpush1.bf16.msra.mxu0 %v2750
        %3061 = vmatprep.subr.bf16.mxu0 0
        %3062 = vmatpush1.bf16.msra.mxu0 %v2751
        %3063 = vmatprep.subr.bf16.mxu0 0
        %3064 = vmatpush1.bf16.msra.mxu0 %v2752
        %3065 = vmatprep.subr.bf16.mxu0 0
        %3066 = vmatpush1.bf16.msra.mxu0 %v2753
        %3067 = vmatprep.subr.bf16.mxu0 0
        %3068 = vmatpush1.bf16.msra.mxu0 %v2754
        %3069 = vmatprep.subr.bf16.mxu0 0
        %3070 = vmatpush1.bf16.msra.mxu0 %v2755
        %3071 = vmatprep.subr.bf16.mxu0 0
        %3072 = vmatpush1.bf16.msra.mxu0 %v2756
        %3073 = vmatprep.subr.bf16.mxu0 0
        %3074 = vmatpush1.bf16.msra.mxu0 %v2757
        %3075 = vmatprep.subr.bf16.mxu0 0
        %3076 = vmatpush1.bf16.msra.mxu0 %v2758
        %3077 = vmatprep.subr.bf16.mxu0 0
        %3078 = vmatpush1.bf16.msra.mxu0 %v2759
        %3079 = vmatprep.subr.bf16.mxu0 0
        %3080 = vmatpush1.bf16.msra.mxu0 %v2760
        %3081 = vmatprep.subr.bf16.mxu0 0
        %3082 = vmatpush1.bf16.msra.mxu0 %v2761
        %3083 = vmatprep.subr.bf16.mxu0 0
        %3084 = vmatpush1.bf16.msra.mxu0 %v2762
        %3085 = vmatprep.mubr.bf16.mxu0 %v1829
        %3086 = vmatmul.mubr.bf16.gmra.mrb[0].mxu0 %v1823
        %v3087 = vpop.f32.mrb[0].mxu0
        %v3088 = vadd.f32 %v3047, %v3087
        %v3089 = vpop.f32.mrb[0].mxu0
        %v3090 = vpop.f32.mrb[0].mxu0
        %v3091 = vadd.f32 %v3050, %v3090
        %v3092 = vpop.f32.mrb[0].mxu0
        %3093 = vdwg.mxu0
        %3094 = vmatprep.subr.bf16.mxu0 0
        %3095 = vmatpush1.bf16.msra.mxu0 %v2763
        %3096 = vmatprep.subr.bf16.mxu0 0
        %3097 = vmatpush1.bf16.msra.mxu0 %v2764
        %3098 = vmatprep.subr.bf16.mxu0 0
        %3099 = vmatpush1.bf16.msra.mxu0 %v2765
        %3100 = vmatprep.subr.bf16.mxu0 0
        %3101 = vmatpush1.bf16.msra.mxu0 %v2766
        %3102 = vmatprep.subr.bf16.mxu0 0
        %3103 = vmatpush1.bf16.msra.mxu0 %v2767
        %3104 = vmatprep.subr.bf16.mxu0 0
        %3105 = vmatpush1.bf16.msra.mxu0 %v2768
        %3106 = vmatprep.subr.bf16.mxu0 0
        %3107 = vmatpush1.bf16.msra.mxu0 %v2769
        %3108 = vmatprep.subr.bf16.mxu0 0
        %3109 = vmatpush1.bf16.msra.mxu0 %v2770
        %3110 = vmatprep.subr.bf16.mxu0 0
        %3111 = vmatpush1.bf16.msra.mxu0 %v2771
        %3112 = vmatprep.subr.bf16.mxu0 0
        %3113 = vmatpush1.bf16.msra.mxu0 %v2772
        %3114 = vmatprep.subr.bf16.mxu0 0
        %3115 = vmatpush1.bf16.msra.mxu0 %v2773
        %3116 = vmatprep.subr.bf16.mxu0 0
        %3117 = vmatpush1.bf16.msra.mxu0 %v2774
        %3118 = vmatprep.subr.bf16.mxu0 0
        %3119 = vmatpush1.bf16.msra.mxu0 %v2775
        %3120 = vmatprep.subr.bf16.mxu0 0
        %3121 = vmatpush1.bf16.msra.mxu0 %v2776
        %3122 = vmatprep.subr.bf16.mxu0 0
        %3123 = vmatpush1.bf16.msra.mxu0 %v2777
        %3124 = vmatprep.subr.bf16.mxu0 0
        %3125 = vmatpush1.bf16.msra.mxu0 %v2778
        %3126 = vmatprep.mubr.bf16.mxu0 %v1867
        %3127 = vmatmul.mubr.bf16.gmra.mrb[0].mxu0 %v1848
        %v3128 = vpop.f32.mrb[0].mxu0
        %v3129 = vadd.f32 %v3088, %v3128
        %v3130 = vpop.f32.mrb[0].mxu0
        %v3131 = vpop.f32.mrb[0].mxu0
        %v3132 = vadd.f32 %v3091, %v3131
        %v3133 = vpop.f32.mrb[0].mxu0
        %3134 = vdwg.mxu0
        %3135 = vmatprep.subr.bf16.mxu0 0
        %3136 = vmatpush1.bf16.msra.mxu0 %v2779
        %3137 = vmatprep.subr.bf16.mxu0 0
        %3138 = vmatpush1.bf16.msra.mxu0 %v2780
        %3139 = vmatprep.subr.bf16.mxu0 0
        %3140 = vmatpush1.bf16.msra.mxu0 %v2781
        %3141 = vmatprep.subr.bf16.mxu0 0
        %3142 = vmatpush1.bf16.msra.mxu0 %v2782
        %3143 = vmatprep.subr.bf16.mxu0 0
        %3144 = vmatpush1.bf16.msra.mxu0 %v2783
        %3145 = vmatprep.subr.bf16.mxu0 0
        %3146 = vmatpush1.bf16.msra.mxu0 %v2784
        %3147 = vmatprep.subr.bf16.mxu0 0
        %3148 = vmatpush1.bf16.msra.mxu0 %v2785
        %3149 = vmatprep.subr.bf16.mxu0 0
        %3150 = vmatpush1.bf16.msra.mxu0 %v2786
        %3151 = vmatprep.subr.bf16.mxu0 0
        %3152 = vmatpush1.bf16.msra.mxu0 %v2787
        %3153 = vmatprep.subr.bf16.mxu0 0
        %3154 = vmatpush1.bf16.msra.mxu0 %v2788
        %3155 = vmatprep.subr.bf16.mxu0 0
        %3156 = vmatpush1.bf16.msra.mxu0 %v2789
        %3157 = vmatprep.subr.bf16.mxu0 0
        %3158 = vmatpush1.bf16.msra.mxu0 %v2790
        %3159 = vmatprep.subr.bf16.mxu0 0
        %3160 = vmatpush1.bf16.msra.mxu0 %v2791
        %3161 = vmatprep.subr.bf16.mxu0 0
        %3162 = vmatpush1.bf16.msra.mxu0 %v2792
        %3163 = vmatprep.subr.bf16.mxu0 0
        %3164 = vmatpush1.bf16.msra.mxu0 %v2793
        %3165 = vmatprep.subr.bf16.mxu0 0
        %3166 = vmatpush1.bf16.msra.mxu0 %v2794
        %3167 = vmatprep.mubr.bf16.mxu0 %v1881
        %3168 = vmatmul.mubr.bf16.gmra.mrb[0].mxu0 %v1874
        %v3169 = vpop.f32.mrb[0].mxu0
        %v3170 = vadd.f32 %v3129, %v3169
        %v3171 = vpop.f32.mrb[0].mxu0
        %v3172 = vpop.f32.mrb[0].mxu0
        %v3173 = vadd.f32 %v3132, %v3172
        %v3174 = vpop.f32.mrb[0].mxu0
        %3175 = vdwg.mxu0
        %3176 = vmatprep.subr.bf16.mxu0 0
        %3177 = vmatpush1.bf16.msra.mxu0 %v2795
        %3178 = vmatprep.subr.bf16.mxu0 0
        %3179 = vmatpush1.bf16.msra.mxu0 %v2796
        %3180 = vmatprep.subr.bf16.mxu0 0
        %3181 = vmatpush1.bf16.msra.mxu0 %v2797
        %3182 = vmatprep.subr.bf16.mxu0 0
        %3183 = vmatpush1.bf16.msra.mxu0 %v2798
        %3184 = vmatprep.subr.bf16.mxu0 0
        %3185 = vmatpush1.bf16.msra.mxu0 %v2799
        %3186 = vmatprep.subr.bf16.mxu0 0
        %3187 = vmatpush1.bf16.msra.mxu0 %v2800
        %3188 = vmatprep.subr.bf16.mxu0 0
        %3189 = vmatpush1.bf16.msra.mxu0 %v2801
        %3190 = vmatprep.subr.bf16.mxu0 0
        %3191 = vmatpush1.bf16.msra.mxu0 %v2802
        %3192 = vmatprep.subr.bf16.mxu0 0
        %3193 = vmatpush1.bf16.msra.mxu0 %v2803
        %3194 = vmatprep.subr.bf16.mxu0 0
        %3195 = vmatpush1.bf16.msra.mxu0 %v2804
        %3196 = vmatprep.subr.bf16.mxu0 0
        %3197 = vmatpush1.bf16.msra.mxu0 %v2805
        %3198 = vmatprep.subr.bf16.mxu0 0
        %3199 = vmatpush1.bf16.msra.mxu0 %v2806
        %3200 = vmatprep.subr.bf16.mxu0 0
        %3201 = vmatpush1.bf16.msra.mxu0 %v2807
        %3202 = vmatprep.subr.bf16.mxu0 0
        %3203 = vmatpush1.bf16.msra.mxu0 %v2808
        %3204 = vmatprep.subr.bf16.mxu0 0
        %3205 = vmatpush1.bf16.msra.mxu0 %v2809
        %3206 = vmatprep.subr.bf16.mxu0 0
        %3207 = vmatpush1.bf16.msra.mxu0 %v2810
        %3208 = vmatprep.mubr.bf16.mxu0 %v1914
        %3209 = vmatmul.mubr.bf16.gmra.mrb[0].mxu0 %v1900
        %v3210 = vpop.f32.mrb[0].mxu0
        %v3211 = vadd.f32 %v3170, %v3210
        %v3212 = vpop.f32.mrb[0].mxu0
        %v3213 = vpop.f32.mrb[0].mxu0
        %v3214 = vadd.f32 %v3173, %v3213
        %v3215 = vpop.f32.mrb[0].mxu0
        %3216 = vdwg.mxu0
        %3217 = vmatprep.subr.bf16.mxu0 0
        %3218 = vmatpush1.bf16.msra.mxu0 %v2811
        %3219 = vmatprep.subr.bf16.mxu0 0
        %3220 = vmatpush1.bf16.msra.mxu0 %v2812
        %3221 = vmatprep.subr.bf16.mxu0 0
        %3222 = vmatpush1.bf16.msra.mxu0 %v2813
        %3223 = vmatprep.subr.bf16.mxu0 0
        %3224 = vmatpush1.bf16.msra.mxu0 %v2814
        %3225 = vmatprep.subr.bf16.mxu0 0
        %3226 = vmatpush1.bf16.msra.mxu0 %v2815
        %3227 = vmatprep.subr.bf16.mxu0 0
        %3228 = vmatpush1.bf16.msra.mxu0 %v2816
        %3229 = vmatprep.subr.bf16.mxu0 0
        %3230 = vmatpush1.bf16.msra.mxu0 %v2817
        %3231 = vmatprep.subr.bf16.mxu0 0
        %3232 = vmatpush1.bf16.msra.mxu0 %v2818
        %3233 = vmatprep.subr.bf16.mxu0 0
        %3234 = vmatpush1.bf16.msra.mxu0 %v2819
        %3235 = vmatprep.subr.bf16.mxu0 0
        %3236 = vmatpush1.bf16.msra.mxu0 %v2820
        %3237 = vmatprep.subr.bf16.mxu0 0
        %3238 = vmatpush1.bf16.msra.mxu0 %v2821
        %3239 = vmatprep.subr.bf16.mxu0 0
        %3240 = vmatpush1.bf16.msra.mxu0 %v2822
        %3241 = vmatprep.subr.bf16.mxu0 0
        %3242 = vmatpush1.bf16.msra.mxu0 %v2823
        %3243 = vmatprep.subr.bf16.mxu0 0
        %3244 = vmatpush1.bf16.msra.mxu0 %v2824
        %3245 = vmatprep.subr.bf16.mxu0 0
        %3246 = vmatpush1.bf16.msra.mxu0 %v2825
        %3247 = vmatprep.subr.bf16.mxu0 0
        %3248 = vmatpush1.bf16.msra.mxu0 %v2826
        %3249 = vmatprep.mubr.bf16.mxu0 %v1920
        %3250 = vmatmul.mubr.bf16.gmra.mrb[0].mxu0 %v1917
        %v3251 = vpop.f32.mrb[0].mxu0
        %v3252 = vadd.f32 %v3211, %v3251
        %v3253 = vpop.f32.mrb[0].mxu0
        %v3254 = vpop.f32.mrb[0].mxu0
        %v3255 = vadd.f32 %v3214, %v3254
        %v3256 = vpop.f32.mrb[0].mxu0
        %3257 = vdwg.mxu0
        %3258 = vmatprep.subr.bf16.mxu0 0
        %3259 = vmatpush1.bf16.msra.mxu0 %v2827
        %3260 = vmatprep.subr.bf16.mxu0 0
        %3261 = vmatpush1.bf16.msra.mxu0 %v2828
        %3262 = vmatprep.subr.bf16.mxu0 0
        %3263 = vmatpush1.bf16.msra.mxu0 %v2829
        %3264 = vmatprep.subr.bf16.mxu0 0
        %3265 = vmatpush1.bf16.msra.mxu0 %v2830
        %3266 = vmatprep.subr.bf16.mxu0 0
        %3267 = vmatpush1.bf16.msra.mxu0 %v2831
        %3268 = vmatprep.subr.bf16.mxu0 0
        %3269 = vmatpush1.bf16.msra.mxu0 %v2832
        %3270 = vmatprep.subr.bf16.mxu0 0
        %3271 = vmatpush1.bf16.msra.mxu0 %v2833
        %3272 = vmatprep.subr.bf16.mxu0 0
        %3273 = vmatpush1.bf16.msra.mxu0 %v2834
        %3274 = vmatprep.subr.bf16.mxu0 0
        %3275 = vmatpush1.bf16.msra.mxu0 %v2835
        %3276 = vmatprep.subr.bf16.mxu0 0
        %3277 = vmatpush1.bf16.msra.mxu0 %v2836
        %3278 = vmatprep.subr.bf16.mxu0 0
        %3279 = vmatpush1.bf16.msra.mxu0 %v2837
        %3280 = vmatprep.subr.bf16.mxu0 0
        %3281 = vmatpush1.bf16.msra.mxu0 %v2838
        %3282 = vmatprep.subr.bf16.mxu0 0
        %3283 = vmatpush1.bf16.msra.mxu0 %v2839
        %3284 = vmatprep.subr.bf16.mxu0 0
        %3285 = vmatpush1.bf16.msra.mxu0 %v2840
        %3286 = vmatprep.subr.bf16.mxu0 0
        %3287 = vmatpush1.bf16.msra.mxu0 %v2841
        %3288 = vmatprep.subr.bf16.mxu0 0
        %3289 = vmatpush1.bf16.msra.mxu0 %v2842
        %3290 = vmatprep.mubr.bf16.mxu0 %v1938
        %3291 = vmatmul.mubr.bf16.gmra.mrb[0].mxu0 %v1929
        %v3292 = vpop.f32.mrb[0].mxu0
        %v3293 = vadd.f32 %v3252, %v3292
        %v3294 = vpop.f32.mrb[0].mxu0
        %v3295 = vpop.f32.mrb[0].mxu0
        %v3296 = vadd.f32 %v3255, %v3295
        %v3297 = vpop.f32.mrb[0].mxu0
        %3298 = vdwg.mxu0
        %v3299 = vmax.f32 %v3293, 0.0
        %v3300 = vmax.f32 %v3296, 0.0
        %v3301 = vpack.c.bf16 %v3299, %v3299
        %v3302 = vpack.c.bf16 %v3300, %v3300
        %v3303 = vld [vmem:[#allocation2 + $0x8] sm:$0x7c]
        %v3304 = vld [vmem:[#allocation2 + $0x38] sm:$0xf0]
        %v3305 = vld [vmem:[#allocation2 + $0x40] sm:$0x1]
        %v3306 = vld [vmem:[#allocation2 + $0x68] sm:$0xc0]
        %v3307 = vld [vmem:[#allocation2 + $0x70] sm:$0x7]
        %v3308 = vld [vmem:[#allocation2 + $0xa0] sm:$0x1f]
        %v3309 = vrot.slane %v1795, 2
        %v3310 = vrot.slane %v1796, 2
        %v3311 = vsel %vm766, %v3309, %v3310
        %vm3312 = vsmask.f32 7424
        %v3313 = vrot.slane %v1888, 1
        %v3314 = vor.u32 %v1885, %v3313
        %v3315 = vrot.slane %v1896, 1
        %v3316 = vsel %vm3312, %v3314, %v3315
        %v3317 = vor.u32 %v1893, %v3315
        %vm3318 = vsmask.f32 5376
        %v3319 = vrot.slane %v1904, 2
        %v3320 = vrot.slane %v1908, 2
        %v3321 = vrot.slane %v1911, 3
        %v3322 = vor.u32 %v3320, %v3321
        %v3323 = vsel %vm3318, %v3319, %v3322
        %v3324 = vrot.slane %v1797, 4
        %v3325 = vrot.slane %v1798, 6
        %v3326 = vrot.slane %v1923, 4
        %v3327 = vrot.slane %v1926, 5
        %v3328 = vor.u32 %v3326, %v3327
        %v3329 = vrot.slane %v1932, 6
        %v3330 = vrot.slane %v1935, 7
        %v3331 = vor.u32 %v3329, %v3330
        %v3333 = vrot.slane %v3303, 5
        %v3336 = vrot.slane %v3304, 7
        %v3337 = vrot.slane %v3305, 7
        %v3338 = vsel %vm1878, %v3336, %v3337
        %v3340 = vshrl.u32 %v3303, 16
        %v3342 = vrot.slane %v3340, 5
        %v3343 = vshll.u32 %v3303, 16
        %v3345 = vrot.slane %v3343, 6
        %v3346 = vor.u32 %v3342, %v3345
        %v3348 = vshrl.u32 %v3304, 16
        %v3350 = vrot.slane %v3348, 7
        %v3351 = vshll.u32 %v3304, 16
        %v3353 = vor.u32 %v3350, %v3351
        %v3355 = vshrl.u32 %v3305, 16
        %v3357 = vrot.slane %v3355, 7
        %v3358 = vshll.u32 %v3305, 16
        %v3360 = vor.u32 %v3357, %v3358
        %v3361 = vsel %vm1902, %v3350, %v3360
        %vm3364 = vcmask 1046528
        %v3365 = vrot.slane %v3306, 1
        %v3366 = vrot.slane %v3307, 1
        %v3367 = vsel %vm3364, %v3365, %v3366
        %v3369 = vrot.slane %v3308, 3
        %vm3370 = vsmask.f32 6400
        %v3372 = vshrl.u32 %v3306, 16
        %v3374 = vrot.slane %v3372, 1
        %v3375 = vshll.u32 %v3306, 16
        %v3377 = vrot.slane %v3375, 2
        %v3378 = vor.u32 %v3374, %v3377
        %v3380 = vshrl.u32 %v3307, 16
        %v3382 = vrot.slane %v3380, 1
        %v3383 = vshll.u32 %v3307, 16
        %v3385 = vrot.slane %v3383, 2
        %v3386 = vor.u32 %v3382, %v3385
        %v3387 = vsel %vm3370, %v3378, %v3386
        %v3389 = vshrl.u32 %v3308, 16
        %v3391 = vrot.slane %v3389, 3
        %v3392 = vshll.u32 %v3308, 16
        %v3394 = vrot.slane %v3392, 4
        %v3395 = vor.u32 %v3391, %v3394
        %v3396 = vrot.slane %v3311, 5
        %v3397 = vrot.slane %v3310, 5
        %v3398 = vsel %vm1871, %v3396, %v3397
        %v3399 = vrot.slane %v3316, 5
        %v3400 = vrot.slane %v3317, 5
        %v3401 = vsel %vm1871, %v3399, %v3400
        %v3402 = vrot.slane %v3323, 5
        %v3403 = vrot.slane %v3322, 5
        %v3404 = vsel %vm1871, %v3402, %v3403
        %v3405 = vrot.slane %v3324, 5
        %v3406 = vsel %vm1871, %v3405, %v3405
        %v3407 = vrot.slane %v3325, 5
        %v3408 = vsel %vm1871, %v3407, %v3407
        %v3409 = vrot.slane %v3328, 5
        %v3410 = vsel %vm1871, %v3409, %v3409
        %v3411 = vrot.slane %v3331, 5
        %v3412 = vsel %vm1871, %v3411, %v3411
        %v3413 = vrot.slane %v3333, 5
        %v3414 = vsel %vm1871, %v3413, %v3413
        %v3415 = vrot.slane %v3336, 5
        %v3416 = vrot.slane %v3338, 5
        %v3417 = vsel %vm1871, %v3415, %v3416
        %v3418 = vrot.slane %v3346, 5
        %v3419 = vsel %vm1871, %v3418, %v3418
        %v3420 = vrot.slane %v3353, 5
        %v3421 = vrot.slane %v3361, 5
        %v3422 = vsel %vm1871, %v3420, %v3421
        %v3423 = vrot.slane %v3367, 5
        %v3424 = vrot.slane %v3366, 5
        %v3425 = vsel %vm1871, %v3423, %v3424
        %v3426 = vrot.slane %v3369, 5
        %v3427 = vsel %vm1871, %v3426, %v3426
        %v3428 = vrot.slane %v3387, 5
        %v3429 = vrot.slane %v3386, 5
        %v3430 = vsel %vm1871, %v3428, %v3429
        %v3431 = vrot.slane %v3395, 5
        %v3432 = vsel %vm1871, %v3431, %v3431
        %3448 = vmatprep.subr.bf16.mxu0 0
        %3449 = vmatpush1.bf16.msra.mxu0 %v2715
        %3450 = vmatprep.subr.bf16.mxu0 0
        %3451 = vmatpush1.bf16.msra.mxu0 %v2716
        %3452 = vmatprep.subr.bf16.mxu0 0
        %3453 = vmatpush1.bf16.msra.mxu0 %v2717
        %3454 = vmatprep.subr.bf16.mxu0 0
        %3455 = vmatpush1.bf16.msra.mxu0 %v2718
        %3456 = vmatprep.subr.bf16.mxu0 0
        %3457 = vmatpush1.bf16.msra.mxu0 %v2719
        %3458 = vmatprep.subr.bf16.mxu0 0
        %3459 = vmatpush1.bf16.msra.mxu0 %v2720
        %3460 = vmatprep.subr.bf16.mxu0 0
        %3461 = vmatpush1.bf16.msra.mxu0 %v2721
        %3462 = vmatprep.subr.bf16.mxu0 0
        %3463 = vmatpush1.bf16.msra.mxu0 %v2722
        %3464 = vmatprep.subr.bf16.mxu0 0
        %3465 = vmatpush1.bf16.msra.mxu0 %v2723
        %3466 = vmatprep.subr.bf16.mxu0 0
        %3467 = vmatpush1.bf16.msra.mxu0 %v2724
        %3468 = vmatprep.subr.bf16.mxu0 0
        %3469 = vmatpush1.bf16.msra.mxu0 %v2725
        %3470 = vmatprep.subr.bf16.mxu0 0
        %3471 = vmatpush1.bf16.msra.mxu0 %v2726
        %3472 = vmatprep.subr.bf16.mxu0 0
        %3473 = vmatpush1.bf16.msra.mxu0 %v2727
        %3474 = vmatprep.subr.bf16.mxu0 0
        %3475 = vmatpush1.bf16.msra.mxu0 %v2728
        %3476 = vmatprep.subr.bf16.mxu0 0
        %3477 = vmatpush1.bf16.msra.mxu0 %v2729
        %3478 = vmatprep.subr.bf16.mxu0 0
        %3479 = vmatpush1.bf16.msra.mxu0 %v2730
        %3480 = vmatprep.mubr.bf16.mxu0 %v3398
        %3481 = vmatmul.mubr.bf16.gmra.mrb[0].mxu0 %v1874
        %v3482 = vpop.f32.mrb[0].mxu0
        %v3483 = vadd.f32 %v2201, %v3482
        %v3484 = vpop.f32.mrb[0].mxu0
        %v3485 = vpop.f32.mrb[0].mxu0
        %v3486 = vadd.f32 %v2201, %v3485
        %v3487 = vpop.f32.mrb[0].mxu0
        %3488 = vdwg.mxu0
        %3489 = vmatprep.subr.bf16.mxu0 0
        %3490 = vmatpush1.bf16.msra.mxu0 %v2731
        %3491 = vmatprep.subr.bf16.mxu0 0
        %3492 = vmatpush1.bf16.msra.mxu0 %v2732
        %3493 = vmatprep.subr.bf16.mxu0 0
        %3494 = vmatpush1.bf16.msra.mxu0 %v2733
        %3495 = vmatprep.subr.bf16.mxu0 0
        %3496 = vmatpush1.bf16.msra.mxu0 %v2734
        %3497 = vmatprep.subr.bf16.mxu0 0
        %3498 = vmatpush1.bf16.msra.mxu0 %v2735
        %3499 = vmatprep.subr.bf16.mxu0 0
        %3500 = vmatpush1.bf16.msra.mxu0 %v2736
        %3501 = vmatprep.subr.bf16.mxu0 0
        %3502 = vmatpush1.bf16.msra.mxu0 %v2737
        %3503 = vmatprep.subr.bf16.mxu0 0
        %3504 = vmatpush1.bf16.msra.mxu0 %v2738
        %3505 = vmatprep.subr.bf16.mxu0 0
        %3506 = vmatpush1.bf16.msra.mxu0 %v2739
        %3507 = vmatprep.subr.bf16.mxu0 0
        %3508 = vmatpush1.bf16.msra.mxu0 %v2740
        %3509 = vmatprep.subr.bf16.mxu0 0
        %3510 = vmatpush1.bf16.msra.mxu0 %v2741
        %3511 = vmatprep.subr.bf16.mxu0 0
        %3512 = vmatpush1.bf16.msra.mxu0 %v2742
        %3513 = vmatprep.subr.bf16.mxu0 0
        %3514 = vmatpush1.bf16.msra.mxu0 %v2743
        %3515 = vmatprep.subr.bf16.mxu0 0
        %3516 = vmatpush1.bf16.msra.mxu0 %v2744
        %3517 = vmatprep.subr.bf16.mxu0 0
        %3518 = vmatpush1.bf16.msra.mxu0 %v2745
        %3519 = vmatprep.subr.bf16.mxu0 0
        %3520 = vmatpush1.bf16.msra.mxu0 %v2746
        %3521 = vmatprep.mubr.bf16.mxu0 %v3404
        %3522 = vmatmul.mubr.bf16.gmra.mrb[0].mxu0 %v3401
        %v3523 = vpop.f32.mrb[0].mxu0
        %v3524 = vadd.f32 %v3483, %v3523
        %v3525 = vpop.f32.mrb[0].mxu0
        %v3526 = vpop.f32.mrb[0].mxu0
        %v3527 = vadd.f32 %v3486, %v3526
        %v3528 = vpop.f32.mrb[0].mxu0
        %3529 = vdwg.mxu0
        %3530 = vmatprep.subr.bf16.mxu0 0
        %3531 = vmatpush1.bf16.msra.mxu0 %v2747
        %3532 = vmatprep.subr.bf16.mxu0 0
        %3533 = vmatpush1.bf16.msra.mxu0 %v2748
        %3534 = vmatprep.subr.bf16.mxu0 0
        %3535 = vmatpush1.bf16.msra.mxu0 %v2749
        %3536 = vmatprep.subr.bf16.mxu0 0
        %3537 = vmatpush1.bf16.msra.mxu0 %v2750
        %3538 = vmatprep.subr.bf16.mxu0 0
        %3539 = vmatpush1.bf16.msra.mxu0 %v2751
        %3540 = vmatprep.subr.bf16.mxu0 0
        %3541 = vmatpush1.bf16.msra.mxu0 %v2752
        %3542 = vmatprep.subr.bf16.mxu0 0
        %3543 = vmatpush1.bf16.msra.mxu0 %v2753
        %3544 = vmatprep.subr.bf16.mxu0 0
        %3545 = vmatpush1.bf16.msra.mxu0 %v2754
        %3546 = vmatprep.subr.bf16.mxu0 0
        %3547 = vmatpush1.bf16.msra.mxu0 %v2755
        %3548 = vmatprep.subr.bf16.mxu0 0
        %3549 = vmatpush1.bf16.msra.mxu0 %v2756
        %3550 = vmatprep.subr.bf16.mxu0 0
        %3551 = vmatpush1.bf16.msra.mxu0 %v2757
        %3552 = vmatprep.subr.bf16.mxu0 0
        %3553 = vmatpush1.bf16.msra.mxu0 %v2758
        %3554 = vmatprep.subr.bf16.mxu0 0
        %3555 = vmatpush1.bf16.msra.mxu0 %v2759
        %3556 = vmatprep.subr.bf16.mxu0 0
        %3557 = vmatpush1.bf16.msra.mxu0 %v2760
        %3558 = vmatprep.subr.bf16.mxu0 0
        %3559 = vmatpush1.bf16.msra.mxu0 %v2761
        %3560 = vmatprep.subr.bf16.mxu0 0
        %3561 = vmatpush1.bf16.msra.mxu0 %v2762
        %3562 = vmatprep.mubr.bf16.mxu0 %v3408
        %3563 = vmatmul.mubr.bf16.gmra.mrb[0].mxu0 %v3406
        %v3564 = vpop.f32.mrb[0].mxu0
        %v3565 = vadd.f32 %v3524, %v3564
        %v3566 = vpop.f32.mrb[0].mxu0
        %v3567 = vpop.f32.mrb[0].mxu0
        %v3568 = vadd.f32 %v3527, %v3567
        %v3569 = vpop.f32.mrb[0].mxu0
        %3570 = vdwg.mxu0
        %3571 = vmatprep.subr.bf16.mxu0 0
        %3572 = vmatpush1.bf16.msra.mxu0 %v2763
        %3573 = vmatprep.subr.bf16.mxu0 0
        %3574 = vmatpush1.bf16.msra.mxu0 %v2764
        %3575 = vmatprep.subr.bf16.mxu0 0
        %3576 = vmatpush1.bf16.msra.mxu0 %v2765
        %3577 = vmatprep.subr.bf16.mxu0 0
        %3578 = vmatpush1.bf16.msra.mxu0 %v2766
        %3579 = vmatprep.subr.bf16.mxu0 0
        %3580 = vmatpush1.bf16.msra.mxu0 %v2767
        %3581 = vmatprep.subr.bf16.mxu0 0
        %3582 = vmatpush1.bf16.msra.mxu0 %v2768
        %3583 = vmatprep.subr.bf16.mxu0 0
        %3584 = vmatpush1.bf16.msra.mxu0 %v2769
        %3585 = vmatprep.subr.bf16.mxu0 0
        %3586 = vmatpush1.bf16.msra.mxu0 %v2770
        %3587 = vmatprep.subr.bf16.mxu0 0
        %3588 = vmatpush1.bf16.msra.mxu0 %v2771
        %3589 = vmatprep.subr.bf16.mxu0 0
        %3590 = vmatpush1.bf16.msra.mxu0 %v2772
        %3591 = vmatprep.subr.bf16.mxu0 0
        %3592 = vmatpush1.bf16.msra.mxu0 %v2773
        %3593 = vmatprep.subr.bf16.mxu0 0
        %3594 = vmatpush1.bf16.msra.mxu0 %v2774
        %3595 = vmatprep.subr.bf16.mxu0 0
        %3596 = vmatpush1.bf16.msra.mxu0 %v2775
        %3597 = vmatprep.subr.bf16.mxu0 0
        %3598 = vmatpush1.bf16.msra.mxu0 %v2776
        %3599 = vmatprep.subr.bf16.mxu0 0
        %3600 = vmatpush1.bf16.msra.mxu0 %v2777
        %3601 = vmatprep.subr.bf16.mxu0 0
        %3602 = vmatpush1.bf16.msra.mxu0 %v2778
        %3603 = vmatprep.mubr.bf16.mxu0 %v3412
        %3604 = vmatmul.mubr.bf16.gmra.mrb[0].mxu0 %v3410
        %v3605 = vpop.f32.mrb[0].mxu0
        %v3606 = vadd.f32 %v3565, %v3605
        %v3607 = vpop.f32.mrb[0].mxu0
        %v3608 = vpop.f32.mrb[0].mxu0
        %v3609 = vadd.f32 %v3568, %v3608
        %v3610 = vpop.f32.mrb[0].mxu0
        %3611 = vdwg.mxu0
        %3612 = vmatprep.subr.bf16.mxu0 0
        %3613 = vmatpush1.bf16.msra.mxu0 %v2779
        %3614 = vmatprep.subr.bf16.mxu0 0
        %3615 = vmatpush1.bf16.msra.mxu0 %v2780
        %3616 = vmatprep.subr.bf16.mxu0 0
        %3617 = vmatpush1.bf16.msra.mxu0 %v2781
        %3618 = vmatprep.subr.bf16.mxu0 0
        %3619 = vmatpush1.bf16.msra.mxu0 %v2782
        %3620 = vmatprep.subr.bf16.mxu0 0
        %3621 = vmatpush1.bf16.msra.mxu0 %v2783
        %3622 = vmatprep.subr.bf16.mxu0 0
        %3623 = vmatpush1.bf16.msra.mxu0 %v2784
        %3624 = vmatprep.subr.bf16.mxu0 0
        %3625 = vmatpush1.bf16.msra.mxu0 %v2785
        %3626 = vmatprep.subr.bf16.mxu0 0
        %3627 = vmatpush1.bf16.msra.mxu0 %v2786
        %3628 = vmatprep.subr.bf16.mxu0 0
        %3629 = vmatpush1.bf16.msra.mxu0 %v2787
        %3630 = vmatprep.subr.bf16.mxu0 0
        %3631 = vmatpush1.bf16.msra.mxu0 %v2788
        %3632 = vmatprep.subr.bf16.mxu0 0
        %3633 = vmatpush1.bf16.msra.mxu0 %v2789
        %3634 = vmatprep.subr.bf16.mxu0 0
        %3635 = vmatpush1.bf16.msra.mxu0 %v2790
        %3636 = vmatprep.subr.bf16.mxu0 0
        %3637 = vmatpush1.bf16.msra.mxu0 %v2791
        %3638 = vmatprep.subr.bf16.mxu0 0
        %3639 = vmatpush1.bf16.msra.mxu0 %v2792
        %3640 = vmatprep.subr.bf16.mxu0 0
        %3641 = vmatpush1.bf16.msra.mxu0 %v2793
        %3642 = vmatprep.subr.bf16.mxu0 0
        %3643 = vmatpush1.bf16.msra.mxu0 %v2794
        %3644 = vmatprep.mubr.bf16.mxu0 %v3417
        %3645 = vmatmul.mubr.bf16.gmra.mrb[0].mxu0 %v3414
        %v3646 = vpop.f32.mrb[0].mxu0
        %v3647 = vadd.f32 %v3606, %v3646
        %v3648 = vpop.f32.mrb[0].mxu0
        %v3649 = vpop.f32.mrb[0].mxu0
        %v3650 = vadd.f32 %v3609, %v3649
        %v3651 = vpop.f32.mrb[0].mxu0
        %3652 = vdwg.mxu0
        %3653 = vmatprep.subr.bf16.mxu0 0
        %3654 = vmatpush1.bf16.msra.mxu0 %v2795
        %3655 = vmatprep.subr.bf16.mxu0 0
        %3656 = vmatpush1.bf16.msra.mxu0 %v2796
        %3657 = vmatprep.subr.bf16.mxu0 0
        %3658 = vmatpush1.bf16.msra.mxu0 %v2797
        %3659 = vmatprep.subr.bf16.mxu0 0
        %3660 = vmatpush1.bf16.msra.mxu0 %v2798
        %3661 = vmatprep.subr.bf16.mxu0 0
        %3662 = vmatpush1.bf16.msra.mxu0 %v2799
        %3663 = vmatprep.subr.bf16.mxu0 0
        %3664 = vmatpush1.bf16.msra.mxu0 %v2800
        %3665 = vmatprep.subr.bf16.mxu0 0
        %3666 = vmatpush1.bf16.msra.mxu0 %v2801
        %3667 = vmatprep.subr.bf16.mxu0 0
        %3668 = vmatpush1.bf16.msra.mxu0 %v2802
        %3669 = vmatprep.subr.bf16.mxu0 0
        %3670 = vmatpush1.bf16.msra.mxu0 %v2803
        %3671 = vmatprep.subr.bf16.mxu0 0
        %3672 = vmatpush1.bf16.msra.mxu0 %v2804
        %3673 = vmatprep.subr.bf16.mxu0 0
        %3674 = vmatpush1.bf16.msra.mxu0 %v2805
        %3675 = vmatprep.subr.bf16.mxu0 0
        %3676 = vmatpush1.bf16.msra.mxu0 %v2806
        %3677 = vmatprep.subr.bf16.mxu0 0
        %3678 = vmatpush1.bf16.msra.mxu0 %v2807
        %3679 = vmatprep.subr.bf16.mxu0 0
        %3680 = vmatpush1.bf16.msra.mxu0 %v2808
        %3681 = vmatprep.subr.bf16.mxu0 0
        %3682 = vmatpush1.bf16.msra.mxu0 %v2809
        %3683 = vmatprep.subr.bf16.mxu0 0
        %3684 = vmatpush1.bf16.msra.mxu0 %v2810
        %3685 = vmatprep.mubr.bf16.mxu0 %v3422
        %3686 = vmatmul.mubr.bf16.gmra.mrb[0].mxu0 %v3419
        %v3687 = vpop.f32.mrb[0].mxu0
        %v3688 = vadd.f32 %v3647, %v3687
        %v3689 = vpop.f32.mrb[0].mxu0
        %v3690 = vpop.f32.mrb[0].mxu0
        %v3691 = vadd.f32 %v3650, %v3690
        %v3692 = vpop.f32.mrb[0].mxu0
        %3693 = vdwg.mxu0
        %3694 = vmatprep.subr.bf16.mxu0 0
        %3695 = vmatpush1.bf16.msra.mxu0 %v2811
        %3696 = vmatprep.subr.bf16.mxu0 0
        %3697 = vmatpush1.bf16.msra.mxu0 %v2812
        %3698 = vmatprep.subr.bf16.mxu0 0
        %3699 = vmatpush1.bf16.msra.mxu0 %v2813
        %3700 = vmatprep.subr.bf16.mxu0 0
        %3701 = vmatpush1.bf16.msra.mxu0 %v2814
        %3702 = vmatprep.subr.bf16.mxu0 0
        %3703 = vmatpush1.bf16.msra.mxu0 %v2815
        %3704 = vmatprep.subr.bf16.mxu0 0
        %3705 = vmatpush1.bf16.msra.mxu0 %v2816
        %3706 = vmatprep.subr.bf16.mxu0 0
        %3707 = vmatpush1.bf16.msra.mxu0 %v2817
        %3708 = vmatprep.subr.bf16.mxu0 0
        %3709 = vmatpush1.bf16.msra.mxu0 %v2818
        %3710 = vmatprep.subr.bf16.mxu0 0
        %3711 = vmatpush1.bf16.msra.mxu0 %v2819
        %3712 = vmatprep.subr.bf16.mxu0 0
        %3713 = vmatpush1.bf16.msra.mxu0 %v2820
        %3714 = vmatprep.subr.bf16.mxu0 0
        %3715 = vmatpush1.bf16.msra.mxu0 %v2821
        %3716 = vmatprep.subr.bf16.mxu0 0
        %3717 = vmatpush1.bf16.msra.mxu0 %v2822
        %3718 = vmatprep.subr.bf16.mxu0 0
        %3719 = vmatpush1.bf16.msra.mxu0 %v2823
        %3720 = vmatprep.subr.bf16.mxu0 0
        %3721 = vmatpush1.bf16.msra.mxu0 %v2824
        %3722 = vmatprep.subr.bf16.mxu0 0
        %3723 = vmatpush1.bf16.msra.mxu0 %v2825
        %3724 = vmatprep.subr.bf16.mxu0 0
        %3725 = vmatpush1.bf16.msra.mxu0 %v2826
        %3726 = vmatprep.mubr.bf16.mxu0 %v3427
        %3727 = vmatmul.mubr.bf16.gmra.mrb[0].mxu0 %v3425
        %v3728 = vpop.f32.mrb[0].mxu0
        %v3729 = vadd.f32 %v3688, %v3728
        %v3730 = vpop.f32.mrb[0].mxu0
        %v3731 = vpop.f32.mrb[0].mxu0
        %v3732 = vadd.f32 %v3691, %v3731
        %v3733 = vpop.f32.mrb[0].mxu0
        %3734 = vdwg.mxu0
        %3735 = vmatprep.subr.bf16.mxu0 0
        %3736 = vmatpush1.bf16.msra.mxu0 %v2827
        %3737 = vmatprep.subr.bf16.mxu0 0
        %3738 = vmatpush1.bf16.msra.mxu0 %v2828
        %3739 = vmatprep.subr.bf16.mxu0 0
        %3740 = vmatpush1.bf16.msra.mxu0 %v2829
        %3741 = vmatprep.subr.bf16.mxu0 0
        %3742 = vmatpush1.bf16.msra.mxu0 %v2830
        %3743 = vmatprep.subr.bf16.mxu0 0
        %3744 = vmatpush1.bf16.msra.mxu0 %v2831
        %3745 = vmatprep.subr.bf16.mxu0 0
        %3746 = vmatpush1.bf16.msra.mxu0 %v2832
        %3747 = vmatprep.subr.bf16.mxu0 0
        %3748 = vmatpush1.bf16.msra.mxu0 %v2833
        %3749 = vmatprep.subr.bf16.mxu0 0
        %3750 = vmatpush1.bf16.msra.mxu0 %v2834
        %3751 = vmatprep.subr.bf16.mxu0 0
        %3752 = vmatpush1.bf16.msra.mxu0 %v2835
        %3753 = vmatprep.subr.bf16.mxu0 0
        %3754 = vmatpush1.bf16.msra.mxu0 %v2836
        %3755 = vmatprep.subr.bf16.mxu0 0
        %3756 = vmatpush1.bf16.msra.mxu0 %v2837
        %3757 = vmatprep.subr.bf16.mxu0 0
        %3758 = vmatpush1.bf16.msra.mxu0 %v2838
        %3759 = vmatprep.subr.bf16.mxu0 0
        %3760 = vmatpush1.bf16.msra.mxu0 %v2839
        %3761 = vmatprep.subr.bf16.mxu0 0
        %3762 = vmatpush1.bf16.msra.mxu0 %v2840
        %3763 = vmatprep.subr.bf16.mxu0 0
        %3764 = vmatpush1.bf16.msra.mxu0 %v2841
        %3765 = vmatprep.subr.bf16.mxu0 0
        %3766 = vmatpush1.bf16.msra.mxu0 %v2842
        %3767 = vmatprep.mubr.bf16.mxu0 %v3432
        %3768 = vmatmul.mubr.bf16.gmra.mrb[0].mxu0 %v3430
        %v3769 = vpop.f32.mrb[0].mxu0
        %v3770 = vadd.f32 %v3729, %v3769
        %v3771 = vpop.f32.mrb[0].mxu0
        %v3772 = vpop.f32.mrb[0].mxu0
        %v3773 = vadd.f32 %v3732, %v3772
        %v3774 = vpop.f32.mrb[0].mxu0
        %3775 = vdwg.mxu0
        %v3776 = vmax.f32 %v3770, 0.0
        %v3777 = vmax.f32 %v3773, 0.0
        %v3778 = vpack.c.bf16 %v3776, %v3776
        %v3779 = vpack.c.bf16 %v3777, %v3777
        %v3780 = vld [vmem:[#allocation2 + $0x8] sm:$0x80]
        %v3781 = vld [vmem:[#allocation2 + $0x10] sm:$0xf]
        %v3782 = vld [vmem:[#allocation2 + $0x40] sm:$0x3e]
        %v3783 = vld [vmem:[#allocation2 + $0x70] sm:$0xf8]
        %v3784 = vld [vmem:[#allocation2 + $0xa0] sm:$0xe0]
        %v3785 = vld [vmem:[#allocation2 + $0xa8] sm:$0x3]
        %v3786 = vrot.slane %v3304, 2
        %v3787 = vrot.slane %v3305, 2
        %v3788 = vsel %vm766, %v3786, %v3787
        %v3789 = vrot.slane %v3343, 1
        %v3790 = vor.u32 %v3340, %v3789
        %v3791 = vrot.slane %v3348, 2
        %v3792 = vrot.slane %v3351, 3
        %v3793 = vor.u32 %v3791, %v3792
        %v3794 = vrot.slane %v3355, 2
        %v3795 = vrot.slane %v3358, 3
        %v3796 = vor.u32 %v3794, %v3795
        %v3797 = vsel %vm3318, %v3793, %v3796
        %v3798 = vrot.slane %v3306, 4
        %v3799 = vrot.slane %v3307, 4
        %v3800 = vsel %vm1376, %v3798, %v3799
        %v3801 = vrot.slane %v3308, 6
        %v3802 = vrot.slane %v3372, 4
        %v3803 = vrot.slane %v3375, 5
        %v3804 = vor.u32 %v3802, %v3803
        %v3805 = vrot.slane %v3380, 4
        %v3806 = vrot.slane %v3383, 5
        %v3807 = vor.u32 %v3805, %v3806
        %v3808 = vsel %vm1831, %v3804, %v3807
        %v3809 = vrot.slane %v3389, 6
        %v3810 = vrot.slane %v3392, 7
        %v3811 = vor.u32 %v3809, %v3810
        %v3814 = vrot.slane %v3780, 5
        %v3815 = vrot.slane %v3781, 5
        %v3816 = vsel %vm1871, %v3814, %v3815
        %v3818 = vrot.slane %v3782, 7
        %v3820 = vshrl.u32 %v3780, 16
        %v3822 = vrot.slane %v3820, 5
        %v3824 = vshrl.u32 %v3781, 16
        %v3826 = vrot.slane %v3824, 5
        %v3827 = vshll.u32 %v3781, 16
        %v3829 = vrot.slane %v3827, 6
        %v3830 = vor.u32 %v3826, %v3829
        %v3831 = vsel %vm1883, %v3822, %v3830
        %v3833 = vshrl.u32 %v3782, 16
        %v3835 = vrot.slane %v3833, 7
        %v3836 = vshll.u32 %v3782, 16
        %v3838 = vor.u32 %v3835, %v3836
        %v3840 = vrot.slane %v3783, 1
        %vm3843 = vcmask 1044480
        %v3844 = vrot.slane %v3784, 3
        %v3845 = vrot.slane %v3785, 3
        %v3846 = vsel %vm3843, %v3844, %v3845
        %v3848 = vshrl.u32 %v3783, 16
        %v3850 = vrot.slane %v3848, 1
        %v3851 = vshll.u32 %v3783, 16
        %v3853 = vrot.slane %v3851, 2
        %v3854 = vor.u32 %v3850, %v3853
        %vm3855 = vsmask.f32 4352
        %v3857 = vshrl.u32 %v3784, 16
        %v3859 = vrot.slane %v3857, 3
        %v3860 = vshll.u32 %v3784, 16
        %v3862 = vrot.slane %v3860, 4
        %v3863 = vor.u32 %v3859, %v3862
        %v3865 = vshrl.u32 %v3785, 16
        %v3867 = vrot.slane %v3865, 3
        %v3868 = vshll.u32 %v3785, 16
        %v3870 = vrot.slane %v3868, 4
        %v3871 = vor.u32 %v3867, %v3870
        %v3872 = vsel %vm3855, %v3863, %v3871
        %v3873 = vrot.slane %v3303, 2
        %v3874 = vrot.slane %v3788, 2
        %v3875 = vrot.slane %v3790, 2
        %v3876 = vrot.slane %v3797, 2
        %v3877 = vrot.slane %v3800, 2
        %v3878 = vrot.slane %v3801, 2
        %v3879 = vrot.slane %v3808, 2
        %v3880 = vrot.slane %v3811, 2
        %v3881 = vrot.slane %v3816, 2
        %v3882 = vrot.slane %v3818, 2
        %v3883 = vrot.slane %v3831, 2
        %v3884 = vrot.slane %v3838, 2
        %v3885 = vrot.slane %v3840, 2
        %v3886 = vrot.slane %v3846, 2
        %v3887 = vrot.slane %v3854, 2
        %v3888 = vrot.slane %v3872, 2
        %3905 = vmatprep.subr.bf16.mxu0 0
        %3906 = vmatpush1.bf16.msra.mxu0 %v2715
        %3907 = vmatprep.subr.bf16.mxu0 0
        %3908 = vmatpush1.bf16.msra.mxu0 %v2716
        %3909 = vmatprep.subr.bf16.mxu0 0
        %3910 = vmatpush1.bf16.msra.mxu0 %v2717
        %3911 = vmatprep.subr.bf16.mxu0 0
        %3912 = vmatpush1.bf16.msra.mxu0 %v2718
        %3913 = vmatprep.subr.bf16.mxu0 0
        %3914 = vmatpush1.bf16.msra.mxu0 %v2719
        %3915 = vmatprep.subr.bf16.mxu0 0
        %3916 = vmatpush1.bf16.msra.mxu0 %v2720
        %3917 = vmatprep.subr.bf16.mxu0 0
        %3918 = vmatpush1.bf16.msra.mxu0 %v2721
        %3919 = vmatprep.subr.bf16.mxu0 0
        %3920 = vmatpush1.bf16.msra.mxu0 %v2722
        %3921 = vmatprep.subr.bf16.mxu0 0
        %3922 = vmatpush1.bf16.msra.mxu0 %v2723
        %3923 = vmatprep.subr.bf16.mxu0 0
        %3924 = vmatpush1.bf16.msra.mxu0 %v2724
        %3925 = vmatprep.subr.bf16.mxu0 0
        %3926 = vmatpush1.bf16.msra.mxu0 %v2725
        %3927 = vmatprep.subr.bf16.mxu0 0
        %3928 = vmatpush1.bf16.msra.mxu0 %v2726
        %3929 = vmatprep.subr.bf16.mxu0 0
        %3930 = vmatpush1.bf16.msra.mxu0 %v2727
        %3931 = vmatprep.subr.bf16.mxu0 0
        %3932 = vmatpush1.bf16.msra.mxu0 %v2728
        %3933 = vmatprep.subr.bf16.mxu0 0
        %3934 = vmatpush1.bf16.msra.mxu0 %v2729
        %3935 = vmatprep.subr.bf16.mxu0 0
        %3936 = vmatpush1.bf16.msra.mxu0 %v2730
        %3937 = vmatprep.mubr.bf16.mxu0 %v3874
        %3938 = vmatmul.mubr.bf16.gmra.mrb[0].mxu0 %v3873
        %v3939 = vpop.f32.mrb[0].mxu0
        %v3940 = vadd.f32 %v2201, %v3939
        %v3941 = vpop.f32.mrb[0].mxu0
        %v3942 = vpop.f32.mrb[0].mxu0
        %v3943 = vadd.f32 %v2201, %v3942
        %v3944 = vpop.f32.mrb[0].mxu0
        %3945 = vdwg.mxu0
        %3946 = vmatprep.subr.bf16.mxu0 0
        %3947 = vmatpush1.bf16.msra.mxu0 %v2731
        %3948 = vmatprep.subr.bf16.mxu0 0
        %3949 = vmatpush1.bf16.msra.mxu0 %v2732
        %3950 = vmatprep.subr.bf16.mxu0 0
        %3951 = vmatpush1.bf16.msra.mxu0 %v2733
        %3952 = vmatprep.subr.bf16.mxu0 0
        %3953 = vmatpush1.bf16.msra.mxu0 %v2734
        %3954 = vmatprep.subr.bf16.mxu0 0
        %3955 = vmatpush1.bf16.msra.mxu0 %v2735
        %3956 = vmatprep.subr.bf16.mxu0 0
        %3957 = vmatpush1.bf16.msra.mxu0 %v2736
        %3958 = vmatprep.subr.bf16.mxu0 0
        %3959 = vmatpush1.bf16.msra.mxu0 %v2737
        %3960 = vmatprep.subr.bf16.mxu0 0
        %3961 = vmatpush1.bf16.msra.mxu0 %v2738
        %3962 = vmatprep.subr.bf16.mxu0 0
        %3963 = vmatpush1.bf16.msra.mxu0 %v2739
        %3964 = vmatprep.subr.bf16.mxu0 0
        %3965 = vmatpush1.bf16.msra.mxu0 %v2740
        %3966 = vmatprep.subr.bf16.mxu0 0
        %3967 = vmatpush1.bf16.msra.mxu0 %v2741
        %3968 = vmatprep.subr.bf16.mxu0 0
        %3969 = vmatpush1.bf16.msra.mxu0 %v2742
        %3970 = vmatprep.subr.bf16.mxu0 0
        %3971 = vmatpush1.bf16.msra.mxu0 %v2743
        %3972 = vmatprep.subr.bf16.mxu0 0
        %3973 = vmatpush1.bf16.msra.mxu0 %v2744
        %3974 = vmatprep.subr.bf16.mxu0 0
        %3975 = vmatpush1.bf16.msra.mxu0 %v2745
        %3976 = vmatprep.subr.bf16.mxu0 0
        %3977 = vmatpush1.bf16.msra.mxu0 %v2746
        %3978 = vmatprep.mubr.bf16.mxu0 %v3876
        %3979 = vmatmul.mubr.bf16.gmra.mrb[0].mxu0 %v3875
        %v3980 = vpop.f32.mrb[0].mxu0
        %v3981 = vadd.f32 %v3940, %v3980
        %v3982 = vpop.f32.mrb[0].mxu0
        %v3983 = vpop.f32.mrb[0].mxu0
        %v3984 = vadd.f32 %v3943, %v3983
        %v3985 = vpop.f32.mrb[0].mxu0
        %3986 = vdwg.mxu0
        %3987 = vmatprep.subr.bf16.mxu0 0
        %3988 = vmatpush1.bf16.msra.mxu0 %v2747
        %3989 = vmatprep.subr.bf16.mxu0 0
        %3990 = vmatpush1.bf16.msra.mxu0 %v2748
        %3991 = vmatprep.subr.bf16.mxu0 0
        %3992 = vmatpush1.bf16.msra.mxu0 %v2749
        %3993 = vmatprep.subr.bf16.mxu0 0
        %3994 = vmatpush1.bf16.msra.mxu0 %v2750
        %3995 = vmatprep.subr.bf16.mxu0 0
        %3996 = vmatpush1.bf16.msra.mxu0 %v2751
        %3997 = vmatprep.subr.bf16.mxu0 0
        %3998 = vmatpush1.bf16.msra.mxu0 %v2752
        %3999 = vmatprep.subr.bf16.mxu0 0
        %4000 = vmatpush1.bf16.msra.mxu0 %v2753
        %4001 = vmatprep.subr.bf16.mxu0 0
        %4002 = vmatpush1.bf16.msra.mxu0 %v2754
        %4003 = vmatprep.subr.bf16.mxu0 0
        %4004 = vmatpush1.bf16.msra.mxu0 %v2755
        %4005 = vmatprep.subr.bf16.mxu0 0
        %4006 = vmatpush1.bf16.msra.mxu0 %v2756
        %4007 = vmatprep.subr.bf16.mxu0 0
        %4008 = vmatpush1.bf16.msra.mxu0 %v2757
        %4009 = vmatprep.subr.bf16.mxu0 0
        %4010 = vmatpush1.bf16.msra.mxu0 %v2758
        %4011 = vmatprep.subr.bf16.mxu0 0
        %4012 = vmatpush1.bf16.msra.mxu0 %v2759
        %4013 = vmatprep.subr.bf16.mxu0 0
        %4014 = vmatpush1.bf16.msra.mxu0 %v2760
        %4015 = vmatprep.subr.bf16.mxu0 0
        %4016 = vmatpush1.bf16.msra.mxu0 %v2761
        %4017 = vmatprep.subr.bf16.mxu0 0
        %4018 = vmatpush1.bf16.msra.mxu0 %v2762
        %4019 = vmatprep.mubr.bf16.mxu0 %v3878
        %4020 = vmatmul.mubr.bf16.gmra.mrb[0].mxu0 %v3877
        %v4021 = vpop.f32.mrb[0].mxu0
        %v4022 = vadd.f32 %v3981, %v4021
        %v4023 = vpop.f32.mrb[0].mxu0
        %v4024 = vpop.f32.mrb[0].mxu0
        %v4025 = vadd.f32 %v3984, %v4024
        %v4026 = vpop.f32.mrb[0].mxu0
        %4027 = vdwg.mxu0
        %4028 = vmatprep.subr.bf16.mxu0 0
        %4029 = vmatpush1.bf16.msra.mxu0 %v2763
        %4030 = vmatprep.subr.bf16.mxu0 0
        %4031 = vmatpush1.bf16.msra.mxu0 %v2764
        %4032 = vmatprep.subr.bf16.mxu0 0
        %4033 = vmatpush1.bf16.msra.mxu0 %v2765
        %4034 = vmatprep.subr.bf16.mxu0 0
        %4035 = vmatpush1.bf16.msra.mxu0 %v2766
        %4036 = vmatprep.subr.bf16.mxu0 0
        %4037 = vmatpush1.bf16.msra.mxu0 %v2767
        %4038 = vmatprep.subr.bf16.mxu0 0
        %4039 = vmatpush1.bf16.msra.mxu0 %v2768
        %4040 = vmatprep.subr.bf16.mxu0 0
        %4041 = vmatpush1.bf16.msra.mxu0 %v2769
        %4042 = vmatprep.subr.bf16.mxu0 0
        %4043 = vmatpush1.bf16.msra.mxu0 %v2770
        %4044 = vmatprep.subr.bf16.mxu0 0
        %4045 = vmatpush1.bf16.msra.mxu0 %v2771
        %4046 = vmatprep.subr.bf16.mxu0 0
        %4047 = vmatpush1.bf16.msra.mxu0 %v2772
        %4048 = vmatprep.subr.bf16.mxu0 0
        %4049 = vmatpush1.bf16.msra.mxu0 %v2773
        %4050 = vmatprep.subr.bf16.mxu0 0
        %4051 = vmatpush1.bf16.msra.mxu0 %v2774
        %4052 = vmatprep.subr.bf16.mxu0 0
        %4053 = vmatpush1.bf16.msra.mxu0 %v2775
        %4054 = vmatprep.subr.bf16.mxu0 0
        %4055 = vmatpush1.bf16.msra.mxu0 %v2776
        %4056 = vmatprep.subr.bf16.mxu0 0
        %4057 = vmatpush1.bf16.msra.mxu0 %v2777
        %4058 = vmatprep.subr.bf16.mxu0 0
        %4059 = vmatpush1.bf16.msra.mxu0 %v2778
        %4060 = vmatprep.mubr.bf16.mxu0 %v3880
        %4061 = vmatmul.mubr.bf16.gmra.mrb[0].mxu0 %v3879
        %v4062 = vpop.f32.mrb[0].mxu0
        %v4063 = vadd.f32 %v4022, %v4062
        %v4064 = vpop.f32.mrb[0].mxu0
        %v4065 = vpop.f32.mrb[0].mxu0
        %v4066 = vadd.f32 %v4025, %v4065
        %v4067 = vpop.f32.mrb[0].mxu0
        %4068 = vdwg.mxu0
        %4069 = vmatprep.subr.bf16.mxu0 0
        %4070 = vmatpush1.bf16.msra.mxu0 %v2779
        %4071 = vmatprep.subr.bf16.mxu0 0
        %4072 = vmatpush1.bf16.msra.mxu0 %v2780
        %4073 = vmatprep.subr.bf16.mxu0 0
        %4074 = vmatpush1.bf16.msra.mxu0 %v2781
        %4075 = vmatprep.subr.bf16.mxu0 0
        %4076 = vmatpush1.bf16.msra.mxu0 %v2782
        %4077 = vmatprep.subr.bf16.mxu0 0
        %4078 = vmatpush1.bf16.msra.mxu0 %v2783
        %4079 = vmatprep.subr.bf16.mxu0 0
        %4080 = vmatpush1.bf16.msra.mxu0 %v2784
        %4081 = vmatprep.subr.bf16.mxu0 0
        %4082 = vmatpush1.bf16.msra.mxu0 %v2785
        %4083 = vmatprep.subr.bf16.mxu0 0
        %4084 = vmatpush1.bf16.msra.mxu0 %v2786
        %4085 = vmatprep.subr.bf16.mxu0 0
        %4086 = vmatpush1.bf16.msra.mxu0 %v2787
        %4087 = vmatprep.subr.bf16.mxu0 0
        %4088 = vmatpush1.bf16.msra.mxu0 %v2788
        %4089 = vmatprep.subr.bf16.mxu0 0
        %4090 = vmatpush1.bf16.msra.mxu0 %v2789
        %4091 = vmatprep.subr.bf16.mxu0 0
        %4092 = vmatpush1.bf16.msra.mxu0 %v2790
        %4093 = vmatprep.subr.bf16.mxu0 0
        %4094 = vmatpush1.bf16.msra.mxu0 %v2791
        %4095 = vmatprep.subr.bf16.mxu0 0
        %4096 = vmatpush1.bf16.msra.mxu0 %v2792
        %4097 = vmatprep.subr.bf16.mxu0 0
        %4098 = vmatpush1.bf16.msra.mxu0 %v2793
        %4099 = vmatprep.subr.bf16.mxu0 0
        %4100 = vmatpush1.bf16.msra.mxu0 %v2794
        %4101 = vmatprep.mubr.bf16.mxu0 %v3882
        %4102 = vmatmul.mubr.bf16.gmra.mrb[0].mxu0 %v3881
        %v4103 = vpop.f32.mrb[0].mxu0
        %v4104 = vadd.f32 %v4063, %v4103
        %v4105 = vpop.f32.mrb[0].mxu0
        %v4106 = vpop.f32.mrb[0].mxu0
        %v4107 = vadd.f32 %v4066, %v4106
        %v4108 = vpop.f32.mrb[0].mxu0
        %4109 = vdwg.mxu0
        %4110 = vmatprep.subr.bf16.mxu0 0
        %4111 = vmatpush1.bf16.msra.mxu0 %v2795
        %4112 = vmatprep.subr.bf16.mxu0 0
        %4113 = vmatpush1.bf16.msra.mxu0 %v2796
        %4114 = vmatprep.subr.bf16.mxu0 0
        %4115 = vmatpush1.bf16.msra.mxu0 %v2797
        %4116 = vmatprep.subr.bf16.mxu0 0
        %4117 = vmatpush1.bf16.msra.mxu0 %v2798
        %4118 = vmatprep.subr.bf16.mxu0 0
        %4119 = vmatpush1.bf16.msra.mxu0 %v2799
        %4120 = vmatprep.subr.bf16.mxu0 0
        %4121 = vmatpush1.bf16.msra.mxu0 %v2800
        %4122 = vmatprep.subr.bf16.mxu0 0
        %4123 = vmatpush1.bf16.msra.mxu0 %v2801
        %4124 = vmatprep.subr.bf16.mxu0 0
        %4125 = vmatpush1.bf16.msra.mxu0 %v2802
        %4126 = vmatprep.subr.bf16.mxu0 0
        %4127 = vmatpush1.bf16.msra.mxu0 %v2803
        %4128 = vmatprep.subr.bf16.mxu0 0
        %4129 = vmatpush1.bf16.msra.mxu0 %v2804
        %4130 = vmatprep.subr.bf16.mxu0 0
        %4131 = vmatpush1.bf16.msra.mxu0 %v2805
        %4132 = vmatprep.subr.bf16.mxu0 0
        %4133 = vmatpush1.bf16.msra.mxu0 %v2806
        %4134 = vmatprep.subr.bf16.mxu0 0
        %4135 = vmatpush1.bf16.msra.mxu0 %v2807
        %4136 = vmatprep.subr.bf16.mxu0 0
        %4137 = vmatpush1.bf16.msra.mxu0 %v2808
        %4138 = vmatprep.subr.bf16.mxu0 0
        %4139 = vmatpush1.bf16.msra.mxu0 %v2809
        %4140 = vmatprep.subr.bf16.mxu0 0
        %4141 = vmatpush1.bf16.msra.mxu0 %v2810
        %4142 = vmatprep.mubr.bf16.mxu0 %v3884
        %4143 = vmatmul.mubr.bf16.gmra.mrb[0].mxu0 %v3883
        %v4144 = vpop.f32.mrb[0].mxu0
        %v4145 = vadd.f32 %v4104, %v4144
        %v4146 = vpop.f32.mrb[0].mxu0
        %v4147 = vpop.f32.mrb[0].mxu0
        %v4148 = vadd.f32 %v4107, %v4147
        %v4149 = vpop.f32.mrb[0].mxu0
        %4150 = vdwg.mxu0
        %4151 = vmatprep.subr.bf16.mxu0 0
        %4152 = vmatpush1.bf16.msra.mxu0 %v2811
        %4153 = vmatprep.subr.bf16.mxu0 0
        %4154 = vmatpush1.bf16.msra.mxu0 %v2812
        %4155 = vmatprep.subr.bf16.mxu0 0
        %4156 = vmatpush1.bf16.msra.mxu0 %v2813
        %4157 = vmatprep.subr.bf16.mxu0 0
        %4158 = vmatpush1.bf16.msra.mxu0 %v2814
        %4159 = vmatprep.subr.bf16.mxu0 0
        %4160 = vmatpush1.bf16.msra.mxu0 %v2815
        %4161 = vmatprep.subr.bf16.mxu0 0
        %4162 = vmatpush1.bf16.msra.mxu0 %v2816
        %4163 = vmatprep.subr.bf16.mxu0 0
        %4164 = vmatpush1.bf16.msra.mxu0 %v2817
        %4165 = vmatprep.subr.bf16.mxu0 0
        %4166 = vmatpush1.bf16.msra.mxu0 %v2818
        %4167 = vmatprep.subr.bf16.mxu0 0
        %4168 = vmatpush1.bf16.msra.mxu0 %v2819
        %4169 = vmatprep.subr.bf16.mxu0 0
        %4170 = vmatpush1.bf16.msra.mxu0 %v2820
        %4171 = vmatprep.subr.bf16.mxu0 0
        %4172 = vmatpush1.bf16.msra.mxu0 %v2821
        %4173 = vmatprep.subr.bf16.mxu0 0
        %4174 = vmatpush1.bf16.msra.mxu0 %v2822
        %4175 = vmatprep.subr.bf16.mxu0 0
        %4176 = vmatpush1.bf16.msra.mxu0 %v2823
        %4177 = vmatprep.subr.bf16.mxu0 0
        %4178 = vmatpush1.bf16.msra.mxu0 %v2824
        %4179 = vmatprep.subr.bf16.mxu0 0
        %4180 = vmatpush1.bf16.msra.mxu0 %v2825
        %4181 = vmatprep.subr.bf16.mxu0 0
        %4182 = vmatpush1.bf16.msra.mxu0 %v2826
        %4183 = vmatprep.mubr.bf16.mxu0 %v3886
        %4184 = vmatmul.mubr.bf16.gmra.mrb[0].mxu0 %v3885
        %v4185 = vpop.f32.mrb[0].mxu0
        %v4186 = vadd.f32 %v4145, %v4185
        %v4187 = vpop.f32.mrb[0].mxu0
        %v4188 = vpop.f32.mrb[0].mxu0
        %v4189 = vadd.f32 %v4148, %v4188
        %v4190 = vpop.f32.mrb[0].mxu0
        %4191 = vdwg.mxu0
        %4192 = vmatprep.subr.bf16.mxu0 0
        %4193 = vmatpush1.bf16.msra.mxu0 %v2827
        %4194 = vmatprep.subr.bf16.mxu0 0
        %4195 = vmatpush1.bf16.msra.mxu0 %v2828
        %4196 = vmatprep.subr.bf16.mxu0 0
        %4197 = vmatpush1.bf16.msra.mxu0 %v2829
        %4198 = vmatprep.subr.bf16.mxu0 0
        %4199 = vmatpush1.bf16.msra.mxu0 %v2830
        %4200 = vmatprep.subr.bf16.mxu0 0
        %4201 = vmatpush1.bf16.msra.mxu0 %v2831
        %4202 = vmatprep.subr.bf16.mxu0 0
        %4203 = vmatpush1.bf16.msra.mxu0 %v2832
        %4204 = vmatprep.subr.bf16.mxu0 0
        %4205 = vmatpush1.bf16.msra.mxu0 %v2833
        %4206 = vmatprep.subr.bf16.mxu0 0
        %4207 = vmatpush1.bf16.msra.mxu0 %v2834
        %4208 = vmatprep.subr.bf16.mxu0 0
        %4209 = vmatpush1.bf16.msra.mxu0 %v2835
        %4210 = vmatprep.subr.bf16.mxu0 0
        %4211 = vmatpush1.bf16.msra.mxu0 %v2836
        %4212 = vmatprep.subr.bf16.mxu0 0
        %4213 = vmatpush1.bf16.msra.mxu0 %v2837
        %4214 = vmatprep.subr.bf16.mxu0 0
        %4215 = vmatpush1.bf16.msra.mxu0 %v2838
        %4216 = vmatprep.subr.bf16.mxu0 0
        %4217 = vmatpush1.bf16.msra.mxu0 %v2839
        %4218 = vmatprep.subr.bf16.mxu0 0
        %4219 = vmatpush1.bf16.msra.mxu0 %v2840
        %4220 = vmatprep.subr.bf16.mxu0 0
        %4221 = vmatpush1.bf16.msra.mxu0 %v2841
        %4222 = vmatprep.subr.bf16.mxu0 0
        %4223 = vmatpush1.bf16.msra.mxu0 %v2842
        %4224 = vmatprep.mubr.bf16.mxu0 %v3888
        %4225 = vmatmul.mubr.bf16.gmra.mrb[0].mxu0 %v3887
        %v4226 = vpop.f32.mrb[0].mxu0
        %v4227 = vadd.f32 %v4186, %v4226
        %v4228 = vpop.f32.mrb[0].mxu0
        %v4229 = vpop.f32.mrb[0].mxu0
        %v4230 = vadd.f32 %v4189, %v4229
        %v4231 = vpop.f32.mrb[0].mxu0
        %4232 = vdwg.mxu0
        %v4233 = vmax.f32 %v4227, 0.0
        %v4234 = vmax.f32 %v4230, 0.0
        %v4235 = vpack.c.bf16 %v4233, %v4233
        %v4236 = vpack.c.bf16 %v4234, %v4234
        %v4237 = vld [vmem:[#allocation2 + $0x10] sm:$0xf0]
        %v4238 = vld [vmem:[#allocation2 + $0x18] sm:$0x1]
        %v4239 = vld [vmem:[#allocation2 + $0x40] sm:$0xc0]
        %v4240 = vld [vmem:[#allocation2 + $0x48] sm:$0x7]
        %v4241 = vld [vmem:[#allocation2 + $0x78] sm:$0x1f]
        %v4242 = vld [vmem:[#allocation2 + $0xa8] sm:$0x7c]
        %v4243 = vrot.slane %v3782, 2
        %v4244 = vrot.slane %v3827, 1
        %v4245 = vsel %vm3312, %v3820, %v4244
        %v4246 = vor.u32 %v3824, %v4244
        %v4247 = vrot.slane %v3833, 2
        %v4248 = vrot.slane %v3836, 3
        %v4249 = vor.u32 %v4247, %v4248
        %v4250 = vrot.slane %v3783, 4
        %v4251 = vrot.slane %v3784, 6
        %v4252 = vrot.slane %v3785, 6
        %v4253 = vsel %vm1018, %v4251, %v4252
        %v4254 = vrot.slane %v3848, 4
        %v4255 = vrot.slane %v3851, 5
        %v4256 = vor.u32 %v4254, %v4255
        %v4257 = vrot.slane %v3857, 6
        %v4258 = vrot.slane %v3860, 7
        %v4259 = vor.u32 %v4257, %v4258
        %v4260 = vrot.slane %v3865, 6
        %v4261 = vrot.slane %v3868, 7
        %v4262 = vor.u32 %v4260, %v4261
        %v4263 = vsel %vm1850, %v4259, %v4262
        %v4266 = vrot.slane %v4237, 5
        %v4267 = vrot.slane %v4238, 5
        %v4268 = vsel %vm1871, %v4266, %v4267
        %v4271 = vrot.slane %v4239, 7
        %v4272 = vrot.slane %v4240, 7
        %v4273 = vsel %vm1878, %v4271, %v4272
        %v4275 = vshrl.u32 %v4237, 16
        %v4277 = vrot.slane %v4275, 5
        %v4278 = vshll.u32 %v4237, 16
        %v4280 = vrot.slane %v4278, 6
        %v4281 = vor.u32 %v4277, %v4280
        %v4283 = vshrl.u32 %v4238, 16
        %v4285 = vrot.slane %v4283, 5
        %v4286 = vshll.u32 %v4238, 16
        %v4288 = vrot.slane %v4286, 6
        %v4289 = vor.u32 %v4285, %v4288
        %v4290 = vsel %vm1883, %v4281, %v4289
        %v4292 = vshrl.u32 %v4239, 16
        %v4294 = vrot.slane %v4292, 7
        %v4295 = vshll.u32 %v4239, 16
        %v4297 = vor.u32 %v4294, %v4295
        %v4299 = vshrl.u32 %v4240, 16
        %v4301 = vrot.slane %v4299, 7
        %v4302 = vshll.u32 %v4240, 16
        %v4304 = vor.u32 %v4301, %v4302
        %v4305 = vsel %vm1902, %v4294, %v4304
        %v4307 = vrot.slane %v4241, 1
        %v4309 = vrot.slane %v4242, 3
        %v4311 = vshrl.u32 %v4241, 16
        %v4313 = vrot.slane %v4311, 1
        %v4314 = vshll.u32 %v4241, 16
        %v4316 = vrot.slane %v4314, 2
        %v4317 = vor.u32 %v4313, %v4316
        %v4319 = vshrl.u32 %v4242, 16
        %v4321 = vrot.slane %v4319, 3
        %v4322 = vshll.u32 %v4242, 16
        %v4324 = vrot.slane %v4322, 4
        %v4325 = vor.u32 %v4321, %v4324
        %v4326 = vrot.slane %v3780, 7
        %v4327 = vrot.slane %v3781, 7
        %v4328 = vsel %vm1878, %v4326, %v4327
        %v4329 = vrot.slane %v4243, 7
        %v4330 = vsel %vm1878, %v4329, %v4329
        %v4331 = vrot.slane %v4245, 7
        %v4332 = vrot.slane %v4246, 7
        %v4333 = vsel %vm1878, %v4331, %v4332
        %v4334 = vrot.slane %v4249, 7
        %v4335 = vsel %vm1878, %v4334, %v4334
        %v4336 = vrot.slane %v4250, 7
        %v4337 = vsel %vm1878, %v4336, %v4336
        %v4338 = vrot.slane %v4251, 7
        %v4339 = vrot.slane %v4253, 7
        %v4340 = vsel %vm1878, %v4338, %v4339
        %v4341 = vrot.slane %v4256, 7
        %v4342 = vsel %vm1878, %v4341, %v4341
        %v4343 = vrot.slane %v4259, 7
        %v4344 = vrot.slane %v4263, 7
        %v4345 = vsel %vm1878, %v4343, %v4344
        %v4346 = vrot.slane %v4266, 7
        %v4347 = vrot.slane %v4268, 7
        %v4348 = vsel %vm1878, %v4346, %v4347
        %v4349 = vrot.slane %v4271, 7
        %v4350 = vrot.slane %v4273, 7
        %v4351 = vsel %vm1878, %v4349, %v4350
        %v4352 = vrot.slane %v4281, 7
        %v4353 = vrot.slane %v4290, 7
        %v4354 = vsel %vm1878, %v4352, %v4353
        %v4355 = vrot.slane %v4297, 7
        %v4356 = vrot.slane %v4305, 7
        %v4357 = vsel %vm1878, %v4355, %v4356
        %v4358 = vrot.slane %v4307, 7
        %v4359 = vsel %vm1878, %v4358, %v4358
        %v4360 = vrot.slane %v4309, 7
        %v4361 = vsel %vm1878, %v4360, %v4360
        %v4362 = vrot.slane %v4317, 7
        %v4363 = vsel %vm1878, %v4362, %v4362
        %v4364 = vrot.slane %v4325, 7
        %v4365 = vsel %vm1878, %v4364, %v4364
        %4382 = vmatprep.subr.bf16.mxu0 0
        %4383 = vmatpush1.bf16.msra.mxu0 %v2715
        %4384 = vmatprep.subr.bf16.mxu0 0
        %4385 = vmatpush1.bf16.msra.mxu0 %v2716
        %4386 = vmatprep.subr.bf16.mxu0 0
        %4387 = vmatpush1.bf16.msra.mxu0 %v2717
        %4388 = vmatprep.subr.bf16.mxu0 0
        %4389 = vmatpush1.bf16.msra.mxu0 %v2718
        %4390 = vmatprep.subr.bf16.mxu0 0
        %4391 = vmatpush1.bf16.msra.mxu0 %v2719
        %4392 = vmatprep.subr.bf16.mxu0 0
        %4393 = vmatpush1.bf16.msra.mxu0 %v2720
        %4394 = vmatprep.subr.bf16.mxu0 0
        %4395 = vmatpush1.bf16.msra.mxu0 %v2721
        %4396 = vmatprep.subr.bf16.mxu0 0
        %4397 = vmatpush1.bf16.msra.mxu0 %v2722
        %4398 = vmatprep.subr.bf16.mxu0 0
        %4399 = vmatpush1.bf16.msra.mxu0 %v2723
        %4400 = vmatprep.subr.bf16.mxu0 0
        %4401 = vmatpush1.bf16.msra.mxu0 %v2724
        %4402 = vmatprep.subr.bf16.mxu0 0
        %4403 = vmatpush1.bf16.msra.mxu0 %v2725
        %4404 = vmatprep.subr.bf16.mxu0 0
        %4405 = vmatpush1.bf16.msra.mxu0 %v2726
        %4406 = vmatprep.subr.bf16.mxu0 0
        %4407 = vmatpush1.bf16.msra.mxu0 %v2727
        %4408 = vmatprep.subr.bf16.mxu0 0
        %4409 = vmatpush1.bf16.msra.mxu0 %v2728
        %4410 = vmatprep.subr.bf16.mxu0 0
        %4411 = vmatpush1.bf16.msra.mxu0 %v2729
        %4412 = vmatprep.subr.bf16.mxu0 0
        %4413 = vmatpush1.bf16.msra.mxu0 %v2730
        %4414 = vmatprep.mubr.bf16.mxu0 %v4330
        %4415 = vmatmul.mubr.bf16.gmra.mrb[0].mxu0 %v4328
        %v4416 = vpop.f32.mrb[0].mxu0
        %v4417 = vadd.f32 %v2201, %v4416
        %v4418 = vpop.f32.mrb[0].mxu0
        %v4419 = vpop.f32.mrb[0].mxu0
        %v4420 = vadd.f32 %v2201, %v4419
        %v4421 = vpop.f32.mrb[0].mxu0
        %4422 = vdwg.mxu0
        %4423 = vmatprep.subr.bf16.mxu0 0
        %4424 = vmatpush1.bf16.msra.mxu0 %v2731
        %4425 = vmatprep.subr.bf16.mxu0 0
        %4426 = vmatpush1.bf16.msra.mxu0 %v2732
        %4427 = vmatprep.subr.bf16.mxu0 0
        %4428 = vmatpush1.bf16.msra.mxu0 %v2733
        %4429 = vmatprep.subr.bf16.mxu0 0
        %4430 = vmatpush1.bf16.msra.mxu0 %v2734
        %4431 = vmatprep.subr.bf16.mxu0 0
        %4432 = vmatpush1.bf16.msra.mxu0 %v2735
        %4433 = vmatprep.subr.bf16.mxu0 0
        %4434 = vmatpush1.bf16.msra.mxu0 %v2736
        %4435 = vmatprep.subr.bf16.mxu0 0
        %4436 = vmatpush1.bf16.msra.mxu0 %v2737
        %4437 = vmatprep.subr.bf16.mxu0 0
        %4438 = vmatpush1.bf16.msra.mxu0 %v2738
        %4439 = vmatprep.subr.bf16.mxu0 0
        %4440 = vmatpush1.bf16.msra.mxu0 %v2739
        %4441 = vmatprep.subr.bf16.mxu0 0
        %4442 = vmatpush1.bf16.msra.mxu0 %v2740
        %4443 = vmatprep.subr.bf16.mxu0 0
        %4444 = vmatpush1.bf16.msra.mxu0 %v2741
        %4445 = vmatprep.subr.bf16.mxu0 0
        %4446 = vmatpush1.bf16.msra.mxu0 %v2742
        %4447 = vmatprep.subr.bf16.mxu0 0
        %4448 = vmatpush1.bf16.msra.mxu0 %v2743
        %4449 = vmatprep.subr.bf16.mxu0 0
        %4450 = vmatpush1.bf16.msra.mxu0 %v2744
        %4451 = vmatprep.subr.bf16.mxu0 0
        %4452 = vmatpush1.bf16.msra.mxu0 %v2745
        %4453 = vmatprep.subr.bf16.mxu0 0
        %4454 = vmatpush1.bf16.msra.mxu0 %v2746
        %4455 = vmatprep.mubr.bf16.mxu0 %v4335
        %4456 = vmatmul.mubr.bf16.gmra.mrb[0].mxu0 %v4333
        %v4457 = vpop.f32.mrb[0].mxu0
        %v4458 = vadd.f32 %v4417, %v4457
        %v4459 = vpop.f32.mrb[0].mxu0
        %v4460 = vpop.f32.mrb[0].mxu0
        %v4461 = vadd.f32 %v4420, %v4460
        %v4462 = vpop.f32.mrb[0].mxu0
        %4463 = vdwg.mxu0
        %4464 = vmatprep.subr.bf16.mxu0 0
        %4465 = vmatpush1.bf16.msra.mxu0 %v2747
        %4466 = vmatprep.subr.bf16.mxu0 0
        %4467 = vmatpush1.bf16.msra.mxu0 %v2748
        %4468 = vmatprep.subr.bf16.mxu0 0
        %4469 = vmatpush1.bf16.msra.mxu0 %v2749
        %4470 = vmatprep.subr.bf16.mxu0 0
        %4471 = vmatpush1.bf16.msra.mxu0 %v2750
        %4472 = vmatprep.subr.bf16.mxu0 0
        %4473 = vmatpush1.bf16.msra.mxu0 %v2751
        %4474 = vmatprep.subr.bf16.mxu0 0
        %4475 = vmatpush1.bf16.msra.mxu0 %v2752
        %4476 = vmatprep.subr.bf16.mxu0 0
        %4477 = vmatpush1.bf16.msra.mxu0 %v2753
        %4478 = vmatprep.subr.bf16.mxu0 0
        %4479 = vmatpush1.bf16.msra.mxu0 %v2754
        %4480 = vmatprep.subr.bf16.mxu0 0
        %4481 = vmatpush1.bf16.msra.mxu0 %v2755
        %4482 = vmatprep.subr.bf16.mxu0 0
        %4483 = vmatpush1.bf16.msra.mxu0 %v2756
        %4484 = vmatprep.subr.bf16.mxu0 0
        %4485 = vmatpush1.bf16.msra.mxu0 %v2757
        %4486 = vmatprep.subr.bf16.mxu0 0
        %4487 = vmatpush1.bf16.msra.mxu0 %v2758
        %4488 = vmatprep.subr.bf16.mxu0 0
        %4489 = vmatpush1.bf16.msra.mxu0 %v2759
        %4490 = vmatprep.subr.bf16.mxu0 0
        %4491 = vmatpush1.bf16.msra.mxu0 %v2760
        %4492 = vmatprep.subr.bf16.mxu0 0
        %4493 = vmatpush1.bf16.msra.mxu0 %v2761
        %4494 = vmatprep.subr.bf16.mxu0 0
        %4495 = vmatpush1.bf16.msra.mxu0 %v2762
        %4496 = vmatprep.mubr.bf16.mxu0 %v4340
        %4497 = vmatmul.mubr.bf16.gmra.mrb[0].mxu0 %v4337
        %v4498 = vpop.f32.mrb[0].mxu0
        %v4499 = vadd.f32 %v4458, %v4498
        %v4500 = vpop.f32.mrb[0].mxu0
        %v4501 = vpop.f32.mrb[0].mxu0
        %v4502 = vadd.f32 %v4461, %v4501
        %v4503 = vpop.f32.mrb[0].mxu0
        %4504 = vdwg.mxu0
        %4505 = vmatprep.subr.bf16.mxu0 0
        %4506 = vmatpush1.bf16.msra.mxu0 %v2763
        %4507 = vmatprep.subr.bf16.mxu0 0
        %4508 = vmatpush1.bf16.msra.mxu0 %v2764
        %4509 = vmatprep.subr.bf16.mxu0 0
        %4510 = vmatpush1.bf16.msra.mxu0 %v2765
        %4511 = vmatprep.subr.bf16.mxu0 0
        %4512 = vmatpush1.bf16.msra.mxu0 %v2766
        %4513 = vmatprep.subr.bf16.mxu0 0
        %4514 = vmatpush1.bf16.msra.mxu0 %v2767
        %4515 = vmatprep.subr.bf16.mxu0 0
        %4516 = vmatpush1.bf16.msra.mxu0 %v2768
        %4517 = vmatprep.subr.bf16.mxu0 0
        %4518 = vmatpush1.bf16.msra.mxu0 %v2769
        %4519 = vmatprep.subr.bf16.mxu0 0
        %4520 = vmatpush1.bf16.msra.mxu0 %v2770
        %4521 = vmatprep.subr.bf16.mxu0 0
        %4522 = vmatpush1.bf16.msra.mxu0 %v2771
        %4523 = vmatprep.subr.bf16.mxu0 0
        %4524 = vmatpush1.bf16.msra.mxu0 %v2772
        %4525 = vmatprep.subr.bf16.mxu0 0
        %4526 = vmatpush1.bf16.msra.mxu0 %v2773
        %4527 = vmatprep.subr.bf16.mxu0 0
        %4528 = vmatpush1.bf16.msra.mxu0 %v2774
        %4529 = vmatprep.subr.bf16.mxu0 0
        %4530 = vmatpush1.bf16.msra.mxu0 %v2775
        %4531 = vmatprep.subr.bf16.mxu0 0
        %4532 = vmatpush1.bf16.msra.mxu0 %v2776
        %4533 = vmatprep.subr.bf16.mxu0 0
        %4534 = vmatpush1.bf16.msra.mxu0 %v2777
        %4535 = vmatprep.subr.bf16.mxu0 0
        %4536 = vmatpush1.bf16.msra.mxu0 %v2778
        %4537 = vmatprep.mubr.bf16.mxu0 %v4345
        %4538 = vmatmul.mubr.bf16.gmra.mrb[0].mxu0 %v4342
        %v4539 = vpop.f32.mrb[0].mxu0
        %v4540 = vadd.f32 %v4499, %v4539
        %v4541 = vpop.f32.mrb[0].mxu0
        %v4542 = vpop.f32.mrb[0].mxu0
        %v4543 = vadd.f32 %v4502, %v4542
        %v4544 = vpop.f32.mrb[0].mxu0
        %4545 = vdwg.mxu0
        %4546 = vmatprep.subr.bf16.mxu0 0
        %4547 = vmatpush1.bf16.msra.mxu0 %v2779
        %4548 = vmatprep.subr.bf16.mxu0 0
        %4549 = vmatpush1.bf16.msra.mxu0 %v2780
        %4550 = vmatprep.subr.bf16.mxu0 0
        %4551 = vmatpush1.bf16.msra.mxu0 %v2781
        %4552 = vmatprep.subr.bf16.mxu0 0
        %4553 = vmatpush1.bf16.msra.mxu0 %v2782
        %4554 = vmatprep.subr.bf16.mxu0 0
        %4555 = vmatpush1.bf16.msra.mxu0 %v2783
        %4556 = vmatprep.subr.bf16.mxu0 0
        %4557 = vmatpush1.bf16.msra.mxu0 %v2784
        %4558 = vmatprep.subr.bf16.mxu0 0
        %4559 = vmatpush1.bf16.msra.mxu0 %v2785
        %4560 = vmatprep.subr.bf16.mxu0 0
        %4561 = vmatpush1.bf16.msra.mxu0 %v2786
        %4562 = vmatprep.subr.bf16.mxu0 0
        %4563 = vmatpush1.bf16.msra.mxu0 %v2787
        %4564 = vmatprep.subr.bf16.mxu0 0
        %4565 = vmatpush1.bf16.msra.mxu0 %v2788
        %4566 = vmatprep.subr.bf16.mxu0 0
        %4567 = vmatpush1.bf16.msra.mxu0 %v2789
        %4568 = vmatprep.subr.bf16.mxu0 0
        %4569 = vmatpush1.bf16.msra.mxu0 %v2790
        %4570 = vmatprep.subr.bf16.mxu0 0
        %4571 = vmatpush1.bf16.msra.mxu0 %v2791
        %4572 = vmatprep.subr.bf16.mxu0 0
        %4573 = vmatpush1.bf16.msra.mxu0 %v2792
        %4574 = vmatprep.subr.bf16.mxu0 0
        %4575 = vmatpush1.bf16.msra.mxu0 %v2793
        %4576 = vmatprep.subr.bf16.mxu0 0
        %4577 = vmatpush1.bf16.msra.mxu0 %v2794
        %4578 = vmatprep.mubr.bf16.mxu0 %v4351
        %4579 = vmatmul.mubr.bf16.gmra.mrb[0].mxu0 %v4348
        %v4580 = vpop.f32.mrb[0].mxu0
        %v4581 = vadd.f32 %v4540, %v4580
        %v4582 = vpop.f32.mrb[0].mxu0
        %v4583 = vpop.f32.mrb[0].mxu0
        %v4584 = vadd.f32 %v4543, %v4583
        %v4585 = vpop.f32.mrb[0].mxu0
        %4586 = vdwg.mxu0
        %4587 = vmatprep.subr.bf16.mxu0 0
        %4588 = vmatpush1.bf16.msra.mxu0 %v2795
        %4589 = vmatprep.subr.bf16.mxu0 0
        %4590 = vmatpush1.bf16.msra.mxu0 %v2796
        %4591 = vmatprep.subr.bf16.mxu0 0
        %4592 = vmatpush1.bf16.msra.mxu0 %v2797
        %4593 = vmatprep.subr.bf16.mxu0 0
        %4594 = vmatpush1.bf16.msra.mxu0 %v2798
        %4595 = vmatprep.subr.bf16.mxu0 0
        %4596 = vmatpush1.bf16.msra.mxu0 %v2799
        %4597 = vmatprep.subr.bf16.mxu0 0
        %4598 = vmatpush1.bf16.msra.mxu0 %v2800
        %4599 = vmatprep.subr.bf16.mxu0 0
        %4600 = vmatpush1.bf16.msra.mxu0 %v2801
        %4601 = vmatprep.subr.bf16.mxu0 0
        %4602 = vmatpush1.bf16.msra.mxu0 %v2802
        %4603 = vmatprep.subr.bf16.mxu0 0
        %4604 = vmatpush1.bf16.msra.mxu0 %v2803
        %4605 = vmatprep.subr.bf16.mxu0 0
        %4606 = vmatpush1.bf16.msra.mxu0 %v2804
        %4607 = vmatprep.subr.bf16.mxu0 0
        %4608 = vmatpush1.bf16.msra.mxu0 %v2805
        %4609 = vmatprep.subr.bf16.mxu0 0
        %4610 = vmatpush1.bf16.msra.mxu0 %v2806
        %4611 = vmatprep.subr.bf16.mxu0 0
        %4612 = vmatpush1.bf16.msra.mxu0 %v2807
        %4613 = vmatprep.subr.bf16.mxu0 0
        %4614 = vmatpush1.bf16.msra.mxu0 %v2808
        %4615 = vmatprep.subr.bf16.mxu0 0
        %4616 = vmatpush1.bf16.msra.mxu0 %v2809
        %4617 = vmatprep.subr.bf16.mxu0 0
        %4618 = vmatpush1.bf16.msra.mxu0 %v2810
        %4619 = vmatprep.mubr.bf16.mxu0 %v4357
        %4620 = vmatmul.mubr.bf16.gmra.mrb[0].mxu0 %v4354
        %v4621 = vpop.f32.mrb[0].mxu0
        %v4622 = vadd.f32 %v4581, %v4621
        %v4623 = vpop.f32.mrb[0].mxu0
        %v4624 = vpop.f32.mrb[0].mxu0
        %v4625 = vadd.f32 %v4584, %v4624
        %v4626 = vpop.f32.mrb[0].mxu0
        %4627 = vdwg.mxu0
        %4628 = vmatprep.subr.bf16.mxu0 0
        %4629 = vmatpush1.bf16.msra.mxu0 %v2811
        %4630 = vmatprep.subr.bf16.mxu0 0
        %4631 = vmatpush1.bf16.msra.mxu0 %v2812
        %4632 = vmatprep.subr.bf16.mxu0 0
        %4633 = vmatpush1.bf16.msra.mxu0 %v2813
        %4634 = vmatprep.subr.bf16.mxu0 0
        %4635 = vmatpush1.bf16.msra.mxu0 %v2814
        %4636 = vmatprep.subr.bf16.mxu0 0
        %4637 = vmatpush1.bf16.msra.mxu0 %v2815
        %4638 = vmatprep.subr.bf16.mxu0 0
        %4639 = vmatpush1.bf16.msra.mxu0 %v2816
        %4640 = vmatprep.subr.bf16.mxu0 0
        %4641 = vmatpush1.bf16.msra.mxu0 %v2817
        %4642 = vmatprep.subr.bf16.mxu0 0
        %4643 = vmatpush1.bf16.msra.mxu0 %v2818
        %4644 = vmatprep.subr.bf16.mxu0 0
        %4645 = vmatpush1.bf16.msra.mxu0 %v2819
        %4646 = vmatprep.subr.bf16.mxu0 0
        %4647 = vmatpush1.bf16.msra.mxu0 %v2820
        %4648 = vmatprep.subr.bf16.mxu0 0
        %4649 = vmatpush1.bf16.msra.mxu0 %v2821
        %4650 = vmatprep.subr.bf16.mxu0 0
        %4651 = vmatpush1.bf16.msra.mxu0 %v2822
        %4652 = vmatprep.subr.bf16.mxu0 0
        %4653 = vmatpush1.bf16.msra.mxu0 %v2823
        %4654 = vmatprep.subr.bf16.mxu0 0
        %4655 = vmatpush1.bf16.msra.mxu0 %v2824
        %4656 = vmatprep.subr.bf16.mxu0 0
        %4657 = vmatpush1.bf16.msra.mxu0 %v2825
        %4658 = vmatprep.subr.bf16.mxu0 0
        %4659 = vmatpush1.bf16.msra.mxu0 %v2826
        %4660 = vmatprep.mubr.bf16.mxu0 %v4361
        %4661 = vmatmul.mubr.bf16.gmra.mrb[0].mxu0 %v4359
        %v4662 = vpop.f32.mrb[0].mxu0
        %v4663 = vadd.f32 %v4622, %v4662
        %v4664 = vpop.f32.mrb[0].mxu0
        %v4665 = vpop.f32.mrb[0].mxu0
        %v4666 = vadd.f32 %v4625, %v4665
        %v4667 = vpop.f32.mrb[0].mxu0
        %4668 = vdwg.mxu0
        %4669 = vmatprep.subr.bf16.mxu0 0
        %4670 = vmatpush1.bf16.msra.mxu0 %v2827
        %4671 = vmatprep.subr.bf16.mxu0 0
        %4672 = vmatpush1.bf16.msra.mxu0 %v2828
        %4673 = vmatprep.subr.bf16.mxu0 0
        %4674 = vmatpush1.bf16.msra.mxu0 %v2829
        %4675 = vmatprep.subr.bf16.mxu0 0
        %4676 = vmatpush1.bf16.msra.mxu0 %v2830
        %4677 = vmatprep.subr.bf16.mxu0 0
        %4678 = vmatpush1.bf16.msra.mxu0 %v2831
        %4679 = vmatprep.subr.bf16.mxu0 0
        %4680 = vmatpush1.bf16.msra.mxu0 %v2832
        %4681 = vmatprep.subr.bf16.mxu0 0
        %4682 = vmatpush1.bf16.msra.mxu0 %v2833
        %4683 = vmatprep.subr.bf16.mxu0 0
        %4684 = vmatpush1.bf16.msra.mxu0 %v2834
        %4685 = vmatprep.subr.bf16.mxu0 0
        %4686 = vmatpush1.bf16.msra.mxu0 %v2835
        %4687 = vmatprep.subr.bf16.mxu0 0
        %4688 = vmatpush1.bf16.msra.mxu0 %v2836
        %4689 = vmatprep.subr.bf16.mxu0 0
        %4690 = vmatpush1.bf16.msra.mxu0 %v2837
        %4691 = vmatprep.subr.bf16.mxu0 0
        %4692 = vmatpush1.bf16.msra.mxu0 %v2838
        %4693 = vmatprep.subr.bf16.mxu0 0
        %4694 = vmatpush1.bf16.msra.mxu0 %v2839
        %4695 = vmatprep.subr.bf16.mxu0 0
        %4696 = vmatpush1.bf16.msra.mxu0 %v2840
        %4697 = vmatprep.subr.bf16.mxu0 0
        %4698 = vmatpush1.bf16.msra.mxu0 %v2841
        %4699 = vmatprep.subr.bf16.mxu0 0
        %4700 = vmatpush1.bf16.msra.mxu0 %v2842
        %4701 = vmatprep.mubr.bf16.mxu0 %v4365
        %4702 = vmatmul.mubr.bf16.gmra.mrb[0].mxu0 %v4363
        %v4703 = vpop.f32.mrb[0].mxu0
        %v4704 = vadd.f32 %v4663, %v4703
        %v4705 = vpop.f32.mrb[0].mxu0
        %v4706 = vpop.f32.mrb[0].mxu0
        %v4707 = vadd.f32 %v4666, %v4706
        %v4708 = vpop.f32.mrb[0].mxu0
        %4709 = vdwg.mxu0
        %v4710 = vmax.f32 %v4704, 0.0
        %v4711 = vmax.f32 %v4707, 0.0
        %v4712 = vpack.c.bf16 %v4710, %v4710
        %v4713 = vpack.c.bf16 %v4711, %v4711
        %v4714 = vld [vmem:[#allocation2 + $0x18] sm:$0x3e]
        %v4715 = vld [vmem:[#allocation2 + $0x48] sm:$0xf8]
        %v4716 = vld [vmem:[#allocation2 + $0x78] sm:$0xe0]
        %v4717 = vld [vmem:[#allocation2 + $0x80] sm:$0x3]
        %v4718 = vld [vmem:[#allocation2 + $0xa8] sm:$0x80]
        %v4719 = vld [vmem:[#allocation2 + $0xb0] sm:$0xf]
        %v4720 = vrot.slane %v4239, 2
        %v4721 = vrot.slane %v4240, 2
        %v4722 = vsel %vm766, %v4720, %v4721
        %v4723 = vrot.slane %v4278, 1
        %v4724 = vor.u32 %v4275, %v4723
        %v4725 = vrot.slane %v4286, 1
        %v4726 = vsel %vm3312, %v4724, %v4725
        %v4727 = vrot.slane %v4292, 2
        %v4728 = vrot.slane %v4295, 3
        %v4729 = vor.u32 %v4727, %v4728
        %v4730 = vrot.slane %v4299, 2
        %v4731 = vrot.slane %v4302, 3
        %v4732 = vor.u32 %v4730, %v4731
        %v4733 = vsel %vm3318, %v4729, %v4732
        %v4734 = vrot.slane %v4241, 4
        %v4735 = vrot.slane %v4242, 6
        %v4736 = vrot.slane %v4311, 4
        %v4737 = vrot.slane %v4314, 5
        %v4738 = vor.u32 %v4736, %v4737
        %v4739 = vrot.slane %v4319, 6
        %v4740 = vrot.slane %v4322, 7
        %v4741 = vor.u32 %v4739, %v4740
        %v4743 = vrot.slane %v4714, 5
        %v4745 = vrot.slane %v4715, 7
        %v4747 = vshrl.u32 %v4714, 16
        %v4749 = vrot.slane %v4747, 5
        %v4750 = vshll.u32 %v4714, 16
        %v4752 = vrot.slane %v4750, 6
        %v4753 = vor.u32 %v4749, %v4752
        %v4755 = vshrl.u32 %v4715, 16
        %v4757 = vrot.slane %v4755, 7
        %v4758 = vshll.u32 %v4715, 16
        %v4760 = vor.u32 %v4757, %v4758
        %v4763 = vrot.slane %v4716, 1
        %v4764 = vrot.slane %v4717, 1
        %v4765 = vsel %vm3364, %v4763, %v4764
        %v4768 = vrot.slane %v4718, 3
        %v4769 = vrot.slane %v4719, 3
        %v4770 = vsel %vm3843, %v4768, %v4769
        %v4772 = vshrl.u32 %v4716, 16
        %v4774 = vrot.slane %v4772, 1
        %v4775 = vshll.u32 %v4716, 16
        %v4777 = vrot.slane %v4775, 2
        %v4778 = vor.u32 %v4774, %v4777
        %v4780 = vshrl.u32 %v4717, 16
        %v4782 = vrot.slane %v4780, 1
        %v4783 = vshll.u32 %v4717, 16
        %v4785 = vrot.slane %v4783, 2
        %v4786 = vor.u32 %v4782, %v4785
        %v4787 = vsel %vm3370, %v4778, %v4786
        %v4789 = vshrl.u32 %v4718, 16
        %v4791 = vrot.slane %v4789, 3
        %v4793 = vshrl.u32 %v4719, 16
        %v4795 = vrot.slane %v4793, 3
        %v4796 = vshll.u32 %v4719, 16
        %v4798 = vrot.slane %v4796, 4
        %v4799 = vor.u32 %v4795, %v4798
        %v4800 = vsel %vm3855, %v4791, %v4799
        %v4801 = vrot.slane %v4237, 4
        %v4802 = vrot.slane %v4238, 4
        %v4803 = vsel %vm1376, %v4801, %v4802
        %v4804 = vrot.slane %v4722, 4
        %v4805 = vrot.slane %v4721, 4
        %v4806 = vsel %vm1376, %v4804, %v4805
        %v4807 = vrot.slane %v4726, 4
        %v4808 = vrot.slane %v4283, 4
        %v4809 = vsel %vm1376, %v4807, %v4808
        %v4810 = vrot.slane %v4733, 4
        %v4811 = vrot.slane %v4730, 4
        %v4812 = vsel %vm1376, %v4810, %v4811
        %v4813 = vrot.slane %v4734, 4
        %v4814 = vsel %vm1376, %v4813, %v4813
        %v4815 = vrot.slane %v4735, 4
        %v4816 = vsel %vm1376, %v4815, %v4815
        %v4817 = vrot.slane %v4738, 4
        %v4818 = vrot.slane %v4736, 4
        %v4819 = vsel %vm1376, %v4817, %v4818
        %v4820 = vrot.slane %v4741, 4
        %v4821 = vrot.slane %v4739, 4
        %v4822 = vsel %vm1376, %v4820, %v4821
        %v4823 = vrot.slane %v4743, 4
        %v4824 = vsel %vm1376, %v4823, %v4823
        %v4825 = vrot.slane %v4745, 4
        %v4826 = vsel %vm1376, %v4825, %v4825
        %v4827 = vrot.slane %v4753, 4
        %v4828 = vrot.slane %v4749, 4
        %v4829 = vsel %vm1376, %v4827, %v4828
        %v4830 = vrot.slane %v4760, 4
        %v4831 = vrot.slane %v4757, 4
        %v4832 = vsel %vm1376, %v4830, %v4831
        %v4833 = vrot.slane %v4765, 4
        %v4834 = vrot.slane %v4764, 4
        %v4835 = vsel %vm1376, %v4833, %v4834
        %v4836 = vrot.slane %v4770, 4
        %v4837 = vrot.slane %v4769, 4
        %v4838 = vsel %vm1376, %v4836, %v4837
        %v4839 = vrot.slane %v4787, 4
        %v4840 = vrot.slane %v4782, 4
        %v4841 = vsel %vm1376, %v4839, %v4840
        %v4842 = vrot.slane %v4800, 4
        %v4843 = vrot.slane %v4795, 4
        %v4844 = vsel %vm1376, %v4842, %v4843
        %4861 = vmatprep.subr.bf16.mxu0 0
        %4862 = vmatpush1.bf16.msra.mxu0 %v2715
        %4863 = vmatprep.subr.bf16.mxu0 0
        %4864 = vmatpush1.bf16.msra.mxu0 %v2716
        %4865 = vmatprep.subr.bf16.mxu0 0
        %4866 = vmatpush1.bf16.msra.mxu0 %v2717
        %4867 = vmatprep.subr.bf16.mxu0 0
        %4868 = vmatpush1.bf16.msra.mxu0 %v2718
        %4869 = vmatprep.subr.bf16.mxu0 0
        %4870 = vmatpush1.bf16.msra.mxu0 %v2719
        %4871 = vmatprep.subr.bf16.mxu0 0
        %4872 = vmatpush1.bf16.msra.mxu0 %v2720
        %4873 = vmatprep.subr.bf16.mxu0 0
        %4874 = vmatpush1.bf16.msra.mxu0 %v2721
        %4875 = vmatprep.subr.bf16.mxu0 0
        %4876 = vmatpush1.bf16.msra.mxu0 %v2722
        %4877 = vmatprep.subr.bf16.mxu0 0
        %4878 = vmatpush1.bf16.msra.mxu0 %v2723
        %4879 = vmatprep.subr.bf16.mxu0 0
        %4880 = vmatpush1.bf16.msra.mxu0 %v2724
        %4881 = vmatprep.subr.bf16.mxu0 0
        %4882 = vmatpush1.bf16.msra.mxu0 %v2725
        %4883 = vmatprep.subr.bf16.mxu0 0
        %4884 = vmatpush1.bf16.msra.mxu0 %v2726
        %4885 = vmatprep.subr.bf16.mxu0 0
        %4886 = vmatpush1.bf16.msra.mxu0 %v2727
        %4887 = vmatprep.subr.bf16.mxu0 0
        %4888 = vmatpush1.bf16.msra.mxu0 %v2728
        %4889 = vmatprep.subr.bf16.mxu0 0
        %4890 = vmatpush1.bf16.msra.mxu0 %v2729
        %4891 = vmatprep.subr.bf16.mxu0 0
        %4892 = vmatpush1.bf16.msra.mxu0 %v2730
        %4893 = vmatprep.mubr.bf16.mxu0 %v4806
        %4894 = vmatmul.mubr.bf16.gmra.mrb[0].mxu0 %v4803
        %v4895 = vpop.f32.mrb[0].mxu0
        %v4896 = vadd.f32 %v2201, %v4895
        %v4897 = vpop.f32.mrb[0].mxu0
        %v4898 = vpop.f32.mrb[0].mxu0
        %v4899 = vadd.f32 %v2201, %v4898
        %v4900 = vpop.f32.mrb[0].mxu0
        %4901 = vdwg.mxu0
        %4902 = vmatprep.subr.bf16.mxu0 0
        %4903 = vmatpush1.bf16.msra.mxu0 %v2731
        %4904 = vmatprep.subr.bf16.mxu0 0
        %4905 = vmatpush1.bf16.msra.mxu0 %v2732
        %4906 = vmatprep.subr.bf16.mxu0 0
        %4907 = vmatpush1.bf16.msra.mxu0 %v2733
        %4908 = vmatprep.subr.bf16.mxu0 0
        %4909 = vmatpush1.bf16.msra.mxu0 %v2734
        %4910 = vmatprep.subr.bf16.mxu0 0
        %4911 = vmatpush1.bf16.msra.mxu0 %v2735
        %4912 = vmatprep.subr.bf16.mxu0 0
        %4913 = vmatpush1.bf16.msra.mxu0 %v2736
        %4914 = vmatprep.subr.bf16.mxu0 0
        %4915 = vmatpush1.bf16.msra.mxu0 %v2737
        %4916 = vmatprep.subr.bf16.mxu0 0
        %4917 = vmatpush1.bf16.msra.mxu0 %v2738
        %4918 = vmatprep.subr.bf16.mxu0 0
        %4919 = vmatpush1.bf16.msra.mxu0 %v2739
        %4920 = vmatprep.subr.bf16.mxu0 0
        %4921 = vmatpush1.bf16.msra.mxu0 %v2740
        %4922 = vmatprep.subr.bf16.mxu0 0
        %4923 = vmatpush1.bf16.msra.mxu0 %v2741
        %4924 = vmatprep.subr.bf16.mxu0 0
        %4925 = vmatpush1.bf16.msra.mxu0 %v2742
        %4926 = vmatprep.subr.bf16.mxu0 0
        %4927 = vmatpush1.bf16.msra.mxu0 %v2743
        %4928 = vmatprep.subr.bf16.mxu0 0
        %4929 = vmatpush1.bf16.msra.mxu0 %v2744
        %4930 = vmatprep.subr.bf16.mxu0 0
        %4931 = vmatpush1.bf16.msra.mxu0 %v2745
        %4932 = vmatprep.subr.bf16.mxu0 0
        %4933 = vmatpush1.bf16.msra.mxu0 %v2746
        %4934 = vmatprep.mubr.bf16.mxu0 %v4812
        %4935 = vmatmul.mubr.bf16.gmra.mrb[0].mxu0 %v4809
        %v4936 = vpop.f32.mrb[0].mxu0
        %v4937 = vadd.f32 %v4896, %v4936
        %v4938 = vpop.f32.mrb[0].mxu0
        %v4939 = vpop.f32.mrb[0].mxu0
        %v4940 = vadd.f32 %v4899, %v4939
        %v4941 = vpop.f32.mrb[0].mxu0
        %4942 = vdwg.mxu0
        %4943 = vmatprep.subr.bf16.mxu0 0
        %4944 = vmatpush1.bf16.msra.mxu0 %v2747
        %4945 = vmatprep.subr.bf16.mxu0 0
        %4946 = vmatpush1.bf16.msra.mxu0 %v2748
        %4947 = vmatprep.subr.bf16.mxu0 0
        %4948 = vmatpush1.bf16.msra.mxu0 %v2749
        %4949 = vmatprep.subr.bf16.mxu0 0
        %4950 = vmatpush1.bf16.msra.mxu0 %v2750
        %4951 = vmatprep.subr.bf16.mxu0 0
        %4952 = vmatpush1.bf16.msra.mxu0 %v2751
        %4953 = vmatprep.subr.bf16.mxu0 0
        %4954 = vmatpush1.bf16.msra.mxu0 %v2752
        %4955 = vmatprep.subr.bf16.mxu0 0
        %4956 = vmatpush1.bf16.msra.mxu0 %v2753
        %4957 = vmatprep.subr.bf16.mxu0 0
        %4958 = vmatpush1.bf16.msra.mxu0 %v2754
        %4959 = vmatprep.subr.bf16.mxu0 0
        %4960 = vmatpush1.bf16.msra.mxu0 %v2755
        %4961 = vmatprep.subr.bf16.mxu0 0
        %4962 = vmatpush1.bf16.msra.mxu0 %v2756
        %4963 = vmatprep.subr.bf16.mxu0 0
        %4964 = vmatpush1.bf16.msra.mxu0 %v2757
        %4965 = vmatprep.subr.bf16.mxu0 0
        %4966 = vmatpush1.bf16.msra.mxu0 %v2758
        %4967 = vmatprep.subr.bf16.mxu0 0
        %4968 = vmatpush1.bf16.msra.mxu0 %v2759
        %4969 = vmatprep.subr.bf16.mxu0 0
        %4970 = vmatpush1.bf16.msra.mxu0 %v2760
        %4971 = vmatprep.subr.bf16.mxu0 0
        %4972 = vmatpush1.bf16.msra.mxu0 %v2761
        %4973 = vmatprep.subr.bf16.mxu0 0
        %4974 = vmatpush1.bf16.msra.mxu0 %v2762
        %4975 = vmatprep.mubr.bf16.mxu0 %v4816
        %4976 = vmatmul.mubr.bf16.gmra.mrb[0].mxu0 %v4814
        %v4977 = vpop.f32.mrb[0].mxu0
        %v4978 = vadd.f32 %v4937, %v4977
        %v4979 = vpop.f32.mrb[0].mxu0
        %v4980 = vpop.f32.mrb[0].mxu0
        %v4981 = vadd.f32 %v4940, %v4980
        %v4982 = vpop.f32.mrb[0].mxu0
        %4983 = vdwg.mxu0
        %4984 = vmatprep.subr.bf16.mxu0 0
        %4985 = vmatpush1.bf16.msra.mxu0 %v2763
        %4986 = vmatprep.subr.bf16.mxu0 0
        %4987 = vmatpush1.bf16.msra.mxu0 %v2764
        %4988 = vmatprep.subr.bf16.mxu0 0
        %4989 = vmatpush1.bf16.msra.mxu0 %v2765
        %4990 = vmatprep.subr.bf16.mxu0 0
        %4991 = vmatpush1.bf16.msra.mxu0 %v2766
        %4992 = vmatprep.subr.bf16.mxu0 0
        %4993 = vmatpush1.bf16.msra.mxu0 %v2767
        %4994 = vmatprep.subr.bf16.mxu0 0
        %4995 = vmatpush1.bf16.msra.mxu0 %v2768
        %4996 = vmatprep.subr.bf16.mxu0 0
        %4997 = vmatpush1.bf16.msra.mxu0 %v2769
        %4998 = vmatprep.subr.bf16.mxu0 0
        %4999 = vmatpush1.bf16.msra.mxu0 %v2770
        %5000 = vmatprep.subr.bf16.mxu0 0
        %5001 = vmatpush1.bf16.msra.mxu0 %v2771
        %5002 = vmatprep.subr.bf16.mxu0 0
        %5003 = vmatpush1.bf16.msra.mxu0 %v2772
        %5004 = vmatprep.subr.bf16.mxu0 0
        %5005 = vmatpush1.bf16.msra.mxu0 %v2773
        %5006 = vmatprep.subr.bf16.mxu0 0
        %5007 = vmatpush1.bf16.msra.mxu0 %v2774
        %5008 = vmatprep.subr.bf16.mxu0 0
        %5009 = vmatpush1.bf16.msra.mxu0 %v2775
        %5010 = vmatprep.subr.bf16.mxu0 0
        %5011 = vmatpush1.bf16.msra.mxu0 %v2776
        %5012 = vmatprep.subr.bf16.mxu0 0
        %5013 = vmatpush1.bf16.msra.mxu0 %v2777
        %5014 = vmatprep.subr.bf16.mxu0 0
        %5015 = vmatpush1.bf16.msra.mxu0 %v2778
        %5016 = vmatprep.mubr.bf16.mxu0 %v4822
        %5017 = vmatmul.mubr.bf16.gmra.mrb[0].mxu0 %v4819
        %v5018 = vpop.f32.mrb[0].mxu0
        %v5019 = vadd.f32 %v4978, %v5018
        %v5020 = vpop.f32.mrb[0].mxu0
        %v5021 = vpop.f32.mrb[0].mxu0
        %v5022 = vadd.f32 %v4981, %v5021
        %v5023 = vpop.f32.mrb[0].mxu0
        %5024 = vdwg.mxu0
        %5025 = vmatprep.subr.bf16.mxu0 0
        %5026 = vmatpush1.bf16.msra.mxu0 %v2779
        %5027 = vmatprep.subr.bf16.mxu0 0
        %5028 = vmatpush1.bf16.msra.mxu0 %v2780
        %5029 = vmatprep.subr.bf16.mxu0 0
        %5030 = vmatpush1.bf16.msra.mxu0 %v2781
        %5031 = vmatprep.subr.bf16.mxu0 0
        %5032 = vmatpush1.bf16.msra.mxu0 %v2782
        %5033 = vmatprep.subr.bf16.mxu0 0
        %5034 = vmatpush1.bf16.msra.mxu0 %v2783
        %5035 = vmatprep.subr.bf16.mxu0 0
        %5036 = vmatpush1.bf16.msra.mxu0 %v2784
        %5037 = vmatprep.subr.bf16.mxu0 0
        %5038 = vmatpush1.bf16.msra.mxu0 %v2785
        %5039 = vmatprep.subr.bf16.mxu0 0
        %5040 = vmatpush1.bf16.msra.mxu0 %v2786
        %5041 = vmatprep.subr.bf16.mxu0 0
        %5042 = vmatpush1.bf16.msra.mxu0 %v2787
        %5043 = vmatprep.subr.bf16.mxu0 0
        %5044 = vmatpush1.bf16.msra.mxu0 %v2788
        %5045 = vmatprep.subr.bf16.mxu0 0
        %5046 = vmatpush1.bf16.msra.mxu0 %v2789
        %5047 = vmatprep.subr.bf16.mxu0 0
        %5048 = vmatpush1.bf16.msra.mxu0 %v2790
        %5049 = vmatprep.subr.bf16.mxu0 0
        %5050 = vmatpush1.bf16.msra.mxu0 %v2791
        %5051 = vmatprep.subr.bf16.mxu0 0
        %5052 = vmatpush1.bf16.msra.mxu0 %v2792
        %5053 = vmatprep.subr.bf16.mxu0 0
        %5054 = vmatpush1.bf16.msra.mxu0 %v2793
        %5055 = vmatprep.subr.bf16.mxu0 0
        %5056 = vmatpush1.bf16.msra.mxu0 %v2794
        %5057 = vmatprep.mubr.bf16.mxu0 %v4826
        %5058 = vmatmul.mubr.bf16.gmra.mrb[0].mxu0 %v4824
        %v5059 = vpop.f32.mrb[0].mxu0
        %v5060 = vadd.f32 %v5019, %v5059
        %v5061 = vpop.f32.mrb[0].mxu0
        %v5062 = vpop.f32.mrb[0].mxu0
        %v5063 = vadd.f32 %v5022, %v5062
        %v5064 = vpop.f32.mrb[0].mxu0
        %5065 = vdwg.mxu0
        %5066 = vmatprep.subr.bf16.mxu0 0
        %5067 = vmatpush1.bf16.msra.mxu0 %v2795
        %5068 = vmatprep.subr.bf16.mxu0 0
        %5069 = vmatpush1.bf16.msra.mxu0 %v2796
        %5070 = vmatprep.subr.bf16.mxu0 0
        %5071 = vmatpush1.bf16.msra.mxu0 %v2797
        %5072 = vmatprep.subr.bf16.mxu0 0
        %5073 = vmatpush1.bf16.msra.mxu0 %v2798
        %5074 = vmatprep.subr.bf16.mxu0 0
        %5075 = vmatpush1.bf16.msra.mxu0 %v2799
        %5076 = vmatprep.subr.bf16.mxu0 0
        %5077 = vmatpush1.bf16.msra.mxu0 %v2800
        %5078 = vmatprep.subr.bf16.mxu0 0
        %5079 = vmatpush1.bf16.msra.mxu0 %v2801
        %5080 = vmatprep.subr.bf16.mxu0 0
        %5081 = vmatpush1.bf16.msra.mxu0 %v2802
        %5082 = vmatprep.subr.bf16.mxu0 0
        %5083 = vmatpush1.bf16.msra.mxu0 %v2803
        %5084 = vmatprep.subr.bf16.mxu0 0
        %5085 = vmatpush1.bf16.msra.mxu0 %v2804
        %5086 = vmatprep.subr.bf16.mxu0 0
        %5087 = vmatpush1.bf16.msra.mxu0 %v2805
        %5088 = vmatprep.subr.bf16.mxu0 0
        %5089 = vmatpush1.bf16.msra.mxu0 %v2806
        %5090 = vmatprep.subr.bf16.mxu0 0
        %5091 = vmatpush1.bf16.msra.mxu0 %v2807
        %5092 = vmatprep.subr.bf16.mxu0 0
        %5093 = vmatpush1.bf16.msra.mxu0 %v2808
        %5094 = vmatprep.subr.bf16.mxu0 0
        %5095 = vmatpush1.bf16.msra.mxu0 %v2809
        %5096 = vmatprep.subr.bf16.mxu0 0
        %5097 = vmatpush1.bf16.msra.mxu0 %v2810
        %5098 = vmatprep.mubr.bf16.mxu0 %v4832
        %5099 = vmatmul.mubr.bf16.gmra.mrb[0].mxu0 %v4829
        %v5100 = vpop.f32.mrb[0].mxu0
        %v5101 = vadd.f32 %v5060, %v5100
        %v5102 = vpop.f32.mrb[0].mxu0
        %v5103 = vpop.f32.mrb[0].mxu0
        %v5104 = vadd.f32 %v5063, %v5103
        %v5105 = vpop.f32.mrb[0].mxu0
        %5106 = vdwg.mxu0
        %5107 = vmatprep.subr.bf16.mxu0 0
        %5108 = vmatpush1.bf16.msra.mxu0 %v2811
        %5109 = vmatprep.subr.bf16.mxu0 0
        %5110 = vmatpush1.bf16.msra.mxu0 %v2812
        %5111 = vmatprep.subr.bf16.mxu0 0
        %5112 = vmatpush1.bf16.msra.mxu0 %v2813
        %5113 = vmatprep.subr.bf16.mxu0 0
        %5114 = vmatpush1.bf16.msra.mxu0 %v2814
        %5115 = vmatprep.subr.bf16.mxu0 0
        %5116 = vmatpush1.bf16.msra.mxu0 %v2815
        %5117 = vmatprep.subr.bf16.mxu0 0
        %5118 = vmatpush1.bf16.msra.mxu0 %v2816
        %5119 = vmatprep.subr.bf16.mxu0 0
        %5120 = vmatpush1.bf16.msra.mxu0 %v2817
        %5121 = vmatprep.subr.bf16.mxu0 0
        %5122 = vmatpush1.bf16.msra.mxu0 %v2818
        %5123 = vmatprep.subr.bf16.mxu0 0
        %5124 = vmatpush1.bf16.msra.mxu0 %v2819
        %5125 = vmatprep.subr.bf16.mxu0 0
        %5126 = vmatpush1.bf16.msra.mxu0 %v2820
        %5127 = vmatprep.subr.bf16.mxu0 0
        %5128 = vmatpush1.bf16.msra.mxu0 %v2821
        %5129 = vmatprep.subr.bf16.mxu0 0
        %5130 = vmatpush1.bf16.msra.mxu0 %v2822
        %5131 = vmatprep.subr.bf16.mxu0 0
        %5132 = vmatpush1.bf16.msra.mxu0 %v2823
        %5133 = vmatprep.subr.bf16.mxu0 0
        %5134 = vmatpush1.bf16.msra.mxu0 %v2824
        %5135 = vmatprep.subr.bf16.mxu0 0
        %5136 = vmatpush1.bf16.msra.mxu0 %v2825
        %5137 = vmatprep.subr.bf16.mxu0 0
        %5138 = vmatpush1.bf16.msra.mxu0 %v2826
        %5139 = vmatprep.mubr.bf16.mxu0 %v4838
        %5140 = vmatmul.mubr.bf16.gmra.mrb[0].mxu0 %v4835
        %v5141 = vpop.f32.mrb[0].mxu0
        %v5142 = vadd.f32 %v5101, %v5141
        %v5143 = vpop.f32.mrb[0].mxu0
        %v5144 = vpop.f32.mrb[0].mxu0
        %v5145 = vadd.f32 %v5104, %v5144
        %v5146 = vpop.f32.mrb[0].mxu0
        %5147 = vdwg.mxu0
        %5148 = vmatprep.subr.bf16.mxu0 0
        %5149 = vmatpush1.bf16.msra.mxu0 %v2827
        %5150 = vmatprep.subr.bf16.mxu0 0
        %5151 = vmatpush1.bf16.msra.mxu0 %v2828
        %5152 = vmatprep.subr.bf16.mxu0 0
        %5153 = vmatpush1.bf16.msra.mxu0 %v2829
        %5154 = vmatprep.subr.bf16.mxu0 0
        %5155 = vmatpush1.bf16.msra.mxu0 %v2830
        %5156 = vmatprep.subr.bf16.mxu0 0
        %5157 = vmatpush1.bf16.msra.mxu0 %v2831
        %5158 = vmatprep.subr.bf16.mxu0 0
        %5159 = vmatpush1.bf16.msra.mxu0 %v2832
        %5160 = vmatprep.subr.bf16.mxu0 0
        %5161 = vmatpush1.bf16.msra.mxu0 %v2833
        %5162 = vmatprep.subr.bf16.mxu0 0
        %5163 = vmatpush1.bf16.msra.mxu0 %v2834
        %5164 = vmatprep.subr.bf16.mxu0 0
        %5165 = vmatpush1.bf16.msra.mxu0 %v2835
        %5166 = vmatprep.subr.bf16.mxu0 0
        %5167 = vmatpush1.bf16.msra.mxu0 %v2836
        %5168 = vmatprep.subr.bf16.mxu0 0
        %5169 = vmatpush1.bf16.msra.mxu0 %v2837
        %5170 = vmatprep.subr.bf16.mxu0 0
        %5171 = vmatpush1.bf16.msra.mxu0 %v2838
        %5172 = vmatprep.subr.bf16.mxu0 0
        %5173 = vmatpush1.bf16.msra.mxu0 %v2839
        %5174 = vmatprep.subr.bf16.mxu0 0
        %5175 = vmatpush1.bf16.msra.mxu0 %v2840
        %5176 = vmatprep.subr.bf16.mxu0 0
        %5177 = vmatpush1.bf16.msra.mxu0 %v2841
        %5178 = vmatprep.subr.bf16.mxu0 0
        %5179 = vmatpush1.bf16.msra.mxu0 %v2842
        %5180 = vmatprep.mubr.bf16.mxu0 %v4844
        %5181 = vmatmul.mubr.bf16.gmra.mrb[0].mxu0 %v4841
        %v5182 = vpop.f32.mrb[0].mxu0
        %v5183 = vadd.f32 %v5142, %v5182
        %v5184 = vpop.f32.mrb[0].mxu0
        %v5185 = vpop.f32.mrb[0].mxu0
        %v5186 = vadd.f32 %v5145, %v5185
        %v5187 = vpop.f32.mrb[0].mxu0
        %5188 = vdwg.mxu0
        %v5189 = vmax.f32 %v5183, 0.0
        %v5190 = vmax.f32 %v5186, 0.0
        %v5191 = vpack.c.bf16 %v5189, %v5189
        %v5192 = vpack.c.bf16 %v5190, %v5190
        %v5193 = vld [vmem:[#allocation2 + $0x18] sm:$0xc0]
        %v5194 = vld [vmem:[#allocation2 + $0x20] sm:$0x7]
        %v5195 = vld [vmem:[#allocation2 + $0x50] sm:$0x1f]
        %v5196 = vld [vmem:[#allocation2 + $0x80] sm:$0x7c]
        %v5197 = vld [vmem:[#allocation2 + $0xb0] sm:$0xf0]
        %v5198 = vld [vmem:[#allocation2 + $0xb8] sm:$0x1]
        %v5199 = vrot.slane %v4715, 2
        %v5200 = vrot.slane %v4750, 1
        %v5201 = vor.u32 %v4747, %v5200
        %v5202 = vrot.slane %v4755, 2
        %v5203 = vrot.slane %v4758, 3
        %v5204 = vor.u32 %v5202, %v5203
        %v5205 = vrot.slane %v4716, 4
        %v5206 = vrot.slane %v4717, 4
        %v5207 = vsel %vm1376, %v5205, %v5206
        %v5208 = vrot.slane %v4718, 6
        %v5209 = vrot.slane %v4719, 6
        %v5210 = vsel %vm1018, %v5208, %v5209
        %v5211 = vrot.slane %v4772, 4
        %v5212 = vrot.slane %v4775, 5
        %v5213 = vor.u32 %v5211, %v5212
        %v5214 = vrot.slane %v4780, 4
        %v5215 = vrot.slane %v4783, 5
        %v5216 = vor.u32 %v5214, %v5215
        %v5217 = vsel %vm1831, %v5213, %v5216
        %v5218 = vrot.slane %v4789, 6
        %v5219 = vrot.slane %v4793, 6
        %v5220 = vrot.slane %v4796, 7
        %v5221 = vor.u32 %v5219, %v5220
        %v5222 = vsel %vm1850, %v5218, %v5221
        %v5225 = vrot.slane %v5193, 5
        %v5226 = vrot.slane %v5194, 5
        %v5227 = vsel %vm1871, %v5225, %v5226
        %v5229 = vrot.slane %v5195, 7
        %v5231 = vshrl.u32 %v5193, 16
        %v5233 = vrot.slane %v5231, 5
        %v5234 = vshll.u32 %v5193, 16
        %v5236 = vrot.slane %v5234, 6
        %v5237 = vor.u32 %v5233, %v5236
        %v5239 = vshrl.u32 %v5194, 16
        %v5241 = vrot.slane %v5239, 5
        %v5242 = vshll.u32 %v5194, 16
        %v5244 = vrot.slane %v5242, 6
        %v5245 = vor.u32 %v5241, %v5244
        %v5246 = vsel %vm1883, %v5237, %v5245
        %v5248 = vshrl.u32 %v5195, 16
        %v5250 = vrot.slane %v5248, 7
        %v5251 = vshll.u32 %v5195, 16
        %v5253 = vor.u32 %v5250, %v5251
        %v5255 = vrot.slane %v5196, 1
        %v5258 = vrot.slane %v5197, 3
        %v5259 = vrot.slane %v5198, 3
        %v5260 = vsel %vm3843, %v5258, %v5259
        %v5262 = vshrl.u32 %v5196, 16
        %v5264 = vrot.slane %v5262, 1
        %v5265 = vshll.u32 %v5196, 16
        %v5267 = vrot.slane %v5265, 2
        %v5268 = vor.u32 %v5264, %v5267
        %v5270 = vshrl.u32 %v5197, 16
        %v5272 = vrot.slane %v5270, 3
        %v5273 = vshll.u32 %v5197, 16
        %v5275 = vrot.slane %v5273, 4
        %v5276 = vor.u32 %v5272, %v5275
        %v5278 = vshrl.u32 %v5198, 16
        %v5280 = vrot.slane %v5278, 3
        %v5281 = vshll.u32 %v5198, 16
        %v5283 = vrot.slane %v5281, 4
        %v5284 = vor.u32 %v5280, %v5283
        %v5285 = vsel %vm3855, %v5276, %v5284
        %v5286 = vrot.slane %v4714, 1
        %v5287 = vrot.slane %v5199, 1
        %v5288 = vrot.slane %v5201, 1
        %v5289 = vrot.slane %v5204, 1
        %v5290 = vrot.slane %v5207, 1
        %v5291 = vrot.slane %v5210, 1
        %v5292 = vrot.slane %v5217, 1
        %v5293 = vrot.slane %v5222, 1
        %v5294 = vrot.slane %v5227, 1
        %v5295 = vrot.slane %v5229, 1
        %v5296 = vrot.slane %v5246, 1
        %v5297 = vrot.slane %v5253, 1
        %v5298 = vrot.slane %v5255, 1
        %v5299 = vrot.slane %v5260, 1
        %v5300 = vrot.slane %v5268, 1
        %v5301 = vrot.slane %v5285, 1
        %5318 = vmatprep.subr.bf16.mxu0 0
        %5319 = vmatpush1.bf16.msra.mxu0 %v2715
        %5320 = vmatprep.subr.bf16.mxu0 0
        %5321 = vmatpush1.bf16.msra.mxu0 %v2716
        %5322 = vmatprep.subr.bf16.mxu0 0
        %5323 = vmatpush1.bf16.msra.mxu0 %v2717
        %5324 = vmatprep.subr.bf16.mxu0 0
        %5325 = vmatpush1.bf16.msra.mxu0 %v2718
        %5326 = vmatprep.subr.bf16.mxu0 0
        %5327 = vmatpush1.bf16.msra.mxu0 %v2719
        %5328 = vmatprep.subr.bf16.mxu0 0
        %5329 = vmatpush1.bf16.msra.mxu0 %v2720
        %5330 = vmatprep.subr.bf16.mxu0 0
        %5331 = vmatpush1.bf16.msra.mxu0 %v2721
        %5332 = vmatprep.subr.bf16.mxu0 0
        %5333 = vmatpush1.bf16.msra.mxu0 %v2722
        %5334 = vmatprep.subr.bf16.mxu0 0
        %5335 = vmatpush1.bf16.msra.mxu0 %v2723
        %5336 = vmatprep.subr.bf16.mxu0 0
        %5337 = vmatpush1.bf16.msra.mxu0 %v2724
        %5338 = vmatprep.subr.bf16.mxu0 0
        %5339 = vmatpush1.bf16.msra.mxu0 %v2725
        %5340 = vmatprep.subr.bf16.mxu0 0
        %5341 = vmatpush1.bf16.msra.mxu0 %v2726
        %5342 = vmatprep.subr.bf16.mxu0 0
        %5343 = vmatpush1.bf16.msra.mxu0 %v2727
        %5344 = vmatprep.subr.bf16.mxu0 0
        %5345 = vmatpush1.bf16.msra.mxu0 %v2728
        %5346 = vmatprep.subr.bf16.mxu0 0
        %5347 = vmatpush1.bf16.msra.mxu0 %v2729
        %5348 = vmatprep.subr.bf16.mxu0 0
        %5349 = vmatpush1.bf16.msra.mxu0 %v2730
        %5350 = vmatprep.mubr.bf16.mxu0 %v5287
        %5351 = vmatmul.mubr.bf16.gmra.mrb[0].mxu0 %v5286
        %v5352 = vpop.f32.mrb[0].mxu0
        %v5353 = vadd.f32 %v2201, %v5352
        %v5354 = vpop.f32.mrb[0].mxu0
        %v5355 = vpop.f32.mrb[0].mxu0
        %v5356 = vadd.f32 %v2201, %v5355
        %v5357 = vpop.f32.mrb[0].mxu0
        %5358 = vdwg.mxu0
        %5359 = vmatprep.subr.bf16.mxu0 0
        %5360 = vmatpush1.bf16.msra.mxu0 %v2731
        %5361 = vmatprep.subr.bf16.mxu0 0
        %5362 = vmatpush1.bf16.msra.mxu0 %v2732
        %5363 = vmatprep.subr.bf16.mxu0 0
        %5364 = vmatpush1.bf16.msra.mxu0 %v2733
        %5365 = vmatprep.subr.bf16.mxu0 0
        %5366 = vmatpush1.bf16.msra.mxu0 %v2734
        %5367 = vmatprep.subr.bf16.mxu0 0
        %5368 = vmatpush1.bf16.msra.mxu0 %v2735
        %5369 = vmatprep.subr.bf16.mxu0 0
        %5370 = vmatpush1.bf16.msra.mxu0 %v2736
        %5371 = vmatprep.subr.bf16.mxu0 0
        %5372 = vmatpush1.bf16.msra.mxu0 %v2737
        %5373 = vmatprep.subr.bf16.mxu0 0
        %5374 = vmatpush1.bf16.msra.mxu0 %v2738
        %5375 = vmatprep.subr.bf16.mxu0 0
        %5376 = vmatpush1.bf16.msra.mxu0 %v2739
        %5377 = vmatprep.subr.bf16.mxu0 0
        %5378 = vmatpush1.bf16.msra.mxu0 %v2740
        %5379 = vmatprep.subr.bf16.mxu0 0
        %5380 = vmatpush1.bf16.msra.mxu0 %v2741
        %5381 = vmatprep.subr.bf16.mxu0 0
        %5382 = vmatpush1.bf16.msra.mxu0 %v2742
        %5383 = vmatprep.subr.bf16.mxu0 0
        %5384 = vmatpush1.bf16.msra.mxu0 %v2743
        %5385 = vmatprep.subr.bf16.mxu0 0
        %5386 = vmatpush1.bf16.msra.mxu0 %v2744
        %5387 = vmatprep.subr.bf16.mxu0 0
        %5388 = vmatpush1.bf16.msra.mxu0 %v2745
        %5389 = vmatprep.subr.bf16.mxu0 0
        %5390 = vmatpush1.bf16.msra.mxu0 %v2746
        %5391 = vmatprep.mubr.bf16.mxu0 %v5289
        %5392 = vmatmul.mubr.bf16.gmra.mrb[0].mxu0 %v5288
        %v5393 = vpop.f32.mrb[0].mxu0
        %v5394 = vadd.f32 %v5353, %v5393
        %v5395 = vpop.f32.mrb[0].mxu0
        %v5396 = vpop.f32.mrb[0].mxu0
        %v5397 = vadd.f32 %v5356, %v5396
        %v5398 = vpop.f32.mrb[0].mxu0
        %5399 = vdwg.mxu0
        %5400 = vmatprep.subr.bf16.mxu0 0
        %5401 = vmatpush1.bf16.msra.mxu0 %v2747
        %5402 = vmatprep.subr.bf16.mxu0 0
        %5403 = vmatpush1.bf16.msra.mxu0 %v2748
        %5404 = vmatprep.subr.bf16.mxu0 0
        %5405 = vmatpush1.bf16.msra.mxu0 %v2749
        %5406 = vmatprep.subr.bf16.mxu0 0
        %5407 = vmatpush1.bf16.msra.mxu0 %v2750
        %5408 = vmatprep.subr.bf16.mxu0 0
        %5409 = vmatpush1.bf16.msra.mxu0 %v2751
        %5410 = vmatprep.subr.bf16.mxu0 0
        %5411 = vmatpush1.bf16.msra.mxu0 %v2752
        %5412 = vmatprep.subr.bf16.mxu0 0
        %5413 = vmatpush1.bf16.msra.mxu0 %v2753
        %5414 = vmatprep.subr.bf16.mxu0 0
        %5415 = vmatpush1.bf16.msra.mxu0 %v2754
        %5416 = vmatprep.subr.bf16.mxu0 0
        %5417 = vmatpush1.bf16.msra.mxu0 %v2755
        %5418 = vmatprep.subr.bf16.mxu0 0
        %5419 = vmatpush1.bf16.msra.mxu0 %v2756
        %5420 = vmatprep.subr.bf16.mxu0 0
        %5421 = vmatpush1.bf16.msra.mxu0 %v2757
        %5422 = vmatprep.subr.bf16.mxu0 0
        %5423 = vmatpush1.bf16.msra.mxu0 %v2758
        %5424 = vmatprep.subr.bf16.mxu0 0
        %5425 = vmatpush1.bf16.msra.mxu0 %v2759
        %5426 = vmatprep.subr.bf16.mxu0 0
        %5427 = vmatpush1.bf16.msra.mxu0 %v2760
        %5428 = vmatprep.subr.bf16.mxu0 0
        %5429 = vmatpush1.bf16.msra.mxu0 %v2761
        %5430 = vmatprep.subr.bf16.mxu0 0
        %5431 = vmatpush1.bf16.msra.mxu0 %v2762
        %5432 = vmatprep.mubr.bf16.mxu0 %v5291
        %5433 = vmatmul.mubr.bf16.gmra.mrb[0].mxu0 %v5290
        %v5434 = vpop.f32.mrb[0].mxu0
        %v5435 = vadd.f32 %v5394, %v5434
        %v5436 = vpop.f32.mrb[0].mxu0
        %v5437 = vpop.f32.mrb[0].mxu0
        %v5438 = vadd.f32 %v5397, %v5437
        %v5439 = vpop.f32.mrb[0].mxu0
        %5440 = vdwg.mxu0
        %5441 = vmatprep.subr.bf16.mxu0 0
        %5442 = vmatpush1.bf16.msra.mxu0 %v2763
        %5443 = vmatprep.subr.bf16.mxu0 0
        %5444 = vmatpush1.bf16.msra.mxu0 %v2764
        %5445 = vmatprep.subr.bf16.mxu0 0
        %5446 = vmatpush1.bf16.msra.mxu0 %v2765
        %5447 = vmatprep.subr.bf16.mxu0 0
        %5448 = vmatpush1.bf16.msra.mxu0 %v2766
        %5449 = vmatprep.subr.bf16.mxu0 0
        %5450 = vmatpush1.bf16.msra.mxu0 %v2767
        %5451 = vmatprep.subr.bf16.mxu0 0
        %5452 = vmatpush1.bf16.msra.mxu0 %v2768
        %5453 = vmatprep.subr.bf16.mxu0 0
        %5454 = vmatpush1.bf16.msra.mxu0 %v2769
        %5455 = vmatprep.subr.bf16.mxu0 0
        %5456 = vmatpush1.bf16.msra.mxu0 %v2770
        %5457 = vmatprep.subr.bf16.mxu0 0
        %5458 = vmatpush1.bf16.msra.mxu0 %v2771
        %5459 = vmatprep.subr.bf16.mxu0 0
        %5460 = vmatpush1.bf16.msra.mxu0 %v2772
        %5461 = vmatprep.subr.bf16.mxu0 0
        %5462 = vmatpush1.bf16.msra.mxu0 %v2773
        %5463 = vmatprep.subr.bf16.mxu0 0
        %5464 = vmatpush1.bf16.msra.mxu0 %v2774
        %5465 = vmatprep.subr.bf16.mxu0 0
        %5466 = vmatpush1.bf16.msra.mxu0 %v2775
        %5467 = vmatprep.subr.bf16.mxu0 0
        %5468 = vmatpush1.bf16.msra.mxu0 %v2776
        %5469 = vmatprep.subr.bf16.mxu0 0
        %5470 = vmatpush1.bf16.msra.mxu0 %v2777
        %5471 = vmatprep.subr.bf16.mxu0 0
        %5472 = vmatpush1.bf16.msra.mxu0 %v2778
        %5473 = vmatprep.mubr.bf16.mxu0 %v5293
        %5474 = vmatmul.mubr.bf16.gmra.mrb[0].mxu0 %v5292
        %v5475 = vpop.f32.mrb[0].mxu0
        %v5476 = vadd.f32 %v5435, %v5475
        %v5477 = vpop.f32.mrb[0].mxu0
        %v5478 = vpop.f32.mrb[0].mxu0
        %v5479 = vadd.f32 %v5438, %v5478
        %v5480 = vpop.f32.mrb[0].mxu0
        %5481 = vdwg.mxu0
        %5482 = vmatprep.subr.bf16.mxu0 0
        %5483 = vmatpush1.bf16.msra.mxu0 %v2779
        %5484 = vmatprep.subr.bf16.mxu0 0
        %5485 = vmatpush1.bf16.msra.mxu0 %v2780
        %5486 = vmatprep.subr.bf16.mxu0 0
        %5487 = vmatpush1.bf16.msra.mxu0 %v2781
        %5488 = vmatprep.subr.bf16.mxu0 0
        %5489 = vmatpush1.bf16.msra.mxu0 %v2782
        %5490 = vmatprep.subr.bf16.mxu0 0
        %5491 = vmatpush1.bf16.msra.mxu0 %v2783
        %5492 = vmatprep.subr.bf16.mxu0 0
        %5493 = vmatpush1.bf16.msra.mxu0 %v2784
        %5494 = vmatprep.subr.bf16.mxu0 0
        %5495 = vmatpush1.bf16.msra.mxu0 %v2785
        %5496 = vmatprep.subr.bf16.mxu0 0
        %5497 = vmatpush1.bf16.msra.mxu0 %v2786
        %5498 = vmatprep.subr.bf16.mxu0 0
        %5499 = vmatpush1.bf16.msra.mxu0 %v2787
        %5500 = vmatprep.subr.bf16.mxu0 0
        %5501 = vmatpush1.bf16.msra.mxu0 %v2788
        %5502 = vmatprep.subr.bf16.mxu0 0
        %5503 = vmatpush1.bf16.msra.mxu0 %v2789
        %5504 = vmatprep.subr.bf16.mxu0 0
        %5505 = vmatpush1.bf16.msra.mxu0 %v2790
        %5506 = vmatprep.subr.bf16.mxu0 0
        %5507 = vmatpush1.bf16.msra.mxu0 %v2791
        %5508 = vmatprep.subr.bf16.mxu0 0
        %5509 = vmatpush1.bf16.msra.mxu0 %v2792
        %5510 = vmatprep.subr.bf16.mxu0 0
        %5511 = vmatpush1.bf16.msra.mxu0 %v2793
        %5512 = vmatprep.subr.bf16.mxu0 0
        %5513 = vmatpush1.bf16.msra.mxu0 %v2794
        %5514 = vmatprep.mubr.bf16.mxu0 %v5295
        %5515 = vmatmul.mubr.bf16.gmra.mrb[0].mxu0 %v5294
        %v5516 = vpop.f32.mrb[0].mxu0
        %v5517 = vadd.f32 %v5476, %v5516
        %v5518 = vpop.f32.mrb[0].mxu0
        %v5519 = vpop.f32.mrb[0].mxu0
        %v5520 = vadd.f32 %v5479, %v5519
        %v5521 = vpop.f32.mrb[0].mxu0
        %5522 = vdwg.mxu0
        %5523 = vmatprep.subr.bf16.mxu0 0
        %5524 = vmatpush1.bf16.msra.mxu0 %v2795
        %5525 = vmatprep.subr.bf16.mxu0 0
        %5526 = vmatpush1.bf16.msra.mxu0 %v2796
        %5527 = vmatprep.subr.bf16.mxu0 0
        %5528 = vmatpush1.bf16.msra.mxu0 %v2797
        %5529 = vmatprep.subr.bf16.mxu0 0
        %5530 = vmatpush1.bf16.msra.mxu0 %v2798
        %5531 = vmatprep.subr.bf16.mxu0 0
        %5532 = vmatpush1.bf16.msra.mxu0 %v2799
        %5533 = vmatprep.subr.bf16.mxu0 0
        %5534 = vmatpush1.bf16.msra.mxu0 %v2800
        %5535 = vmatprep.subr.bf16.mxu0 0
        %5536 = vmatpush1.bf16.msra.mxu0 %v2801
        %5537 = vmatprep.subr.bf16.mxu0 0
        %5538 = vmatpush1.bf16.msra.mxu0 %v2802
        %5539 = vmatprep.subr.bf16.mxu0 0
        %5540 = vmatpush1.bf16.msra.mxu0 %v2803
        %5541 = vmatprep.subr.bf16.mxu0 0
        %5542 = vmatpush1.bf16.msra.mxu0 %v2804
        %5543 = vmatprep.subr.bf16.mxu0 0
        %5544 = vmatpush1.bf16.msra.mxu0 %v2805
        %5545 = vmatprep.subr.bf16.mxu0 0
        %5546 = vmatpush1.bf16.msra.mxu0 %v2806
        %5547 = vmatprep.subr.bf16.mxu0 0
        %5548 = vmatpush1.bf16.msra.mxu0 %v2807
        %5549 = vmatprep.subr.bf16.mxu0 0
        %5550 = vmatpush1.bf16.msra.mxu0 %v2808
        %5551 = vmatprep.subr.bf16.mxu0 0
        %5552 = vmatpush1.bf16.msra.mxu0 %v2809
        %5553 = vmatprep.subr.bf16.mxu0 0
        %5554 = vmatpush1.bf16.msra.mxu0 %v2810
        %5555 = vmatprep.mubr.bf16.mxu0 %v5297
        %5556 = vmatmul.mubr.bf16.gmra.mrb[0].mxu0 %v5296
        %v5557 = vpop.f32.mrb[0].mxu0
        %v5558 = vadd.f32 %v5517, %v5557
        %v5559 = vpop.f32.mrb[0].mxu0
        %v5560 = vpop.f32.mrb[0].mxu0
        %v5561 = vadd.f32 %v5520, %v5560
        %v5562 = vpop.f32.mrb[0].mxu0
        %5563 = vdwg.mxu0
        %5564 = vmatprep.subr.bf16.mxu0 0
        %5565 = vmatpush1.bf16.msra.mxu0 %v2811
        %5566 = vmatprep.subr.bf16.mxu0 0
        %5567 = vmatpush1.bf16.msra.mxu0 %v2812
        %5568 = vmatprep.subr.bf16.mxu0 0
        %5569 = vmatpush1.bf16.msra.mxu0 %v2813
        %5570 = vmatprep.subr.bf16.mxu0 0
        %5571 = vmatpush1.bf16.msra.mxu0 %v2814
        %5572 = vmatprep.subr.bf16.mxu0 0
        %5573 = vmatpush1.bf16.msra.mxu0 %v2815
        %5574 = vmatprep.subr.bf16.mxu0 0
        %5575 = vmatpush1.bf16.msra.mxu0 %v2816
        %5576 = vmatprep.subr.bf16.mxu0 0
        %5577 = vmatpush1.bf16.msra.mxu0 %v2817
        %5578 = vmatprep.subr.bf16.mxu0 0
        %5579 = vmatpush1.bf16.msra.mxu0 %v2818
        %5580 = vmatprep.subr.bf16.mxu0 0
        %5581 = vmatpush1.bf16.msra.mxu0 %v2819
        %5582 = vmatprep.subr.bf16.mxu0 0
        %5583 = vmatpush1.bf16.msra.mxu0 %v2820
        %5584 = vmatprep.subr.bf16.mxu0 0
        %5585 = vmatpush1.bf16.msra.mxu0 %v2821
        %5586 = vmatprep.subr.bf16.mxu0 0
        %5587 = vmatpush1.bf16.msra.mxu0 %v2822
        %5588 = vmatprep.subr.bf16.mxu0 0
        %5589 = vmatpush1.bf16.msra.mxu0 %v2823
        %5590 = vmatprep.subr.bf16.mxu0 0
        %5591 = vmatpush1.bf16.msra.mxu0 %v2824
        %5592 = vmatprep.subr.bf16.mxu0 0
        %5593 = vmatpush1.bf16.msra.mxu0 %v2825
        %5594 = vmatprep.subr.bf16.mxu0 0
        %5595 = vmatpush1.bf16.msra.mxu0 %v2826
        %5596 = vmatprep.mubr.bf16.mxu0 %v5299
        %5597 = vmatmul.mubr.bf16.gmra.mrb[0].mxu0 %v5298
        %v5598 = vpop.f32.mrb[0].mxu0
        %v5599 = vadd.f32 %v5558, %v5598
        %v5600 = vpop.f32.mrb[0].mxu0
        %v5601 = vpop.f32.mrb[0].mxu0
        %v5602 = vadd.f32 %v5561, %v5601
        %v5603 = vpop.f32.mrb[0].mxu0
        %5604 = vdwg.mxu0
        %5605 = vmatprep.subr.bf16.mxu0 0
        %5606 = vmatpush1.bf16.msra.mxu0 %v2827
        %5607 = vmatprep.subr.bf16.mxu0 0
        %5608 = vmatpush1.bf16.msra.mxu0 %v2828
        %5609 = vmatprep.subr.bf16.mxu0 0
        %5610 = vmatpush1.bf16.msra.mxu0 %v2829
        %5611 = vmatprep.subr.bf16.mxu0 0
        %5612 = vmatpush1.bf16.msra.mxu0 %v2830
        %5613 = vmatprep.subr.bf16.mxu0 0
        %5614 = vmatpush1.bf16.msra.mxu0 %v2831
        %5615 = vmatprep.subr.bf16.mxu0 0
        %5616 = vmatpush1.bf16.msra.mxu0 %v2832
        %5617 = vmatprep.subr.bf16.mxu0 0
        %5618 = vmatpush1.bf16.msra.mxu0 %v2833
        %5619 = vmatprep.subr.bf16.mxu0 0
        %5620 = vmatpush1.bf16.msra.mxu0 %v2834
        %5621 = vmatprep.subr.bf16.mxu0 0
        %5622 = vmatpush1.bf16.msra.mxu0 %v2835
        %5623 = vmatprep.subr.bf16.mxu0 0
        %5624 = vmatpush1.bf16.msra.mxu0 %v2836
        %5625 = vmatprep.subr.bf16.mxu0 0
        %5626 = vmatpush1.bf16.msra.mxu0 %v2837
        %5627 = vmatprep.subr.bf16.mxu0 0
        %5628 = vmatpush1.bf16.msra.mxu0 %v2838
        %5629 = vmatprep.subr.bf16.mxu0 0
        %5630 = vmatpush1.bf16.msra.mxu0 %v2839
        %5631 = vmatprep.subr.bf16.mxu0 0
        %5632 = vmatpush1.bf16.msra.mxu0 %v2840
        %5633 = vmatprep.subr.bf16.mxu0 0
        %5634 = vmatpush1.bf16.msra.mxu0 %v2841
        %5635 = vmatprep.subr.bf16.mxu0 0
        %5636 = vmatpush1.bf16.msra.mxu0 %v2842
        %5637 = vmatprep.mubr.bf16.mxu0 %v5301
        %5638 = vmatmul.mubr.bf16.gmra.mrb[0].mxu0 %v5300
        %v5639 = vpop.f32.mrb[0].mxu0
        %v5640 = vadd.f32 %v5599, %v5639
        %v5641 = vpop.f32.mrb[0].mxu0
        %v5642 = vpop.f32.mrb[0].mxu0
        %v5643 = vadd.f32 %v5602, %v5642
        %v5644 = vpop.f32.mrb[0].mxu0
        %5645 = vdwg.mxu0
        %v5646 = vmax.f32 %v5640, 0.0
        %v5647 = vmax.f32 %v5643, 0.0
        %v5648 = vpack.c.bf16 %v5646, %v5646
        %v5649 = vpack.c.bf16 %v5647, %v5647
        %v5650 = vld [vmem:[#allocation2 + $0x20] sm:$0xf8]
        %v5651 = vld [vmem:[#allocation2 + $0x50] sm:$0xe0]
        %v5652 = vld [vmem:[#allocation2 + $0x58] sm:$0x3]
        %v5653 = vld [vmem:[#allocation2 + $0x80] sm:$0x80]
        %v5654 = vld [vmem:[#allocation2 + $0x88] sm:$0xf]
        %v5655 = vld [vmem:[#allocation2 + $0xb8] sm:$0x3e]
        %v5656 = vrot.slane %v5195, 2
        %v5657 = vrot.slane %v5234, 1
        %v5658 = vor.u32 %v5231, %v5657
        %v5659 = vrot.slane %v5242, 1
        %v5660 = vsel %vm3312, %v5658, %v5659
        %v5661 = vor.u32 %v5239, %v5659
        %v5662 = vrot.slane %v5248, 2
        %v5663 = vrot.slane %v5251, 3
        %v5664 = vor.u32 %v5662, %v5663
        %v5665 = vrot.slane %v5196, 4
        %v5666 = vrot.slane %v5197, 6
        %v5667 = vrot.slane %v5198, 6
        %v5668 = vsel %vm1018, %v5666, %v5667
        %v5669 = vrot.slane %v5262, 4
        %v5670 = vrot.slane %v5265, 5
        %v5671 = vor.u32 %v5669, %v5670
        %v5672 = vrot.slane %v5270, 6
        %v5673 = vrot.slane %v5273, 7
        %v5674 = vor.u32 %v5672, %v5673
        %v5675 = vrot.slane %v5278, 6
        %v5676 = vrot.slane %v5281, 7
        %v5677 = vor.u32 %v5675, %v5676
        %v5678 = vsel %vm1850, %v5674, %v5677
        %v5680 = vrot.slane %v5650, 5
        %v5683 = vrot.slane %v5651, 7
        %v5684 = vrot.slane %v5652, 7
        %v5685 = vsel %vm1878, %v5683, %v5684
        %v5687 = vshrl.u32 %v5650, 16
        %v5689 = vrot.slane %v5687, 5
        %v5690 = vshll.u32 %v5650, 16
        %v5692 = vrot.slane %v5690, 6
        %v5693 = vor.u32 %v5689, %v5692
        %v5695 = vshrl.u32 %v5651, 16
        %v5697 = vrot.slane %v5695, 7
        %v5698 = vshll.u32 %v5651, 16
        %v5700 = vor.u32 %v5697, %v5698
        %v5702 = vshrl.u32 %v5652, 16
        %v5704 = vrot.slane %v5702, 7
        %v5705 = vshll.u32 %v5652, 16
        %v5707 = vor.u32 %v5704, %v5705
        %v5708 = vsel %vm1902, %v5697, %v5707
        %v5711 = vrot.slane %v5653, 1
        %v5712 = vrot.slane %v5654, 1
        %v5713 = vsel %vm3364, %v5711, %v5712
        %v5715 = vrot.slane %v5655, 3
        %v5717 = vshrl.u32 %v5653, 16
        %v5719 = vrot.slane %v5717, 1
        %v5721 = vshrl.u32 %v5654, 16
        %v5723 = vrot.slane %v5721, 1
        %v5724 = vshll.u32 %v5654, 16
        %v5726 = vrot.slane %v5724, 2
        %v5727 = vor.u32 %v5723, %v5726
        %v5728 = vsel %vm3370, %v5719, %v5727
        %v5730 = vshrl.u32 %v5655, 16
        %v5732 = vrot.slane %v5730, 3
        %v5733 = vshll.u32 %v5655, 16
        %v5735 = vrot.slane %v5733, 4
        %v5736 = vor.u32 %v5732, %v5735
        %v5737 = vrot.slane %v5193, 6
        %v5738 = vrot.slane %v5194, 6
        %v5739 = vsel %vm1018, %v5737, %v5738
        %v5740 = vrot.slane %v5656, 6
        %v5741 = vsel %vm1018, %v5740, %v5740
        %v5742 = vrot.slane %v5660, 6
        %v5743 = vrot.slane %v5661, 6
        %v5744 = vsel %vm1018, %v5742, %v5743
        %v5745 = vrot.slane %v5664, 6
        %v5746 = vsel %vm1018, %v5745, %v5745
        %v5747 = vrot.slane %v5665, 6
        %v5748 = vsel %vm1018, %v5747, %v5747
        %v5749 = vrot.slane %v5666, 6
        %v5750 = vrot.slane %v5668, 6
        %v5751 = vsel %vm1018, %v5749, %v5750
        %v5752 = vrot.slane %v5671, 6
        %v5753 = vsel %vm1018, %v5752, %v5752
        %v5754 = vrot.slane %v5674, 6
        %v5755 = vrot.slane %v5678, 6
        %v5756 = vsel %vm1018, %v5754, %v5755
        %v5757 = vrot.slane %v5680, 6
        %v5758 = vsel %vm1018, %v5757, %v5757
        %v5759 = vrot.slane %v5683, 6
        %v5760 = vrot.slane %v5685, 6
        %v5761 = vsel %vm1018, %v5759, %v5760
        %v5762 = vrot.slane %v5693, 6
        %v5763 = vsel %vm1018, %v5762, %v5762
        %v5764 = vrot.slane %v5700, 6
        %v5765 = vrot.slane %v5708, 6
        %v5766 = vsel %vm1018, %v5764, %v5765
        %v5767 = vrot.slane %v5713, 6
        %v5768 = vrot.slane %v5712, 6
        %v5769 = vsel %vm1018, %v5767, %v5768
        %v5770 = vrot.slane %v5715, 6
        %v5771 = vsel %vm1018, %v5770, %v5770
        %v5772 = vrot.slane %v5728, 6
        %v5773 = vrot.slane %v5727, 6
        %v5774 = vsel %vm1018, %v5772, %v5773
        %v5775 = vrot.slane %v5736, 6
        %v5776 = vsel %vm1018, %v5775, %v5775
        %5793 = vmatprep.subr.bf16.mxu0 0
        %5794 = vmatpush1.bf16.msra.mxu0 %v2715
        %5795 = vmatprep.subr.bf16.mxu0 0
        %5796 = vmatpush1.bf16.msra.mxu0 %v2716
        %5797 = vmatprep.subr.bf16.mxu0 0
        %5798 = vmatpush1.bf16.msra.mxu0 %v2717
        %5799 = vmatprep.subr.bf16.mxu0 0
        %5800 = vmatpush1.bf16.msra.mxu0 %v2718
        %5801 = vmatprep.subr.bf16.mxu0 0
        %5802 = vmatpush1.bf16.msra.mxu0 %v2719
        %5803 = vmatprep.subr.bf16.mxu0 0
        %5804 = vmatpush1.bf16.msra.mxu0 %v2720
        %5805 = vmatprep.subr.bf16.mxu0 0
        %5806 = vmatpush1.bf16.msra.mxu0 %v2721
        %5807 = vmatprep.subr.bf16.mxu0 0
        %5808 = vmatpush1.bf16.msra.mxu0 %v2722
        %5809 = vmatprep.subr.bf16.mxu0 0
        %5810 = vmatpush1.bf16.msra.mxu0 %v2723
        %5811 = vmatprep.subr.bf16.mxu0 0
        %5812 = vmatpush1.bf16.msra.mxu0 %v2724
        %5813 = vmatprep.subr.bf16.mxu0 0
        %5814 = vmatpush1.bf16.msra.mxu0 %v2725
        %5815 = vmatprep.subr.bf16.mxu0 0
        %5816 = vmatpush1.bf16.msra.mxu0 %v2726
        %5817 = vmatprep.subr.bf16.mxu0 0
        %5818 = vmatpush1.bf16.msra.mxu0 %v2727
        %5819 = vmatprep.subr.bf16.mxu0 0
        %5820 = vmatpush1.bf16.msra.mxu0 %v2728
        %5821 = vmatprep.subr.bf16.mxu0 0
        %5822 = vmatpush1.bf16.msra.mxu0 %v2729
        %5823 = vmatprep.subr.bf16.mxu0 0
        %5824 = vmatpush1.bf16.msra.mxu0 %v2730
        %5825 = vmatprep.mubr.bf16.mxu0 %v5741
        %5826 = vmatmul.mubr.bf16.gmra.mrb[0].mxu0 %v5739
        %v5827 = vpop.f32.mrb[0].mxu0
        %v5828 = vadd.f32 %v2201, %v5827
        %v5829 = vpop.f32.mrb[0].mxu0
        %v5830 = vpop.f32.mrb[0].mxu0
        %v5831 = vadd.f32 %v2201, %v5830
        %v5832 = vpop.f32.mrb[0].mxu0
        %5833 = vdwg.mxu0
        %5834 = vmatprep.subr.bf16.mxu0 0
        %5835 = vmatpush1.bf16.msra.mxu0 %v2731
        %5836 = vmatprep.subr.bf16.mxu0 0
        %5837 = vmatpush1.bf16.msra.mxu0 %v2732
        %5838 = vmatprep.subr.bf16.mxu0 0
        %5839 = vmatpush1.bf16.msra.mxu0 %v2733
        %5840 = vmatprep.subr.bf16.mxu0 0
        %5841 = vmatpush1.bf16.msra.mxu0 %v2734
        %5842 = vmatprep.subr.bf16.mxu0 0
        %5843 = vmatpush1.bf16.msra.mxu0 %v2735
        %5844 = vmatprep.subr.bf16.mxu0 0
        %5845 = vmatpush1.bf16.msra.mxu0 %v2736
        %5846 = vmatprep.subr.bf16.mxu0 0
        %5847 = vmatpush1.bf16.msra.mxu0 %v2737
        %5848 = vmatprep.subr.bf16.mxu0 0
        %5849 = vmatpush1.bf16.msra.mxu0 %v2738
        %5850 = vmatprep.subr.bf16.mxu0 0
        %5851 = vmatpush1.bf16.msra.mxu0 %v2739
        %5852 = vmatprep.subr.bf16.mxu0 0
        %5853 = vmatpush1.bf16.msra.mxu0 %v2740
        %5854 = vmatprep.subr.bf16.mxu0 0
        %5855 = vmatpush1.bf16.msra.mxu0 %v2741
        %5856 = vmatprep.subr.bf16.mxu0 0
        %5857 = vmatpush1.bf16.msra.mxu0 %v2742
        %5858 = vmatprep.subr.bf16.mxu0 0
        %5859 = vmatpush1.bf16.msra.mxu0 %v2743
        %5860 = vmatprep.subr.bf16.mxu0 0
        %5861 = vmatpush1.bf16.msra.mxu0 %v2744
        %5862 = vmatprep.subr.bf16.mxu0 0
        %5863 = vmatpush1.bf16.msra.mxu0 %v2745
        %5864 = vmatprep.subr.bf16.mxu0 0
        %5865 = vmatpush1.bf16.msra.mxu0 %v2746
        %5866 = vmatprep.mubr.bf16.mxu0 %v5746
        %5867 = vmatmul.mubr.bf16.gmra.mrb[0].mxu0 %v5744
        %v5868 = vpop.f32.mrb[0].mxu0
        %v5869 = vadd.f32 %v5828, %v5868
        %v5870 = vpop.f32.mrb[0].mxu0
        %v5871 = vpop.f32.mrb[0].mxu0
        %v5872 = vadd.f32 %v5831, %v5871
        %v5873 = vpop.f32.mrb[0].mxu0
        %5874 = vdwg.mxu0
        %5875 = vmatprep.subr.bf16.mxu0 0
        %5876 = vmatpush1.bf16.msra.mxu0 %v2747
        %5877 = vmatprep.subr.bf16.mxu0 0
        %5878 = vmatpush1.bf16.msra.mxu0 %v2748
        %5879 = vmatprep.subr.bf16.mxu0 0
        %5880 = vmatpush1.bf16.msra.mxu0 %v2749
        %5881 = vmatprep.subr.bf16.mxu0 0
        %5882 = vmatpush1.bf16.msra.mxu0 %v2750
        %5883 = vmatprep.subr.bf16.mxu0 0
        %5884 = vmatpush1.bf16.msra.mxu0 %v2751
        %5885 = vmatprep.subr.bf16.mxu0 0
        %5886 = vmatpush1.bf16.msra.mxu0 %v2752
        %5887 = vmatprep.subr.bf16.mxu0 0
        %5888 = vmatpush1.bf16.msra.mxu0 %v2753
        %5889 = vmatprep.subr.bf16.mxu0 0
        %5890 = vmatpush1.bf16.msra.mxu0 %v2754
        %5891 = vmatprep.subr.bf16.mxu0 0
        %5892 = vmatpush1.bf16.msra.mxu0 %v2755
        %5893 = vmatprep.subr.bf16.mxu0 0
        %5894 = vmatpush1.bf16.msra.mxu0 %v2756
        %5895 = vmatprep.subr.bf16.mxu0 0
        %5896 = vmatpush1.bf16.msra.mxu0 %v2757
        %5897 = vmatprep.subr.bf16.mxu0 0
        %5898 = vmatpush1.bf16.msra.mxu0 %v2758
        %5899 = vmatprep.subr.bf16.mxu0 0
        %5900 = vmatpush1.bf16.msra.mxu0 %v2759
        %5901 = vmatprep.subr.bf16.mxu0 0
        %5902 = vmatpush1.bf16.msra.mxu0 %v2760
        %5903 = vmatprep.subr.bf16.mxu0 0
        %5904 = vmatpush1.bf16.msra.mxu0 %v2761
        %5905 = vmatprep.subr.bf16.mxu0 0
        %5906 = vmatpush1.bf16.msra.mxu0 %v2762
        %5907 = vmatprep.mubr.bf16.mxu0 %v5751
        %5908 = vmatmul.mubr.bf16.gmra.mrb[0].mxu0 %v5748
        %v5909 = vpop.f32.mrb[0].mxu0
        %v5910 = vadd.f32 %v5869, %v5909
        %v5911 = vpop.f32.mrb[0].mxu0
        %v5912 = vpop.f32.mrb[0].mxu0
        %v5913 = vadd.f32 %v5872, %v5912
        %v5914 = vpop.f32.mrb[0].mxu0
        %5915 = vdwg.mxu0
        %5916 = vmatprep.subr.bf16.mxu0 0
        %5917 = vmatpush1.bf16.msra.mxu0 %v2763
        %5918 = vmatprep.subr.bf16.mxu0 0
        %5919 = vmatpush1.bf16.msra.mxu0 %v2764
        %5920 = vmatprep.subr.bf16.mxu0 0
        %5921 = vmatpush1.bf16.msra.mxu0 %v2765
        %5922 = vmatprep.subr.bf16.mxu0 0
        %5923 = vmatpush1.bf16.msra.mxu0 %v2766
        %5924 = vmatprep.subr.bf16.mxu0 0
        %5925 = vmatpush1.bf16.msra.mxu0 %v2767
        %5926 = vmatprep.subr.bf16.mxu0 0
        %5927 = vmatpush1.bf16.msra.mxu0 %v2768
        %5928 = vmatprep.subr.bf16.mxu0 0
        %5929 = vmatpush1.bf16.msra.mxu0 %v2769
        %5930 = vmatprep.subr.bf16.mxu0 0
        %5931 = vmatpush1.bf16.msra.mxu0 %v2770
        %5932 = vmatprep.subr.bf16.mxu0 0
        %5933 = vmatpush1.bf16.msra.mxu0 %v2771
        %5934 = vmatprep.subr.bf16.mxu0 0
        %5935 = vmatpush1.bf16.msra.mxu0 %v2772
        %5936 = vmatprep.subr.bf16.mxu0 0
        %5937 = vmatpush1.bf16.msra.mxu0 %v2773
        %5938 = vmatprep.subr.bf16.mxu0 0
        %5939 = vmatpush1.bf16.msra.mxu0 %v2774
        %5940 = vmatprep.subr.bf16.mxu0 0
        %5941 = vmatpush1.bf16.msra.mxu0 %v2775
        %5942 = vmatprep.subr.bf16.mxu0 0
        %5943 = vmatpush1.bf16.msra.mxu0 %v2776
        %5944 = vmatprep.subr.bf16.mxu0 0
        %5945 = vmatpush1.bf16.msra.mxu0 %v2777
        %5946 = vmatprep.subr.bf16.mxu0 0
        %5947 = vmatpush1.bf16.msra.mxu0 %v2778
        %5948 = vmatprep.mubr.bf16.mxu0 %v5756
        %5949 = vmatmul.mubr.bf16.gmra.mrb[0].mxu0 %v5753
        %v5950 = vpop.f32.mrb[0].mxu0
        %v5951 = vadd.f32 %v5910, %v5950
        %v5952 = vpop.f32.mrb[0].mxu0
        %v5953 = vpop.f32.mrb[0].mxu0
        %v5954 = vadd.f32 %v5913, %v5953
        %v5955 = vpop.f32.mrb[0].mxu0
        %5956 = vdwg.mxu0
        %5957 = vmatprep.subr.bf16.mxu0 0
        %5958 = vmatpush1.bf16.msra.mxu0 %v2779
        %5959 = vmatprep.subr.bf16.mxu0 0
        %5960 = vmatpush1.bf16.msra.mxu0 %v2780
        %5961 = vmatprep.subr.bf16.mxu0 0
        %5962 = vmatpush1.bf16.msra.mxu0 %v2781
        %5963 = vmatprep.subr.bf16.mxu0 0
        %5964 = vmatpush1.bf16.msra.mxu0 %v2782
        %5965 = vmatprep.subr.bf16.mxu0 0
        %5966 = vmatpush1.bf16.msra.mxu0 %v2783
        %5967 = vmatprep.subr.bf16.mxu0 0
        %5968 = vmatpush1.bf16.msra.mxu0 %v2784
        %5969 = vmatprep.subr.bf16.mxu0 0
        %5970 = vmatpush1.bf16.msra.mxu0 %v2785
        %5971 = vmatprep.subr.bf16.mxu0 0
        %5972 = vmatpush1.bf16.msra.mxu0 %v2786
        %5973 = vmatprep.subr.bf16.mxu0 0
        %5974 = vmatpush1.bf16.msra.mxu0 %v2787
        %5975 = vmatprep.subr.bf16.mxu0 0
        %5976 = vmatpush1.bf16.msra.mxu0 %v2788
        %5977 = vmatprep.subr.bf16.mxu0 0
        %5978 = vmatpush1.bf16.msra.mxu0 %v2789
        %5979 = vmatprep.subr.bf16.mxu0 0
        %5980 = vmatpush1.bf16.msra.mxu0 %v2790
        %5981 = vmatprep.subr.bf16.mxu0 0
        %5982 = vmatpush1.bf16.msra.mxu0 %v2791
        %5983 = vmatprep.subr.bf16.mxu0 0
        %5984 = vmatpush1.bf16.msra.mxu0 %v2792
        %5985 = vmatprep.subr.bf16.mxu0 0
        %5986 = vmatpush1.bf16.msra.mxu0 %v2793
        %5987 = vmatprep.subr.bf16.mxu0 0
        %5988 = vmatpush1.bf16.msra.mxu0 %v2794
        %5989 = vmatprep.mubr.bf16.mxu0 %v5761
        %5990 = vmatmul.mubr.bf16.gmra.mrb[0].mxu0 %v5758
        %v5991 = vpop.f32.mrb[0].mxu0
        %v5992 = vadd.f32 %v5951, %v5991
        %v5993 = vpop.f32.mrb[0].mxu0
        %v5994 = vpop.f32.mrb[0].mxu0
        %v5995 = vadd.f32 %v5954, %v5994
        %v5996 = vpop.f32.mrb[0].mxu0
        %5997 = vdwg.mxu0
        %5998 = vmatprep.subr.bf16.mxu0 0
        %5999 = vmatpush1.bf16.msra.mxu0 %v2795
        %6000 = vmatprep.subr.bf16.mxu0 0
        %6001 = vmatpush1.bf16.msra.mxu0 %v2796
        %6002 = vmatprep.subr.bf16.mxu0 0
        %6003 = vmatpush1.bf16.msra.mxu0 %v2797
        %6004 = vmatprep.subr.bf16.mxu0 0
        %6005 = vmatpush1.bf16.msra.mxu0 %v2798
        %6006 = vmatprep.subr.bf16.mxu0 0
        %6007 = vmatpush1.bf16.msra.mxu0 %v2799
        %6008 = vmatprep.subr.bf16.mxu0 0
        %6009 = vmatpush1.bf16.msra.mxu0 %v2800
        %6010 = vmatprep.subr.bf16.mxu0 0
        %6011 = vmatpush1.bf16.msra.mxu0 %v2801
        %6012 = vmatprep.subr.bf16.mxu0 0
        %6013 = vmatpush1.bf16.msra.mxu0 %v2802
        %6014 = vmatprep.subr.bf16.mxu0 0
        %6015 = vmatpush1.bf16.msra.mxu0 %v2803
        %6016 = vmatprep.subr.bf16.mxu0 0
        %6017 = vmatpush1.bf16.msra.mxu0 %v2804
        %6018 = vmatprep.subr.bf16.mxu0 0
        %6019 = vmatpush1.bf16.msra.mxu0 %v2805
        %6020 = vmatprep.subr.bf16.mxu0 0
        %6021 = vmatpush1.bf16.msra.mxu0 %v2806
        %6022 = vmatprep.subr.bf16.mxu0 0
        %6023 = vmatpush1.bf16.msra.mxu0 %v2807
        %6024 = vmatprep.subr.bf16.mxu0 0
        %6025 = vmatpush1.bf16.msra.mxu0 %v2808
        %6026 = vmatprep.subr.bf16.mxu0 0
        %6027 = vmatpush1.bf16.msra.mxu0 %v2809
        %6028 = vmatprep.subr.bf16.mxu0 0
        %6029 = vmatpush1.bf16.msra.mxu0 %v2810
        %6030 = vmatprep.mubr.bf16.mxu0 %v5766
        %6031 = vmatmul.mubr.bf16.gmra.mrb[0].mxu0 %v5763
        %v6032 = vpop.f32.mrb[0].mxu0
        %v6033 = vadd.f32 %v5992, %v6032
        %v6034 = vpop.f32.mrb[0].mxu0
        %v6035 = vpop.f32.mrb[0].mxu0
        %v6036 = vadd.f32 %v5995, %v6035
        %v6037 = vpop.f32.mrb[0].mxu0
        %6038 = vdwg.mxu0
        %6039 = vmatprep.subr.bf16.mxu0 0
        %6040 = vmatpush1.bf16.msra.mxu0 %v2811
        %6041 = vmatprep.subr.bf16.mxu0 0
        %6042 = vmatpush1.bf16.msra.mxu0 %v2812
        %6043 = vmatprep.subr.bf16.mxu0 0
        %6044 = vmatpush1.bf16.msra.mxu0 %v2813
        %6045 = vmatprep.subr.bf16.mxu0 0
        %6046 = vmatpush1.bf16.msra.mxu0 %v2814
        %6047 = vmatprep.subr.bf16.mxu0 0
        %6048 = vmatpush1.bf16.msra.mxu0 %v2815
        %6049 = vmatprep.subr.bf16.mxu0 0
        %6050 = vmatpush1.bf16.msra.mxu0 %v2816
        %6051 = vmatprep.subr.bf16.mxu0 0
        %6052 = vmatpush1.bf16.msra.mxu0 %v2817
        %6053 = vmatprep.subr.bf16.mxu0 0
        %6054 = vmatpush1.bf16.msra.mxu0 %v2818
        %6055 = vmatprep.subr.bf16.mxu0 0
        %6056 = vmatpush1.bf16.msra.mxu0 %v2819
        %6057 = vmatprep.subr.bf16.mxu0 0
        %6058 = vmatpush1.bf16.msra.mxu0 %v2820
        %6059 = vmatprep.subr.bf16.mxu0 0
        %6060 = vmatpush1.bf16.msra.mxu0 %v2821
        %6061 = vmatprep.subr.bf16.mxu0 0
        %6062 = vmatpush1.bf16.msra.mxu0 %v2822
        %6063 = vmatprep.subr.bf16.mxu0 0
        %6064 = vmatpush1.bf16.msra.mxu0 %v2823
        %6065 = vmatprep.subr.bf16.mxu0 0
        %6066 = vmatpush1.bf16.msra.mxu0 %v2824
        %6067 = vmatprep.subr.bf16.mxu0 0
        %6068 = vmatpush1.bf16.msra.mxu0 %v2825
        %6069 = vmatprep.subr.bf16.mxu0 0
        %6070 = vmatpush1.bf16.msra.mxu0 %v2826
        %6071 = vmatprep.mubr.bf16.mxu0 %v5771
        %6072 = vmatmul.mubr.bf16.gmra.mrb[0].mxu0 %v5769
        %v6073 = vpop.f32.mrb[0].mxu0
        %v6074 = vadd.f32 %v6033, %v6073
        %v6075 = vpop.f32.mrb[0].mxu0
        %v6076 = vpop.f32.mrb[0].mxu0
        %v6077 = vadd.f32 %v6036, %v6076
        %v6078 = vpop.f32.mrb[0].mxu0
        %6079 = vdwg.mxu0
        %6080 = vmatprep.subr.bf16.mxu0 0
        %6081 = vmatpush1.bf16.msra.mxu0 %v2827
        %6082 = vmatprep.subr.bf16.mxu0 0
        %6083 = vmatpush1.bf16.msra.mxu0 %v2828
        %6084 = vmatprep.subr.bf16.mxu0 0
        %6085 = vmatpush1.bf16.msra.mxu0 %v2829
        %6086 = vmatprep.subr.bf16.mxu0 0
        %6087 = vmatpush1.bf16.msra.mxu0 %v2830
        %6088 = vmatprep.subr.bf16.mxu0 0
        %6089 = vmatpush1.bf16.msra.mxu0 %v2831
        %6090 = vmatprep.subr.bf16.mxu0 0
        %6091 = vmatpush1.bf16.msra.mxu0 %v2832
        %6092 = vmatprep.subr.bf16.mxu0 0
        %6093 = vmatpush1.bf16.msra.mxu0 %v2833
        %6094 = vmatprep.subr.bf16.mxu0 0
        %6095 = vmatpush1.bf16.msra.mxu0 %v2834
        %6096 = vmatprep.subr.bf16.mxu0 0
        %6097 = vmatpush1.bf16.msra.mxu0 %v2835
        %6098 = vmatprep.subr.bf16.mxu0 0
        %6099 = vmatpush1.bf16.msra.mxu0 %v2836
        %6100 = vmatprep.subr.bf16.mxu0 0
        %6101 = vmatpush1.bf16.msra.mxu0 %v2837
        %6102 = vmatprep.subr.bf16.mxu0 0
        %6103 = vmatpush1.bf16.msra.mxu0 %v2838
        %6104 = vmatprep.subr.bf16.mxu0 0
        %6105 = vmatpush1.bf16.msra.mxu0 %v2839
        %6106 = vmatprep.subr.bf16.mxu0 0
        %6107 = vmatpush1.bf16.msra.mxu0 %v2840
        %6108 = vmatprep.subr.bf16.mxu0 0
        %6109 = vmatpush1.bf16.msra.mxu0 %v2841
        %6110 = vmatprep.subr.bf16.mxu0 0
        %6111 = vmatpush1.bf16.msra.mxu0 %v2842
        %6112 = vmatprep.mubr.bf16.mxu0 %v5776
        %6113 = vmatmul.mubr.bf16.gmra.mrb[0].mxu0 %v5774
        %v6114 = vpop.f32.mrb[0].mxu0
        %v6115 = vadd.f32 %v6074, %v6114
        %v6116 = vpop.f32.mrb[0].mxu0
        %v6117 = vpop.f32.mrb[0].mxu0
        %v6118 = vadd.f32 %v6077, %v6117
        %v6119 = vpop.f32.mrb[0].mxu0
        %6120 = vdwg.mxu0
        %v6121 = vmax.f32 %v6115, 0.0
        %v6122 = vmax.f32 %v6118, 0.0
        %v6123 = vpack.c.bf16 %v6121, %v6121
        %v6124 = vpack.c.bf16 %v6122, %v6122
        %v6125 = vld [vmem:[#allocation2 + $0x28] sm:$0x1f]
        %v6126 = vld [vmem:[#allocation2 + $0x58] sm:$0x7c]
        %v6127 = vld [vmem:[#allocation2 + $0x88] sm:$0xf0]
        %v6128 = vld [vmem:[#allocation2 + $0x90] sm:$0x1]
        %v6129 = vld [vmem:[#allocation2 + $0xb8] sm:$0xc0]
        %v6130 = vld [vmem:[#allocation2 + $0xc0] sm:$0x7]
        %v6131 = vrot.slane %v5651, 2
        %v6132 = vrot.slane %v5652, 2
        %v6133 = vsel %vm766, %v6131, %v6132
        %v6134 = vrot.slane %v5690, 1
        %v6135 = vor.u32 %v5687, %v6134
        %v6136 = vrot.slane %v5695, 2
        %v6137 = vrot.slane %v5698, 3
        %v6138 = vor.u32 %v6136, %v6137
        %v6139 = vrot.slane %v5702, 2
        %v6140 = vrot.slane %v5705, 3
        %v6141 = vor.u32 %v6139, %v6140
        %v6142 = vsel %vm3318, %v6138, %v6141
        %v6143 = vrot.slane %v5653, 4
        %v6144 = vrot.slane %v5654, 4
        %v6145 = vsel %vm1376, %v6143, %v6144
        %v6146 = vrot.slane %v5655, 6
        %v6147 = vrot.slane %v5717, 4
        %v6148 = vrot.slane %v5721, 4
        %v6149 = vrot.slane %v5724, 5
        %v6150 = vor.u32 %v6148, %v6149
        %v6151 = vsel %vm1831, %v6147, %v6150
        %v6152 = vrot.slane %v5730, 6
        %v6153 = vrot.slane %v5733, 7
        %v6154 = vor.u32 %v6152, %v6153
        %v6156 = vrot.slane %v6125, 5
        %v6158 = vrot.slane %v6126, 7
        %v6160 = vshrl.u32 %v6125, 16
        %v6162 = vrot.slane %v6160, 5
        %v6163 = vshll.u32 %v6125, 16
        %v6165 = vrot.slane %v6163, 6
        %v6166 = vor.u32 %v6162, %v6165
        %v6168 = vshrl.u32 %v6126, 16
        %v6170 = vrot.slane %v6168, 7
        %v6171 = vshll.u32 %v6126, 16
        %v6173 = vor.u32 %v6170, %v6171
        %v6176 = vrot.slane %v6127, 1
        %v6177 = vrot.slane %v6128, 1
        %v6178 = vsel %vm3364, %v6176, %v6177
        %v6181 = vrot.slane %v6129, 3
        %v6182 = vrot.slane %v6130, 3
        %v6183 = vsel %vm3843, %v6181, %v6182
        %v6185 = vshrl.u32 %v6127, 16
        %v6187 = vrot.slane %v6185, 1
        %v6188 = vshll.u32 %v6127, 16
        %v6190 = vrot.slane %v6188, 2
        %v6191 = vor.u32 %v6187, %v6190
        %v6193 = vshrl.u32 %v6128, 16
        %v6195 = vrot.slane %v6193, 1
        %v6196 = vshll.u32 %v6128, 16
        %v6198 = vrot.slane %v6196, 2
        %v6199 = vor.u32 %v6195, %v6198
        %v6200 = vsel %vm3370, %v6191, %v6199
        %v6202 = vshrl.u32 %v6129, 16
        %v6204 = vrot.slane %v6202, 3
        %v6205 = vshll.u32 %v6129, 16
        %v6207 = vrot.slane %v6205, 4
        %v6208 = vor.u32 %v6204, %v6207
        %v6210 = vshrl.u32 %v6130, 16
        %v6212 = vrot.slane %v6210, 3
        %v6213 = vshll.u32 %v6130, 16
        %v6215 = vrot.slane %v6213, 4
        %v6216 = vor.u32 %v6212, %v6215
        %v6217 = vsel %vm3855, %v6208, %v6216
        %v6218 = vrot.slane %v5650, 3
        %v6219 = vrot.slane %v6133, 3
        %v6220 = vrot.slane %v6135, 3
        %v6221 = vrot.slane %v6142, 3
        %v6222 = vrot.slane %v6145, 3
        %v6223 = vrot.slane %v6146, 3
        %v6224 = vrot.slane %v6151, 3
        %v6225 = vrot.slane %v6154, 3
        %v6226 = vrot.slane %v6156, 3
        %v6227 = vrot.slane %v6158, 3
        %v6228 = vrot.slane %v6166, 3
        %v6229 = vrot.slane %v6173, 3
        %v6230 = vrot.slane %v6178, 3
        %v6231 = vrot.slane %v6183, 3
        %v6232 = vrot.slane %v6200, 3
        %v6233 = vrot.slane %v6217, 3
        %6250 = vmatprep.subr.bf16.mxu0 0
        %6251 = vmatpush1.bf16.msra.mxu0 %v2715
        %6252 = vmatprep.subr.bf16.mxu0 0
        %6253 = vmatpush1.bf16.msra.mxu0 %v2716
        %6254 = vmatprep.subr.bf16.mxu0 0
        %6255 = vmatpush1.bf16.msra.mxu0 %v2717
        %6256 = vmatprep.subr.bf16.mxu0 0
        %6257 = vmatpush1.bf16.msra.mxu0 %v2718
        %6258 = vmatprep.subr.bf16.mxu0 0
        %6259 = vmatpush1.bf16.msra.mxu0 %v2719
        %6260 = vmatprep.subr.bf16.mxu0 0
        %6261 = vmatpush1.bf16.msra.mxu0 %v2720
        %6262 = vmatprep.subr.bf16.mxu0 0
        %6263 = vmatpush1.bf16.msra.mxu0 %v2721
        %6264 = vmatprep.subr.bf16.mxu0 0
        %6265 = vmatpush1.bf16.msra.mxu0 %v2722
        %6266 = vmatprep.subr.bf16.mxu0 0
        %6267 = vmatpush1.bf16.msra.mxu0 %v2723
        %6268 = vmatprep.subr.bf16.mxu0 0
        %6269 = vmatpush1.bf16.msra.mxu0 %v2724
        %6270 = vmatprep.subr.bf16.mxu0 0
        %6271 = vmatpush1.bf16.msra.mxu0 %v2725
        %6272 = vmatprep.subr.bf16.mxu0 0
        %6273 = vmatpush1.bf16.msra.mxu0 %v2726
        %6274 = vmatprep.subr.bf16.mxu0 0
        %6275 = vmatpush1.bf16.msra.mxu0 %v2727
        %6276 = vmatprep.subr.bf16.mxu0 0
        %6277 = vmatpush1.bf16.msra.mxu0 %v2728
        %6278 = vmatprep.subr.bf16.mxu0 0
        %6279 = vmatpush1.bf16.msra.mxu0 %v2729
        %6280 = vmatprep.subr.bf16.mxu0 0
        %6281 = vmatpush1.bf16.msra.mxu0 %v2730
        %6282 = vmatprep.mubr.bf16.mxu0 %v6219
        %6283 = vmatmul.mubr.bf16.gmra.mrb[0].mxu0 %v6218
        %v6284 = vpop.f32.mrb[0].mxu0
        %v6285 = vadd.f32 %v2201, %v6284
        %v6286 = vpop.f32.mrb[0].mxu0
        %v6287 = vpop.f32.mrb[0].mxu0
        %v6288 = vadd.f32 %v2201, %v6287
        %v6289 = vpop.f32.mrb[0].mxu0
        %6290 = vdwg.mxu0
        %6291 = vmatprep.subr.bf16.mxu0 0
        %6292 = vmatpush1.bf16.msra.mxu0 %v2731
        %6293 = vmatprep.subr.bf16.mxu0 0
        %6294 = vmatpush1.bf16.msra.mxu0 %v2732
        %6295 = vmatprep.subr.bf16.mxu0 0
        %6296 = vmatpush1.bf16.msra.mxu0 %v2733
        %6297 = vmatprep.subr.bf16.mxu0 0
        %6298 = vmatpush1.bf16.msra.mxu0 %v2734
        %6299 = vmatprep.subr.bf16.mxu0 0
        %6300 = vmatpush1.bf16.msra.mxu0 %v2735
        %6301 = vmatprep.subr.bf16.mxu0 0
        %6302 = vmatpush1.bf16.msra.mxu0 %v2736
        %6303 = vmatprep.subr.bf16.mxu0 0
        %6304 = vmatpush1.bf16.msra.mxu0 %v2737
        %6305 = vmatprep.subr.bf16.mxu0 0
        %6306 = vmatpush1.bf16.msra.mxu0 %v2738
        %6307 = vmatprep.subr.bf16.mxu0 0
        %6308 = vmatpush1.bf16.msra.mxu0 %v2739
        %6309 = vmatprep.subr.bf16.mxu0 0
        %6310 = vmatpush1.bf16.msra.mxu0 %v2740
        %6311 = vmatprep.subr.bf16.mxu0 0
        %6312 = vmatpush1.bf16.msra.mxu0 %v2741
        %6313 = vmatprep.subr.bf16.mxu0 0
        %6314 = vmatpush1.bf16.msra.mxu0 %v2742
        %6315 = vmatprep.subr.bf16.mxu0 0
        %6316 = vmatpush1.bf16.msra.mxu0 %v2743
        %6317 = vmatprep.subr.bf16.mxu0 0
        %6318 = vmatpush1.bf16.msra.mxu0 %v2744
        %6319 = vmatprep.subr.bf16.mxu0 0
        %6320 = vmatpush1.bf16.msra.mxu0 %v2745
        %6321 = vmatprep.subr.bf16.mxu0 0
        %6322 = vmatpush1.bf16.msra.mxu0 %v2746
        %6323 = vmatprep.mubr.bf16.mxu0 %v6221
        %6324 = vmatmul.mubr.bf16.gmra.mrb[0].mxu0 %v6220
        %v6325 = vpop.f32.mrb[0].mxu0
        %v6326 = vadd.f32 %v6285, %v6325
        %v6327 = vpop.f32.mrb[0].mxu0
        %v6328 = vpop.f32.mrb[0].mxu0
        %v6329 = vadd.f32 %v6288, %v6328
        %v6330 = vpop.f32.mrb[0].mxu0
        %6331 = vdwg.mxu0
        %6332 = vmatprep.subr.bf16.mxu0 0
        %6333 = vmatpush1.bf16.msra.mxu0 %v2747
        %6334 = vmatprep.subr.bf16.mxu0 0
        %6335 = vmatpush1.bf16.msra.mxu0 %v2748
        %6336 = vmatprep.subr.bf16.mxu0 0
        %6337 = vmatpush1.bf16.msra.mxu0 %v2749
        %6338 = vmatprep.subr.bf16.mxu0 0
        %6339 = vmatpush1.bf16.msra.mxu0 %v2750
        %6340 = vmatprep.subr.bf16.mxu0 0
        %6341 = vmatpush1.bf16.msra.mxu0 %v2751
        %6342 = vmatprep.subr.bf16.mxu0 0
        %6343 = vmatpush1.bf16.msra.mxu0 %v2752
        %6344 = vmatprep.subr.bf16.mxu0 0
        %6345 = vmatpush1.bf16.msra.mxu0 %v2753
        %6346 = vmatprep.subr.bf16.mxu0 0
        %6347 = vmatpush1.bf16.msra.mxu0 %v2754
        %6348 = vmatprep.subr.bf16.mxu0 0
        %6349 = vmatpush1.bf16.msra.mxu0 %v2755
        %6350 = vmatprep.subr.bf16.mxu0 0
        %6351 = vmatpush1.bf16.msra.mxu0 %v2756
        %6352 = vmatprep.subr.bf16.mxu0 0
        %6353 = vmatpush1.bf16.msra.mxu0 %v2757
        %6354 = vmatprep.subr.bf16.mxu0 0
        %6355 = vmatpush1.bf16.msra.mxu0 %v2758
        %6356 = vmatprep.subr.bf16.mxu0 0
        %6357 = vmatpush1.bf16.msra.mxu0 %v2759
        %6358 = vmatprep.subr.bf16.mxu0 0
        %6359 = vmatpush1.bf16.msra.mxu0 %v2760
        %6360 = vmatprep.subr.bf16.mxu0 0
        %6361 = vmatpush1.bf16.msra.mxu0 %v2761
        %6362 = vmatprep.subr.bf16.mxu0 0
        %6363 = vmatpush1.bf16.msra.mxu0 %v2762
        %6364 = vmatprep.mubr.bf16.mxu0 %v6223
        %6365 = vmatmul.mubr.bf16.gmra.mrb[0].mxu0 %v6222
        %v6366 = vpop.f32.mrb[0].mxu0
        %v6367 = vadd.f32 %v6326, %v6366
        %v6368 = vpop.f32.mrb[0].mxu0
        %v6369 = vpop.f32.mrb[0].mxu0
        %v6370 = vadd.f32 %v6329, %v6369
        %v6371 = vpop.f32.mrb[0].mxu0
        %6372 = vdwg.mxu0
        %6373 = vmatprep.subr.bf16.mxu0 0
        %6374 = vmatpush1.bf16.msra.mxu0 %v2763
        %6375 = vmatprep.subr.bf16.mxu0 0
        %6376 = vmatpush1.bf16.msra.mxu0 %v2764
        %6377 = vmatprep.subr.bf16.mxu0 0
        %6378 = vmatpush1.bf16.msra.mxu0 %v2765
        %6379 = vmatprep.subr.bf16.mxu0 0
        %6380 = vmatpush1.bf16.msra.mxu0 %v2766
        %6381 = vmatprep.subr.bf16.mxu0 0
        %6382 = vmatpush1.bf16.msra.mxu0 %v2767
        %6383 = vmatprep.subr.bf16.mxu0 0
        %6384 = vmatpush1.bf16.msra.mxu0 %v2768
        %6385 = vmatprep.subr.bf16.mxu0 0
        %6386 = vmatpush1.bf16.msra.mxu0 %v2769
        %6387 = vmatprep.subr.bf16.mxu0 0
        %6388 = vmatpush1.bf16.msra.mxu0 %v2770
        %6389 = vmatprep.subr.bf16.mxu0 0
        %6390 = vmatpush1.bf16.msra.mxu0 %v2771
        %6391 = vmatprep.subr.bf16.mxu0 0
        %6392 = vmatpush1.bf16.msra.mxu0 %v2772
        %6393 = vmatprep.subr.bf16.mxu0 0
        %6394 = vmatpush1.bf16.msra.mxu0 %v2773
        %6395 = vmatprep.subr.bf16.mxu0 0
        %6396 = vmatpush1.bf16.msra.mxu0 %v2774
        %6397 = vmatprep.subr.bf16.mxu0 0
        %6398 = vmatpush1.bf16.msra.mxu0 %v2775
        %6399 = vmatprep.subr.bf16.mxu0 0
        %6400 = vmatpush1.bf16.msra.mxu0 %v2776
        %6401 = vmatprep.subr.bf16.mxu0 0
        %6402 = vmatpush1.bf16.msra.mxu0 %v2777
        %6403 = vmatprep.subr.bf16.mxu0 0
        %6404 = vmatpush1.bf16.msra.mxu0 %v2778
        %6405 = vmatprep.mubr.bf16.mxu0 %v6225
        %6406 = vmatmul.mubr.bf16.gmra.mrb[0].mxu0 %v6224
        %v6407 = vpop.f32.mrb[0].mxu0
        %v6408 = vadd.f32 %v6367, %v6407
        %v6409 = vpop.f32.mrb[0].mxu0
        %v6410 = vpop.f32.mrb[0].mxu0
        %v6411 = vadd.f32 %v6370, %v6410
        %v6412 = vpop.f32.mrb[0].mxu0
        %6413 = vdwg.mxu0
        %6414 = vmatprep.subr.bf16.mxu0 0
        %6415 = vmatpush1.bf16.msra.mxu0 %v2779
        %6416 = vmatprep.subr.bf16.mxu0 0
        %6417 = vmatpush1.bf16.msra.mxu0 %v2780
        %6418 = vmatprep.subr.bf16.mxu0 0
        %6419 = vmatpush1.bf16.msra.mxu0 %v2781
        %6420 = vmatprep.subr.bf16.mxu0 0
        %6421 = vmatpush1.bf16.msra.mxu0 %v2782
        %6422 = vmatprep.subr.bf16.mxu0 0
        %6423 = vmatpush1.bf16.msra.mxu0 %v2783
        %6424 = vmatprep.subr.bf16.mxu0 0
        %6425 = vmatpush1.bf16.msra.mxu0 %v2784
        %6426 = vmatprep.subr.bf16.mxu0 0
        %6427 = vmatpush1.bf16.msra.mxu0 %v2785
        %6428 = vmatprep.subr.bf16.mxu0 0
        %6429 = vmatpush1.bf16.msra.mxu0 %v2786
        %6430 = vmatprep.subr.bf16.mxu0 0
        %6431 = vmatpush1.bf16.msra.mxu0 %v2787
        %6432 = vmatprep.subr.bf16.mxu0 0
        %6433 = vmatpush1.bf16.msra.mxu0 %v2788
        %6434 = vmatprep.subr.bf16.mxu0 0
        %6435 = vmatpush1.bf16.msra.mxu0 %v2789
        %6436 = vmatprep.subr.bf16.mxu0 0
        %6437 = vmatpush1.bf16.msra.mxu0 %v2790
        %6438 = vmatprep.subr.bf16.mxu0 0
        %6439 = vmatpush1.bf16.msra.mxu0 %v2791
        %6440 = vmatprep.subr.bf16.mxu0 0
        %6441 = vmatpush1.bf16.msra.mxu0 %v2792
        %6442 = vmatprep.subr.bf16.mxu0 0
        %6443 = vmatpush1.bf16.msra.mxu0 %v2793
        %6444 = vmatprep.subr.bf16.mxu0 0
        %6445 = vmatpush1.bf16.msra.mxu0 %v2794
        %6446 = vmatprep.mubr.bf16.mxu0 %v6227
        %6447 = vmatmul.mubr.bf16.gmra.mrb[0].mxu0 %v6226
        %v6448 = vpop.f32.mrb[0].mxu0
        %v6449 = vadd.f32 %v6408, %v6448
        %v6450 = vpop.f32.mrb[0].mxu0
        %v6451 = vpop.f32.mrb[0].mxu0
        %v6452 = vadd.f32 %v6411, %v6451
        %v6453 = vpop.f32.mrb[0].mxu0
        %6454 = vdwg.mxu0
        %6455 = vmatprep.subr.bf16.mxu0 0
        %6456 = vmatpush1.bf16.msra.mxu0 %v2795
        %6457 = vmatprep.subr.bf16.mxu0 0
        %6458 = vmatpush1.bf16.msra.mxu0 %v2796
        %6459 = vmatprep.subr.bf16.mxu0 0
        %6460 = vmatpush1.bf16.msra.mxu0 %v2797
        %6461 = vmatprep.subr.bf16.mxu0 0
        %6462 = vmatpush1.bf16.msra.mxu0 %v2798
        %6463 = vmatprep.subr.bf16.mxu0 0
        %6464 = vmatpush1.bf16.msra.mxu0 %v2799
        %6465 = vmatprep.subr.bf16.mxu0 0
        %6466 = vmatpush1.bf16.msra.mxu0 %v2800
        %6467 = vmatprep.subr.bf16.mxu0 0
        %6468 = vmatpush1.bf16.msra.mxu0 %v2801
        %6469 = vmatprep.subr.bf16.mxu0 0
        %6470 = vmatpush1.bf16.msra.mxu0 %v2802
        %6471 = vmatprep.subr.bf16.mxu0 0
        %6472 = vmatpush1.bf16.msra.mxu0 %v2803
        %6473 = vmatprep.subr.bf16.mxu0 0
        %6474 = vmatpush1.bf16.msra.mxu0 %v2804
        %6475 = vmatprep.subr.bf16.mxu0 0
        %6476 = vmatpush1.bf16.msra.mxu0 %v2805
        %6477 = vmatprep.subr.bf16.mxu0 0
        %6478 = vmatpush1.bf16.msra.mxu0 %v2806
        %6479 = vmatprep.subr.bf16.mxu0 0
        %6480 = vmatpush1.bf16.msra.mxu0 %v2807
        %6481 = vmatprep.subr.bf16.mxu0 0
        %6482 = vmatpush1.bf16.msra.mxu0 %v2808
        %6483 = vmatprep.subr.bf16.mxu0 0
        %6484 = vmatpush1.bf16.msra.mxu0 %v2809
        %6485 = vmatprep.subr.bf16.mxu0 0
        %6486 = vmatpush1.bf16.msra.mxu0 %v2810
        %6487 = vmatprep.mubr.bf16.mxu0 %v6229
        %6488 = vmatmul.mubr.bf16.gmra.mrb[0].mxu0 %v6228
        %v6489 = vpop.f32.mrb[0].mxu0
        %v6490 = vadd.f32 %v6449, %v6489
        %v6491 = vpop.f32.mrb[0].mxu0
        %v6492 = vpop.f32.mrb[0].mxu0
        %v6493 = vadd.f32 %v6452, %v6492
        %v6494 = vpop.f32.mrb[0].mxu0
        %6495 = vdwg.mxu0
        %6496 = vmatprep.subr.bf16.mxu0 0
        %6497 = vmatpush1.bf16.msra.mxu0 %v2811
        %6498 = vmatprep.subr.bf16.mxu0 0
        %6499 = vmatpush1.bf16.msra.mxu0 %v2812
        %6500 = vmatprep.subr.bf16.mxu0 0
        %6501 = vmatpush1.bf16.msra.mxu0 %v2813
        %6502 = vmatprep.subr.bf16.mxu0 0
        %6503 = vmatpush1.bf16.msra.mxu0 %v2814
        %6504 = vmatprep.subr.bf16.mxu0 0
        %6505 = vmatpush1.bf16.msra.mxu0 %v2815
        %6506 = vmatprep.subr.bf16.mxu0 0
        %6507 = vmatpush1.bf16.msra.mxu0 %v2816
        %6508 = vmatprep.subr.bf16.mxu0 0
        %6509 = vmatpush1.bf16.msra.mxu0 %v2817
        %6510 = vmatprep.subr.bf16.mxu0 0
        %6511 = vmatpush1.bf16.msra.mxu0 %v2818
        %6512 = vmatprep.subr.bf16.mxu0 0
        %6513 = vmatpush1.bf16.msra.mxu0 %v2819
        %6514 = vmatprep.subr.bf16.mxu0 0
        %6515 = vmatpush1.bf16.msra.mxu0 %v2820
        %6516 = vmatprep.subr.bf16.mxu0 0
        %6517 = vmatpush1.bf16.msra.mxu0 %v2821
        %6518 = vmatprep.subr.bf16.mxu0 0
        %6519 = vmatpush1.bf16.msra.mxu0 %v2822
        %6520 = vmatprep.subr.bf16.mxu0 0
        %6521 = vmatpush1.bf16.msra.mxu0 %v2823
        %6522 = vmatprep.subr.bf16.mxu0 0
        %6523 = vmatpush1.bf16.msra.mxu0 %v2824
        %6524 = vmatprep.subr.bf16.mxu0 0
        %6525 = vmatpush1.bf16.msra.mxu0 %v2825
        %6526 = vmatprep.subr.bf16.mxu0 0
        %6527 = vmatpush1.bf16.msra.mxu0 %v2826
        %6528 = vmatprep.mubr.bf16.mxu0 %v6231
        %6529 = vmatmul.mubr.bf16.gmra.mrb[0].mxu0 %v6230
        %v6530 = vpop.f32.mrb[0].mxu0
        %v6531 = vadd.f32 %v6490, %v6530
        %v6532 = vpop.f32.mrb[0].mxu0
        %v6533 = vpop.f32.mrb[0].mxu0
        %v6534 = vadd.f32 %v6493, %v6533
        %v6535 = vpop.f32.mrb[0].mxu0
        %6536 = vdwg.mxu0
        %6537 = vmatprep.subr.bf16.mxu0 0
        %6538 = vmatpush1.bf16.msra.mxu0 %v2827
        %6539 = vmatprep.subr.bf16.mxu0 0
        %6540 = vmatpush1.bf16.msra.mxu0 %v2828
        %6541 = vmatprep.subr.bf16.mxu0 0
        %6542 = vmatpush1.bf16.msra.mxu0 %v2829
        %6543 = vmatprep.subr.bf16.mxu0 0
        %6544 = vmatpush1.bf16.msra.mxu0 %v2830
        %6545 = vmatprep.subr.bf16.mxu0 0
        %6546 = vmatpush1.bf16.msra.mxu0 %v2831
        %6547 = vmatprep.subr.bf16.mxu0 0
        %6548 = vmatpush1.bf16.msra.mxu0 %v2832
        %6549 = vmatprep.subr.bf16.mxu0 0
        %6550 = vmatpush1.bf16.msra.mxu0 %v2833
        %6551 = vmatprep.subr.bf16.mxu0 0
        %6552 = vmatpush1.bf16.msra.mxu0 %v2834
        %6553 = vmatprep.subr.bf16.mxu0 0
        %6554 = vmatpush1.bf16.msra.mxu0 %v2835
        %6555 = vmatprep.subr.bf16.mxu0 0
        %6556 = vmatpush1.bf16.msra.mxu0 %v2836
        %6557 = vmatprep.subr.bf16.mxu0 0
        %6558 = vmatpush1.bf16.msra.mxu0 %v2837
        %6559 = vmatprep.subr.bf16.mxu0 0
        %6560 = vmatpush1.bf16.msra.mxu0 %v2838
        %6561 = vmatprep.subr.bf16.mxu0 0
        %6562 = vmatpush1.bf16.msra.mxu0 %v2839
        %6563 = vmatprep.subr.bf16.mxu0 0
        %6564 = vmatpush1.bf16.msra.mxu0 %v2840
        %6565 = vmatprep.subr.bf16.mxu0 0
        %6566 = vmatpush1.bf16.msra.mxu0 %v2841
        %6567 = vmatprep.subr.bf16.mxu0 0
        %6568 = vmatpush1.bf16.msra.mxu0 %v2842
        %6569 = vmatprep.mubr.bf16.mxu0 %v6233
        %6570 = vmatmul.mubr.bf16.gmra.mrb[0].mxu0 %v6232
        %v6571 = vpop.f32.mrb[0].mxu0
        %v6572 = vadd.f32 %v6531, %v6571
        %v6573 = vpop.f32.mrb[0].mxu0
        %v6574 = vpop.f32.mrb[0].mxu0
        %v6575 = vadd.f32 %v6534, %v6574
        %v6576 = vpop.f32.mrb[0].mxu0
        %6577 = vdwg.mxu0
        %v6578 = vmax.f32 %v6572, 0.0
        %v6579 = vmax.f32 %v6575, 0.0
        %v6580 = vpack.c.bf16 %v6578, %v6578
        %v6581 = vpack.c.bf16 %v6579, %v6579
        %v6582 = vld [vmem:[#allocation2 + $0x28] sm:$0xe0]
        %v6583 = vld [vmem:[#allocation2 + $0x30] sm:$0x3]
        %v6584 = vld [vmem:[#allocation2 + $0x58] sm:$0x80]
        %v6585 = vld [vmem:[#allocation2 + $0x60] sm:$0xf]
        %v6586 = vld [vmem:[#allocation2 + $0x90] sm:$0x3e]
        %v6587 = vld [vmem:[#allocation2 + $0xc0] sm:$0xf8]
        %v6588 = vrot.slane %v6126, 2
        %v6590 = vrot.slane %v6163, 1
        %v6591 = vor.u32 %v6160, %v6590
        %v6593 = vrot.slane %v6168, 2
        %v6594 = vrot.slane %v6171, 3
        %v6595 = vor.u32 %v6593, %v6594
        %v6597 = vrot.slane %v6127, 4
        %v6598 = vrot.slane %v6128, 4
        %v6599 = vsel %vm1376, %v6597, %v6598
        %v6601 = vrot.slane %v6129, 6
        %v6602 = vrot.slane %v6130, 6
        %v6603 = vsel %vm1018, %v6601, %v6602
        %v6605 = vrot.slane %v6185, 4
        %v6606 = vrot.slane %v6188, 5
        %v6607 = vor.u32 %v6605, %v6606
        %v6608 = vrot.slane %v6193, 4
        %v6609 = vrot.slane %v6196, 5
        %v6610 = vor.u32 %v6608, %v6609
        %v6611 = vsel %vm1831, %v6607, %v6610
        %v6613 = vrot.slane %v6202, 6
        %v6614 = vrot.slane %v6205, 7
        %v6615 = vor.u32 %v6613, %v6614
        %v6616 = vrot.slane %v6210, 6
        %v6617 = vrot.slane %v6213, 7
        %v6618 = vor.u32 %v6616, %v6617
        %v6619 = vsel %vm1850, %v6615, %v6618
        %v6623 = vrot.slane %v6582, 5
        %v6624 = vrot.slane %v6583, 5
        %v6625 = vsel %vm1871, %v6623, %v6624
        %v6629 = vrot.slane %v6584, 7
        %v6630 = vrot.slane %v6585, 7
        %v6631 = vsel %vm1878, %v6629, %v6630
        %v6634 = vshrl.u32 %v6582, 16
        %v6636 = vrot.slane %v6634, 5
        %v6637 = vshll.u32 %v6582, 16
        %v6639 = vrot.slane %v6637, 6
        %v6640 = vor.u32 %v6636, %v6639
        %v6642 = vshrl.u32 %v6583, 16
        %v6644 = vrot.slane %v6642, 5
        %v6645 = vshll.u32 %v6583, 16
        %v6647 = vrot.slane %v6645, 6
        %v6648 = vor.u32 %v6644, %v6647
        %v6649 = vsel %vm1883, %v6640, %v6648
        %v6652 = vshrl.u32 %v6584, 16
        %v6654 = vrot.slane %v6652, 7
        %v6656 = vshrl.u32 %v6585, 16
        %v6658 = vrot.slane %v6656, 7
        %v6659 = vshll.u32 %v6585, 16
        %v6661 = vor.u32 %v6658, %v6659
        %v6662 = vsel %vm1902, %v6654, %v6661
        %v6665 = vrot.slane %v6586, 1
        %v6668 = vrot.slane %v6587, 3
        %v6671 = vshrl.u32 %v6586, 16
        %v6673 = vrot.slane %v6671, 1
        %v6674 = vshll.u32 %v6586, 16
        %v6676 = vrot.slane %v6674, 2
        %v6677 = vor.u32 %v6673, %v6676
        %v6680 = vshrl.u32 %v6587, 16
        %v6682 = vrot.slane %v6680, 3
        %v6683 = vshll.u32 %v6587, 16
        %v6685 = vrot.slane %v6683, 4
        %v6686 = vor.u32 %v6682, %v6685
        %6688 = vmatprep.subr.bf16.mxu0 0
        %6689 = vmatpush1.bf16.msra.mxu0 %v2715
        %6690 = vmatprep.subr.bf16.mxu0 0
        %6691 = vmatpush1.bf16.msra.mxu0 %v2716
        %6692 = vmatprep.subr.bf16.mxu0 0
        %6693 = vmatpush1.bf16.msra.mxu0 %v2717
        %6694 = vmatprep.subr.bf16.mxu0 0
        %6695 = vmatpush1.bf16.msra.mxu0 %v2718
        %6696 = vmatprep.subr.bf16.mxu0 0
        %6697 = vmatpush1.bf16.msra.mxu0 %v2719
        %6698 = vmatprep.subr.bf16.mxu0 0
        %6699 = vmatpush1.bf16.msra.mxu0 %v2720
        %6700 = vmatprep.subr.bf16.mxu0 0
        %6701 = vmatpush1.bf16.msra.mxu0 %v2721
        %6702 = vmatprep.subr.bf16.mxu0 0
        %6703 = vmatpush1.bf16.msra.mxu0 %v2722
        %6704 = vmatprep.subr.bf16.mxu0 0
        %6705 = vmatpush1.bf16.msra.mxu0 %v2723
        %6706 = vmatprep.subr.bf16.mxu0 0
        %6707 = vmatpush1.bf16.msra.mxu0 %v2724
        %6708 = vmatprep.subr.bf16.mxu0 0
        %6709 = vmatpush1.bf16.msra.mxu0 %v2725
        %6710 = vmatprep.subr.bf16.mxu0 0
        %6711 = vmatpush1.bf16.msra.mxu0 %v2726
        %6712 = vmatprep.subr.bf16.mxu0 0
        %6713 = vmatpush1.bf16.msra.mxu0 %v2727
        %6714 = vmatprep.subr.bf16.mxu0 0
        %6715 = vmatpush1.bf16.msra.mxu0 %v2728
        %6716 = vmatprep.subr.bf16.mxu0 0
        %6717 = vmatpush1.bf16.msra.mxu0 %v2729
        %6718 = vmatprep.subr.bf16.mxu0 0
        %6719 = vmatpush1.bf16.msra.mxu0 %v2730
        %6720 = vmatprep.mubr.bf16.mxu0 %v6588
        %6721 = vmatmul.mubr.bf16.gmra.mrb[0].mxu0 %v6125
        %v6722 = vpop.f32.mrb[0].mxu0
        %v6723 = vadd.f32 %v2201, %v6722
        %v6724 = vpop.f32.mrb[0].mxu0
        %v6725 = vpop.f32.mrb[0].mxu0
        %v6726 = vadd.f32 %v2201, %v6725
        %v6727 = vpop.f32.mrb[0].mxu0
        %6728 = vdwg.mxu0
        %6729 = vmatprep.subr.bf16.mxu0 0
        %6730 = vmatpush1.bf16.msra.mxu0 %v2731
        %6731 = vmatprep.subr.bf16.mxu0 0
        %6732 = vmatpush1.bf16.msra.mxu0 %v2732
        %6733 = vmatprep.subr.bf16.mxu0 0
        %6734 = vmatpush1.bf16.msra.mxu0 %v2733
        %6735 = vmatprep.subr.bf16.mxu0 0
        %6736 = vmatpush1.bf16.msra.mxu0 %v2734
        %6737 = vmatprep.subr.bf16.mxu0 0
        %6738 = vmatpush1.bf16.msra.mxu0 %v2735
        %6739 = vmatprep.subr.bf16.mxu0 0
        %6740 = vmatpush1.bf16.msra.mxu0 %v2736
        %6741 = vmatprep.subr.bf16.mxu0 0
        %6742 = vmatpush1.bf16.msra.mxu0 %v2737
        %6743 = vmatprep.subr.bf16.mxu0 0
        %6744 = vmatpush1.bf16.msra.mxu0 %v2738
        %6745 = vmatprep.subr.bf16.mxu0 0
        %6746 = vmatpush1.bf16.msra.mxu0 %v2739
        %6747 = vmatprep.subr.bf16.mxu0 0
        %6748 = vmatpush1.bf16.msra.mxu0 %v2740
        %6749 = vmatprep.subr.bf16.mxu0 0
        %6750 = vmatpush1.bf16.msra.mxu0 %v2741
        %6751 = vmatprep.subr.bf16.mxu0 0
        %6752 = vmatpush1.bf16.msra.mxu0 %v2742
        %6753 = vmatprep.subr.bf16.mxu0 0
        %6754 = vmatpush1.bf16.msra.mxu0 %v2743
        %6755 = vmatprep.subr.bf16.mxu0 0
        %6756 = vmatpush1.bf16.msra.mxu0 %v2744
        %6757 = vmatprep.subr.bf16.mxu0 0
        %6758 = vmatpush1.bf16.msra.mxu0 %v2745
        %6759 = vmatprep.subr.bf16.mxu0 0
        %6760 = vmatpush1.bf16.msra.mxu0 %v2746
        %6761 = vmatprep.mubr.bf16.mxu0 %v6595
        %6762 = vmatmul.mubr.bf16.gmra.mrb[0].mxu0 %v6591
        %v6763 = vpop.f32.mrb[0].mxu0
        %v6764 = vadd.f32 %v6723, %v6763
        %v6765 = vpop.f32.mrb[0].mxu0
        %v6766 = vpop.f32.mrb[0].mxu0
        %v6767 = vadd.f32 %v6726, %v6766
        %v6768 = vpop.f32.mrb[0].mxu0
        %6769 = vdwg.mxu0
        %6770 = vmatprep.subr.bf16.mxu0 0
        %6771 = vmatpush1.bf16.msra.mxu0 %v2747
        %6772 = vmatprep.subr.bf16.mxu0 0
        %6773 = vmatpush1.bf16.msra.mxu0 %v2748
        %6774 = vmatprep.subr.bf16.mxu0 0
        %6775 = vmatpush1.bf16.msra.mxu0 %v2749
        %6776 = vmatprep.subr.bf16.mxu0 0
        %6777 = vmatpush1.bf16.msra.mxu0 %v2750
        %6778 = vmatprep.subr.bf16.mxu0 0
        %6779 = vmatpush1.bf16.msra.mxu0 %v2751
        %6780 = vmatprep.subr.bf16.mxu0 0
        %6781 = vmatpush1.bf16.msra.mxu0 %v2752
        %6782 = vmatprep.subr.bf16.mxu0 0
        %6783 = vmatpush1.bf16.msra.mxu0 %v2753
        %6784 = vmatprep.subr.bf16.mxu0 0
        %6785 = vmatpush1.bf16.msra.mxu0 %v2754
        %6786 = vmatprep.subr.bf16.mxu0 0
        %6787 = vmatpush1.bf16.msra.mxu0 %v2755
        %6788 = vmatprep.subr.bf16.mxu0 0
        %6789 = vmatpush1.bf16.msra.mxu0 %v2756
        %6790 = vmatprep.subr.bf16.mxu0 0
        %6791 = vmatpush1.bf16.msra.mxu0 %v2757
        %6792 = vmatprep.subr.bf16.mxu0 0
        %6793 = vmatpush1.bf16.msra.mxu0 %v2758
        %6794 = vmatprep.subr.bf16.mxu0 0
        %6795 = vmatpush1.bf16.msra.mxu0 %v2759
        %6796 = vmatprep.subr.bf16.mxu0 0
        %6797 = vmatpush1.bf16.msra.mxu0 %v2760
        %6798 = vmatprep.subr.bf16.mxu0 0
        %6799 = vmatpush1.bf16.msra.mxu0 %v2761
        %6800 = vmatprep.subr.bf16.mxu0 0
        %6801 = vmatpush1.bf16.msra.mxu0 %v2762
        %6802 = vmatprep.mubr.bf16.mxu0 %v6603
        %6803 = vmatmul.mubr.bf16.gmra.mrb[0].mxu0 %v6599
        %v6804 = vpop.f32.mrb[0].mxu0
        %v6805 = vadd.f32 %v6764, %v6804
        %v6806 = vpop.f32.mrb[0].mxu0
        %v6807 = vpop.f32.mrb[0].mxu0
        %v6808 = vadd.f32 %v6767, %v6807
        %v6809 = vpop.f32.mrb[0].mxu0
        %6810 = vdwg.mxu0
        %6811 = vmatprep.subr.bf16.mxu0 0
        %6812 = vmatpush1.bf16.msra.mxu0 %v2763
        %6813 = vmatprep.subr.bf16.mxu0 0
        %6814 = vmatpush1.bf16.msra.mxu0 %v2764
        %6815 = vmatprep.subr.bf16.mxu0 0
        %6816 = vmatpush1.bf16.msra.mxu0 %v2765
        %6817 = vmatprep.subr.bf16.mxu0 0
        %6818 = vmatpush1.bf16.msra.mxu0 %v2766
        %6819 = vmatprep.subr.bf16.mxu0 0
        %6820 = vmatpush1.bf16.msra.mxu0 %v2767
        %6821 = vmatprep.subr.bf16.mxu0 0
        %6822 = vmatpush1.bf16.msra.mxu0 %v2768
        %6823 = vmatprep.subr.bf16.mxu0 0
        %6824 = vmatpush1.bf16.msra.mxu0 %v2769
        %6825 = vmatprep.subr.bf16.mxu0 0
        %6826 = vmatpush1.bf16.msra.mxu0 %v2770
        %6827 = vmatprep.subr.bf16.mxu0 0
        %6828 = vmatpush1.bf16.msra.mxu0 %v2771
        %6829 = vmatprep.subr.bf16.mxu0 0
        %6830 = vmatpush1.bf16.msra.mxu0 %v2772
        %6831 = vmatprep.subr.bf16.mxu0 0
        %6832 = vmatpush1.bf16.msra.mxu0 %v2773
        %6833 = vmatprep.subr.bf16.mxu0 0
        %6834 = vmatpush1.bf16.msra.mxu0 %v2774
        %6835 = vmatprep.subr.bf16.mxu0 0
        %6836 = vmatpush1.bf16.msra.mxu0 %v2775
        %6837 = vmatprep.subr.bf16.mxu0 0
        %6838 = vmatpush1.bf16.msra.mxu0 %v2776
        %6839 = vmatprep.subr.bf16.mxu0 0
        %6840 = vmatpush1.bf16.msra.mxu0 %v2777
        %6841 = vmatprep.subr.bf16.mxu0 0
        %6842 = vmatpush1.bf16.msra.mxu0 %v2778
        %6843 = vmatprep.mubr.bf16.mxu0 %v6619
        %6844 = vmatmul.mubr.bf16.gmra.mrb[0].mxu0 %v6611
        %v6845 = vpop.f32.mrb[0].mxu0
        %v6846 = vadd.f32 %v6805, %v6845
        %v6847 = vpop.f32.mrb[0].mxu0
        %v6848 = vpop.f32.mrb[0].mxu0
        %v6849 = vadd.f32 %v6808, %v6848
        %v6850 = vpop.f32.mrb[0].mxu0
        %6851 = vdwg.mxu0
        %6852 = vmatprep.subr.bf16.mxu0 0
        %6853 = vmatpush1.bf16.msra.mxu0 %v2779
        %6854 = vmatprep.subr.bf16.mxu0 0
        %6855 = vmatpush1.bf16.msra.mxu0 %v2780
        %6856 = vmatprep.subr.bf16.mxu0 0
        %6857 = vmatpush1.bf16.msra.mxu0 %v2781
        %6858 = vmatprep.subr.bf16.mxu0 0
        %6859 = vmatpush1.bf16.msra.mxu0 %v2782
        %6860 = vmatprep.subr.bf16.mxu0 0
        %6861 = vmatpush1.bf16.msra.mxu0 %v2783
        %6862 = vmatprep.subr.bf16.mxu0 0
        %6863 = vmatpush1.bf16.msra.mxu0 %v2784
        %6864 = vmatprep.subr.bf16.mxu0 0
        %6865 = vmatpush1.bf16.msra.mxu0 %v2785
        %6866 = vmatprep.subr.bf16.mxu0 0
        %6867 = vmatpush1.bf16.msra.mxu0 %v2786
        %6868 = vmatprep.subr.bf16.mxu0 0
        %6869 = vmatpush1.bf16.msra.mxu0 %v2787
        %6870 = vmatprep.subr.bf16.mxu0 0
        %6871 = vmatpush1.bf16.msra.mxu0 %v2788
        %6872 = vmatprep.subr.bf16.mxu0 0
        %6873 = vmatpush1.bf16.msra.mxu0 %v2789
        %6874 = vmatprep.subr.bf16.mxu0 0
        %6875 = vmatpush1.bf16.msra.mxu0 %v2790
        %6876 = vmatprep.subr.bf16.mxu0 0
        %6877 = vmatpush1.bf16.msra.mxu0 %v2791
        %6878 = vmatprep.subr.bf16.mxu0 0
        %6879 = vmatpush1.bf16.msra.mxu0 %v2792
        %6880 = vmatprep.subr.bf16.mxu0 0
        %6881 = vmatpush1.bf16.msra.mxu0 %v2793
        %6882 = vmatprep.subr.bf16.mxu0 0
        %6883 = vmatpush1.bf16.msra.mxu0 %v2794
        %6884 = vmatprep.mubr.bf16.mxu0 %v6631
        %6885 = vmatmul.mubr.bf16.gmra.mrb[0].mxu0 %v6625
        %v6886 = vpop.f32.mrb[0].mxu0
        %v6887 = vadd.f32 %v6846, %v6886
        %v6888 = vpop.f32.mrb[0].mxu0
        %v6889 = vpop.f32.mrb[0].mxu0
        %v6890 = vadd.f32 %v6849, %v6889
        %v6891 = vpop.f32.mrb[0].mxu0
        %6892 = vdwg.mxu0
        %6893 = vmatprep.subr.bf16.mxu0 0
        %6894 = vmatpush1.bf16.msra.mxu0 %v2795
        %6895 = vmatprep.subr.bf16.mxu0 0
        %6896 = vmatpush1.bf16.msra.mxu0 %v2796
        %6897 = vmatprep.subr.bf16.mxu0 0
        %6898 = vmatpush1.bf16.msra.mxu0 %v2797
        %6899 = vmatprep.subr.bf16.mxu0 0
        %6900 = vmatpush1.bf16.msra.mxu0 %v2798
        %6901 = vmatprep.subr.bf16.mxu0 0
        %6902 = vmatpush1.bf16.msra.mxu0 %v2799
        %6903 = vmatprep.subr.bf16.mxu0 0
        %6904 = vmatpush1.bf16.msra.mxu0 %v2800
        %6905 = vmatprep.subr.bf16.mxu0 0
        %6906 = vmatpush1.bf16.msra.mxu0 %v2801
        %6907 = vmatprep.subr.bf16.mxu0 0
        %6908 = vmatpush1.bf16.msra.mxu0 %v2802
        %6909 = vmatprep.subr.bf16.mxu0 0
        %6910 = vmatpush1.bf16.msra.mxu0 %v2803
        %6911 = vmatprep.subr.bf16.mxu0 0
        %6912 = vmatpush1.bf16.msra.mxu0 %v2804
        %6913 = vmatprep.subr.bf16.mxu0 0
        %6914 = vmatpush1.bf16.msra.mxu0 %v2805
        %6915 = vmatprep.subr.bf16.mxu0 0
        %6916 = vmatpush1.bf16.msra.mxu0 %v2806
        %6917 = vmatprep.subr.bf16.mxu0 0
        %6918 = vmatpush1.bf16.msra.mxu0 %v2807
        %6919 = vmatprep.subr.bf16.mxu0 0
        %6920 = vmatpush1.bf16.msra.mxu0 %v2808
        %6921 = vmatprep.subr.bf16.mxu0 0
        %6922 = vmatpush1.bf16.msra.mxu0 %v2809
        %6923 = vmatprep.subr.bf16.mxu0 0
        %6924 = vmatpush1.bf16.msra.mxu0 %v2810
        %6925 = vmatprep.mubr.bf16.mxu0 %v6662
        %6926 = vmatmul.mubr.bf16.gmra.mrb[0].mxu0 %v6649
        %v6927 = vpop.f32.mrb[0].mxu0
        %v6928 = vadd.f32 %v6887, %v6927
        %v6929 = vpop.f32.mrb[0].mxu0
        %v6930 = vpop.f32.mrb[0].mxu0
        %v6931 = vadd.f32 %v6890, %v6930
        %v6932 = vpop.f32.mrb[0].mxu0
        %6933 = vdwg.mxu0
        %6934 = vmatprep.subr.bf16.mxu0 0
        %6935 = vmatpush1.bf16.msra.mxu0 %v2811
        %6936 = vmatprep.subr.bf16.mxu0 0
        %6937 = vmatpush1.bf16.msra.mxu0 %v2812
        %6938 = vmatprep.subr.bf16.mxu0 0
        %6939 = vmatpush1.bf16.msra.mxu0 %v2813
        %6940 = vmatprep.subr.bf16.mxu0 0
        %6941 = vmatpush1.bf16.msra.mxu0 %v2814
        %6942 = vmatprep.subr.bf16.mxu0 0
        %6943 = vmatpush1.bf16.msra.mxu0 %v2815
        %6944 = vmatprep.subr.bf16.mxu0 0
        %6945 = vmatpush1.bf16.msra.mxu0 %v2816
        %6946 = vmatprep.subr.bf16.mxu0 0
        %6947 = vmatpush1.bf16.msra.mxu0 %v2817
        %6948 = vmatprep.subr.bf16.mxu0 0
        %6949 = vmatpush1.bf16.msra.mxu0 %v2818
        %6950 = vmatprep.subr.bf16.mxu0 0
        %6951 = vmatpush1.bf16.msra.mxu0 %v2819
        %6952 = vmatprep.subr.bf16.mxu0 0
        %6953 = vmatpush1.bf16.msra.mxu0 %v2820
        %6954 = vmatprep.subr.bf16.mxu0 0
        %6955 = vmatpush1.bf16.msra.mxu0 %v2821
        %6956 = vmatprep.subr.bf16.mxu0 0
        %6957 = vmatpush1.bf16.msra.mxu0 %v2822
        %6958 = vmatprep.subr.bf16.mxu0 0
        %6959 = vmatpush1.bf16.msra.mxu0 %v2823
        %6960 = vmatprep.subr.bf16.mxu0 0
        %6961 = vmatpush1.bf16.msra.mxu0 %v2824
        %6962 = vmatprep.subr.bf16.mxu0 0
        %6963 = vmatpush1.bf16.msra.mxu0 %v2825
        %6964 = vmatprep.subr.bf16.mxu0 0
        %6965 = vmatpush1.bf16.msra.mxu0 %v2826
        %6966 = vmatprep.mubr.bf16.mxu0 %v6668
        %6967 = vmatmul.mubr.bf16.gmra.mrb[0].mxu0 %v6665
        %v6968 = vpop.f32.mrb[0].mxu0
        %v6969 = vadd.f32 %v6928, %v6968
        %v6970 = vpop.f32.mrb[0].mxu0
        %v6971 = vpop.f32.mrb[0].mxu0
        %v6972 = vadd.f32 %v6931, %v6971
        %v6973 = vpop.f32.mrb[0].mxu0
        %6974 = vdwg.mxu0
        %6975 = vmatprep.subr.bf16.mxu0 0
        %6976 = vmatpush1.bf16.msra.mxu0 %v2827
        %6977 = vmatprep.subr.bf16.mxu0 0
        %6978 = vmatpush1.bf16.msra.mxu0 %v2828
        %6979 = vmatprep.subr.bf16.mxu0 0
        %6980 = vmatpush1.bf16.msra.mxu0 %v2829
        %6981 = vmatprep.subr.bf16.mxu0 0
        %6982 = vmatpush1.bf16.msra.mxu0 %v2830
        %6983 = vmatprep.subr.bf16.mxu0 0
        %6984 = vmatpush1.bf16.msra.mxu0 %v2831
        %6985 = vmatprep.subr.bf16.mxu0 0
        %6986 = vmatpush1.bf16.msra.mxu0 %v2832
        %6987 = vmatprep.subr.bf16.mxu0 0
        %6988 = vmatpush1.bf16.msra.mxu0 %v2833
        %6989 = vmatprep.subr.bf16.mxu0 0
        %6990 = vmatpush1.bf16.msra.mxu0 %v2834
        %6991 = vmatprep.subr.bf16.mxu0 0
        %6992 = vmatpush1.bf16.msra.mxu0 %v2835
        %6993 = vmatprep.subr.bf16.mxu0 0
        %6994 = vmatpush1.bf16.msra.mxu0 %v2836
        %6995 = vmatprep.subr.bf16.mxu0 0
        %6996 = vmatpush1.bf16.msra.mxu0 %v2837
        %6997 = vmatprep.subr.bf16.mxu0 0
        %6998 = vmatpush1.bf16.msra.mxu0 %v2838
        %6999 = vmatprep.subr.bf16.mxu0 0
        %7000 = vmatpush1.bf16.msra.mxu0 %v2839
        %7001 = vmatprep.subr.bf16.mxu0 0
        %7002 = vmatpush1.bf16.msra.mxu0 %v2840
        %7003 = vmatprep.subr.bf16.mxu0 0
        %7004 = vmatpush1.bf16.msra.mxu0 %v2841
        %7005 = vmatprep.subr.bf16.mxu0 0
        %7006 = vmatpush1.bf16.msra.mxu0 %v2842
        %7007 = vmatprep.mubr.bf16.mxu0 %v6686
        %7008 = vmatmul.mubr.bf16.gmra.mrb[0].mxu0 %v6677
        %v7009 = vpop.f32.mrb[0].mxu0
        %v7010 = vadd.f32 %v6969, %v7009
        %v7011 = vpop.f32.mrb[0].mxu0
        %v7012 = vpop.f32.mrb[0].mxu0
        %v7013 = vadd.f32 %v6972, %v7012
        %v7014 = vpop.f32.mrb[0].mxu0
        %7015 = vdwg.mxu0
        %v7016 = vmax.f32 %v7010, 0.0
        %v7017 = vmax.f32 %v7013, 0.0
        %v7018 = vpack.c.bf16 %v7016, %v7016
        %v7019 = vpack.c.bf16 %v7017, %v7017
        %v7021 = vshrl.u32 %v3301, 16
        %7023 = vrot.lane.b32.xlu0 %v7021, 32
        %v7024 = vpop.permute.xlu0 %7023
        %v7026 = vrot.slane %v3301, 1
        %7027 = vrot.lane.b32.xlu0 %v7026, 64
        %v7028 = vpop.permute.xlu0 %7027
        %v7029 = vrot.slane %v7021, 1
        %7030 = vrot.lane.b32.xlu0 %v7029, 96
        %v7031 = vpop.permute.xlu0 %7030
        %v7032 = vrot.slane %v3301, 2
        %v7033 = vrot.slane %v7021, 2
        %7034 = vrot.lane.b32.xlu0 %v7033, 32
        %v7035 = vpop.permute.xlu0 %7034
        %v7036 = vrot.slane %v3301, 3
        %7037 = vrot.lane.b32.xlu0 %v7036, 64
        %v7038 = vpop.permute.xlu0 %7037
        %v7039 = vrot.slane %v7021, 3
        %7040 = vrot.lane.b32.xlu0 %v7039, 96
        %v7041 = vpop.permute.xlu0 %7040
        %7043 = vrot.lane.b32.xlu0 %v3778, 32
        %v7044 = vpop.permute.xlu0 %7043
        %v7046 = vshrl.u32 %v3778, 16
        %7048 = vrot.lane.b32.xlu0 %v7046, 64
        %v7049 = vpop.permute.xlu0 %7048
        %v7050 = vrot.slane %v3778, 1
        %7051 = vrot.lane.b32.xlu0 %v7050, 96
        %v7052 = vpop.permute.xlu0 %7051
        %v7053 = vrot.slane %v7046, 1
        %v7054 = vrot.slane %v3778, 2
        %7055 = vrot.lane.b32.xlu0 %v7054, 32
        %v7056 = vpop.permute.xlu0 %7055
        %v7057 = vrot.slane %v7046, 2
        %7058 = vrot.lane.b32.xlu0 %v7057, 64
        %v7059 = vpop.permute.xlu0 %7058
        %v7060 = vrot.slane %v3778, 3
        %7061 = vrot.lane.b32.xlu0 %v7060, 96
        %v7062 = vpop.permute.xlu0 %7061
        %vm7063 = vcmask 261120
        %v7065 = vsel %vm7063, %v3301, %v7024
        %vm7066 = vcmask 523264
        %v7068 = vsel %vm7066, %v7065, %v7028
        %vm7069 = vcmask 785408
        %v7071 = vsel %vm7069, %v7068, %v7031
        %v7075 = vsel %vm7063, %v7032, %v7035
        %v7077 = vsel %vm7066, %v7075, %v7038
        %v7079 = vsel %vm7069, %v7077, %v7041
        %v7083 = vsel %vm7063, %v3302, %v7044
        %v7085 = vsel %vm7066, %v7083, %v7049
        %v7087 = vsel %vm7069, %v7085, %v7052
        %v7091 = vsel %vm7063, %v7053, %v7056
        %v7093 = vsel %vm7066, %v7091, %v7059
        %v7095 = vsel %vm7069, %v7093, %v7062
        %v7098 = vshll.u32 %v3779, 16
        %v7100 = vrot.slane %v7098, 5
        %7101 = vrot.lane.b32.xlu0 %v7100, 32
        %v7102 = vpop.permute.xlu0 %7101
        %v7104 = vshll.u32 %v4235, 16
        %v7106 = vrot.slane %v7104, 5
        %7107 = vrot.lane.b32.xlu0 %v7106, 64
        %v7108 = vpop.permute.xlu0 %7107
        %v7110 = vrot.slane %v4235, 5
        %7111 = vrot.lane.b32.xlu0 %v7110, 96
        %v7112 = vpop.permute.xlu0 %7111
        %v7113 = vrot.slane %v7104, 6
        %v7114 = vrot.slane %v4235, 6
        %7115 = vrot.lane.b32.xlu0 %v7114, 32
        %v7116 = vpop.permute.xlu0 %7115
        %v7117 = vrot.slane %v7104, 7
        %7118 = vrot.lane.b32.xlu0 %v7117, 64
        %v7119 = vpop.permute.xlu0 %7118
        %v7120 = vrot.slane %v4235, 7
        %7121 = vrot.lane.b32.xlu0 %v7120, 96
        %v7122 = vpop.permute.xlu0 %7121
        %7123 = vrot.lane.b32.xlu0 %v4235, 32
        %v7124 = vpop.permute.xlu0 %7123
        %v7126 = vshll.u32 %v4236, 16
        %v7128 = vrot.slane %v7126, 5
        %7129 = vrot.lane.b32.xlu0 %v7128, 64
        %v7130 = vpop.permute.xlu0 %7129
        %v7132 = vshll.u32 %v4712, 16
        %v7134 = vrot.slane %v7132, 5
        %7135 = vrot.lane.b32.xlu0 %v7134, 96
        %v7136 = vpop.permute.xlu0 %7135
        %v7138 = vrot.slane %v4712, 5
        %v7139 = vrot.slane %v7132, 6
        %7140 = vrot.lane.b32.xlu0 %v7139, 32
        %v7141 = vpop.permute.xlu0 %7140
        %v7142 = vrot.slane %v4712, 6
        %7143 = vrot.lane.b32.xlu0 %v7142, 64
        %v7144 = vpop.permute.xlu0 %7143
        %v7145 = vrot.slane %v7132, 7
        %7146 = vrot.lane.b32.xlu0 %v7145, 96
        %v7147 = vpop.permute.xlu0 %7146
        %v7149 = vsel %vm7063, %v3778, %v7102
        %v7151 = vsel %vm7066, %v7149, %v7108
        %v7153 = vsel %vm7069, %v7151, %v7112
        %v7156 = vsel %vm7063, %v7113, %v7116
        %v7158 = vsel %vm7066, %v7156, %v7119
        %v7160 = vsel %vm7069, %v7158, %v7122
        %v7163 = vsel %vm7063, %v7104, %v7124
        %v7165 = vsel %vm7066, %v7163, %v7130
        %v7167 = vsel %vm7069, %v7165, %v7136
        %v7170 = vsel %vm7063, %v7138, %v7141
        %v7172 = vsel %vm7066, %v7170, %v7144
        %v7174 = vsel %vm7069, %v7172, %v7147
        %v7175 = vrot.slane %v7132, 1
        %7176 = vrot.lane.b32.xlu0 %v7175, 32
        %v7177 = vpop.permute.xlu0 %7176
        %v7178 = vrot.slane %v4712, 1
        %7179 = vrot.lane.b32.xlu0 %v7178, 64
        %v7180 = vpop.permute.xlu0 %7179
        %v7182 = vshll.u32 %v4713, 16
        %v7184 = vrot.slane %v7182, 6
        %7185 = vrot.lane.b32.xlu0 %v7184, 96
        %v7186 = vpop.permute.xlu0 %7185
        %v7188 = vshll.u32 %v5191, 16
        %v7190 = vrot.slane %v7188, 6
        %v7192 = vrot.slane %v5191, 6
        %7193 = vrot.lane.b32.xlu0 %v7192, 32
        %v7194 = vpop.permute.xlu0 %7193
        %v7195 = vrot.slane %v7188, 7
        %7196 = vrot.lane.b32.xlu0 %v7195, 64
        %v7197 = vpop.permute.xlu0 %7196
        %v7198 = vrot.slane %v5191, 7
        %7199 = vrot.lane.b32.xlu0 %v7198, 96
        %v7200 = vpop.permute.xlu0 %7199
        %7201 = vrot.lane.b32.xlu0 %v5191, 32
        %v7202 = vpop.permute.xlu0 %7201
        %v7203 = vrot.slane %v7188, 1
        %7204 = vrot.lane.b32.xlu0 %v7203, 64
        %v7205 = vpop.permute.xlu0 %7204
        %v7206 = vrot.slane %v5191, 1
        %7207 = vrot.lane.b32.xlu0 %v7206, 96
        %v7208 = vpop.permute.xlu0 %7207
        %v7210 = vshll.u32 %v5192, 16
        %v7212 = vrot.slane %v7210, 6
        %v7214 = vshll.u32 %v5648, 16
        %v7216 = vrot.slane %v7214, 6
        %7217 = vrot.lane.b32.xlu0 %v7216, 32
        %v7218 = vpop.permute.xlu0 %7217
        %v7220 = vrot.slane %v5648, 6
        %7221 = vrot.lane.b32.xlu0 %v7220, 64
        %v7222 = vpop.permute.xlu0 %7221
        %v7223 = vrot.slane %v7214, 7
        %7224 = vrot.lane.b32.xlu0 %v7223, 96
        %v7225 = vpop.permute.xlu0 %7224
        %v7227 = vsel %vm7063, %v4712, %v7177
        %v7229 = vsel %vm7066, %v7227, %v7180
        %v7231 = vsel %vm7069, %v7229, %v7186
        %v7234 = vsel %vm7063, %v7190, %v7194
        %v7236 = vsel %vm7066, %v7234, %v7197
        %v7238 = vsel %vm7069, %v7236, %v7200
        %v7241 = vsel %vm7063, %v7188, %v7202
        %v7243 = vsel %vm7066, %v7241, %v7205
        %v7245 = vsel %vm7069, %v7243, %v7208
        %v7248 = vsel %vm7063, %v7212, %v7218
        %v7250 = vsel %vm7066, %v7248, %v7222
        %v7252 = vsel %vm7069, %v7250, %v7225
        %v7253 = vrot.slane %v7214, 1
        %7254 = vrot.lane.b32.xlu0 %v7253, 32
        %v7255 = vpop.permute.xlu0 %7254
        %v7256 = vrot.slane %v5648, 1
        %7257 = vrot.lane.b32.xlu0 %v7256, 64
        %v7258 = vpop.permute.xlu0 %7257
        %v7259 = vrot.slane %v7214, 2
        %7260 = vrot.lane.b32.xlu0 %v7259, 96
        %v7261 = vpop.permute.xlu0 %7260
        %v7262 = vrot.slane %v5648, 2
        %v7264 = vshll.u32 %v5649, 16
        %v7266 = vrot.slane %v7264, 7
        %7267 = vrot.lane.b32.xlu0 %v7266, 32
        %v7268 = vpop.permute.xlu0 %7267
        %v7270 = vshll.u32 %v6123, 16
        %v7272 = vrot.slane %v7270, 7
        %7273 = vrot.lane.b32.xlu0 %v7272, 64
        %v7274 = vpop.permute.xlu0 %7273
        %v7276 = vrot.slane %v6123, 7
        %7277 = vrot.lane.b32.xlu0 %v7276, 96
        %v7278 = vpop.permute.xlu0 %7277
        %7279 = vrot.lane.b32.xlu0 %v6123, 32
        %v7280 = vpop.permute.xlu0 %7279
        %v7281 = vrot.slane %v7270, 1
        %7282 = vrot.lane.b32.xlu0 %v7281, 64
        %v7283 = vpop.permute.xlu0 %7282
        %v7284 = vrot.slane %v6123, 1
        %7285 = vrot.lane.b32.xlu0 %v7284, 96
        %v7286 = vpop.permute.xlu0 %7285
        %v7287 = vrot.slane %v7270, 2
        %v7288 = vrot.slane %v6123, 2
        %7289 = vrot.lane.b32.xlu0 %v7288, 32
        %v7290 = vpop.permute.xlu0 %7289
        %v7292 = vshll.u32 %v6124, 16
        %v7294 = vrot.slane %v7292, 7
        %7295 = vrot.lane.b32.xlu0 %v7294, 64
        %v7296 = vpop.permute.xlu0 %7295
        %v7298 = vshll.u32 %v6580, 16
        %v7300 = vrot.slane %v7298, 7
        %7301 = vrot.lane.b32.xlu0 %v7300, 96
        %v7302 = vpop.permute.xlu0 %7301
        %v7304 = vsel %vm7063, %v5648, %v7255
        %v7306 = vsel %vm7066, %v7304, %v7258
        %v7308 = vsel %vm7069, %v7306, %v7261
        %v7311 = vsel %vm7063, %v7262, %v7268
        %v7313 = vsel %vm7066, %v7311, %v7274
        %v7315 = vsel %vm7069, %v7313, %v7278
        %v7318 = vsel %vm7063, %v7270, %v7280
        %v7320 = vsel %vm7066, %v7318, %v7283
        %v7322 = vsel %vm7069, %v7320, %v7286
        %v7325 = vsel %vm7063, %v7287, %v7290
        %v7327 = vsel %vm7066, %v7325, %v7296
        %v7329 = vsel %vm7069, %v7327, %v7302
        %v7330 = vrot.slane %v7298, 1
        %7331 = vrot.lane.b32.xlu0 %v7330, 32
        %v7332 = vpop.permute.xlu0 %7331
        %v7334 = vrot.slane %v6580, 1
        %7335 = vrot.lane.b32.xlu0 %v7334, 64
        %v7336 = vpop.permute.xlu0 %7335
        %v7337 = vrot.slane %v7298, 2
        %7338 = vrot.lane.b32.xlu0 %v7337, 96
        %v7339 = vpop.permute.xlu0 %7338
        %v7340 = vrot.slane %v6580, 2
        %v7341 = vrot.slane %v7298, 3
        %7342 = vrot.lane.b32.xlu0 %v7341, 32
        %v7343 = vpop.permute.xlu0 %7342
        %v7344 = vrot.slane %v6580, 3
        %7345 = vrot.lane.b32.xlu0 %v7344, 64
        %v7346 = vpop.permute.xlu0 %7345
        %v7348 = vshll.u32 %v6581, 16
        %7350 = vrot.lane.b32.xlu0 %v7348, 96
        %v7351 = vpop.permute.xlu0 %7350
        %v7353 = vshll.u32 %v7018, 16
        %7356 = vrot.lane.b32.xlu0 %v7018, 32
        %v7357 = vpop.permute.xlu0 %7356
        %v7358 = vrot.slane %v7353, 1
        %7359 = vrot.lane.b32.xlu0 %v7358, 64
        %v7360 = vpop.permute.xlu0 %7359
        %v7361 = vrot.slane %v7018, 1
        %7362 = vrot.lane.b32.xlu0 %v7361, 96
        %v7363 = vpop.permute.xlu0 %7362
        %v7364 = vrot.slane %v7353, 2
        %v7365 = vrot.slane %v7018, 2
        %7366 = vrot.lane.b32.xlu0 %v7365, 32
        %v7367 = vpop.permute.xlu0 %7366
        %v7368 = vrot.slane %v7353, 3
        %7369 = vrot.lane.b32.xlu0 %v7368, 64
        %v7370 = vpop.permute.xlu0 %7369
        %v7371 = vrot.slane %v7018, 3
        %7372 = vrot.lane.b32.xlu0 %v7371, 96
        %v7373 = vpop.permute.xlu0 %7372
        %v7375 = vsel %vm7063, %v6580, %v7332
        %v7377 = vsel %vm7066, %v7375, %v7336
        %v7379 = vsel %vm7069, %v7377, %v7339
        %v7382 = vsel %vm7063, %v7340, %v7343
        %v7384 = vsel %vm7066, %v7382, %v7346
        %v7386 = vsel %vm7069, %v7384, %v7351
        %v7389 = vsel %vm7063, %v7353, %v7357
        %v7391 = vsel %vm7066, %v7389, %v7360
        %v7393 = vsel %vm7069, %v7391, %v7363
        %v7396 = vsel %vm7063, %v7364, %v7367
        %v7398 = vsel %vm7066, %v7396, %v7370
        %v7400 = vsel %vm7069, %v7398, %v7373
        %v7401 = vshrl.u32 %v7153, 16
        %v7403 = vrot.slane %v7401, 3
        %v7404 = vshrl.u32 %v7160, 16
        %v7406 = vrot.slane %v7404, 3
        %v7407 = vshrl.u32 %v7167, 16
        %v7409 = vrot.slane %v7407, 3
        %v7410 = vshrl.u32 %v7174, 16
        %v7412 = vrot.slane %v7410, 3
        %v7417 = vshrl.u32 %v7231, 16
        %v7419 = vrot.slane %v7417, 2
        %v7420 = vshrl.u32 %v7238, 16
        %v7422 = vrot.slane %v7420, 2
        %v7423 = vshrl.u32 %v7245, 16
        %v7425 = vrot.slane %v7423, 2
        %v7426 = vshrl.u32 %v7252, 16
        %v7428 = vrot.slane %v7426, 2
        %v7433 = vshrl.u32 %v7308, 16
        %v7435 = vrot.slane %v7433, 1
        %v7436 = vshrl.u32 %v7315, 16
        %v7438 = vrot.slane %v7436, 1
        %v7439 = vshrl.u32 %v7322, 16
        %v7441 = vrot.slane %v7439, 1
        %v7442 = vshrl.u32 %v7329, 16
        %v7444 = vrot.slane %v7442, 1
        %v7449 = vshrl.u32 %v7379, 16
        %v7451 = vshrl.u32 %v7386, 16
        %v7453 = vshrl.u32 %v7393, 16
        %v7455 = vshrl.u32 %v7400, 16
        %v7461 = vld [vmem:[%s5] sm:$0xff]
        %v7462 = vld [vmem:[%s5 + $0x8] sm:$0xff]
        %v7463 = vld [vmem:[%s5 + $0x10] sm:$0xff]
        %v7464 = vld [vmem:[%s5 + $0x18] sm:$0xff]
        %v7465 = vld [vmem:[%s5 + $0x20] sm:$0xff]
        %v7466 = vld [vmem:[%s5 + $0x28] sm:$0xff]
        %v7467 = vld [vmem:[%s5 + $0x30] sm:$0xff]
        %v7468 = vld [vmem:[%s5 + $0x38] sm:$0xff]
        %v7469 = vld [vmem:[%s5 + $0x40] sm:$0xff]
        %v7470 = vld [vmem:[%s5 + $0x48] sm:$0xff]
        %v7471 = vld [vmem:[%s5 + $0x50] sm:$0xff]
        %v7472 = vld [vmem:[%s5 + $0x58] sm:$0xff]
        %v7473 = vld [vmem:[%s5 + $0x60] sm:$0xff]
        %v7474 = vld [vmem:[%s5 + $0x68] sm:$0xff]
        %v7475 = vld [vmem:[%s5 + $0x70] sm:$0xff]
        %v7476 = vld [vmem:[%s5 + $0x78] sm:$0xff]
        %v7477 = vld [vmem:[%s5 + $0x80] sm:$0xff]
        %v7478 = vld [vmem:[%s5 + $0x88] sm:$0xff]
        %v7479 = vld [vmem:[%s5 + $0x90] sm:$0xff]
        %v7480 = vld [vmem:[%s5 + $0x98] sm:$0xff]
        %v7481 = vld [vmem:[%s5 + $0xa0] sm:$0xff]
        %v7482 = vld [vmem:[%s5 + $0xa8] sm:$0xff]
        %v7483 = vld [vmem:[%s5 + $0xb0] sm:$0xff]
        %v7484 = vld [vmem:[%s5 + $0xb8] sm:$0xff]
        %v7485 = vld [vmem:[%s5 + $0xc0] sm:$0xff]
        %v7486 = vld [vmem:[%s5 + $0xc8] sm:$0xff]
        %v7487 = vld [vmem:[%s5 + $0xd0] sm:$0xff]
        %v7488 = vld [vmem:[%s5 + $0xd8] sm:$0xff]
        %v7489 = vld [vmem:[%s5 + $0xe0] sm:$0xff]
        %v7490 = vld [vmem:[%s5 + $0xe8] sm:$0xff]
        %v7491 = vld [vmem:[%s5 + $0xf0] sm:$0xff]
        %v7492 = vld [vmem:[%s5 + $0xf8] sm:$0xff]
        %v7493 = vld [vmem:[%s5 + $0x100] sm:$0xff]
        %v7494 = vld [vmem:[%s5 + $0x108] sm:$0xff]
        %v7495 = vld [vmem:[%s5 + $0x110] sm:$0xff]
        %v7496 = vld [vmem:[%s5 + $0x118] sm:$0xff]
        %v7497 = vld [vmem:[%s5 + $0x120] sm:$0xff]
        %v7498 = vld [vmem:[%s5 + $0x128] sm:$0xff]
        %v7499 = vld [vmem:[%s5 + $0x130] sm:$0xff]
        %v7500 = vld [vmem:[%s5 + $0x138] sm:$0xff]
        %v7501 = vld [vmem:[%s5 + $0x140] sm:$0xff]
        %v7502 = vld [vmem:[%s5 + $0x148] sm:$0xff]
        %v7503 = vld [vmem:[%s5 + $0x150] sm:$0xff]
        %v7504 = vld [vmem:[%s5 + $0x158] sm:$0xff]
        %v7505 = vld [vmem:[%s5 + $0x160] sm:$0xff]
        %v7506 = vld [vmem:[%s5 + $0x168] sm:$0xff]
        %v7507 = vld [vmem:[%s5 + $0x170] sm:$0xff]
        %v7508 = vld [vmem:[%s5 + $0x178] sm:$0xff]
        %v7509 = vld [vmem:[%s5 + $0x180] sm:$0xff]
        %v7510 = vld [vmem:[%s5 + $0x188] sm:$0xff]
        %v7511 = vld [vmem:[%s5 + $0x190] sm:$0xff]
        %v7512 = vld [vmem:[%s5 + $0x198] sm:$0xff]
        %v7513 = vld [vmem:[%s5 + $0x1a0] sm:$0xff]
        %v7514 = vld [vmem:[%s5 + $0x1a8] sm:$0xff]
        %v7515 = vld [vmem:[%s5 + $0x1b0] sm:$0xff]
        %v7516 = vld [vmem:[%s5 + $0x1b8] sm:$0xff]
        %v7517 = vld [vmem:[%s5 + $0x1c0] sm:$0xff]
        %v7518 = vld [vmem:[%s5 + $0x1c8] sm:$0xff]
        %v7519 = vld [vmem:[%s5 + $0x1d0] sm:$0xff]
        %v7520 = vld [vmem:[%s5 + $0x1d8] sm:$0xff]
        %v7521 = vld [vmem:[%s5 + $0x1e0] sm:$0xff]
        %v7522 = vld [vmem:[%s5 + $0x1e8] sm:$0xff]
        %v7523 = vld [vmem:[%s5 + $0x1f0] sm:$0xff]
        %v7524 = vld [vmem:[%s5 + $0x1f8] sm:$0xff]
        %v7525 = vld [vmem:[%s5 + $0x200] sm:$0xff]
        %v7526 = vld [vmem:[%s5 + $0x208] sm:$0xff]
        %v7527 = vld [vmem:[%s5 + $0x210] sm:$0xff]
        %v7528 = vld [vmem:[%s5 + $0x218] sm:$0xff]
        %v7529 = vld [vmem:[%s5 + $0x220] sm:$0xff]
        %v7530 = vld [vmem:[%s5 + $0x228] sm:$0xff]
        %v7531 = vld [vmem:[%s5 + $0x230] sm:$0xff]
        %v7532 = vld [vmem:[%s5 + $0x238] sm:$0xff]
        %v7533 = vld [vmem:[%s5 + $0x240] sm:$0xff]
        %v7534 = vld [vmem:[%s5 + $0x248] sm:$0xff]
        %v7535 = vld [vmem:[%s5 + $0x250] sm:$0xff]
        %v7536 = vld [vmem:[%s5 + $0x258] sm:$0xff]
        %v7537 = vld [vmem:[%s5 + $0x260] sm:$0xff]
        %v7538 = vld [vmem:[%s5 + $0x268] sm:$0xff]
        %v7539 = vld [vmem:[%s5 + $0x270] sm:$0xff]
        %v7540 = vld [vmem:[%s5 + $0x278] sm:$0xff]
        %v7541 = vld [vmem:[%s5 + $0x280] sm:$0xff]
        %v7542 = vld [vmem:[%s5 + $0x288] sm:$0xff]
        %v7543 = vld [vmem:[%s5 + $0x290] sm:$0xff]
        %v7544 = vld [vmem:[%s5 + $0x298] sm:$0xff]
        %v7545 = vld [vmem:[%s5 + $0x2a0] sm:$0xff]
        %v7546 = vld [vmem:[%s5 + $0x2a8] sm:$0xff]
        %v7547 = vld [vmem:[%s5 + $0x2b0] sm:$0xff]
        %v7548 = vld [vmem:[%s5 + $0x2b8] sm:$0xff]
        %v7549 = vld [vmem:[%s5 + $0x2c0] sm:$0xff]
        %v7550 = vld [vmem:[%s5 + $0x2c8] sm:$0xff]
        %v7551 = vld [vmem:[%s5 + $0x2d0] sm:$0xff]
        %v7552 = vld [vmem:[%s5 + $0x2d8] sm:$0xff]
        %v7553 = vld [vmem:[%s5 + $0x2e0] sm:$0xff]
        %v7554 = vld [vmem:[%s5 + $0x2e8] sm:$0xff]
        %v7555 = vld [vmem:[%s5 + $0x2f0] sm:$0xff]
        %v7556 = vld [vmem:[%s5 + $0x2f8] sm:$0xff]
        %v7557 = vld [vmem:[%s5 + $0x300] sm:$0xff]
        %v7558 = vld [vmem:[%s5 + $0x308] sm:$0xff]
        %v7559 = vld [vmem:[%s5 + $0x310] sm:$0xff]
        %v7560 = vld [vmem:[%s5 + $0x318] sm:$0xff]
        %v7561 = vld [vmem:[%s5 + $0x320] sm:$0xff]
        %v7562 = vld [vmem:[%s5 + $0x328] sm:$0xff]
        %v7563 = vld [vmem:[%s5 + $0x330] sm:$0xff]
        %v7564 = vld [vmem:[%s5 + $0x338] sm:$0xff]
        %v7565 = vld [vmem:[%s5 + $0x340] sm:$0xff]
        %v7566 = vld [vmem:[%s5 + $0x348] sm:$0xff]
        %v7567 = vld [vmem:[%s5 + $0x350] sm:$0xff]
        %v7568 = vld [vmem:[%s5 + $0x358] sm:$0xff]
        %v7569 = vld [vmem:[%s5 + $0x360] sm:$0xff]
        %v7570 = vld [vmem:[%s5 + $0x368] sm:$0xff]
        %v7571 = vld [vmem:[%s5 + $0x370] sm:$0xff]
        %v7572 = vld [vmem:[%s5 + $0x378] sm:$0xff]
        %v7573 = vld [vmem:[%s5 + $0x380] sm:$0xff]
        %v7574 = vld [vmem:[%s5 + $0x388] sm:$0xff]
        %v7575 = vld [vmem:[%s5 + $0x390] sm:$0xff]
        %v7576 = vld [vmem:[%s5 + $0x398] sm:$0xff]
        %v7577 = vld [vmem:[%s5 + $0x3a0] sm:$0xff]
        %v7578 = vld [vmem:[%s5 + $0x3a8] sm:$0xff]
        %v7579 = vld [vmem:[%s5 + $0x3b0] sm:$0xff]
        %v7580 = vld [vmem:[%s5 + $0x3b8] sm:$0xff]
        %v7581 = vld [vmem:[%s5 + $0x3c0] sm:$0xff]
        %v7582 = vld [vmem:[%s5 + $0x3c8] sm:$0xff]
        %v7583 = vld [vmem:[%s5 + $0x3d0] sm:$0xff]
        %v7584 = vld [vmem:[%s5 + $0x3d8] sm:$0xff]
        %v7585 = vld [vmem:[%s5 + $0x3e0] sm:$0xff]
        %v7586 = vld [vmem:[%s5 + $0x3e8] sm:$0xff]
        %v7587 = vld [vmem:[%s5 + $0x3f0] sm:$0xff]
        %v7588 = vld [vmem:[%s5 + $0x3f8] sm:$0xff]
        %v7589 = vld [vmem:[%s5 + $0x400] sm:$0xff]
        %v7590 = vld [vmem:[%s5 + $0x408] sm:$0xff]
        %v7591 = vld [vmem:[%s5 + $0x410] sm:$0xff]
        %v7592 = vld [vmem:[%s5 + $0x418] sm:$0xff]
        %v7593 = vld [vmem:[%s5 + $0x420] sm:$0xff]
        %v7594 = vld [vmem:[%s5 + $0x428] sm:$0xff]
        %v7595 = vld [vmem:[%s5 + $0x430] sm:$0xff]
        %v7596 = vld [vmem:[%s5 + $0x438] sm:$0xff]
        %v7597 = vld [vmem:[%s5 + $0x440] sm:$0xff]
        %v7598 = vld [vmem:[%s5 + $0x448] sm:$0xff]
        %v7599 = vld [vmem:[%s5 + $0x450] sm:$0xff]
        %v7600 = vld [vmem:[%s5 + $0x458] sm:$0xff]
        %v7601 = vld [vmem:[%s5 + $0x460] sm:$0xff]
        %v7602 = vld [vmem:[%s5 + $0x468] sm:$0xff]
        %v7603 = vld [vmem:[%s5 + $0x470] sm:$0xff]
        %v7604 = vld [vmem:[%s5 + $0x478] sm:$0xff]
        %v7605 = vld [vmem:[%s5 + $0x480] sm:$0xff]
        %v7606 = vld [vmem:[%s5 + $0x488] sm:$0xff]
        %v7607 = vld [vmem:[%s5 + $0x490] sm:$0xff]
        %v7608 = vld [vmem:[%s5 + $0x498] sm:$0xff]
        %v7609 = vld [vmem:[%s5 + $0x4a0] sm:$0xff]
        %v7610 = vld [vmem:[%s5 + $0x4a8] sm:$0xff]
        %v7611 = vld [vmem:[%s5 + $0x4b0] sm:$0xff]
        %v7612 = vld [vmem:[%s5 + $0x4b8] sm:$0xff]
        %v7613 = vld [vmem:[%s5 + $0x4c0] sm:$0xff]
        %v7614 = vld [vmem:[%s5 + $0x4c8] sm:$0xff]
        %v7615 = vld [vmem:[%s5 + $0x4d0] sm:$0xff]
        %v7616 = vld [vmem:[%s5 + $0x4d8] sm:$0xff]
        %v7617 = vld [vmem:[%s5 + $0x4e0] sm:$0xff]
        %v7618 = vld [vmem:[%s5 + $0x4e8] sm:$0xff]
        %v7619 = vld [vmem:[%s5 + $0x4f0] sm:$0xff]
        %v7620 = vld [vmem:[%s5 + $0x4f8] sm:$0xff]
        %v7621 = vld [vmem:[%s5 + $0x500] sm:$0xff]
        %v7622 = vld [vmem:[%s5 + $0x508] sm:$0xff]
        %v7623 = vld [vmem:[%s5 + $0x510] sm:$0xff]
        %v7624 = vld [vmem:[%s5 + $0x518] sm:$0xff]
        %v7625 = vld [vmem:[%s5 + $0x520] sm:$0xff]
        %v7626 = vld [vmem:[%s5 + $0x528] sm:$0xff]
        %v7627 = vld [vmem:[%s5 + $0x530] sm:$0xff]
        %v7628 = vld [vmem:[%s5 + $0x538] sm:$0xff]
        %v7629 = vld [vmem:[%s5 + $0x540] sm:$0xff]
        %v7630 = vld [vmem:[%s5 + $0x548] sm:$0xff]
        %v7631 = vld [vmem:[%s5 + $0x550] sm:$0xff]
        %v7632 = vld [vmem:[%s5 + $0x558] sm:$0xff]
        %v7633 = vld [vmem:[%s5 + $0x560] sm:$0xff]
        %v7634 = vld [vmem:[%s5 + $0x568] sm:$0xff]
        %v7635 = vld [vmem:[%s5 + $0x570] sm:$0xff]
        %v7636 = vld [vmem:[%s5 + $0x578] sm:$0xff]
        %v7637 = vld [vmem:[%s5 + $0x580] sm:$0xff]
        %v7638 = vld [vmem:[%s5 + $0x588] sm:$0xff]
        %v7639 = vld [vmem:[%s5 + $0x590] sm:$0xff]
        %v7640 = vld [vmem:[%s5 + $0x598] sm:$0xff]
        %v7641 = vld [vmem:[%s5 + $0x5a0] sm:$0xff]
        %v7642 = vld [vmem:[%s5 + $0x5a8] sm:$0xff]
        %v7643 = vld [vmem:[%s5 + $0x5b0] sm:$0xff]
        %v7644 = vld [vmem:[%s5 + $0x5b8] sm:$0xff]
        %v7645 = vld [vmem:[%s5 + $0x5c0] sm:$0xff]
        %v7646 = vld [vmem:[%s5 + $0x5c8] sm:$0xff]
        %v7647 = vld [vmem:[%s5 + $0x5d0] sm:$0xff]
        %v7648 = vld [vmem:[%s5 + $0x5d8] sm:$0xff]
        %v7649 = vld [vmem:[%s5 + $0x5e0] sm:$0xff]
        %v7650 = vld [vmem:[%s5 + $0x5e8] sm:$0xff]
        %v7651 = vld [vmem:[%s5 + $0x5f0] sm:$0xff]
        %v7652 = vld [vmem:[%s5 + $0x5f8] sm:$0xff]
        %v7653 = vld [vmem:[%s5 + $0x600] sm:$0xff]
        %v7654 = vld [vmem:[%s5 + $0x608] sm:$0xff]
        %v7655 = vld [vmem:[%s5 + $0x610] sm:$0xff]
        %v7656 = vld [vmem:[%s5 + $0x618] sm:$0xff]
        %v7657 = vld [vmem:[%s5 + $0x620] sm:$0xff]
        %v7658 = vld [vmem:[%s5 + $0x628] sm:$0xff]
        %v7659 = vld [vmem:[%s5 + $0x630] sm:$0xff]
        %v7660 = vld [vmem:[%s5 + $0x638] sm:$0xff]
        %v7661 = vld [vmem:[%s5 + $0x640] sm:$0xff]
        %v7662 = vld [vmem:[%s5 + $0x648] sm:$0xff]
        %v7663 = vld [vmem:[%s5 + $0x650] sm:$0xff]
        %v7664 = vld [vmem:[%s5 + $0x658] sm:$0xff]
        %v7665 = vld [vmem:[%s5 + $0x660] sm:$0xff]
        %v7666 = vld [vmem:[%s5 + $0x668] sm:$0xff]
        %v7667 = vld [vmem:[%s5 + $0x670] sm:$0xff]
        %v7668 = vld [vmem:[%s5 + $0x678] sm:$0xff]
        %v7669 = vld [vmem:[%s5 + $0x680] sm:$0xff]
        %v7670 = vld [vmem:[%s5 + $0x688] sm:$0xff]
        %v7671 = vld [vmem:[%s5 + $0x690] sm:$0xff]
        %v7672 = vld [vmem:[%s5 + $0x698] sm:$0xff]
        %v7673 = vld [vmem:[%s5 + $0x6a0] sm:$0xff]
        %v7674 = vld [vmem:[%s5 + $0x6a8] sm:$0xff]
        %v7675 = vld [vmem:[%s5 + $0x6b0] sm:$0xff]
        %v7676 = vld [vmem:[%s5 + $0x6b8] sm:$0xff]
        %v7677 = vld [vmem:[%s5 + $0x6c0] sm:$0xff]
        %v7678 = vld [vmem:[%s5 + $0x6c8] sm:$0xff]
        %v7679 = vld [vmem:[%s5 + $0x6d0] sm:$0xff]
        %v7680 = vld [vmem:[%s5 + $0x6d8] sm:$0xff]
        %v7681 = vld [vmem:[%s5 + $0x6e0] sm:$0xff]
        %v7682 = vld [vmem:[%s5 + $0x6e8] sm:$0xff]
        %v7683 = vld [vmem:[%s5 + $0x6f0] sm:$0xff]
        %v7684 = vld [vmem:[%s5 + $0x6f8] sm:$0xff]
        %v7685 = vld [vmem:[%s5 + $0x700] sm:$0xff]
        %v7686 = vld [vmem:[%s5 + $0x708] sm:$0xff]
        %v7687 = vld [vmem:[%s5 + $0x710] sm:$0xff]
        %v7688 = vld [vmem:[%s5 + $0x718] sm:$0xff]
        %v7689 = vld [vmem:[%s5 + $0x720] sm:$0xff]
        %v7690 = vld [vmem:[%s5 + $0x728] sm:$0xff]
        %v7691 = vld [vmem:[%s5 + $0x730] sm:$0xff]
        %v7692 = vld [vmem:[%s5 + $0x738] sm:$0xff]
        %v7693 = vld [vmem:[%s5 + $0x740] sm:$0xff]
        %v7694 = vld [vmem:[%s5 + $0x748] sm:$0xff]
        %v7695 = vld [vmem:[%s5 + $0x750] sm:$0xff]
        %v7696 = vld [vmem:[%s5 + $0x758] sm:$0xff]
        %v7697 = vld [vmem:[%s5 + $0x760] sm:$0xff]
        %v7698 = vld [vmem:[%s5 + $0x768] sm:$0xff]
        %v7699 = vld [vmem:[%s5 + $0x770] sm:$0xff]
        %v7700 = vld [vmem:[%s5 + $0x778] sm:$0xff]
        %v7701 = vld [vmem:[%s5 + $0x780] sm:$0xff]
        %v7702 = vld [vmem:[%s5 + $0x788] sm:$0xff]
        %v7703 = vld [vmem:[%s5 + $0x790] sm:$0xff]
        %v7704 = vld [vmem:[%s5 + $0x798] sm:$0xff]
        %v7705 = vld [vmem:[%s5 + $0x7a0] sm:$0xff]
        %v7706 = vld [vmem:[%s5 + $0x7a8] sm:$0xff]
        %v7707 = vld [vmem:[%s5 + $0x7b0] sm:$0xff]
        %v7708 = vld [vmem:[%s5 + $0x7b8] sm:$0xff]
        %v7709 = vld [vmem:[%s5 + $0x7c0] sm:$0xff]
        %v7710 = vld [vmem:[%s5 + $0x7c8] sm:$0xff]
        %v7711 = vld [vmem:[%s5 + $0x7d0] sm:$0xff]
        %v7712 = vld [vmem:[%s5 + $0x7d8] sm:$0xff]
        %v7713 = vld [vmem:[%s5 + $0x7e0] sm:$0xff]
        %v7714 = vld [vmem:[%s5 + $0x7e8] sm:$0xff]
        %v7715 = vld [vmem:[%s5 + $0x7f0] sm:$0xff]
        %v7716 = vld [vmem:[%s5 + $0x7f8] sm:$0xff]
        %v7717 = vld [vmem:[%s5 + $0x800] sm:$0xff]
        %v7718 = vld [vmem:[%s5 + $0x808] sm:$0xff]
        %v7719 = vld [vmem:[%s5 + $0x810] sm:$0xff]
        %v7720 = vld [vmem:[%s5 + $0x818] sm:$0xff]
        %v7721 = vld [vmem:[%s5 + $0x820] sm:$0xff]
        %v7722 = vld [vmem:[%s5 + $0x828] sm:$0xff]
        %v7723 = vld [vmem:[%s5 + $0x830] sm:$0xff]
        %v7724 = vld [vmem:[%s5 + $0x838] sm:$0xff]
        %v7725 = vld [vmem:[%s5 + $0x840] sm:$0xff]
        %v7726 = vld [vmem:[%s5 + $0x848] sm:$0xff]
        %v7727 = vld [vmem:[%s5 + $0x850] sm:$0xff]
        %v7728 = vld [vmem:[%s5 + $0x858] sm:$0xff]
        %v7729 = vld [vmem:[%s5 + $0x860] sm:$0xff]
        %v7730 = vld [vmem:[%s5 + $0x868] sm:$0xff]
        %v7731 = vld [vmem:[%s5 + $0x870] sm:$0xff]
        %v7732 = vld [vmem:[%s5 + $0x878] sm:$0xff]
        %v7733 = vld [vmem:[%s5 + $0x880] sm:$0xff]
        %v7734 = vld [vmem:[%s5 + $0x888] sm:$0xff]
        %v7735 = vld [vmem:[%s5 + $0x890] sm:$0xff]
        %v7736 = vld [vmem:[%s5 + $0x898] sm:$0xff]
        %v7737 = vld [vmem:[%s5 + $0x8a0] sm:$0xff]
        %v7738 = vld [vmem:[%s5 + $0x8a8] sm:$0xff]
        %v7739 = vld [vmem:[%s5 + $0x8b0] sm:$0xff]
        %v7740 = vld [vmem:[%s5 + $0x8b8] sm:$0xff]
        %v7741 = vld [vmem:[%s5 + $0x8c0] sm:$0xff]
        %v7742 = vld [vmem:[%s5 + $0x8c8] sm:$0xff]
        %v7743 = vld [vmem:[%s5 + $0x8d0] sm:$0xff]
        %v7744 = vld [vmem:[%s5 + $0x8d8] sm:$0xff]
        %v7745 = vld [vmem:[%s5 + $0x8e0] sm:$0xff]
        %v7746 = vld [vmem:[%s5 + $0x8e8] sm:$0xff]
        %v7747 = vld [vmem:[%s5 + $0x8f0] sm:$0xff]
        %v7748 = vld [vmem:[%s5 + $0x8f8] sm:$0xff]
        %v7749 = vld [vmem:[%s5 + $0x900] sm:$0xff]
        %v7750 = vld [vmem:[%s5 + $0x908] sm:$0xff]
        %v7751 = vld [vmem:[%s5 + $0x910] sm:$0xff]
        %v7752 = vld [vmem:[%s5 + $0x918] sm:$0xff]
        %v7753 = vld [vmem:[%s5 + $0x920] sm:$0xff]
        %v7754 = vld [vmem:[%s5 + $0x928] sm:$0xff]
        %v7755 = vld [vmem:[%s5 + $0x930] sm:$0xff]
        %v7756 = vld [vmem:[%s5 + $0x938] sm:$0xff]
        %v7757 = vld [vmem:[%s5 + $0x940] sm:$0xff]
        %v7758 = vld [vmem:[%s5 + $0x948] sm:$0xff]
        %v7759 = vld [vmem:[%s5 + $0x950] sm:$0xff]
        %v7760 = vld [vmem:[%s5 + $0x958] sm:$0xff]
        %v7761 = vld [vmem:[%s5 + $0x960] sm:$0xff]
        %v7762 = vld [vmem:[%s5 + $0x968] sm:$0xff]
        %v7763 = vld [vmem:[%s5 + $0x970] sm:$0xff]
        %v7764 = vld [vmem:[%s5 + $0x978] sm:$0xff]
        %v7765 = vld [vmem:[%s5 + $0x980] sm:$0xff]
        %v7766 = vld [vmem:[%s5 + $0x988] sm:$0xff]
        %v7767 = vld [vmem:[%s5 + $0x990] sm:$0xff]
        %v7768 = vld [vmem:[%s5 + $0x998] sm:$0xff]
        %v7769 = vld [vmem:[%s5 + $0x9a0] sm:$0xff]
        %v7770 = vld [vmem:[%s5 + $0x9a8] sm:$0xff]
        %v7771 = vld [vmem:[%s5 + $0x9b0] sm:$0xff]
        %v7772 = vld [vmem:[%s5 + $0x9b8] sm:$0xff]
        %v7773 = vld [vmem:[%s5 + $0x9c0] sm:$0xff]
        %v7774 = vld [vmem:[%s5 + $0x9c8] sm:$0xff]
        %v7775 = vld [vmem:[%s5 + $0x9d0] sm:$0xff]
        %v7776 = vld [vmem:[%s5 + $0x9d8] sm:$0xff]
        %v7777 = vld [vmem:[%s5 + $0x9e0] sm:$0xff]
        %v7778 = vld [vmem:[%s5 + $0x9e8] sm:$0xff]
        %v7779 = vld [vmem:[%s5 + $0x9f0] sm:$0xff]
        %v7780 = vld [vmem:[%s5 + $0x9f8] sm:$0xff]
        %v7781 = vld [vmem:[%s5 + $0xa00] sm:$0xff]
        %v7782 = vld [vmem:[%s5 + $0xa08] sm:$0xff]
        %v7783 = vld [vmem:[%s5 + $0xa10] sm:$0xff]
        %v7784 = vld [vmem:[%s5 + $0xa18] sm:$0xff]
        %v7785 = vld [vmem:[%s6] sm:$0x3]
        %v8110 = vunpack.c.l.b16 %v7461
        %v8111 = vunpack.c.h.b16 %v7461
        %v8112 = vunpack.c.l.b16 %v7462
        %v8113 = vunpack.c.h.b16 %v7462
        %v8114 = vunpack.c.l.b16 %v7463
        %v8115 = vunpack.c.h.b16 %v7463
        %v8116 = vunpack.c.l.b16 %v7464
        %v8117 = vunpack.c.h.b16 %v7464
        %v8118 = vunpack.c.l.b16 %v7465
        %v8119 = vunpack.c.h.b16 %v7465
        %v8120 = vunpack.c.l.b16 %v7466
        %v8121 = vunpack.c.h.b16 %v7466
        %v8122 = vunpack.c.l.b16 %v7467
        %v8123 = vunpack.c.h.b16 %v7467
        %v8124 = vunpack.c.l.b16 %v7468
        %v8125 = vunpack.c.h.b16 %v7468
        %v8126 = vunpack.c.l.b16 %v7469
        %v8127 = vunpack.c.h.b16 %v7469
        %v8128 = vunpack.c.l.b16 %v7470
        %v8129 = vunpack.c.h.b16 %v7470
        %v8130 = vunpack.c.l.b16 %v7471
        %v8131 = vunpack.c.h.b16 %v7471
        %v8132 = vunpack.c.l.b16 %v7472
        %v8133 = vunpack.c.h.b16 %v7472
        %v8134 = vunpack.c.l.b16 %v7473
        %v8135 = vunpack.c.h.b16 %v7473
        %v8136 = vunpack.c.l.b16 %v7474
        %v8137 = vunpack.c.h.b16 %v7474
        %v8138 = vunpack.c.l.b16 %v7475
        %v8139 = vunpack.c.h.b16 %v7475
        %v8140 = vunpack.c.l.b16 %v7476
        %v8141 = vunpack.c.h.b16 %v7476
        %v8142 = vunpack.c.l.b16 %v7477
        %v8143 = vunpack.c.h.b16 %v7477
        %v8144 = vunpack.c.l.b16 %v7478
        %v8145 = vunpack.c.h.b16 %v7478
        %v8146 = vunpack.c.l.b16 %v7479
        %v8147 = vunpack.c.h.b16 %v7479
        %v8148 = vunpack.c.l.b16 %v7480
        %v8149 = vunpack.c.h.b16 %v7480
        %v8150 = vunpack.c.l.b16 %v7481
        %v8151 = vunpack.c.h.b16 %v7481
        %v8152 = vunpack.c.l.b16 %v7482
        %v8153 = vunpack.c.h.b16 %v7482
        %v8154 = vunpack.c.l.b16 %v7483
        %v8155 = vunpack.c.h.b16 %v7483
        %v8156 = vunpack.c.l.b16 %v7484
        %v8157 = vunpack.c.h.b16 %v7484
        %v8158 = vunpack.c.l.b16 %v7485
        %v8159 = vunpack.c.h.b16 %v7485
        %v8160 = vunpack.c.l.b16 %v7486
        %v8161 = vunpack.c.h.b16 %v7486
        %v8162 = vunpack.c.l.b16 %v7487
        %v8163 = vunpack.c.h.b16 %v7487
        %v8164 = vunpack.c.l.b16 %v7488
        %v8165 = vunpack.c.h.b16 %v7488
        %v8166 = vunpack.c.l.b16 %v7489
        %v8167 = vunpack.c.h.b16 %v7489
        %v8168 = vunpack.c.l.b16 %v7490
        %v8169 = vunpack.c.h.b16 %v7490
        %v8170 = vunpack.c.l.b16 %v7491
        %v8171 = vunpack.c.h.b16 %v7491
        %v8172 = vunpack.c.l.b16 %v7492
        %v8173 = vunpack.c.h.b16 %v7492
        %v8174 = vunpack.c.l.b16 %v7493
        %v8175 = vunpack.c.h.b16 %v7493
        %v8176 = vunpack.c.l.b16 %v7494
        %v8177 = vunpack.c.h.b16 %v7494
        %v8178 = vunpack.c.l.b16 %v7495
        %v8179 = vunpack.c.h.b16 %v7495
        %v8180 = vunpack.c.l.b16 %v7496
        %v8181 = vunpack.c.h.b16 %v7496
        %v8182 = vunpack.c.l.b16 %v7497
        %v8183 = vunpack.c.h.b16 %v7497
        %v8184 = vunpack.c.l.b16 %v7498
        %v8185 = vunpack.c.h.b16 %v7498
        %v8186 = vunpack.c.l.b16 %v7499
        %v8187 = vunpack.c.h.b16 %v7499
        %v8188 = vunpack.c.l.b16 %v7500
        %v8189 = vunpack.c.h.b16 %v7500
        %v8190 = vunpack.c.l.b16 %v7501
        %v8191 = vunpack.c.h.b16 %v7501
        %v8192 = vunpack.c.l.b16 %v7502
        %v8193 = vunpack.c.h.b16 %v7502
        %v8194 = vunpack.c.l.b16 %v7503
        %v8195 = vunpack.c.h.b16 %v7503
        %v8196 = vunpack.c.l.b16 %v7504
        %v8197 = vunpack.c.h.b16 %v7504
        %v8198 = vunpack.c.l.b16 %v7505
        %v8199 = vunpack.c.h.b16 %v7505
        %v8200 = vunpack.c.l.b16 %v7506
        %v8201 = vunpack.c.h.b16 %v7506
        %v8202 = vunpack.c.l.b16 %v7507
        %v8203 = vunpack.c.h.b16 %v7507
        %v8204 = vunpack.c.l.b16 %v7508
        %v8205 = vunpack.c.h.b16 %v7508
        %v8206 = vunpack.c.l.b16 %v7509
        %v8207 = vunpack.c.h.b16 %v7509
        %v8208 = vunpack.c.l.b16 %v7510
        %v8209 = vunpack.c.h.b16 %v7510
        %v8210 = vunpack.c.l.b16 %v7511
        %v8211 = vunpack.c.h.b16 %v7511
        %v8212 = vunpack.c.l.b16 %v7512
        %v8213 = vunpack.c.h.b16 %v7512
        %v8214 = vunpack.c.l.b16 %v7513
        %v8215 = vunpack.c.h.b16 %v7513
        %v8216 = vunpack.c.l.b16 %v7514
        %v8217 = vunpack.c.h.b16 %v7514
        %v8218 = vunpack.c.l.b16 %v7515
        %v8219 = vunpack.c.h.b16 %v7515
        %v8220 = vunpack.c.l.b16 %v7516
        %v8221 = vunpack.c.h.b16 %v7516
        %v8222 = vunpack.c.l.b16 %v7517
        %v8223 = vunpack.c.h.b16 %v7517
        %v8224 = vunpack.c.l.b16 %v7518
        %v8225 = vunpack.c.h.b16 %v7518
        %v8226 = vunpack.c.l.b16 %v7519
        %v8227 = vunpack.c.h.b16 %v7519
        %v8228 = vunpack.c.l.b16 %v7520
        %v8229 = vunpack.c.h.b16 %v7520
        %v8230 = vunpack.c.l.b16 %v7521
        %v8231 = vunpack.c.h.b16 %v7521
        %v8232 = vunpack.c.l.b16 %v7522
        %v8233 = vunpack.c.h.b16 %v7522
        %v8234 = vunpack.c.l.b16 %v7523
        %v8235 = vunpack.c.h.b16 %v7523
        %v8236 = vunpack.c.l.b16 %v7524
        %v8237 = vunpack.c.h.b16 %v7524
        %v8238 = vunpack.c.l.b16 %v7525
        %v8239 = vunpack.c.h.b16 %v7525
        %v8240 = vunpack.c.l.b16 %v7526
        %v8241 = vunpack.c.h.b16 %v7526
        %v8242 = vunpack.c.l.b16 %v7527
        %v8243 = vunpack.c.h.b16 %v7527
        %v8244 = vunpack.c.l.b16 %v7528
        %v8245 = vunpack.c.h.b16 %v7528
        %v8246 = vunpack.c.l.b16 %v7529
        %v8247 = vunpack.c.h.b16 %v7529
        %v8248 = vunpack.c.l.b16 %v7530
        %v8249 = vunpack.c.h.b16 %v7530
        %v8250 = vunpack.c.l.b16 %v7531
        %v8251 = vunpack.c.h.b16 %v7531
        %v8252 = vunpack.c.l.b16 %v7532
        %v8253 = vunpack.c.h.b16 %v7532
        %v8254 = vunpack.c.l.b16 %v7533
        %v8255 = vunpack.c.h.b16 %v7533
        %v8256 = vunpack.c.l.b16 %v7534
        %v8257 = vunpack.c.h.b16 %v7534
        %v8258 = vunpack.c.l.b16 %v7535
        %v8259 = vunpack.c.h.b16 %v7535
        %v8260 = vunpack.c.l.b16 %v7536
        %v8261 = vunpack.c.h.b16 %v7536
        %v8262 = vunpack.c.l.b16 %v7537
        %v8263 = vunpack.c.h.b16 %v7537
        %v8264 = vunpack.c.l.b16 %v7538
        %v8265 = vunpack.c.h.b16 %v7538
        %v8266 = vunpack.c.l.b16 %v7539
        %v8267 = vunpack.c.h.b16 %v7539
        %v8268 = vunpack.c.l.b16 %v7540
        %v8269 = vunpack.c.h.b16 %v7540
        %v8270 = vunpack.c.l.b16 %v7541
        %v8271 = vunpack.c.h.b16 %v7541
        %v8272 = vunpack.c.l.b16 %v7542
        %v8273 = vunpack.c.h.b16 %v7542
        %v8274 = vunpack.c.l.b16 %v7543
        %v8275 = vunpack.c.h.b16 %v7543
        %v8276 = vunpack.c.l.b16 %v7544
        %v8277 = vunpack.c.h.b16 %v7544
        %v8278 = vunpack.c.l.b16 %v7545
        %v8279 = vunpack.c.h.b16 %v7545
        %v8280 = vunpack.c.l.b16 %v7546
        %v8281 = vunpack.c.h.b16 %v7546
        %v8282 = vunpack.c.l.b16 %v7547
        %v8283 = vunpack.c.h.b16 %v7547
        %v8284 = vunpack.c.l.b16 %v7548
        %v8285 = vunpack.c.h.b16 %v7548
        %v8286 = vunpack.c.l.b16 %v7549
        %v8287 = vunpack.c.h.b16 %v7549
        %v8288 = vunpack.c.l.b16 %v7550
        %v8289 = vunpack.c.h.b16 %v7550
        %v8290 = vunpack.c.l.b16 %v7551
        %v8291 = vunpack.c.h.b16 %v7551
        %v8292 = vunpack.c.l.b16 %v7552
        %v8293 = vunpack.c.h.b16 %v7552
        %v8294 = vunpack.c.l.b16 %v7553
        %v8295 = vunpack.c.h.b16 %v7553
        %v8296 = vunpack.c.l.b16 %v7554
        %v8297 = vunpack.c.h.b16 %v7554
        %v8298 = vunpack.c.l.b16 %v7555
        %v8299 = vunpack.c.h.b16 %v7555
        %v8300 = vunpack.c.l.b16 %v7556
        %v8301 = vunpack.c.h.b16 %v7556
        %v8302 = vunpack.c.l.b16 %v7557
        %v8303 = vunpack.c.h.b16 %v7557
        %v8304 = vunpack.c.l.b16 %v7558
        %v8305 = vunpack.c.h.b16 %v7558
        %v8306 = vunpack.c.l.b16 %v7559
        %v8307 = vunpack.c.h.b16 %v7559
        %v8308 = vunpack.c.l.b16 %v7560
        %v8309 = vunpack.c.h.b16 %v7560
        %v8310 = vunpack.c.l.b16 %v7561
        %v8311 = vunpack.c.h.b16 %v7561
        %v8312 = vunpack.c.l.b16 %v7562
        %v8313 = vunpack.c.h.b16 %v7562
        %v8314 = vunpack.c.l.b16 %v7563
        %v8315 = vunpack.c.h.b16 %v7563
        %v8316 = vunpack.c.l.b16 %v7564
        %v8317 = vunpack.c.h.b16 %v7564
        %v8318 = vunpack.c.l.b16 %v7565
        %v8319 = vunpack.c.h.b16 %v7565
        %v8320 = vunpack.c.l.b16 %v7566
        %v8321 = vunpack.c.h.b16 %v7566
        %v8322 = vunpack.c.l.b16 %v7567
        %v8323 = vunpack.c.h.b16 %v7567
        %v8324 = vunpack.c.l.b16 %v7568
        %v8325 = vunpack.c.h.b16 %v7568
        %v8326 = vunpack.c.l.b16 %v7569
        %v8327 = vunpack.c.h.b16 %v7569
        %v8328 = vunpack.c.l.b16 %v7570
        %v8329 = vunpack.c.h.b16 %v7570
        %v8330 = vunpack.c.l.b16 %v7571
        %v8331 = vunpack.c.h.b16 %v7571
        %v8332 = vunpack.c.l.b16 %v7572
        %v8333 = vunpack.c.h.b16 %v7572
        %v8334 = vunpack.c.l.b16 %v7573
        %v8335 = vunpack.c.h.b16 %v7573
        %v8336 = vunpack.c.l.b16 %v7574
        %v8337 = vunpack.c.h.b16 %v7574
        %v8338 = vunpack.c.l.b16 %v7575
        %v8339 = vunpack.c.h.b16 %v7575
        %v8340 = vunpack.c.l.b16 %v7576
        %v8341 = vunpack.c.h.b16 %v7576
        %v8342 = vunpack.c.l.b16 %v7577
        %v8343 = vunpack.c.h.b16 %v7577
        %v8344 = vunpack.c.l.b16 %v7578
        %v8345 = vunpack.c.h.b16 %v7578
        %v8346 = vunpack.c.l.b16 %v7579
        %v8347 = vunpack.c.h.b16 %v7579
        %v8348 = vunpack.c.l.b16 %v7580
        %v8349 = vunpack.c.h.b16 %v7580
        %v8350 = vunpack.c.l.b16 %v7581
        %v8351 = vunpack.c.h.b16 %v7581
        %v8352 = vunpack.c.l.b16 %v7582
        %v8353 = vunpack.c.h.b16 %v7582
        %v8354 = vunpack.c.l.b16 %v7583
        %v8355 = vunpack.c.h.b16 %v7583
        %v8356 = vunpack.c.l.b16 %v7584
        %v8357 = vunpack.c.h.b16 %v7584
        %v8358 = vunpack.c.l.b16 %v7585
        %v8359 = vunpack.c.h.b16 %v7585
        %v8360 = vunpack.c.l.b16 %v7586
        %v8361 = vunpack.c.h.b16 %v7586
        %v8362 = vunpack.c.l.b16 %v7587
        %v8363 = vunpack.c.h.b16 %v7587
        %v8364 = vunpack.c.l.b16 %v7588
        %v8365 = vunpack.c.h.b16 %v7588
        %v8366 = vunpack.c.l.b16 %v7589
        %v8367 = vunpack.c.h.b16 %v7589
        %v8368 = vunpack.c.l.b16 %v7590
        %v8369 = vunpack.c.h.b16 %v7590
        %v8370 = vunpack.c.l.b16 %v7591
        %v8371 = vunpack.c.h.b16 %v7591
        %v8372 = vunpack.c.l.b16 %v7592
        %v8373 = vunpack.c.h.b16 %v7592
        %v8374 = vunpack.c.l.b16 %v7593
        %v8375 = vunpack.c.h.b16 %v7593
        %v8376 = vunpack.c.l.b16 %v7594
        %v8377 = vunpack.c.h.b16 %v7594
        %v8378 = vunpack.c.l.b16 %v7595
        %v8379 = vunpack.c.h.b16 %v7595
        %v8380 = vunpack.c.l.b16 %v7596
        %v8381 = vunpack.c.h.b16 %v7596
        %v8382 = vunpack.c.l.b16 %v7597
        %v8383 = vunpack.c.h.b16 %v7597
        %v8384 = vunpack.c.l.b16 %v7598
        %v8385 = vunpack.c.h.b16 %v7598
        %v8386 = vunpack.c.l.b16 %v7599
        %v8387 = vunpack.c.h.b16 %v7599
        %v8388 = vunpack.c.l.b16 %v7600
        %v8389 = vunpack.c.h.b16 %v7600
        %v8390 = vunpack.c.l.b16 %v7601
        %v8391 = vunpack.c.h.b16 %v7601
        %v8392 = vunpack.c.l.b16 %v7602
        %v8393 = vunpack.c.h.b16 %v7602
        %v8394 = vunpack.c.l.b16 %v7603
        %v8395 = vunpack.c.h.b16 %v7603
        %v8396 = vunpack.c.l.b16 %v7604
        %v8397 = vunpack.c.h.b16 %v7604
        %v8398 = vunpack.c.l.b16 %v7605
        %v8399 = vunpack.c.h.b16 %v7605
        %v8400 = vunpack.c.l.b16 %v7606
        %v8401 = vunpack.c.h.b16 %v7606
        %v8402 = vunpack.c.l.b16 %v7607
        %v8403 = vunpack.c.h.b16 %v7607
        %v8404 = vunpack.c.l.b16 %v7608
        %v8405 = vunpack.c.h.b16 %v7608
        %v8406 = vunpack.c.l.b16 %v7609
        %v8407 = vunpack.c.h.b16 %v7609
        %v8408 = vunpack.c.l.b16 %v7610
        %v8409 = vunpack.c.h.b16 %v7610
        %v8410 = vunpack.c.l.b16 %v7611
        %v8411 = vunpack.c.h.b16 %v7611
        %v8412 = vunpack.c.l.b16 %v7612
        %v8413 = vunpack.c.h.b16 %v7612
        %v8414 = vunpack.c.l.b16 %v7613
        %v8415 = vunpack.c.h.b16 %v7613
        %v8416 = vunpack.c.l.b16 %v7614
        %v8417 = vunpack.c.h.b16 %v7614
        %v8418 = vunpack.c.l.b16 %v7615
        %v8419 = vunpack.c.h.b16 %v7615
        %v8420 = vunpack.c.l.b16 %v7616
        %v8421 = vunpack.c.h.b16 %v7616
        %v8422 = vunpack.c.l.b16 %v7617
        %v8423 = vunpack.c.h.b16 %v7617
        %v8424 = vunpack.c.l.b16 %v7618
        %v8425 = vunpack.c.h.b16 %v7618
        %v8426 = vunpack.c.l.b16 %v7619
        %v8427 = vunpack.c.h.b16 %v7619
        %v8428 = vunpack.c.l.b16 %v7620
        %v8429 = vunpack.c.h.b16 %v7620
        %v8430 = vunpack.c.l.b16 %v7621
        %v8431 = vunpack.c.h.b16 %v7621
        %v8432 = vunpack.c.l.b16 %v7622
        %v8433 = vunpack.c.h.b16 %v7622
        %v8434 = vunpack.c.l.b16 %v7623
        %v8435 = vunpack.c.h.b16 %v7623
        %v8436 = vunpack.c.l.b16 %v7624
        %v8437 = vunpack.c.h.b16 %v7624
        %v8438 = vunpack.c.l.b16 %v7625
        %v8439 = vunpack.c.h.b16 %v7625
        %v8440 = vunpack.c.l.b16 %v7626
        %v8441 = vunpack.c.h.b16 %v7626
        %v8442 = vunpack.c.l.b16 %v7627
        %v8443 = vunpack.c.h.b16 %v7627
        %v8444 = vunpack.c.l.b16 %v7628
        %v8445 = vunpack.c.h.b16 %v7628
        %v8446 = vunpack.c.l.b16 %v7629
        %v8447 = vunpack.c.h.b16 %v7629
        %v8448 = vunpack.c.l.b16 %v7630
        %v8449 = vunpack.c.h.b16 %v7630
        %v8450 = vunpack.c.l.b16 %v7631
        %v8451 = vunpack.c.h.b16 %v7631
        %v8452 = vunpack.c.l.b16 %v7632
        %v8453 = vunpack.c.h.b16 %v7632
        %v8454 = vunpack.c.l.b16 %v7633
        %v8455 = vunpack.c.h.b16 %v7633
        %v8456 = vunpack.c.l.b16 %v7634
        %v8457 = vunpack.c.h.b16 %v7634
        %v8458 = vunpack.c.l.b16 %v7635
        %v8459 = vunpack.c.h.b16 %v7635
        %v8460 = vunpack.c.l.b16 %v7636
        %v8461 = vunpack.c.h.b16 %v7636
        %v8462 = vunpack.c.l.b16 %v7637
        %v8463 = vunpack.c.h.b16 %v7637
        %v8464 = vunpack.c.l.b16 %v7638
        %v8465 = vunpack.c.h.b16 %v7638
        %v8466 = vunpack.c.l.b16 %v7639
        %v8467 = vunpack.c.h.b16 %v7639
        %v8468 = vunpack.c.l.b16 %v7640
        %v8469 = vunpack.c.h.b16 %v7640
        %v8470 = vunpack.c.l.b16 %v7641
        %v8471 = vunpack.c.h.b16 %v7641
        %v8472 = vunpack.c.l.b16 %v7642
        %v8473 = vunpack.c.h.b16 %v7642
        %v8474 = vunpack.c.l.b16 %v7643
        %v8475 = vunpack.c.h.b16 %v7643
        %v8476 = vunpack.c.l.b16 %v7644
        %v8477 = vunpack.c.h.b16 %v7644
        %v8478 = vunpack.c.l.b16 %v7645
        %v8479 = vunpack.c.h.b16 %v7645
        %v8480 = vunpack.c.l.b16 %v7646
        %v8481 = vunpack.c.h.b16 %v7646
        %v8482 = vunpack.c.l.b16 %v7647
        %v8483 = vunpack.c.h.b16 %v7647
        %v8484 = vunpack.c.l.b16 %v7648
        %v8485 = vunpack.c.h.b16 %v7648
        %v8486 = vunpack.c.l.b16 %v7649
        %v8487 = vunpack.c.h.b16 %v7649
        %v8488 = vunpack.c.l.b16 %v7650
        %v8489 = vunpack.c.h.b16 %v7650
        %v8490 = vunpack.c.l.b16 %v7651
        %v8491 = vunpack.c.h.b16 %v7651
        %v8492 = vunpack.c.l.b16 %v7652
        %v8493 = vunpack.c.h.b16 %v7652
        %v8494 = vunpack.c.l.b16 %v7653
        %v8495 = vunpack.c.h.b16 %v7653
        %v8496 = vunpack.c.l.b16 %v7654
        %v8497 = vunpack.c.h.b16 %v7654
        %v8498 = vunpack.c.l.b16 %v7655
        %v8499 = vunpack.c.h.b16 %v7655
        %v8500 = vunpack.c.l.b16 %v7656
        %v8501 = vunpack.c.h.b16 %v7656
        %v8502 = vunpack.c.l.b16 %v7657
        %v8503 = vunpack.c.h.b16 %v7657
        %v8504 = vunpack.c.l.b16 %v7658
        %v8505 = vunpack.c.h.b16 %v7658
        %v8506 = vunpack.c.l.b16 %v7659
        %v8507 = vunpack.c.h.b16 %v7659
        %v8508 = vunpack.c.l.b16 %v7660
        %v8509 = vunpack.c.h.b16 %v7660
        %v8510 = vunpack.c.l.b16 %v7661
        %v8511 = vunpack.c.h.b16 %v7661
        %v8512 = vunpack.c.l.b16 %v7662
        %v8513 = vunpack.c.h.b16 %v7662
        %v8514 = vunpack.c.l.b16 %v7663
        %v8515 = vunpack.c.h.b16 %v7663
        %v8516 = vunpack.c.l.b16 %v7664
        %v8517 = vunpack.c.h.b16 %v7664
        %v8518 = vunpack.c.l.b16 %v7665
        %v8519 = vunpack.c.h.b16 %v7665
        %v8520 = vunpack.c.l.b16 %v7666
        %v8521 = vunpack.c.h.b16 %v7666
        %v8522 = vunpack.c.l.b16 %v7667
        %v8523 = vunpack.c.h.b16 %v7667
        %v8524 = vunpack.c.l.b16 %v7668
        %v8525 = vunpack.c.h.b16 %v7668
        %v8526 = vunpack.c.l.b16 %v7669
        %v8527 = vunpack.c.h.b16 %v7669
        %v8528 = vunpack.c.l.b16 %v7670
        %v8529 = vunpack.c.h.b16 %v7670
        %v8530 = vunpack.c.l.b16 %v7671
        %v8531 = vunpack.c.h.b16 %v7671
        %v8532 = vunpack.c.l.b16 %v7672
        %v8533 = vunpack.c.h.b16 %v7672
        %v8534 = vunpack.c.l.b16 %v7673
        %v8535 = vunpack.c.h.b16 %v7673
        %v8536 = vunpack.c.l.b16 %v7674
        %v8537 = vunpack.c.h.b16 %v7674
        %v8538 = vunpack.c.l.b16 %v7675
        %v8539 = vunpack.c.h.b16 %v7675
        %v8540 = vunpack.c.l.b16 %v7676
        %v8541 = vunpack.c.h.b16 %v7676
        %v8542 = vunpack.c.l.b16 %v7677
        %v8543 = vunpack.c.h.b16 %v7677
        %v8544 = vunpack.c.l.b16 %v7678
        %v8545 = vunpack.c.h.b16 %v7678
        %v8546 = vunpack.c.l.b16 %v7679
        %v8547 = vunpack.c.h.b16 %v7679
        %v8548 = vunpack.c.l.b16 %v7680
        %v8549 = vunpack.c.h.b16 %v7680
        %v8550 = vunpack.c.l.b16 %v7681
        %v8551 = vunpack.c.h.b16 %v7681
        %v8552 = vunpack.c.l.b16 %v7682
        %v8553 = vunpack.c.h.b16 %v7682
        %v8554 = vunpack.c.l.b16 %v7683
        %v8555 = vunpack.c.h.b16 %v7683
        %v8556 = vunpack.c.l.b16 %v7684
        %v8557 = vunpack.c.h.b16 %v7684
        %v8558 = vunpack.c.l.b16 %v7685
        %v8559 = vunpack.c.h.b16 %v7685
        %v8560 = vunpack.c.l.b16 %v7686
        %v8561 = vunpack.c.h.b16 %v7686
        %v8562 = vunpack.c.l.b16 %v7687
        %v8563 = vunpack.c.h.b16 %v7687
        %v8564 = vunpack.c.l.b16 %v7688
        %v8565 = vunpack.c.h.b16 %v7688
        %v8566 = vunpack.c.l.b16 %v7689
        %v8567 = vunpack.c.h.b16 %v7689
        %v8568 = vunpack.c.l.b16 %v7690
        %v8569 = vunpack.c.h.b16 %v7690
        %v8570 = vunpack.c.l.b16 %v7691
        %v8571 = vunpack.c.h.b16 %v7691
        %v8572 = vunpack.c.l.b16 %v7692
        %v8573 = vunpack.c.h.b16 %v7692
        %v8574 = vunpack.c.l.b16 %v7693
        %v8575 = vunpack.c.h.b16 %v7693
        %v8576 = vunpack.c.l.b16 %v7694
        %v8577 = vunpack.c.h.b16 %v7694
        %v8578 = vunpack.c.l.b16 %v7695
        %v8579 = vunpack.c.h.b16 %v7695
        %v8580 = vunpack.c.l.b16 %v7696
        %v8581 = vunpack.c.h.b16 %v7696
        %v8582 = vunpack.c.l.b16 %v7697
        %v8583 = vunpack.c.h.b16 %v7697
        %v8584 = vunpack.c.l.b16 %v7698
        %v8585 = vunpack.c.h.b16 %v7698
        %v8586 = vunpack.c.l.b16 %v7699
        %v8587 = vunpack.c.h.b16 %v7699
        %v8588 = vunpack.c.l.b16 %v7700
        %v8589 = vunpack.c.h.b16 %v7700
        %v8590 = vunpack.c.l.b16 %v7701
        %v8591 = vunpack.c.h.b16 %v7701
        %v8592 = vunpack.c.l.b16 %v7702
        %v8593 = vunpack.c.h.b16 %v7702
        %v8594 = vunpack.c.l.b16 %v7703
        %v8595 = vunpack.c.h.b16 %v7703
        %v8596 = vunpack.c.l.b16 %v7704
        %v8597 = vunpack.c.h.b16 %v7704
        %v8598 = vunpack.c.l.b16 %v7705
        %v8599 = vunpack.c.h.b16 %v7705
        %v8600 = vunpack.c.l.b16 %v7706
        %v8601 = vunpack.c.h.b16 %v7706
        %v8602 = vunpack.c.l.b16 %v7707
        %v8603 = vunpack.c.h.b16 %v7707
        %v8604 = vunpack.c.l.b16 %v7708
        %v8605 = vunpack.c.h.b16 %v7708
        %v8606 = vunpack.c.l.b16 %v7709
        %v8607 = vunpack.c.h.b16 %v7709
        %v8608 = vunpack.c.l.b16 %v7710
        %v8609 = vunpack.c.h.b16 %v7710
        %v8610 = vunpack.c.l.b16 %v7711
        %v8611 = vunpack.c.h.b16 %v7711
        %v8612 = vunpack.c.l.b16 %v7712
        %v8613 = vunpack.c.h.b16 %v7712
        %v8614 = vunpack.c.l.b16 %v7713
        %v8615 = vunpack.c.h.b16 %v7713
        %v8616 = vunpack.c.l.b16 %v7714
        %v8617 = vunpack.c.h.b16 %v7714
        %v8618 = vunpack.c.l.b16 %v7715
        %v8619 = vunpack.c.h.b16 %v7715
        %v8620 = vunpack.c.l.b16 %v7716
        %v8621 = vunpack.c.h.b16 %v7716
        %v8622 = vunpack.c.l.b16 %v7717
        %v8623 = vunpack.c.h.b16 %v7717
        %v8624 = vunpack.c.l.b16 %v7718
        %v8625 = vunpack.c.h.b16 %v7718
        %v8626 = vunpack.c.l.b16 %v7719
        %v8627 = vunpack.c.h.b16 %v7719
        %v8628 = vunpack.c.l.b16 %v7720
        %v8629 = vunpack.c.h.b16 %v7720
        %v8630 = vunpack.c.l.b16 %v7721
        %v8631 = vunpack.c.h.b16 %v7721
        %v8632 = vunpack.c.l.b16 %v7722
        %v8633 = vunpack.c.h.b16 %v7722
        %v8634 = vunpack.c.l.b16 %v7723
        %v8635 = vunpack.c.h.b16 %v7723
        %v8636 = vunpack.c.l.b16 %v7724
        %v8637 = vunpack.c.h.b16 %v7724
        %v8638 = vunpack.c.l.b16 %v7725
        %v8639 = vunpack.c.h.b16 %v7725
        %v8640 = vunpack.c.l.b16 %v7726
        %v8641 = vunpack.c.h.b16 %v7726
        %v8642 = vunpack.c.l.b16 %v7727
        %v8643 = vunpack.c.h.b16 %v7727
        %v8644 = vunpack.c.l.b16 %v7728
        %v8645 = vunpack.c.h.b16 %v7728
        %v8646 = vunpack.c.l.b16 %v7729
        %v8647 = vunpack.c.h.b16 %v7729
        %v8648 = vunpack.c.l.b16 %v7730
        %v8649 = vunpack.c.h.b16 %v7730
        %v8650 = vunpack.c.l.b16 %v7731
        %v8651 = vunpack.c.h.b16 %v7731
        %v8652 = vunpack.c.l.b16 %v7732
        %v8653 = vunpack.c.h.b16 %v7732
        %v8654 = vunpack.c.l.b16 %v7733
        %v8655 = vunpack.c.h.b16 %v7733
        %v8656 = vunpack.c.l.b16 %v7734
        %v8657 = vunpack.c.h.b16 %v7734
        %v8658 = vunpack.c.l.b16 %v7735
        %v8659 = vunpack.c.h.b16 %v7735
        %v8660 = vunpack.c.l.b16 %v7736
        %v8661 = vunpack.c.h.b16 %v7736
        %v8662 = vunpack.c.l.b16 %v7737
        %v8663 = vunpack.c.h.b16 %v7737
        %v8664 = vunpack.c.l.b16 %v7738
        %v8665 = vunpack.c.h.b16 %v7738
        %v8666 = vunpack.c.l.b16 %v7739
        %v8667 = vunpack.c.h.b16 %v7739
        %v8668 = vunpack.c.l.b16 %v7740
        %v8669 = vunpack.c.h.b16 %v7740
        %v8670 = vunpack.c.l.b16 %v7741
        %v8671 = vunpack.c.h.b16 %v7741
        %v8672 = vunpack.c.l.b16 %v7742
        %v8673 = vunpack.c.h.b16 %v7742
        %v8674 = vunpack.c.l.b16 %v7743
        %v8675 = vunpack.c.h.b16 %v7743
        %v8676 = vunpack.c.l.b16 %v7744
        %v8677 = vunpack.c.h.b16 %v7744
        %v8678 = vunpack.c.l.b16 %v7745
        %v8679 = vunpack.c.h.b16 %v7745
        %v8680 = vunpack.c.l.b16 %v7746
        %v8681 = vunpack.c.h.b16 %v7746
        %v8682 = vunpack.c.l.b16 %v7747
        %v8683 = vunpack.c.h.b16 %v7747
        %v8684 = vunpack.c.l.b16 %v7748
        %v8685 = vunpack.c.h.b16 %v7748
        %v8686 = vunpack.c.l.b16 %v7749
        %v8687 = vunpack.c.h.b16 %v7749
        %v8688 = vunpack.c.l.b16 %v7750
        %v8689 = vunpack.c.h.b16 %v7750
        %v8690 = vunpack.c.l.b16 %v7751
        %v8691 = vunpack.c.h.b16 %v7751
        %v8692 = vunpack.c.l.b16 %v7752
        %v8693 = vunpack.c.h.b16 %v7752
        %v8694 = vunpack.c.l.b16 %v7753
        %v8695 = vunpack.c.h.b16 %v7753
        %v8696 = vunpack.c.l.b16 %v7754
        %v8697 = vunpack.c.h.b16 %v7754
        %v8698 = vunpack.c.l.b16 %v7755
        %v8699 = vunpack.c.h.b16 %v7755
        %v8700 = vunpack.c.l.b16 %v7756
        %v8701 = vunpack.c.h.b16 %v7756
        %v8702 = vunpack.c.l.b16 %v7757
        %v8703 = vunpack.c.h.b16 %v7757
        %v8704 = vunpack.c.l.b16 %v7758
        %v8705 = vunpack.c.h.b16 %v7758
        %v8706 = vunpack.c.l.b16 %v7759
        %v8707 = vunpack.c.h.b16 %v7759
        %v8708 = vunpack.c.l.b16 %v7760
        %v8709 = vunpack.c.h.b16 %v7760
        %v8710 = vunpack.c.l.b16 %v7761
        %v8711 = vunpack.c.h.b16 %v7761
        %v8712 = vunpack.c.l.b16 %v7762
        %v8713 = vunpack.c.h.b16 %v7762
        %v8714 = vunpack.c.l.b16 %v7763
        %v8715 = vunpack.c.h.b16 %v7763
        %v8716 = vunpack.c.l.b16 %v7764
        %v8717 = vunpack.c.h.b16 %v7764
        %v8718 = vunpack.c.l.b16 %v7765
        %v8719 = vunpack.c.h.b16 %v7765
        %v8720 = vunpack.c.l.b16 %v7766
        %v8721 = vunpack.c.h.b16 %v7766
        %v8722 = vunpack.c.l.b16 %v7767
        %v8723 = vunpack.c.h.b16 %v7767
        %v8724 = vunpack.c.l.b16 %v7768
        %v8725 = vunpack.c.h.b16 %v7768
        %v8726 = vunpack.c.l.b16 %v7769
        %v8727 = vunpack.c.h.b16 %v7769
        %v8728 = vunpack.c.l.b16 %v7770
        %v8729 = vunpack.c.h.b16 %v7770
        %v8730 = vunpack.c.l.b16 %v7771
        %v8731 = vunpack.c.h.b16 %v7771
        %v8732 = vunpack.c.l.b16 %v7772
        %v8733 = vunpack.c.h.b16 %v7772
        %v8734 = vunpack.c.l.b16 %v7773
        %v8735 = vunpack.c.h.b16 %v7773
        %v8736 = vunpack.c.l.b16 %v7774
        %v8737 = vunpack.c.h.b16 %v7774
        %v8738 = vunpack.c.l.b16 %v7775
        %v8739 = vunpack.c.h.b16 %v7775
        %v8740 = vunpack.c.l.b16 %v7776
        %v8741 = vunpack.c.h.b16 %v7776
        %v8742 = vunpack.c.l.b16 %v7777
        %v8743 = vunpack.c.h.b16 %v7777
        %v8744 = vunpack.c.l.b16 %v7778
        %v8745 = vunpack.c.h.b16 %v7778
        %v8746 = vunpack.c.l.b16 %v7779
        %v8747 = vunpack.c.h.b16 %v7779
        %v8748 = vunpack.c.l.b16 %v7780
        %v8749 = vunpack.c.h.b16 %v7780
        %v8750 = vunpack.c.l.b16 %v7781
        %v8751 = vunpack.c.h.b16 %v7781
        %v8752 = vunpack.c.l.b16 %v7782
        %v8753 = vunpack.c.h.b16 %v7782
        %v8754 = vunpack.c.l.b16 %v7783
        %v8755 = vunpack.c.h.b16 %v7783
        %v8756 = vunpack.c.l.b16 %v7784
        %v8757 = vunpack.c.h.b16 %v7784
        %v8758 = vpack.c.b16 %v8112, %v8110
        %v8759 = vpack.c.b16 %v8113, %v8111
        %v8760 = vpack.c.b16 %v8116, %v8114
        %v8761 = vpack.c.b16 %v8117, %v8115
        %v8762 = vpack.c.b16 %v8120, %v8118
        %v8763 = vpack.c.b16 %v8121, %v8119
        %v8764 = vpack.c.b16 %v8124, %v8122
        %v8765 = vpack.c.b16 %v8125, %v8123
        %v8766 = vpack.c.b16 %v8128, %v8126
        %v8767 = vpack.c.b16 %v8129, %v8127
        %v8768 = vpack.c.b16 %v8132, %v8130
        %v8769 = vpack.c.b16 %v8133, %v8131
        %v8770 = vpack.c.b16 %v8136, %v8134
        %v8771 = vpack.c.b16 %v8137, %v8135
        %v8772 = vpack.c.b16 %v8140, %v8138
        %v8773 = vpack.c.b16 %v8141, %v8139
        %v8774 = vpack.c.b16 %v8144, %v8142
        %v8775 = vpack.c.b16 %v8145, %v8143
        %v8776 = vpack.c.b16 %v8148, %v8146
        %v8777 = vpack.c.b16 %v8149, %v8147
        %v8778 = vpack.c.b16 %v8152, %v8150
        %v8779 = vpack.c.b16 %v8153, %v8151
        %v8780 = vpack.c.b16 %v8156, %v8154
        %v8781 = vpack.c.b16 %v8157, %v8155
        %v8782 = vpack.c.b16 %v8160, %v8158
        %v8783 = vpack.c.b16 %v8161, %v8159
        %v8784 = vpack.c.b16 %v8164, %v8162
        %v8785 = vpack.c.b16 %v8165, %v8163
        %v8786 = vpack.c.b16 %v8168, %v8166
        %v8787 = vpack.c.b16 %v8169, %v8167
        %v8788 = vpack.c.b16 %v8172, %v8170
        %v8789 = vpack.c.b16 %v8173, %v8171
        %v8790 = vpack.c.b16 %v8176, %v8174
        %v8791 = vpack.c.b16 %v8177, %v8175
        %v8792 = vpack.c.b16 %v8180, %v8178
        %v8793 = vpack.c.b16 %v8181, %v8179
        %v8794 = vpack.c.b16 %v8184, %v8182
        %v8795 = vpack.c.b16 %v8185, %v8183
        %v8796 = vpack.c.b16 %v8188, %v8186
        %v8797 = vpack.c.b16 %v8189, %v8187
        %v8798 = vpack.c.b16 %v8192, %v8190
        %v8799 = vpack.c.b16 %v8193, %v8191
        %v8800 = vpack.c.b16 %v8196, %v8194
        %v8801 = vpack.c.b16 %v8197, %v8195
        %v8802 = vpack.c.b16 %v8200, %v8198
        %v8803 = vpack.c.b16 %v8201, %v8199
        %v8804 = vpack.c.b16 %v8204, %v8202
        %v8805 = vpack.c.b16 %v8205, %v8203
        %v8806 = vpack.c.b16 %v8208, %v8206
        %v8807 = vpack.c.b16 %v8209, %v8207
        %v8808 = vpack.c.b16 %v8212, %v8210
        %v8809 = vpack.c.b16 %v8213, %v8211
        %v8810 = vpack.c.b16 %v8216, %v8214
        %v8811 = vpack.c.b16 %v8217, %v8215
        %v8812 = vpack.c.b16 %v8220, %v8218
        %v8813 = vpack.c.b16 %v8221, %v8219
        %v8814 = vpack.c.b16 %v8224, %v8222
        %v8815 = vpack.c.b16 %v8225, %v8223
        %v8816 = vpack.c.b16 %v8228, %v8226
        %v8817 = vpack.c.b16 %v8229, %v8227
        %v8818 = vpack.c.b16 %v8232, %v8230
        %v8819 = vpack.c.b16 %v8233, %v8231
        %v8820 = vpack.c.b16 %v8236, %v8234
        %v8821 = vpack.c.b16 %v8237, %v8235
        %v8822 = vpack.c.b16 %v8240, %v8238
        %v8823 = vpack.c.b16 %v8241, %v8239
        %v8824 = vpack.c.b16 %v8244, %v8242
        %v8825 = vpack.c.b16 %v8245, %v8243
        %v8826 = vpack.c.b16 %v8248, %v8246
        %v8827 = vpack.c.b16 %v8249, %v8247
        %v8828 = vpack.c.b16 %v8252, %v8250
        %v8829 = vpack.c.b16 %v8253, %v8251
        %v8830 = vpack.c.b16 %v8256, %v8254
        %v8831 = vpack.c.b16 %v8257, %v8255
        %v8832 = vpack.c.b16 %v8260, %v8258
        %v8833 = vpack.c.b16 %v8261, %v8259
        %v8834 = vpack.c.b16 %v8264, %v8262
        %v8835 = vpack.c.b16 %v8265, %v8263
        %v8836 = vpack.c.b16 %v8268, %v8266
        %v8837 = vpack.c.b16 %v8269, %v8267
        %v8838 = vpack.c.b16 %v8272, %v8270
        %v8839 = vpack.c.b16 %v8273, %v8271
        %v8840 = vpack.c.b16 %v8276, %v8274
        %v8841 = vpack.c.b16 %v8277, %v8275
        %v8842 = vpack.c.b16 %v8280, %v8278
        %v8843 = vpack.c.b16 %v8281, %v8279
        %v8844 = vpack.c.b16 %v8284, %v8282
        %v8845 = vpack.c.b16 %v8285, %v8283
        %v8846 = vpack.c.b16 %v8288, %v8286
        %v8847 = vpack.c.b16 %v8289, %v8287
        %v8848 = vpack.c.b16 %v8292, %v8290
        %v8849 = vpack.c.b16 %v8293, %v8291
        %v8850 = vpack.c.b16 %v8296, %v8294
        %v8851 = vpack.c.b16 %v8297, %v8295
        %v8852 = vpack.c.b16 %v8300, %v8298
        %v8853 = vpack.c.b16 %v8301, %v8299
        %v8854 = vpack.c.b16 %v8304, %v8302
        %v8855 = vpack.c.b16 %v8305, %v8303
        %v8856 = vpack.c.b16 %v8308, %v8306
        %v8857 = vpack.c.b16 %v8309, %v8307
        %v8858 = vpack.c.b16 %v8312, %v8310
        %v8859 = vpack.c.b16 %v8313, %v8311
        %v8860 = vpack.c.b16 %v8316, %v8314
        %v8861 = vpack.c.b16 %v8317, %v8315
        %v8862 = vpack.c.b16 %v8320, %v8318
        %v8863 = vpack.c.b16 %v8321, %v8319
        %v8864 = vpack.c.b16 %v8324, %v8322
        %v8865 = vpack.c.b16 %v8325, %v8323
        %v8866 = vpack.c.b16 %v8328, %v8326
        %v8867 = vpack.c.b16 %v8329, %v8327
        %v8868 = vpack.c.b16 %v8332, %v8330
        %v8869 = vpack.c.b16 %v8333, %v8331
        %v8870 = vpack.c.b16 %v8336, %v8334
        %v8871 = vpack.c.b16 %v8337, %v8335
        %v8872 = vpack.c.b16 %v8340, %v8338
        %v8873 = vpack.c.b16 %v8341, %v8339
        %v8874 = vpack.c.b16 %v8344, %v8342
        %v8875 = vpack.c.b16 %v8345, %v8343
        %v8876 = vpack.c.b16 %v8348, %v8346
        %v8877 = vpack.c.b16 %v8349, %v8347
        %v8878 = vpack.c.b16 %v8352, %v8350
        %v8879 = vpack.c.b16 %v8353, %v8351
        %v8880 = vpack.c.b16 %v8356, %v8354
        %v8881 = vpack.c.b16 %v8357, %v8355
        %v8882 = vpack.c.b16 %v8360, %v8358
        %v8883 = vpack.c.b16 %v8361, %v8359
        %v8884 = vpack.c.b16 %v8364, %v8362
        %v8885 = vpack.c.b16 %v8365, %v8363
        %v8886 = vpack.c.b16 %v8368, %v8366
        %v8887 = vpack.c.b16 %v8369, %v8367
        %v8888 = vpack.c.b16 %v8372, %v8370
        %v8889 = vpack.c.b16 %v8373, %v8371
        %v8890 = vpack.c.b16 %v8376, %v8374
        %v8891 = vpack.c.b16 %v8377, %v8375
        %v8892 = vpack.c.b16 %v8380, %v8378
        %v8893 = vpack.c.b16 %v8381, %v8379
        %v8894 = vpack.c.b16 %v8384, %v8382
        %v8895 = vpack.c.b16 %v8385, %v8383
        %v8896 = vpack.c.b16 %v8388, %v8386
        %v8897 = vpack.c.b16 %v8389, %v8387
        %v8898 = vpack.c.b16 %v8392, %v8390
        %v8899 = vpack.c.b16 %v8393, %v8391
        %v8900 = vpack.c.b16 %v8396, %v8394
        %v8901 = vpack.c.b16 %v8397, %v8395
        %v8902 = vpack.c.b16 %v8400, %v8398
        %v8903 = vpack.c.b16 %v8401, %v8399
        %v8904 = vpack.c.b16 %v8404, %v8402
        %v8905 = vpack.c.b16 %v8405, %v8403
        %v8906 = vpack.c.b16 %v8408, %v8406
        %v8907 = vpack.c.b16 %v8409, %v8407
        %v8908 = vpack.c.b16 %v8412, %v8410
        %v8909 = vpack.c.b16 %v8413, %v8411
        %v8910 = vpack.c.b16 %v8416, %v8414
        %v8911 = vpack.c.b16 %v8417, %v8415
        %v8912 = vpack.c.b16 %v8420, %v8418
        %v8913 = vpack.c.b16 %v8421, %v8419
        %v8914 = vpack.c.b16 %v8424, %v8422
        %v8915 = vpack.c.b16 %v8425, %v8423
        %v8916 = vpack.c.b16 %v8428, %v8426
        %v8917 = vpack.c.b16 %v8429, %v8427
        %v8918 = vpack.c.b16 %v8432, %v8430
        %v8919 = vpack.c.b16 %v8433, %v8431
        %v8920 = vpack.c.b16 %v8436, %v8434
        %v8921 = vpack.c.b16 %v8437, %v8435
        %v8922 = vpack.c.b16 %v8440, %v8438
        %v8923 = vpack.c.b16 %v8441, %v8439
        %v8924 = vpack.c.b16 %v8444, %v8442
        %v8925 = vpack.c.b16 %v8445, %v8443
        %v8926 = vpack.c.b16 %v8448, %v8446
        %v8927 = vpack.c.b16 %v8449, %v8447
        %v8928 = vpack.c.b16 %v8452, %v8450
        %v8929 = vpack.c.b16 %v8453, %v8451
        %v8930 = vpack.c.b16 %v8456, %v8454
        %v8931 = vpack.c.b16 %v8457, %v8455
        %v8932 = vpack.c.b16 %v8460, %v8458
        %v8933 = vpack.c.b16 %v8461, %v8459
        %v8934 = vpack.c.b16 %v8464, %v8462
        %v8935 = vpack.c.b16 %v8465, %v8463
        %v8936 = vpack.c.b16 %v8468, %v8466
        %v8937 = vpack.c.b16 %v8469, %v8467
        %v8938 = vpack.c.b16 %v8472, %v8470
        %v8939 = vpack.c.b16 %v8473, %v8471
        %v8940 = vpack.c.b16 %v8476, %v8474
        %v8941 = vpack.c.b16 %v8477, %v8475
        %v8942 = vpack.c.b16 %v8480, %v8478
        %v8943 = vpack.c.b16 %v8481, %v8479
        %v8944 = vpack.c.b16 %v8484, %v8482
        %v8945 = vpack.c.b16 %v8485, %v8483
        %v8946 = vpack.c.b16 %v8488, %v8486
        %v8947 = vpack.c.b16 %v8489, %v8487
        %v8948 = vpack.c.b16 %v8492, %v8490
        %v8949 = vpack.c.b16 %v8493, %v8491
        %v8950 = vpack.c.b16 %v8496, %v8494
        %v8951 = vpack.c.b16 %v8497, %v8495
        %v8952 = vpack.c.b16 %v8500, %v8498
        %v8953 = vpack.c.b16 %v8501, %v8499
        %v8954 = vpack.c.b16 %v8504, %v8502
        %v8955 = vpack.c.b16 %v8505, %v8503
        %v8956 = vpack.c.b16 %v8508, %v8506
        %v8957 = vpack.c.b16 %v8509, %v8507
        %v8958 = vpack.c.b16 %v8512, %v8510
        %v8959 = vpack.c.b16 %v8513, %v8511
        %v8960 = vpack.c.b16 %v8516, %v8514
        %v8961 = vpack.c.b16 %v8517, %v8515
        %v8962 = vpack.c.b16 %v8520, %v8518
        %v8963 = vpack.c.b16 %v8521, %v8519
        %v8964 = vpack.c.b16 %v8524, %v8522
        %v8965 = vpack.c.b16 %v8525, %v8523
        %v8966 = vpack.c.b16 %v8528, %v8526
        %v8967 = vpack.c.b16 %v8529, %v8527
        %v8968 = vpack.c.b16 %v8532, %v8530
        %v8969 = vpack.c.b16 %v8533, %v8531
        %v8970 = vpack.c.b16 %v8536, %v8534
        %v8971 = vpack.c.b16 %v8537, %v8535
        %v8972 = vpack.c.b16 %v8540, %v8538
        %v8973 = vpack.c.b16 %v8541, %v8539
        %v8974 = vpack.c.b16 %v8544, %v8542
        %v8975 = vpack.c.b16 %v8545, %v8543
        %v8976 = vpack.c.b16 %v8548, %v8546
        %v8977 = vpack.c.b16 %v8549, %v8547
        %v8978 = vpack.c.b16 %v8552, %v8550
        %v8979 = vpack.c.b16 %v8553, %v8551
        %v8980 = vpack.c.b16 %v8556, %v8554
        %v8981 = vpack.c.b16 %v8557, %v8555
        %v8982 = vpack.c.b16 %v8560, %v8558
        %v8983 = vpack.c.b16 %v8561, %v8559
        %v8984 = vpack.c.b16 %v8564, %v8562
        %v8985 = vpack.c.b16 %v8565, %v8563
        %v8986 = vpack.c.b16 %v8568, %v8566
        %v8987 = vpack.c.b16 %v8569, %v8567
        %v8988 = vpack.c.b16 %v8572, %v8570
        %v8989 = vpack.c.b16 %v8573, %v8571
        %v8990 = vpack.c.b16 %v8576, %v8574
        %v8991 = vpack.c.b16 %v8577, %v8575
        %v8992 = vpack.c.b16 %v8580, %v8578
        %v8993 = vpack.c.b16 %v8581, %v8579
        %v8994 = vpack.c.b16 %v8584, %v8582
        %v8995 = vpack.c.b16 %v8585, %v8583
        %v8996 = vpack.c.b16 %v8588, %v8586
        %v8997 = vpack.c.b16 %v8589, %v8587
        %v8998 = vpack.c.b16 %v8592, %v8590
        %v8999 = vpack.c.b16 %v8593, %v8591
        %v9000 = vpack.c.b16 %v8596, %v8594
        %v9001 = vpack.c.b16 %v8597, %v8595
        %v9002 = vpack.c.b16 %v8600, %v8598
        %v9003 = vpack.c.b16 %v8601, %v8599
        %v9004 = vpack.c.b16 %v8604, %v8602
        %v9005 = vpack.c.b16 %v8605, %v8603
        %v9006 = vpack.c.b16 %v8608, %v8606
        %v9007 = vpack.c.b16 %v8609, %v8607
        %v9008 = vpack.c.b16 %v8612, %v8610
        %v9009 = vpack.c.b16 %v8613, %v8611
        %v9010 = vpack.c.b16 %v8616, %v8614
        %v9011 = vpack.c.b16 %v8617, %v8615
        %v9012 = vpack.c.b16 %v8620, %v8618
        %v9013 = vpack.c.b16 %v8621, %v8619
        %v9014 = vpack.c.b16 %v8624, %v8622
        %v9015 = vpack.c.b16 %v8625, %v8623
        %v9016 = vpack.c.b16 %v8628, %v8626
        %v9017 = vpack.c.b16 %v8629, %v8627
        %v9018 = vpack.c.b16 %v8632, %v8630
        %v9019 = vpack.c.b16 %v8633, %v8631
        %v9020 = vpack.c.b16 %v8636, %v8634
        %v9021 = vpack.c.b16 %v8637, %v8635
        %v9022 = vpack.c.b16 %v8640, %v8638
        %v9023 = vpack.c.b16 %v8641, %v8639
        %v9024 = vpack.c.b16 %v8644, %v8642
        %v9025 = vpack.c.b16 %v8645, %v8643
        %v9026 = vpack.c.b16 %v8648, %v8646
        %v9027 = vpack.c.b16 %v8649, %v8647
        %v9028 = vpack.c.b16 %v8652, %v8650
        %v9029 = vpack.c.b16 %v8653, %v8651
        %v9030 = vpack.c.b16 %v8656, %v8654
        %v9031 = vpack.c.b16 %v8657, %v8655
        %v9032 = vpack.c.b16 %v8660, %v8658
        %v9033 = vpack.c.b16 %v8661, %v8659
        %v9034 = vpack.c.b16 %v8664, %v8662
        %v9035 = vpack.c.b16 %v8665, %v8663
        %v9036 = vpack.c.b16 %v8668, %v8666
        %v9037 = vpack.c.b16 %v8669, %v8667
        %v9038 = vpack.c.b16 %v8672, %v8670
        %v9039 = vpack.c.b16 %v8673, %v8671
        %v9040 = vpack.c.b16 %v8676, %v8674
        %v9041 = vpack.c.b16 %v8677, %v8675
        %v9042 = vpack.c.b16 %v8680, %v8678
        %v9043 = vpack.c.b16 %v8681, %v8679
        %v9044 = vpack.c.b16 %v8684, %v8682
        %v9045 = vpack.c.b16 %v8685, %v8683
        %v9046 = vpack.c.b16 %v8688, %v8686
        %v9047 = vpack.c.b16 %v8689, %v8687
        %v9048 = vpack.c.b16 %v8692, %v8690
        %v9049 = vpack.c.b16 %v8693, %v8691
        %v9050 = vpack.c.b16 %v8696, %v8694
        %v9051 = vpack.c.b16 %v8697, %v8695
        %v9052 = vpack.c.b16 %v8700, %v8698
        %v9053 = vpack.c.b16 %v8701, %v8699
        %v9054 = vpack.c.b16 %v8704, %v8702
        %v9055 = vpack.c.b16 %v8705, %v8703
        %v9056 = vpack.c.b16 %v8708, %v8706
        %v9057 = vpack.c.b16 %v8709, %v8707
        %v9058 = vpack.c.b16 %v8712, %v8710
        %v9059 = vpack.c.b16 %v8713, %v8711
        %v9060 = vpack.c.b16 %v8716, %v8714
        %v9061 = vpack.c.b16 %v8717, %v8715
        %v9062 = vpack.c.b16 %v8720, %v8718
        %v9063 = vpack.c.b16 %v8721, %v8719
        %v9064 = vpack.c.b16 %v8724, %v8722
        %v9065 = vpack.c.b16 %v8725, %v8723
        %v9066 = vpack.c.b16 %v8728, %v8726
        %v9067 = vpack.c.b16 %v8729, %v8727
        %v9068 = vpack.c.b16 %v8732, %v8730
        %v9069 = vpack.c.b16 %v8733, %v8731
        %v9070 = vpack.c.b16 %v8736, %v8734
        %v9071 = vpack.c.b16 %v8737, %v8735
        %v9072 = vpack.c.b16 %v8740, %v8738
        %v9073 = vpack.c.b16 %v8741, %v8739
        %v9074 = vpack.c.b16 %v8744, %v8742
        %v9075 = vpack.c.b16 %v8745, %v8743
        %v9076 = vpack.c.b16 %v8748, %v8746
        %v9077 = vpack.c.b16 %v8749, %v8747
        %v9078 = vpack.c.b16 %v8752, %v8750
        %v9079 = vpack.c.b16 %v8753, %v8751
        %v9080 = vpack.c.b16 %v8756, %v8754
        %v9081 = vpack.c.b16 %v8757, %v8755
        %v9407 = vlaneseq
        %v9408 = vshrl.u32 %v9407, 7
        %v9409 = vsub.s32 0, %v9408
        %v9410 = vrot.slane %v7785, %v9409
        %v9411 = vlaneseq
        %v9412 = vshrl.u32 %v9411, 7
        %v9413 = vsub.s32 1, %v9412
        %v9414 = vrot.slane %v7785, %v9413
        %v9418 = vsel %vm7063, %v7019, 0
        %9420 = vmatprep.subr.bf16.mxu0 %v8759
        %9421 = vmatpush1.bf16.msra.mxu0 %v8758
        %9422 = vmatprep.subr.bf16.mxu0 %v8761
        %9423 = vmatpush1.bf16.msra.mxu0 %v8760
        %9424 = vmatprep.subr.bf16.mxu0 %v8763
        %9425 = vmatpush1.bf16.msra.mxu0 %v8762
        %9426 = vmatprep.subr.bf16.mxu0 %v8765
        %9427 = vmatpush1.bf16.msra.mxu0 %v8764
        %9428 = vmatprep.subr.bf16.mxu0 %v8767
        %9429 = vmatpush1.bf16.msra.mxu0 %v8766
        %9430 = vmatprep.subr.bf16.mxu0 %v8769
        %9431 = vmatpush1.bf16.msra.mxu0 %v8768
        %9432 = vmatprep.subr.bf16.mxu0 %v8771
        %9433 = vmatpush1.bf16.msra.mxu0 %v8770
        %9434 = vmatprep.subr.bf16.mxu0 %v8773
        %9435 = vmatpush1.bf16.msra.mxu0 %v8772
        %9436 = vmatprep.subr.bf16.mxu0 %v8775
        %9437 = vmatpush1.bf16.msra.mxu0 %v8774
        %9438 = vmatprep.subr.bf16.mxu0 %v8777
        %9439 = vmatpush1.bf16.msra.mxu0 %v8776
        %9440 = vmatprep.subr.bf16.mxu0 %v8779
        %9441 = vmatpush1.bf16.msra.mxu0 %v8778
        %9442 = vmatprep.subr.bf16.mxu0 %v8781
        %9443 = vmatpush1.bf16.msra.mxu0 %v8780
        %9444 = vmatprep.subr.bf16.mxu0 %v8783
        %9445 = vmatpush1.bf16.msra.mxu0 %v8782
        %9446 = vmatprep.subr.bf16.mxu0 %v8785
        %9447 = vmatpush1.bf16.msra.mxu0 %v8784
        %9448 = vmatprep.subr.bf16.mxu0 %v8787
        %9449 = vmatpush1.bf16.msra.mxu0 %v8786
        %9450 = vmatprep.subr.bf16.mxu0 %v8789
        %9451 = vmatpush1.bf16.msra.mxu0 %v8788
        %9452 = vmatprep.mubr.bf16.mxu0 %v7079
        %9453 = vmatmul.mubr.bf16.gmra.mrb[0].mxu0 %v7071
        %v9454 = vpop.f32.mrb[0].mxu0
        %v9455 = vadd.f32 %v9410, %v9454
        %v9456 = vpop.f32.mrb[0].mxu0
        %v9457 = vadd.f32 %v9414, %v9456
        %v9458 = vpop.f32.mrb[0].mxu0
        %v9459 = vpop.f32.mrb[0].mxu0
        %9460 = vdwg.mxu0
        %9461 = vmatprep.subr.bf16.mxu0 %v8791
        %9462 = vmatpush1.bf16.msra.mxu0 %v8790
        %9463 = vmatprep.subr.bf16.mxu0 %v8793
        %9464 = vmatpush1.bf16.msra.mxu0 %v8792
        %9465 = vmatprep.subr.bf16.mxu0 %v8795
        %9466 = vmatpush1.bf16.msra.mxu0 %v8794
        %9467 = vmatprep.subr.bf16.mxu0 %v8797
        %9468 = vmatpush1.bf16.msra.mxu0 %v8796
        %9469 = vmatprep.subr.bf16.mxu0 %v8799
        %9470 = vmatpush1.bf16.msra.mxu0 %v8798
        %9471 = vmatprep.subr.bf16.mxu0 %v8801
        %9472 = vmatpush1.bf16.msra.mxu0 %v8800
        %9473 = vmatprep.subr.bf16.mxu0 %v8803
        %9474 = vmatpush1.bf16.msra.mxu0 %v8802
        %9475 = vmatprep.subr.bf16.mxu0 %v8805
        %9476 = vmatpush1.bf16.msra.mxu0 %v8804
        %9477 = vmatprep.subr.bf16.mxu0 %v8807
        %9478 = vmatpush1.bf16.msra.mxu0 %v8806
        %9479 = vmatprep.subr.bf16.mxu0 %v8809
        %9480 = vmatpush1.bf16.msra.mxu0 %v8808
        %9481 = vmatprep.subr.bf16.mxu0 %v8811
        %9482 = vmatpush1.bf16.msra.mxu0 %v8810
        %9483 = vmatprep.subr.bf16.mxu0 %v8813
        %9484 = vmatpush1.bf16.msra.mxu0 %v8812
        %9485 = vmatprep.subr.bf16.mxu0 %v8815
        %9486 = vmatpush1.bf16.msra.mxu0 %v8814
        %9487 = vmatprep.subr.bf16.mxu0 %v8817
        %9488 = vmatpush1.bf16.msra.mxu0 %v8816
        %9489 = vmatprep.subr.bf16.mxu0 %v8819
        %9490 = vmatpush1.bf16.msra.mxu0 %v8818
        %9491 = vmatprep.subr.bf16.mxu0 %v8821
        %9492 = vmatpush1.bf16.msra.mxu0 %v8820
        %9493 = vmatprep.mubr.bf16.mxu0 %v7095
        %9494 = vmatmul.mubr.bf16.gmra.mrb[0].mxu0 %v7087
        %v9495 = vpop.f32.mrb[0].mxu0
        %v9496 = vadd.f32 %v9455, %v9495
        %v9497 = vpop.f32.mrb[0].mxu0
        %v9498 = vadd.f32 %v9457, %v9497
        %v9499 = vpop.f32.mrb[0].mxu0
        %v9500 = vpop.f32.mrb[0].mxu0
        %9501 = vdwg.mxu0
        %9502 = vmatprep.subr.bf16.mxu0 %v8823
        %9503 = vmatpush1.bf16.msra.mxu0 %v8822
        %9504 = vmatprep.subr.bf16.mxu0 %v8825
        %9505 = vmatpush1.bf16.msra.mxu0 %v8824
        %9506 = vmatprep.subr.bf16.mxu0 %v8827
        %9507 = vmatpush1.bf16.msra.mxu0 %v8826
        %9508 = vmatprep.subr.bf16.mxu0 %v8829
        %9509 = vmatpush1.bf16.msra.mxu0 %v8828
        %9510 = vmatprep.subr.bf16.mxu0 %v8831
        %9511 = vmatpush1.bf16.msra.mxu0 %v8830
        %9512 = vmatprep.subr.bf16.mxu0 %v8833
        %9513 = vmatpush1.bf16.msra.mxu0 %v8832
        %9514 = vmatprep.subr.bf16.mxu0 %v8835
        %9515 = vmatpush1.bf16.msra.mxu0 %v8834
        %9516 = vmatprep.subr.bf16.mxu0 %v8837
        %9517 = vmatpush1.bf16.msra.mxu0 %v8836
        %9518 = vmatprep.subr.bf16.mxu0 %v8839
        %9519 = vmatpush1.bf16.msra.mxu0 %v8838
        %9520 = vmatprep.subr.bf16.mxu0 %v8841
        %9521 = vmatpush1.bf16.msra.mxu0 %v8840
        %9522 = vmatprep.subr.bf16.mxu0 %v8843
        %9523 = vmatpush1.bf16.msra.mxu0 %v8842
        %9524 = vmatprep.subr.bf16.mxu0 %v8845
        %9525 = vmatpush1.bf16.msra.mxu0 %v8844
        %9526 = vmatprep.subr.bf16.mxu0 %v8847
        %9527 = vmatpush1.bf16.msra.mxu0 %v8846
        %9528 = vmatprep.subr.bf16.mxu0 %v8849
        %9529 = vmatpush1.bf16.msra.mxu0 %v8848
        %9530 = vmatprep.subr.bf16.mxu0 %v8851
        %9531 = vmatpush1.bf16.msra.mxu0 %v8850
        %9532 = vmatprep.subr.bf16.mxu0 %v8853
        %9533 = vmatpush1.bf16.msra.mxu0 %v8852
        %9534 = vmatprep.mubr.bf16.mxu0 %v7406
        %9535 = vmatmul.mubr.bf16.gmra.mrb[0].mxu0 %v7403
        %v9536 = vpop.f32.mrb[0].mxu0
        %v9537 = vadd.f32 %v9496, %v9536
        %v9538 = vpop.f32.mrb[0].mxu0
        %v9539 = vadd.f32 %v9498, %v9538
        %v9540 = vpop.f32.mrb[0].mxu0
        %v9541 = vpop.f32.mrb[0].mxu0
        %9542 = vdwg.mxu0
        %9543 = vmatprep.subr.bf16.mxu0 %v8855
        %9544 = vmatpush1.bf16.msra.mxu0 %v8854
        %9545 = vmatprep.subr.bf16.mxu0 %v8857
        %9546 = vmatpush1.bf16.msra.mxu0 %v8856
        %9547 = vmatprep.subr.bf16.mxu0 %v8859
        %9548 = vmatpush1.bf16.msra.mxu0 %v8858
        %9549 = vmatprep.subr.bf16.mxu0 %v8861
        %9550 = vmatpush1.bf16.msra.mxu0 %v8860
        %9551 = vmatprep.subr.bf16.mxu0 %v8863
        %9552 = vmatpush1.bf16.msra.mxu0 %v8862
        %9553 = vmatprep.subr.bf16.mxu0 %v8865
        %9554 = vmatpush1.bf16.msra.mxu0 %v8864
        %9555 = vmatprep.subr.bf16.mxu0 %v8867
        %9556 = vmatpush1.bf16.msra.mxu0 %v8866
        %9557 = vmatprep.subr.bf16.mxu0 %v8869
        %9558 = vmatpush1.bf16.msra.mxu0 %v8868
        %9559 = vmatprep.subr.bf16.mxu0 %v8871
        %9560 = vmatpush1.bf16.msra.mxu0 %v8870
        %9561 = vmatprep.subr.bf16.mxu0 %v8873
        %9562 = vmatpush1.bf16.msra.mxu0 %v8872
        %9563 = vmatprep.subr.bf16.mxu0 %v8875
        %9564 = vmatpush1.bf16.msra.mxu0 %v8874
        %9565 = vmatprep.subr.bf16.mxu0 %v8877
        %9566 = vmatpush1.bf16.msra.mxu0 %v8876
        %9567 = vmatprep.subr.bf16.mxu0 %v8879
        %9568 = vmatpush1.bf16.msra.mxu0 %v8878
        %9569 = vmatprep.subr.bf16.mxu0 %v8881
        %9570 = vmatpush1.bf16.msra.mxu0 %v8880
        %9571 = vmatprep.subr.bf16.mxu0 %v8883
        %9572 = vmatpush1.bf16.msra.mxu0 %v8882
        %9573 = vmatprep.subr.bf16.mxu0 %v8885
        %9574 = vmatpush1.bf16.msra.mxu0 %v8884
        %9575 = vmatprep.mubr.bf16.mxu0 %v7412
        %9576 = vmatmul.mubr.bf16.gmra.mrb[0].mxu0 %v7409
        %v9577 = vpop.f32.mrb[0].mxu0
        %v9578 = vadd.f32 %v9537, %v9577
        %v9579 = vpop.f32.mrb[0].mxu0
        %v9580 = vadd.f32 %v9539, %v9579
        %v9581 = vpop.f32.mrb[0].mxu0
        %v9582 = vpop.f32.mrb[0].mxu0
        %9583 = vdwg.mxu0
        %9584 = vmatprep.subr.bf16.mxu0 %v8887
        %9585 = vmatpush1.bf16.msra.mxu0 %v8886
        %9586 = vmatprep.subr.bf16.mxu0 %v8889
        %9587 = vmatpush1.bf16.msra.mxu0 %v8888
        %9588 = vmatprep.subr.bf16.mxu0 %v8891
        %9589 = vmatpush1.bf16.msra.mxu0 %v8890
        %9590 = vmatprep.subr.bf16.mxu0 %v8893
        %9591 = vmatpush1.bf16.msra.mxu0 %v8892
        %9592 = vmatprep.subr.bf16.mxu0 %v8895
        %9593 = vmatpush1.bf16.msra.mxu0 %v8894
        %9594 = vmatprep.subr.bf16.mxu0 %v8897
        %9595 = vmatpush1.bf16.msra.mxu0 %v8896
        %9596 = vmatprep.subr.bf16.mxu0 %v8899
        %9597 = vmatpush1.bf16.msra.mxu0 %v8898
        %9598 = vmatprep.subr.bf16.mxu0 %v8901
        %9599 = vmatpush1.bf16.msra.mxu0 %v8900
        %9600 = vmatprep.subr.bf16.mxu0 %v8903
        %9601 = vmatpush1.bf16.msra.mxu0 %v8902
        %9602 = vmatprep.subr.bf16.mxu0 %v8905
        %9603 = vmatpush1.bf16.msra.mxu0 %v8904
        %9604 = vmatprep.subr.bf16.mxu0 %v8907
        %9605 = vmatpush1.bf16.msra.mxu0 %v8906
        %9606 = vmatprep.subr.bf16.mxu0 %v8909
        %9607 = vmatpush1.bf16.msra.mxu0 %v8908
        %9608 = vmatprep.subr.bf16.mxu0 %v8911
        %9609 = vmatpush1.bf16.msra.mxu0 %v8910
        %9610 = vmatprep.subr.bf16.mxu0 %v8913
        %9611 = vmatpush1.bf16.msra.mxu0 %v8912
        %9612 = vmatprep.subr.bf16.mxu0 %v8915
        %9613 = vmatpush1.bf16.msra.mxu0 %v8914
        %9614 = vmatprep.subr.bf16.mxu0 %v8917
        %9615 = vmatpush1.bf16.msra.mxu0 %v8916
        %9616 = vmatprep.mubr.bf16.mxu0 %v7422
        %9617 = vmatmul.mubr.bf16.gmra.mrb[0].mxu0 %v7419
        %v9618 = vpop.f32.mrb[0].mxu0
        %v9619 = vadd.f32 %v9578, %v9618
        %v9620 = vpop.f32.mrb[0].mxu0
        %v9621 = vadd.f32 %v9580, %v9620
        %v9622 = vpop.f32.mrb[0].mxu0
        %v9623 = vpop.f32.mrb[0].mxu0
        %9624 = vdwg.mxu0
        %9625 = vmatprep.subr.bf16.mxu0 %v8919
        %9626 = vmatpush1.bf16.msra.mxu0 %v8918
        %9627 = vmatprep.subr.bf16.mxu0 %v8921
        %9628 = vmatpush1.bf16.msra.mxu0 %v8920
        %9629 = vmatprep.subr.bf16.mxu0 %v8923
        %9630 = vmatpush1.bf16.msra.mxu0 %v8922
        %9631 = vmatprep.subr.bf16.mxu0 %v8925
        %9632 = vmatpush1.bf16.msra.mxu0 %v8924
        %9633 = vmatprep.subr.bf16.mxu0 %v8927
        %9634 = vmatpush1.bf16.msra.mxu0 %v8926
        %9635 = vmatprep.subr.bf16.mxu0 %v8929
        %9636 = vmatpush1.bf16.msra.mxu0 %v8928
        %9637 = vmatprep.subr.bf16.mxu0 %v8931
        %9638 = vmatpush1.bf16.msra.mxu0 %v8930
        %9639 = vmatprep.subr.bf16.mxu0 %v8933
        %9640 = vmatpush1.bf16.msra.mxu0 %v8932
        %9641 = vmatprep.subr.bf16.mxu0 %v8935
        %9642 = vmatpush1.bf16.msra.mxu0 %v8934
        %9643 = vmatprep.subr.bf16.mxu0 %v8937
        %9644 = vmatpush1.bf16.msra.mxu0 %v8936
        %9645 = vmatprep.subr.bf16.mxu0 %v8939
        %9646 = vmatpush1.bf16.msra.mxu0 %v8938
        %9647 = vmatprep.subr.bf16.mxu0 %v8941
        %9648 = vmatpush1.bf16.msra.mxu0 %v8940
        %9649 = vmatprep.subr.bf16.mxu0 %v8943
        %9650 = vmatpush1.bf16.msra.mxu0 %v8942
        %9651 = vmatprep.subr.bf16.mxu0 %v8945
        %9652 = vmatpush1.bf16.msra.mxu0 %v8944
        %9653 = vmatprep.subr.bf16.mxu0 %v8947
        %9654 = vmatpush1.bf16.msra.mxu0 %v8946
        %9655 = vmatprep.subr.bf16.mxu0 %v8949
        %9656 = vmatpush1.bf16.msra.mxu0 %v8948
        %9657 = vmatprep.mubr.bf16.mxu0 %v7428
        %9658 = vmatmul.mubr.bf16.gmra.mrb[0].mxu0 %v7425
        %v9659 = vpop.f32.mrb[0].mxu0
        %v9660 = vadd.f32 %v9619, %v9659
        %v9661 = vpop.f32.mrb[0].mxu0
        %v9662 = vadd.f32 %v9621, %v9661
        %v9663 = vpop.f32.mrb[0].mxu0
        %v9664 = vpop.f32.mrb[0].mxu0
        %9665 = vdwg.mxu0
        %9666 = vmatprep.subr.bf16.mxu0 %v8951
        %9667 = vmatpush1.bf16.msra.mxu0 %v8950
        %9668 = vmatprep.subr.bf16.mxu0 %v8953
        %9669 = vmatpush1.bf16.msra.mxu0 %v8952
        %9670 = vmatprep.subr.bf16.mxu0 %v8955
        %9671 = vmatpush1.bf16.msra.mxu0 %v8954
        %9672 = vmatprep.subr.bf16.mxu0 %v8957
        %9673 = vmatpush1.bf16.msra.mxu0 %v8956
        %9674 = vmatprep.subr.bf16.mxu0 %v8959
        %9675 = vmatpush1.bf16.msra.mxu0 %v8958
        %9676 = vmatprep.subr.bf16.mxu0 %v8961
        %9677 = vmatpush1.bf16.msra.mxu0 %v8960
        %9678 = vmatprep.subr.bf16.mxu0 %v8963
        %9679 = vmatpush1.bf16.msra.mxu0 %v8962
        %9680 = vmatprep.subr.bf16.mxu0 %v8965
        %9681 = vmatpush1.bf16.msra.mxu0 %v8964
        %9682 = vmatprep.subr.bf16.mxu0 %v8967
        %9683 = vmatpush1.bf16.msra.mxu0 %v8966
        %9684 = vmatprep.subr.bf16.mxu0 %v8969
        %9685 = vmatpush1.bf16.msra.mxu0 %v8968
        %9686 = vmatprep.subr.bf16.mxu0 %v8971
        %9687 = vmatpush1.bf16.msra.mxu0 %v8970
        %9688 = vmatprep.subr.bf16.mxu0 %v8973
        %9689 = vmatpush1.bf16.msra.mxu0 %v8972
        %9690 = vmatprep.subr.bf16.mxu0 %v8975
        %9691 = vmatpush1.bf16.msra.mxu0 %v8974
        %9692 = vmatprep.subr.bf16.mxu0 %v8977
        %9693 = vmatpush1.bf16.msra.mxu0 %v8976
        %9694 = vmatprep.subr.bf16.mxu0 %v8979
        %9695 = vmatpush1.bf16.msra.mxu0 %v8978
        %9696 = vmatprep.subr.bf16.mxu0 %v8981
        %9697 = vmatpush1.bf16.msra.mxu0 %v8980
        %9698 = vmatprep.mubr.bf16.mxu0 %v7438
        %9699 = vmatmul.mubr.bf16.gmra.mrb[0].mxu0 %v7435
        %v9700 = vpop.f32.mrb[0].mxu0
        %v9701 = vadd.f32 %v9660, %v9700
        %v9702 = vpop.f32.mrb[0].mxu0
        %v9703 = vadd.f32 %v9662, %v9702
        %v9704 = vpop.f32.mrb[0].mxu0
        %v9705 = vpop.f32.mrb[0].mxu0
        %9706 = vdwg.mxu0
        %9707 = vmatprep.subr.bf16.mxu0 %v8983
        %9708 = vmatpush1.bf16.msra.mxu0 %v8982
        %9709 = vmatprep.subr.bf16.mxu0 %v8985
        %9710 = vmatpush1.bf16.msra.mxu0 %v8984
        %9711 = vmatprep.subr.bf16.mxu0 %v8987
        %9712 = vmatpush1.bf16.msra.mxu0 %v8986
        %9713 = vmatprep.subr.bf16.mxu0 %v8989
        %9714 = vmatpush1.bf16.msra.mxu0 %v8988
        %9715 = vmatprep.subr.bf16.mxu0 %v8991
        %9716 = vmatpush1.bf16.msra.mxu0 %v8990
        %9717 = vmatprep.subr.bf16.mxu0 %v8993
        %9718 = vmatpush1.bf16.msra.mxu0 %v8992
        %9719 = vmatprep.subr.bf16.mxu0 %v8995
        %9720 = vmatpush1.bf16.msra.mxu0 %v8994
        %9721 = vmatprep.subr.bf16.mxu0 %v8997
        %9722 = vmatpush1.bf16.msra.mxu0 %v8996
        %9723 = vmatprep.subr.bf16.mxu0 %v8999
        %9724 = vmatpush1.bf16.msra.mxu0 %v8998
        %9725 = vmatprep.subr.bf16.mxu0 %v9001
        %9726 = vmatpush1.bf16.msra.mxu0 %v9000
        %9727 = vmatprep.subr.bf16.mxu0 %v9003
        %9728 = vmatpush1.bf16.msra.mxu0 %v9002
        %9729 = vmatprep.subr.bf16.mxu0 %v9005
        %9730 = vmatpush1.bf16.msra.mxu0 %v9004
        %9731 = vmatprep.subr.bf16.mxu0 %v9007
        %9732 = vmatpush1.bf16.msra.mxu0 %v9006
        %9733 = vmatprep.subr.bf16.mxu0 %v9009
        %9734 = vmatpush1.bf16.msra.mxu0 %v9008
        %9735 = vmatprep.subr.bf16.mxu0 %v9011
        %9736 = vmatpush1.bf16.msra.mxu0 %v9010
        %9737 = vmatprep.subr.bf16.mxu0 %v9013
        %9738 = vmatpush1.bf16.msra.mxu0 %v9012
        %9739 = vmatprep.mubr.bf16.mxu0 %v7444
        %9740 = vmatmul.mubr.bf16.gmra.mrb[0].mxu0 %v7441
        %v9741 = vpop.f32.mrb[0].mxu0
        %v9742 = vadd.f32 %v9701, %v9741
        %v9743 = vpop.f32.mrb[0].mxu0
        %v9744 = vadd.f32 %v9703, %v9743
        %v9745 = vpop.f32.mrb[0].mxu0
        %v9746 = vpop.f32.mrb[0].mxu0
        %9747 = vdwg.mxu0
        %9748 = vmatprep.subr.bf16.mxu0 %v9015
        %9749 = vmatpush1.bf16.msra.mxu0 %v9014
        %9750 = vmatprep.subr.bf16.mxu0 %v9017
        %9751 = vmatpush1.bf16.msra.mxu0 %v9016
        %9752 = vmatprep.subr.bf16.mxu0 %v9019
        %9753 = vmatpush1.bf16.msra.mxu0 %v9018
        %9754 = vmatprep.subr.bf16.mxu0 %v9021
        %9755 = vmatpush1.bf16.msra.mxu0 %v9020
        %9756 = vmatprep.subr.bf16.mxu0 %v9023
        %9757 = vmatpush1.bf16.msra.mxu0 %v9022
        %9758 = vmatprep.subr.bf16.mxu0 %v9025
        %9759 = vmatpush1.bf16.msra.mxu0 %v9024
        %9760 = vmatprep.subr.bf16.mxu0 %v9027
        %9761 = vmatpush1.bf16.msra.mxu0 %v9026
        %9762 = vmatprep.subr.bf16.mxu0 %v9029
        %9763 = vmatpush1.bf16.msra.mxu0 %v9028
        %9764 = vmatprep.subr.bf16.mxu0 %v9031
        %9765 = vmatpush1.bf16.msra.mxu0 %v9030
        %9766 = vmatprep.subr.bf16.mxu0 %v9033
        %9767 = vmatpush1.bf16.msra.mxu0 %v9032
        %9768 = vmatprep.subr.bf16.mxu0 %v9035
        %9769 = vmatpush1.bf16.msra.mxu0 %v9034
        %9770 = vmatprep.subr.bf16.mxu0 %v9037
        %9771 = vmatpush1.bf16.msra.mxu0 %v9036
        %9772 = vmatprep.subr.bf16.mxu0 %v9039
        %9773 = vmatpush1.bf16.msra.mxu0 %v9038
        %9774 = vmatprep.subr.bf16.mxu0 %v9041
        %9775 = vmatpush1.bf16.msra.mxu0 %v9040
        %9776 = vmatprep.subr.bf16.mxu0 %v9043
        %9777 = vmatpush1.bf16.msra.mxu0 %v9042
        %9778 = vmatprep.subr.bf16.mxu0 %v9045
        %9779 = vmatpush1.bf16.msra.mxu0 %v9044
        %9780 = vmatprep.mubr.bf16.mxu0 %v7451
        %9781 = vmatmul.mubr.bf16.gmra.mrb[0].mxu0 %v7449
        %v9782 = vpop.f32.mrb[0].mxu0
        %v9783 = vadd.f32 %v9742, %v9782
        %v9784 = vpop.f32.mrb[0].mxu0
        %v9785 = vadd.f32 %v9744, %v9784
        %v9786 = vpop.f32.mrb[0].mxu0
        %v9787 = vpop.f32.mrb[0].mxu0
        %9788 = vdwg.mxu0
        %9789 = vmatprep.subr.bf16.mxu0 %v9047
        %9790 = vmatpush1.bf16.msra.mxu0 %v9046
        %9791 = vmatprep.subr.bf16.mxu0 %v9049
        %9792 = vmatpush1.bf16.msra.mxu0 %v9048
        %9793 = vmatprep.subr.bf16.mxu0 %v9051
        %9794 = vmatpush1.bf16.msra.mxu0 %v9050
        %9795 = vmatprep.subr.bf16.mxu0 %v9053
        %9796 = vmatpush1.bf16.msra.mxu0 %v9052
        %9797 = vmatprep.subr.bf16.mxu0 %v9055
        %9798 = vmatpush1.bf16.msra.mxu0 %v9054
        %9799 = vmatprep.subr.bf16.mxu0 %v9057
        %9800 = vmatpush1.bf16.msra.mxu0 %v9056
        %9801 = vmatprep.subr.bf16.mxu0 %v9059
        %9802 = vmatpush1.bf16.msra.mxu0 %v9058
        %9803 = vmatprep.subr.bf16.mxu0 %v9061
        %9804 = vmatpush1.bf16.msra.mxu0 %v9060
        %9805 = vmatprep.subr.bf16.mxu0 %v9063
        %9806 = vmatpush1.bf16.msra.mxu0 %v9062
        %9807 = vmatprep.subr.bf16.mxu0 %v9065
        %9808 = vmatpush1.bf16.msra.mxu0 %v9064
        %9809 = vmatprep.subr.bf16.mxu0 %v9067
        %9810 = vmatpush1.bf16.msra.mxu0 %v9066
        %9811 = vmatprep.subr.bf16.mxu0 %v9069
        %9812 = vmatpush1.bf16.msra.mxu0 %v9068
        %9813 = vmatprep.subr.bf16.mxu0 %v9071
        %9814 = vmatpush1.bf16.msra.mxu0 %v9070
        %9815 = vmatprep.subr.bf16.mxu0 %v9073
        %9816 = vmatpush1.bf16.msra.mxu0 %v9072
        %9817 = vmatprep.subr.bf16.mxu0 %v9075
        %9818 = vmatpush1.bf16.msra.mxu0 %v9074
        %9819 = vmatprep.subr.bf16.mxu0 %v9077
        %9820 = vmatpush1.bf16.msra.mxu0 %v9076
        %9821 = vmatprep.mubr.bf16.mxu0 %v7455
        %9822 = vmatmul.mubr.bf16.gmra.mrb[0].mxu0 %v7453
        %v9823 = vpop.f32.mrb[0].mxu0
        %v9824 = vadd.f32 %v9783, %v9823
        %v9825 = vpop.f32.mrb[0].mxu0
        %v9826 = vadd.f32 %v9785, %v9825
        %v9827 = vpop.f32.mrb[0].mxu0
        %v9828 = vpop.f32.mrb[0].mxu0
        %9829 = vdwg.mxu0
        %9830 = vmatprep.subr.bf16.mxu0 %v9079
        %9831 = vmatpush1.bf16.msra.mxu0 %v9078
        %9832 = vmatprep.subr.bf16.mxu0 %v9081
        %9833 = vmatpush1.bf16.msra.mxu0 %v9080
        %9834 = vmatprep.subr.bf16.mxu0 0
        %9835 = vmatpush1.bf16.msra.mxu0 0
        %9836 = vmatprep.subr.bf16.mxu0 0
        %9837 = vmatpush1.bf16.msra.mxu0 0
        %9838 = vmatprep.subr.bf16.mxu0 0
        %9839 = vmatpush1.bf16.msra.mxu0 0
        %9840 = vmatprep.subr.bf16.mxu0 0
        %9841 = vmatpush1.bf16.msra.mxu0 0
        %9842 = vmatprep.subr.bf16.mxu0 0
        %9843 = vmatpush1.bf16.msra.mxu0 0
        %9844 = vmatprep.subr.bf16.mxu0 0
        %9845 = vmatpush1.bf16.msra.mxu0 0
        %9846 = vmatprep.subr.bf16.mxu0 0
        %9847 = vmatpush1.bf16.msra.mxu0 0
        %9848 = vmatprep.subr.bf16.mxu0 0
        %9849 = vmatpush1.bf16.msra.mxu0 0
        %9850 = vmatprep.subr.bf16.mxu0 0
        %9851 = vmatpush1.bf16.msra.mxu0 0
        %9852 = vmatprep.subr.bf16.mxu0 0
        %9853 = vmatpush1.bf16.msra.mxu0 0
        %9854 = vmatprep.subr.bf16.mxu0 0
        %9855 = vmatpush1.bf16.msra.mxu0 0
        %9856 = vmatprep.subr.bf16.mxu0 0
        %9857 = vmatpush1.bf16.msra.mxu0 0
        %9858 = vmatprep.subr.bf16.mxu0 0
        %9859 = vmatpush1.bf16.msra.mxu0 0
        %9860 = vmatprep.subr.bf16.mxu0 0
        %9861 = vmatpush1.bf16.msra.mxu0 0
        %9862 = vmatprep.mubr.bf16.mxu0 0
        %9863 = vmatmul.mubr.bf16.gmra.mrb[0].mxu0 %v9418
        %v9864 = vpop.f32.mrb[0].mxu0
        %v9865 = vadd.f32 %v9824, %v9864
        %v9866 = vpop.f32.mrb[0].mxu0
        %v9867 = vadd.f32 %v9826, %v9866
        %v9868 = vpop.f32.mrb[0].mxu0
        %v9869 = vpop.f32.mrb[0].mxu0
        %9870 = vdwg.mxu0
        %v9871 = vmax.f32 %v9865, 0.0
        %v9872 = vmax.f32 %v9867, 0.0
        %v9873 = vpack.c.bf16 %v9871, %v9871
        %v9874 = vpack.c.bf16 %v9872, %v9872
        %v9875 = vld [vmem:[%s7] sm:$0xf]
        %v9876 = vld [vmem:[%s7 + $0x4] sm:$0xf]
        %v9877 = vld [vmem:[%s7 + $0x8] sm:$0xf]
        %v9878 = vld [vmem:[%s7 + $0xc] sm:$0xf]
        %v9879 = vld [vmem:[%s7 + $0x10] sm:$0xf]
        %v9880 = vld [vmem:[%s7 + $0x14] sm:$0xf]
        %v9881 = vld [vmem:[%s7 + $0x18] sm:$0xf]
        %v9882 = vld [vmem:[%s7 + $0x1c] sm:$0xf]
        %v9883 = vld [vmem:[%s7 + $0x20] sm:$0xf]
        %v9884 = vld [vmem:[%s7 + $0x24] sm:$0xf]
        %v9885 = vld [vmem:[%s7 + $0x28] sm:$0xf]
        %v9886 = vld [vmem:[%s7 + $0x2c] sm:$0xf]
        %v9887 = vld [vmem:[%s7 + $0x30] sm:$0xf]
        %v9888 = vld [vmem:[%s7 + $0x34] sm:$0xf]
        %v9889 = vld [vmem:[%s7 + $0x38] sm:$0xf]
        %v9890 = vld [vmem:[%s7 + $0x3c] sm:$0xf]
        %v9891 = vld [vmem:[%s7 + $0x40] sm:$0xf]
        %v9892 = vld [vmem:[%s7 + $0x44] sm:$0xf]
        %v9893 = vld [vmem:[%s7 + $0x48] sm:$0xf]
        %v9894 = vld [vmem:[%s7 + $0x4c] sm:$0xf]
        %v9895 = vld [vmem:[%s7 + $0x50] sm:$0xf]
        %v9896 = vld [vmem:[%s7 + $0x54] sm:$0xf]
        %v9897 = vld [vmem:[%s7 + $0x58] sm:$0xf]
        %v9898 = vld [vmem:[%s7 + $0x5c] sm:$0xf]
        %v9899 = vld [vmem:[%s7 + $0x60] sm:$0xf]
        %v9900 = vld [vmem:[%s7 + $0x64] sm:$0xf]
        %v9901 = vld [vmem:[%s7 + $0x68] sm:$0xf]
        %v9902 = vld [vmem:[%s7 + $0x6c] sm:$0xf]
        %v9903 = vld [vmem:[%s7 + $0x70] sm:$0xf]
        %v9904 = vld [vmem:[%s7 + $0x74] sm:$0xf]
        %v9905 = vld [vmem:[%s7 + $0x78] sm:$0xf]
        %v9906 = vld [vmem:[%s7 + $0x7c] sm:$0xf]
        %v9907 = vld [vmem:[%s8] sm:$0x1]
        %v9940 = vunpack.c.l.b16 %v9875
        %v9941 = vunpack.c.l.b16 %v9876
        %v9942 = vunpack.c.l.b16 %v9877
        %v9943 = vunpack.c.l.b16 %v9878
        %v9944 = vunpack.c.l.b16 %v9879
        %v9945 = vunpack.c.l.b16 %v9880
        %v9946 = vunpack.c.l.b16 %v9881
        %v9947 = vunpack.c.l.b16 %v9882
        %v9948 = vunpack.c.l.b16 %v9883
        %v9949 = vunpack.c.l.b16 %v9884
        %v9950 = vunpack.c.l.b16 %v9885
        %v9951 = vunpack.c.l.b16 %v9886
        %v9952 = vunpack.c.l.b16 %v9887
        %v9953 = vunpack.c.l.b16 %v9888
        %v9954 = vunpack.c.l.b16 %v9889
        %v9955 = vunpack.c.l.b16 %v9890
        %v9956 = vunpack.c.l.b16 %v9891
        %v9957 = vunpack.c.l.b16 %v9892
        %v9958 = vunpack.c.l.b16 %v9893
        %v9959 = vunpack.c.l.b16 %v9894
        %v9960 = vunpack.c.l.b16 %v9895
        %v9961 = vunpack.c.l.b16 %v9896
        %v9962 = vunpack.c.l.b16 %v9897
        %v9963 = vunpack.c.l.b16 %v9898
        %v9964 = vunpack.c.l.b16 %v9899
        %v9965 = vunpack.c.l.b16 %v9900
        %v9966 = vunpack.c.l.b16 %v9901
        %v9967 = vunpack.c.l.b16 %v9902
        %v9968 = vunpack.c.l.b16 %v9903
        %v9969 = vunpack.c.l.b16 %v9904
        %v9970 = vunpack.c.l.b16 %v9905
        %v9971 = vunpack.c.l.b16 %v9906
        %v9972 = vpack.c.b16 %v9941, %v9940
        %v9973 = vpack.c.b16 %v9943, %v9942
        %v9974 = vpack.c.b16 %v9945, %v9944
        %v9975 = vpack.c.b16 %v9947, %v9946
        %v9976 = vpack.c.b16 %v9949, %v9948
        %v9977 = vpack.c.b16 %v9951, %v9950
        %v9978 = vpack.c.b16 %v9953, %v9952
        %v9979 = vpack.c.b16 %v9955, %v9954
        %v9980 = vpack.c.b16 %v9957, %v9956
        %v9981 = vpack.c.b16 %v9959, %v9958
        %v9982 = vpack.c.b16 %v9961, %v9960
        %v9983 = vpack.c.b16 %v9963, %v9962
        %v9984 = vpack.c.b16 %v9965, %v9964
        %v9985 = vpack.c.b16 %v9967, %v9966
        %v9986 = vpack.c.b16 %v9969, %v9968
        %v9987 = vpack.c.b16 %v9971, %v9970
        %10004 = vmatprep.subr.bf16.mxu0 0
        %10005 = vmatpush1.bf16.msra.mxu0 %v9972
        %10006 = vmatprep.subr.bf16.mxu0 0
        %10007 = vmatpush1.bf16.msra.mxu0 %v9973
        %10008 = vmatprep.subr.bf16.mxu0 0
        %10009 = vmatpush1.bf16.msra.mxu0 %v9974
        %10010 = vmatprep.subr.bf16.mxu0 0
        %10011 = vmatpush1.bf16.msra.mxu0 %v9975
        %10012 = vmatprep.subr.bf16.mxu0 0
        %10013 = vmatpush1.bf16.msra.mxu0 %v9976
        %10014 = vmatprep.subr.bf16.mxu0 0
        %10015 = vmatpush1.bf16.msra.mxu0 %v9977
        %10016 = vmatprep.subr.bf16.mxu0 0
        %10017 = vmatpush1.bf16.msra.mxu0 %v9978
        %10018 = vmatprep.subr.bf16.mxu0 0
        %10019 = vmatpush1.bf16.msra.mxu0 %v9979
        %10020 = vmatprep.subr.bf16.mxu0 0
        %10021 = vmatpush1.bf16.msra.mxu0 %v9980
        %10022 = vmatprep.subr.bf16.mxu0 0
        %10023 = vmatpush1.bf16.msra.mxu0 %v9981
        %10024 = vmatprep.subr.bf16.mxu0 0
        %10025 = vmatpush1.bf16.msra.mxu0 %v9982
        %10026 = vmatprep.subr.bf16.mxu0 0
        %10027 = vmatpush1.bf16.msra.mxu0 %v9983
        %10028 = vmatprep.subr.bf16.mxu0 0
        %10029 = vmatpush1.bf16.msra.mxu0 %v9984
        %10030 = vmatprep.subr.bf16.mxu0 0
        %10031 = vmatpush1.bf16.msra.mxu0 %v9985
        %10032 = vmatprep.subr.bf16.mxu0 0
        %10033 = vmatpush1.bf16.msra.mxu0 %v9986
        %10034 = vmatprep.subr.bf16.mxu0 0
        %10035 = vmatpush1.bf16.msra.mxu0 %v9987
        %10036 = vmatprep.mubr.bf16.mxu0 %v9874
        %10037 = vmatmul.mubr.bf16.gmra.mrb[0].mxu0 %v9873
        %v10038 = vpop.f32.mrb[0].mxu0
        %v10039 = vadd.f32 %v9907, %v10038
        %v10040 = vpop.f32.mrb[0].mxu0
        %v10041 = vpop.f32.mrb[0].mxu0
        %v10042 = vpop.f32.mrb[0].mxu0
        %10043 = vdwg.mxu0
        %10044 = vst [vmem:[%s324] sm:$0x1] %v10039
        %s10045 = sand.u32 %s225, 1
        %s10046 = scalar_lea.sflag [#allocation4], %s10045
        %s10047 = sand.u32 %s225, 1
        %s10048 = scalar_lea.vmem [#allocation3], %s10047
        // Predicated region
        $region57: #{dqn_forward.1} parent=55 // pred_check
          %p10049 = pneg %p235
        $region58: #{dqn_forward.1} parent=55 // pred_check_branch
          %10051 = sbr.rel (%p10049) target = $region60
        $region59: #{dqn_forward.1} parent=55 // pred_region
          %s10053 = ssub.s32 16, 16
          %10054 = vsyncadd %s10046, %s10053
          %s10055 = smul.addr %s23, 16
          %s10056 = scalar_lea.hbm %s9, %s10055
          %s10058 = sshll.u32 %s10048, 4
          %s10059 = int_to_ptr.vmem [resolvable:$true] %s10058
          %10061 = dma.vmem_to_hbm [thread:$0]  %s10059, 16, %s10056, %s10046
        $region60: #{dqn_forward.1} parent=55 // pred_fallthru
          _
      $region56: #{dqn_forward.1} parent=5 // pred_fallthru
        _
      %p10062 = scmp.le.s32.totalorder 2, %s18
      // Predicated region
      $region61: #{dqn_forward.1} parent=5 // pred_check
        %p10063 = pneg %p10062
      $region62: #{dqn_forward.1} parent=5 // pred_check_branch
        %10065 = sbr.rel (%p10063) target = $region64
      $region63: #{dqn_forward.1} parent=5 // pred_region
        %s10066 = ssub.s32 %s18, 2
        // Predicated region
        $region65: #{dqn_forward.1} parent=63 // pred_check
          %p10067 = pneg %p241
        $region66: #{dqn_forward.1} parent=63 // pred_check_branch
          %10069 = sbr.rel (%p10067) target = $region68
        $region67: #{dqn_forward.1} parent=63 // pred_region
          %s10070 = sand.u32 %s226, 1
          %s10071 = scalar_lea.sflag [#allocation4], %s10070
          %s10072 = sand.u32 %s226, 1
          %s10073 = scalar_lea.vmem [#allocation3], %s10072
          %10074 = dma.done %s10071, 16
        $region68: #{dqn_forward.1} parent=63 // pred_fallthru
          _
      $region64: #{dqn_forward.1} parent=5 // pred_fallthru
        _
    $region6: #{dqn_forward.1} parent=1 // loop_footer
      %s22 = sadd.s32 1, %s18
    $region7: #{dqn_forward.1} parent=1 // loop_footer_branch
      %17 = sbr.rel target = $region3
    $region8: #{dqn_forward.1} parent=1 // loop_exit
      _
    %10075 = vsyncpa [#allocation4], 1
    %s10076 = scalar_lea.sflag [#allocation4], 1
    %10077 = vsyncpa %s10076, 1

</llo_original>
